<compile_context>
chip_gen: v7x
topology: tpu7x:2x2x1
jax: 0.10.0
libtpu: 0.0.40
codegen_flags: <defaults>
</compile_context>

<pallas_src>
import functools

import jax
import jax.numpy as jnp
from jax.experimental import pallas as pl
from jax.experimental.pallas import tpu as pltpu


# ----------------------------------------------------------------------------
# Fused kernel: whole DecoupledHead forward for one batch image per grid step.
# ----------------------------------------------------------------------------
def _fused_head_kernel(
    x_ref,                      # (1, H, W, C)      bf16
    w_stem_ref, b_stem_ref,     # (9C, 2C) bf16, (1, 2C) f32   (cls1 | reg1)
    w_c2_ref, b_c2_ref,         # (9C, C)  bf16, (1, C)  f32   cls conv 2
    w_reg_ref, b_reg_ref,       # (3, 9C, C) bf16, (3, 1, C) f32  reg convs 2..4
    w_clsp_ref, b_clsp_ref,     # (9C, K)  bf16, (1, K)  f32   cls_pred
    w_or_ref, b_or_ref,         # (9C, 5)  bf16, (1, 5)  f32   (obj | reg_pred)
    out_ref,                    # (1, H*W, K+4)     f32        (norm_cls | reg)
    pad_cls, pad_reg,           # scratch: (H+2, W+2, C) bf16
    *, H, W, C, K,
):
    HW = H * W

    def im2col(pad_ref):
        # Build (HW, 9*C) patch matrix from the zero-padded activation buffer.
        taps = []
        for dy in range(3):
            for dx in range(3):
                taps.append(pad_ref[dy:dy + H, dx:dx + W, :].reshape(HW, C))
        return jnp.concatenate(taps, axis=-1)                    # bf16 (HW, 9C)

    def conv(pad_ref, w, b, relu):
        acc = jnp.dot(im2col(pad_ref), w,
                      preferred_element_type=jnp.float32) + b    # f32 (HW, Cout)
        if relu:
            acc = jnp.maximum(acc, 0.0)
        return acc

    def set_interior(pad_ref, act):                              # act: (HW, C) f32
        pad_ref[1:H + 1, 1:W + 1, :] = act.astype(jnp.bfloat16).reshape(H, W, C)

    # Zero the padded buffers once per image (border must be zero; the
    # interior is fully overwritten by every layer).
    pad_cls[...] = jnp.zeros_like(pad_cls)
    pad_reg[...] = jnp.zeros_like(pad_reg)

    # --- stem: first cls conv + first reg conv share x -> one matmul --------
    pad_cls[1:H + 1, 1:W + 1, :] = x_ref[0]
    stem = conv(pad_cls, w_stem_ref[...], b_stem_ref[...], relu=True)  # (HW, 2C)

    # --- cls branch: conv2 -> cls_feats -> cls_pred --------------------------
    set_interior(pad_cls, stem[:, :C])
    cls_feats = conv(pad_cls, w_c2_ref[...], b_c2_ref[...], relu=True)
    set_interior(pad_cls, cls_feats)
    cls_logit = conv(pad_cls, w_clsp_ref[...], b_clsp_ref[...], relu=False)  # (HW, K)

    # --- reg branch: conv2..4 -> reg_feats -> fused (obj | reg) pred ---------
    set_interior(pad_reg, stem[:, C:])
    for i in range(3):
        act = conv(pad_reg, w_reg_ref[i], b_reg_ref[i], relu=True)
        set_interior(pad_reg, act)
    objreg = conv(pad_reg, w_or_ref[...], b_or_ref[...], relu=False)     # (HW, 5)
    obj = objreg[:, 0:1]
    reg = objreg[:, 1:5]

    # --- fused normalization (f32; exp/log on the EUP slot) ------------------
    #   norm = cls + obj - log(1 + min(exp(cls), 1e8) + min(exp(obj), 1e8))
    ec = jnp.minimum(jnp.exp(cls_logit), 1e8)
    eo = jnp.minimum(jnp.exp(obj), 1e8)
    norm = cls_logit + obj - jnp.log(1.0 + ec + eo)

    out_ref[0] = jnp.concatenate([norm, reg], axis=-1).astype(out_ref.dtype)


# ----------------------------------------------------------------------------
# Parameter init (deterministic, synthetic) and weight packing.
# ----------------------------------------------------------------------------
def init_params(key, head_dim, num_classes):
    def conv_params(k, cin, cout, std=0.01):
        w = jax.random.normal(k, (3, 3, cin, cout), jnp.float32) * std
        b = jnp.zeros((1, cout), jnp.float32)
        return w, b

    keys = jax.random.split(key, 9)
    return {
        "cls_feats": [conv_params(keys[i], head_dim, head_dim) for i in range(2)],
        "reg_feats": [conv_params(keys[2 + i], head_dim, head_dim) for i in range(4)],
        "obj_pred": conv_params(keys[6], head_dim, 1),
        "cls_pred": conv_params(keys[7], head_dim, num_classes),
        "reg_pred": conv_params(keys[8], head_dim, 4),
    }


def _flat(w):
    # (3, 3, Cin, Cout) -> (9*Cin, Cout); row index = (dy*3+dx)*Cin + cin,
    # matching the im2col column order inside the kernel.
    kh, kw, cin, cout = w.shape
    return w.reshape(kh * kw * cin, cout)


def _pack_params(params):
    bf = jnp.bfloat16
    w_stem = jnp.concatenate([_flat(params["cls_feats"][0][0]),
                              _flat(params["reg_feats"][0][0])], axis=-1).astype(bf)
    b_stem = jnp.concatenate([params["cls_feats"][0][1],
                              params["reg_feats"][0][1]], axis=-1)
    w_c2 = _flat(params["cls_feats"][1][0]).astype(bf)
    b_c2 = params["cls_feats"][1][1]
    w_reg = jnp.stack([_flat(params["reg_feats"][i][0]) for i in range(1, 4)]).astype(bf)
    b_reg = jnp.stack([params["reg_feats"][i][1] for i in range(1, 4)])
    w_clsp = _flat(params["cls_pred"][0]).astype(bf)
    b_clsp = params["cls_pred"][1]
    w_or = jnp.concatenate([_flat(params["obj_pred"][0]),
                            _flat(params["reg_pred"][0])], axis=-1).astype(bf)
    b_or = jnp.concatenate([params["obj_pred"][1], params["reg_pred"][1]], axis=-1)
    return (w_stem, b_stem, w_c2, b_c2, w_reg, b_reg,
            w_clsp, b_clsp, w_or, b_or)


# ----------------------------------------------------------------------------
# Forward pass.
# ----------------------------------------------------------------------------
def decoupled_head_forward(params, x_nchw, num_classes):
    """x_nchw: (B, head_dim, H, W) -> (cls: (B, H*W, K), reg: (B, H*W, 4))."""
    x = jnp.transpose(x_nchw, (0, 2, 3, 1)).astype(jnp.bfloat16)   # NCHW -> NHWC
    B, H, W, C = x.shape
    K = num_classes
    packed = _pack_params(params)

    const2 = lambda b: (0, 0)
    const3 = lambda b: (0, 0, 0)

    out = pl.pallas_call(
        functools.partial(_fused_head_kernel, H=H, W=W, C=C, K=K),
        grid=(B,),
        in_specs=[
            pl.BlockSpec((1, H, W, C), lambda b: (b, 0, 0, 0)),   # x
            pl.BlockSpec((9 * C, 2 * C), const2),                 # w_stem
            pl.BlockSpec((1, 2 * C), const2),                     # b_stem
            pl.BlockSpec((9 * C, C), const2),                     # w_c2
            pl.BlockSpec((1, C), const2),                         # b_c2
            pl.BlockSpec((3, 9 * C, C), const3),                  # w_reg
            pl.BlockSpec((3, 1, C), const3),                      # b_reg
            pl.BlockSpec((9 * C, K), const2),                     # w_clsp
            pl.BlockSpec((1, K), const2),                         # b_clsp
            pl.BlockSpec((9 * C, 5), const2),                     # w_or
            pl.BlockSpec((1, 5), const2),                         # b_or
        ],
        out_specs=pl.BlockSpec((1, H * W, K + 4), lambda b: (b, 0, 0)),
        out_shape=jax.ShapeDtypeStruct((B, H * W, K + 4), jnp.float32),
        scratch_shapes=[
            pltpu.VMEM((H + 2, W + 2, C), jnp.bfloat16),   # cls-branch pad buf
            pltpu.VMEM((H + 2, W + 2, C), jnp.bfloat16),   # reg-branch pad buf
        ],
        compiler_params=pltpu.CompilerParams(
            dimension_semantics=("parallel",)),            # batch halves -> 2 TCs on v7x
    )(x, *packed)

    normalized_cls_pred = out[:, :, :K]
    reg_pred = out[:, :, K:]
    return normalized_cls_pred, reg_pred


if __name__ == "__main__":
    # Small, module-consistent shapes: batch=2, head_dim=32, spatial=8x8,
    # num_classes=8, num_anchors=1.
    B, head_dim, H, W, num_classes = 2, 32, 8, 8, 8

    key = jax.random.PRNGKey(0)
    kx, kp = jax.random.split(key)
    x = jax.random.normal(kx, (B, head_dim, H, W), jnp.float32)   # NCHW input
    params = init_params(kp, head_dim, num_classes)

    fwd = jax.jit(functools.partial(decoupled_head_forward,
                                    num_classes=num_classes))
    cls_out, reg_out = fwd(params, x)
    jax.block_until_ready((cls_out, reg_out))

    assert cls_out.shape == (B, H * W, num_classes)
    assert reg_out.shape == (B, H * W, 4)
    assert bool(jnp.isfinite(cls_out).all())
    assert bool(jnp.isfinite(reg_out).all())
    print("KERNEL_OK")
</pallas_src>

<mosaic_0001>
module attributes {stable_mosaic.version = 11 : i64} {
  func.func @_fused_head_kernel(%arg0: i32, %arg1: memref<1x8x8x32xbf16, #tpu.memory_space<vmem>>, %arg2: memref<288x64xbf16, #tpu.memory_space<vmem>>, %arg3: memref<1x64xf32, #tpu.memory_space<vmem>>, %arg4: memref<288x32xbf16, #tpu.memory_space<vmem>>, %arg5: memref<1x32xf32, #tpu.memory_space<vmem>>, %arg6: memref<3x288x32xbf16, #tpu.memory_space<vmem>>, %arg7: memref<3x1x32xf32, #tpu.memory_space<vmem>>, %arg8: memref<288x8xbf16, #tpu.memory_space<vmem>>, %arg9: memref<1x8xf32, #tpu.memory_space<vmem>>, %arg10: memref<288x5xbf16, #tpu.memory_space<vmem>>, %arg11: memref<1x5xf32, #tpu.memory_space<vmem>>, %arg12: memref<1x64x12xf32, #tpu.memory_space<vmem>>, %arg13: memref<10x10x32xbf16, #tpu.memory_space<vmem>>, %arg14: memref<10x10x32xbf16, #tpu.memory_space<vmem>>) attributes {dimension_semantics = [#tpu.dimension_semantics<parallel>], iteration_bounds = array<i64: 2>, scalar_prefetch = 0 : i64, scratch_operands = 2 : i64, tpu.core_type = #tpu.core_type<tc>, window_params = [{transform_indices = @transform_0, window_bounds = array<i64: 1, 8, 8, 32>}, {pipeline_mode = #tpu.pipeline_mode<synchronous>, transform_indices = @transform_1, window_bounds = array<i64: 288, 64>}, {pipeline_mode = #tpu.pipeline_mode<synchronous>, transform_indices = @transform_2, window_bounds = array<i64: 1, 64>}, {pipeline_mode = #tpu.pipeline_mode<synchronous>, transform_indices = @transform_3, window_bounds = array<i64: 288, 32>}, {pipeline_mode = #tpu.pipeline_mode<synchronous>, transform_indices = @transform_4, window_bounds = array<i64: 1, 32>}, {pipeline_mode = #tpu.pipeline_mode<synchronous>, transform_indices = @transform_5, window_bounds = array<i64: 3, 288, 32>}, {pipeline_mode = #tpu.pipeline_mode<synchronous>, transform_indices = @transform_6, window_bounds = array<i64: 3, 1, 32>}, {pipeline_mode = #tpu.pipeline_mode<synchronous>, transform_indices = @transform_7, window_bounds = array<i64: 288, 8>}, {pipeline_mode = #tpu.pipeline_mode<synchronous>, transform_indices = @transform_8, window_bounds = array<i64: 1, 8>}, {pipeline_mode = #tpu.pipeline_mode<synchronous>, transform_indices = @transform_9, window_bounds = array<i64: 288, 5>}, {pipeline_mode = #tpu.pipeline_mode<synchronous>, transform_indices = @transform_10, window_bounds = array<i64: 1, 5>}, {transform_indices = @transform_11, window_bounds = array<i64: 1, 64, 12>}]} {
    %cst = arith.constant 0.000000e+00 : bf16
    %0 = vector.broadcast %cst : bf16 to vector<10x10x32xbf16>
    %c0 = arith.constant 0 : index
    %c0_0 = arith.constant 0 : index
    %c0_1 = arith.constant 0 : index
    %1 = vector.load %arg13[%c0, %c0_0, %c0_1] : memref<10x10x32xbf16, #tpu.memory_space<vmem>>, vector<10x10x32xbf16>
    tpu.vector_store %arg13[%c0, %c0_0, %c0_1], %0 {strides = array<i32>} : memref<10x10x32xbf16, #tpu.memory_space<vmem>>, vector<10x10x32xbf16>,
    %cst_2 = arith.constant 0.000000e+00 : bf16
    %2 = vector.broadcast %cst_2 : bf16 to vector<10x10x32xbf16>
    %c0_3 = arith.constant 0 : index
    %c0_4 = arith.constant 0 : index
    %c0_5 = arith.constant 0 : index
    %3 = vector.load %arg14[%c0_3, %c0_4, %c0_5] : memref<10x10x32xbf16, #tpu.memory_space<vmem>>, vector<10x10x32xbf16>
    tpu.vector_store %arg14[%c0_3, %c0_4, %c0_5], %2 {strides = array<i32>} : memref<10x10x32xbf16, #tpu.memory_space<vmem>>, vector<10x10x32xbf16>,
    %c0_6 = arith.constant 0 : index
    %c0_7 = arith.constant 0 : index
    %c0_8 = arith.constant 0 : index
    %c0_9 = arith.constant 0 : index
    %4 = vector.load %arg1[%c0_6, %c0_7, %c0_8, %c0_9] : memref<1x8x8x32xbf16, #tpu.memory_space<vmem>>, vector<1x8x8x32xbf16>
    %5 = vector.shape_cast %4 : vector<1x8x8x32xbf16> to vector<8x8x32xbf16>
    %c1 = arith.constant 1 : index
    %c1_10 = arith.constant 1 : index
    %c0_11 = arith.constant 0 : index
    %6 = vector.load %arg13[%c1, %c1_10, %c0_11] : memref<10x10x32xbf16, #tpu.memory_space<vmem>>, vector<8x8x32xbf16>
    tpu.vector_store %arg13[%c1, %c1_10, %c0_11], %5 {strides = array<i32>} : memref<10x10x32xbf16, #tpu.memory_space<vmem>>, vector<8x8x32xbf16>,
    %c0_12 = arith.constant 0 : index
    %c0_13 = arith.constant 0 : index
    %7 = vector.load %arg2[%c0_12, %c0_13] : memref<288x64xbf16, #tpu.memory_space<vmem>>, vector<288x64xbf16>
    %c0_14 = arith.constant 0 : index
    %c0_15 = arith.constant 0 : index
    %8 = vector.load %arg3[%c0_14, %c0_15] : memref<1x64xf32, #tpu.memory_space<vmem>>, vector<1x64xf32>
    %c0_16 = arith.constant 0 : index
    %c0_17 = arith.constant 0 : index
    %c0_18 = arith.constant 0 : index
    %9 = vector.load %arg13[%c0_16, %c0_17, %c0_18] : memref<10x10x32xbf16, #tpu.memory_space<vmem>>, vector<8x8x32xbf16>
    %10 = vector.shape_cast %9 : vector<8x8x32xbf16> to vector<64x32xbf16>
    %c0_19 = arith.constant 0 : index
    %c1_20 = arith.constant 1 : index
    %c0_21 = arith.constant 0 : index
    %11 = vector.load %arg13[%c0_19, %c1_20, %c0_21] : memref<10x10x32xbf16, #tpu.memory_space<vmem>>, vector<8x8x32xbf16>
    %12 = vector.shape_cast %11 : vector<8x8x32xbf16> to vector<64x32xbf16>
    %c0_22 = arith.constant 0 : index
    %c2 = arith.constant 2 : index
    %c0_23 = arith.constant 0 : index
    %13 = vector.load %arg13[%c0_22, %c2, %c0_23] : memref<10x10x32xbf16, #tpu.memory_space<vmem>>, vector<8x8x32xbf16>
    %14 = vector.shape_cast %13 : vector<8x8x32xbf16> to vector<64x32xbf16>
    %c1_24 = arith.constant 1 : index
    %c0_25 = arith.constant 0 : index
    %c0_26 = arith.constant 0 : index
    %15 = vector.load %arg13[%c1_24, %c0_25, %c0_26] : memref<10x10x32xbf16, #tpu.memory_space<vmem>>, vector<8x8x32xbf16>
    %16 = vector.shape_cast %15 : vector<8x8x32xbf16> to vector<64x32xbf16>
    %c1_27 = arith.constant 1 : index
    %c1_28 = arith.constant 1 : index
    %c0_29 = arith.constant 0 : index
    %17 = vector.load %arg13[%c1_27, %c1_28, %c0_29] : memref<10x10x32xbf16, #tpu.memory_space<vmem>>, vector<8x8x32xbf16>
    %18 = vector.shape_cast %17 : vector<8x8x32xbf16> to vector<64x32xbf16>
    %c1_30 = arith.constant 1 : index
    %c2_31 = arith.constant 2 : index
    %c0_32 = arith.constant 0 : index
    %19 = vector.load %arg13[%c1_30, %c2_31, %c0_32] : memref<10x10x32xbf16, #tpu.memory_space<vmem>>, vector<8x8x32xbf16>
    %20 = vector.shape_cast %19 : vector<8x8x32xbf16> to vector<64x32xbf16>
    %c2_33 = arith.constant 2 : index
    %c0_34 = arith.constant 0 : index
    %c0_35 = arith.constant 0 : index
    %21 = vector.load %arg13[%c2_33, %c0_34, %c0_35] : memref<10x10x32xbf16, #tpu.memory_space<vmem>>, vector<8x8x32xbf16>
    %22 = vector.shape_cast %21 : vector<8x8x32xbf16> to vector<64x32xbf16>
    %c2_36 = arith.constant 2 : index
    %c1_37 = arith.constant 1 : index
    %c0_38 = arith.constant 0 : index
    %23 = vector.load %arg13[%c2_36, %c1_37, %c0_38] : memref<10x10x32xbf16, #tpu.memory_space<vmem>>, vector<8x8x32xbf16>
    %24 = vector.shape_cast %23 : vector<8x8x32xbf16> to vector<64x32xbf16>
    %c2_39 = arith.constant 2 : index
    %c2_40 = arith.constant 2 : index
    %c0_41 = arith.constant 0 : index
    %25 = vector.load %arg13[%c2_39, %c2_40, %c0_41] : memref<10x10x32xbf16, #tpu.memory_space<vmem>>, vector<8x8x32xbf16>
    %26 = vector.shape_cast %25 : vector<8x8x32xbf16> to vector<64x32xbf16>
    %27 = tpu.concatenate %10, %12, %14, %16, %18, %20, %22, %24, %26 in 1 : vector<64x32xbf16>, vector<64x32xbf16>, vector<64x32xbf16>, vector<64x32xbf16>, vector<64x32xbf16>, vector<64x32xbf16>, vector<64x32xbf16>, vector<64x32xbf16>, vector<64x32xbf16> -> vector<64x288xbf16>
    %cst_42 = arith.constant dense<0.000000e+00> : vector<64x64xf32>
    %28 = tpu.matmul %27, %7, %cst_42 {dimension_numbers = #tpu.dot_dimension_numbers<[1], [0], [0], [1], [0, 0, 1, 1], [], []>} : vector<64x288xbf16>, vector<288x64xbf16>, vector<64x64xf32> -> vector<64x64xf32>
    %29 = vector.broadcast %8 : vector<1x64xf32> to vector<64x64xf32>
    %30 = arith.addf %28, %29 : vector<64x64xf32>
    %cst_43 = arith.constant 0.000000e+00 : f32
    %31 = vector.broadcast %cst_43 : f32 to vector<64x64xf32>
    %32 = arith.maximumf %30, %31 : vector<64x64xf32>
    %33 = vector.extract_strided_slice %32 {offsets = [0, 0], sizes = [64, 32], strides = [1, 1]} : vector<64x64xf32> to vector<64x32xf32>
    %34 = arith.truncf %33 : vector<64x32xf32> to vector<64x32xbf16>
    %35 = vector.shape_cast %34 : vector<64x32xbf16> to vector<8x8x32xbf16>
    %c1_44 = arith.constant 1 : index
    %c1_45 = arith.constant 1 : index
    %c0_46 = arith.constant 0 : index
    %36 = vector.load %arg13[%c1_44, %c1_45, %c0_46] : memref<10x10x32xbf16, #tpu.memory_space<vmem>>, vector<8x8x32xbf16>
    tpu.vector_store %arg13[%c1_44, %c1_45, %c0_46], %35 {strides = array<i32>} : memref<10x10x32xbf16, #tpu.memory_space<vmem>>, vector<8x8x32xbf16>,
    %c0_47 = arith.constant 0 : index
    %c0_48 = arith.constant 0 : index
    %37 = vector.load %arg4[%c0_47, %c0_48] : memref<288x32xbf16, #tpu.memory_space<vmem>>, vector<288x32xbf16>
    %c0_49 = arith.constant 0 : index
    %c0_50 = arith.constant 0 : index
    %38 = vector.load %arg5[%c0_49, %c0_50] : memref<1x32xf32, #tpu.memory_space<vmem>>, vector<1x32xf32>
    %c0_51 = arith.constant 0 : index
    %c0_52 = arith.constant 0 : index
    %c0_53 = arith.constant 0 : index
    %39 = vector.load %arg13[%c0_51, %c0_52, %c0_53] : memref<10x10x32xbf16, #tpu.memory_space<vmem>>, vector<8x8x32xbf16>
    %40 = vector.shape_cast %39 : vector<8x8x32xbf16> to vector<64x32xbf16>
    %c0_54 = arith.constant 0 : index
    %c1_55 = arith.constant 1 : index
    %c0_56 = arith.constant 0 : index
    %41 = vector.load %arg13[%c0_54, %c1_55, %c0_56] : memref<10x10x32xbf16, #tpu.memory_space<vmem>>, vector<8x8x32xbf16>
    %42 = vector.shape_cast %41 : vector<8x8x32xbf16> to vector<64x32xbf16>
    %c0_57 = arith.constant 0 : index
    %c2_58 = arith.constant 2 : index
    %c0_59 = arith.constant 0 : index
    %43 = vector.load %arg13[%c0_57, %c2_58, %c0_59] : memref<10x10x32xbf16, #tpu.memory_space<vmem>>, vector<8x8x32xbf16>
    %44 = vector.shape_cast %43 : vector<8x8x32xbf16> to vector<64x32xbf16>
    %c1_60 = arith.constant 1 : index
    %c0_61 = arith.constant 0 : index
    %c0_62 = arith.constant 0 : index
    %45 = vector.load %arg13[%c1_60, %c0_61, %c0_62] : memref<10x10x32xbf16, #tpu.memory_space<vmem>>, vector<8x8x32xbf16>
    %46 = vector.shape_cast %45 : vector<8x8x32xbf16> to vector<64x32xbf16>
    %c1_63 = arith.constant 1 : index
    %c1_64 = arith.constant 1 : index
    %c0_65 = arith.constant 0 : index
    %47 = vector.load %arg13[%c1_63, %c1_64, %c0_65] : memref<10x10x32xbf16, #tpu.memory_space<vmem>>, vector<8x8x32xbf16>
    %48 = vector.shape_cast %47 : vector<8x8x32xbf16> to vector<64x32xbf16>
    %c1_66 = arith.constant 1 : index
    %c2_67 = arith.constant 2 : index
    %c0_68 = arith.constant 0 : index
    %49 = vector.load %arg13[%c1_66, %c2_67, %c0_68] : memref<10x10x32xbf16, #tpu.memory_space<vmem>>, vector<8x8x32xbf16>
    %50 = vector.shape_cast %49 : vector<8x8x32xbf16> to vector<64x32xbf16>
    %c2_69 = arith.constant 2 : index
    %c0_70 = arith.constant 0 : index
    %c0_71 = arith.constant 0 : index
    %51 = vector.load %arg13[%c2_69, %c0_70, %c0_71] : memref<10x10x32xbf16, #tpu.memory_space<vmem>>, vector<8x8x32xbf16>
    %52 = vector.shape_cast %51 : vector<8x8x32xbf16> to vector<64x32xbf16>
    %c2_72 = arith.constant 2 : index
    %c1_73 = arith.constant 1 : index
    %c0_74 = arith.constant 0 : index
    %53 = vector.load %arg13[%c2_72, %c1_73, %c0_74] : memref<10x10x32xbf16, #tpu.memory_space<vmem>>, vector<8x8x32xbf16>
    %54 = vector.shape_cast %53 : vector<8x8x32xbf16> to vector<64x32xbf16>
    %c2_75 = arith.constant 2 : index
    %c2_76 = arith.constant 2 : index
    %c0_77 = arith.constant 0 : index
    %55 = vector.load %arg13[%c2_75, %c2_76, %c0_77] : memref<10x10x32xbf16, #tpu.memory_space<vmem>>, vector<8x8x32xbf16>
    %56 = vector.shape_cast %55 : vector<8x8x32xbf16> to vector<64x32xbf16>
    %57 = tpu.concatenate %40, %42, %44, %46, %48, %50, %52, %54, %56 in 1 : vector<64x32xbf16>, vector<64x32xbf16>, vector<64x32xbf16>, vector<64x32xbf16>, vector<64x32xbf16>, vector<64x32xbf16>, vector<64x32xbf16>, vector<64x32xbf16>, vector<64x32xbf16> -> vector<64x288xbf16>
    %cst_78 = arith.constant dense<0.000000e+00> : vector<64x32xf32>
    %58 = tpu.matmul %57, %37, %cst_78 {dimension_numbers = #tpu.dot_dimension_numbers<[1], [0], [0], [1], [0, 0, 1, 1], [], []>} : vector<64x288xbf16>, vector<288x32xbf16>, vector<64x32xf32> -> vector<64x32xf32>
    %59 = vector.broadcast %38 : vector<1x32xf32> to vector<64x32xf32>
    %60 = arith.addf %58, %59 : vector<64x32xf32>
    %cst_79 = arith.constant 0.000000e+00 : f32
    %61 = vector.broadcast %cst_79 : f32 to vector<64x32xf32>
    %62 = arith.maximumf %60, %61 : vector<64x32xf32>
    %63 = arith.truncf %62 : vector<64x32xf32> to vector<64x32xbf16>
    %64 = vector.shape_cast %63 : vector<64x32xbf16> to vector<8x8x32xbf16>
    %c1_80 = arith.constant 1 : index
    %c1_81 = arith.constant 1 : index
    %c0_82 = arith.constant 0 : index
    %65 = vector.load %arg13[%c1_80, %c1_81, %c0_82] : memref<10x10x32xbf16, #tpu.memory_space<vmem>>, vector<8x8x32xbf16>
    tpu.vector_store %arg13[%c1_80, %c1_81, %c0_82], %64 {strides = array<i32>} : memref<10x10x32xbf16, #tpu.memory_space<vmem>>, vector<8x8x32xbf16>,
    %c0_83 = arith.constant 0 : index
    %c0_84 = arith.constant 0 : index
    %66 = vector.load %arg8[%c0_83, %c0_84] : memref<288x8xbf16, #tpu.memory_space<vmem>>, vector<288x8xbf16>
    %c0_85 = arith.constant 0 : index
    %c0_86 = arith.constant 0 : index
    %67 = vector.load %arg9[%c0_85, %c0_86] : memref<1x8xf32, #tpu.memory_space<vmem>>, vector<1x8xf32>
    %c0_87 = arith.constant 0 : index
    %c0_88 = arith.constant 0 : index
    %c0_89 = arith.constant 0 : index
    %68 = vector.load %arg13[%c0_87, %c0_88, %c0_89] : memref<10x10x32xbf16, #tpu.memory_space<vmem>>, vector<8x8x32xbf16>
    %69 = vector.shape_cast %68 : vector<8x8x32xbf16> to vector<64x32xbf16>
    %c0_90 = arith.constant 0 : index
    %c1_91 = arith.constant 1 : index
    %c0_92 = arith.constant 0 : index
    %70 = vector.load %arg13[%c0_90, %c1_91, %c0_92] : memref<10x10x32xbf16, #tpu.memory_space<vmem>>, vector<8x8x32xbf16>
    %71 = vector.shape_cast %70 : vector<8x8x32xbf16> to vector<64x32xbf16>
    %c0_93 = arith.constant 0 : index
    %c2_94 = arith.constant 2 : index
    %c0_95 = arith.constant 0 : index
    %72 = vector.load %arg13[%c0_93, %c2_94, %c0_95] : memref<10x10x32xbf16, #tpu.memory_space<vmem>>, vector<8x8x32xbf16>
    %73 = vector.shape_cast %72 : vector<8x8x32xbf16> to vector<64x32xbf16>
    %c1_96 = arith.constant 1 : index
    %c0_97 = arith.constant 0 : index
    %c0_98 = arith.constant 0 : index
    %74 = vector.load %arg13[%c1_96, %c0_97, %c0_98] : memref<10x10x32xbf16, #tpu.memory_space<vmem>>, vector<8x8x32xbf16>
    %75 = vector.shape_cast %74 : vector<8x8x32xbf16> to vector<64x32xbf16>
    %c1_99 = arith.constant 1 : index
    %c1_100 = arith.constant 1 : index
    %c0_101 = arith.constant 0 : index
    %76 = vector.load %arg13[%c1_99, %c1_100, %c0_101] : memref<10x10x32xbf16, #tpu.memory_space<vmem>>, vector<8x8x32xbf16>
    %77 = vector.shape_cast %76 : vector<8x8x32xbf16> to vector<64x32xbf16>
    %c1_102 = arith.constant 1 : index
    %c2_103 = arith.constant 2 : index
    %c0_104 = arith.constant 0 : index
    %78 = vector.load %arg13[%c1_102, %c2_103, %c0_104] : memref<10x10x32xbf16, #tpu.memory_space<vmem>>, vector<8x8x32xbf16>
    %79 = vector.shape_cast %78 : vector<8x8x32xbf16> to vector<64x32xbf16>
    %c2_105 = arith.constant 2 : index
    %c0_106 = arith.constant 0 : index
    %c0_107 = arith.constant 0 : index
    %80 = vector.load %arg13[%c2_105, %c0_106, %c0_107] : memref<10x10x32xbf16, #tpu.memory_space<vmem>>, vector<8x8x32xbf16>
    %81 = vector.shape_cast %80 : vector<8x8x32xbf16> to vector<64x32xbf16>
    %c2_108 = arith.constant 2 : index
    %c1_109 = arith.constant 1 : index
    %c0_110 = arith.constant 0 : index
    %82 = vector.load %arg13[%c2_108, %c1_109, %c0_110] : memref<10x10x32xbf16, #tpu.memory_space<vmem>>, vector<8x8x32xbf16>
    %83 = vector.shape_cast %82 : vector<8x8x32xbf16> to vector<64x32xbf16>
    %c2_111 = arith.constant 2 : index
    %c2_112 = arith.constant 2 : index
    %c0_113 = arith.constant 0 : index
    %84 = vector.load %arg13[%c2_111, %c2_112, %c0_113] : memref<10x10x32xbf16, #tpu.memory_space<vmem>>, vector<8x8x32xbf16>
    %85 = vector.shape_cast %84 : vector<8x8x32xbf16> to vector<64x32xbf16>
    %86 = tpu.concatenate %69, %71, %73, %75, %77, %79, %81, %83, %85 in 1 : vector<64x32xbf16>, vector<64x32xbf16>, vector<64x32xbf16>, vector<64x32xbf16>, vector<64x32xbf16>, vector<64x32xbf16>, vector<64x32xbf16>, vector<64x32xbf16>, vector<64x32xbf16> -> vector<64x288xbf16>
    %cst_114 = arith.constant dense<0.000000e+00> : vector<64x8xf32>
    %87 = tpu.matmul %86, %66, %cst_114 {dimension_numbers = #tpu.dot_dimension_numbers<[1], [0], [0], [1], [0, 0, 1, 1], [], []>} : vector<64x288xbf16>, vector<288x8xbf16>, vector<64x8xf32> -> vector<64x8xf32>
    %88 = vector.broadcast %67 : vector<1x8xf32> to vector<64x8xf32>
    %89 = arith.addf %87, %88 : vector<64x8xf32>
    %90 = vector.extract_strided_slice %32 {offsets = [0, 32], sizes = [64, 32], strides = [1, 1]} : vector<64x64xf32> to vector<64x32xf32>
    %91 = arith.truncf %90 : vector<64x32xf32> to vector<64x32xbf16>
    %92 = vector.shape_cast %91 : vector<64x32xbf16> to vector<8x8x32xbf16>
    %c1_115 = arith.constant 1 : index
    %c1_116 = arith.constant 1 : index
    %c0_117 = arith.constant 0 : index
    %93 = vector.load %arg14[%c1_115, %c1_116, %c0_117] : memref<10x10x32xbf16, #tpu.memory_space<vmem>>, vector<8x8x32xbf16>
    tpu.vector_store %arg14[%c1_115, %c1_116, %c0_117], %92 {strides = array<i32>} : memref<10x10x32xbf16, #tpu.memory_space<vmem>>, vector<8x8x32xbf16>,
    %c0_118 = arith.constant 0 : index
    %c0_119 = arith.constant 0 : index
    %c0_120 = arith.constant 0 : index
    %94 = vector.load %arg6[%c0_118, %c0_119, %c0_120] : memref<3x288x32xbf16, #tpu.memory_space<vmem>>, vector<1x288x32xbf16>
    %95 = vector.shape_cast %94 : vector<1x288x32xbf16> to vector<288x32xbf16>
    %c0_121 = arith.constant 0 : index
    %c0_122 = arith.constant 0 : index
    %c0_123 = arith.constant 0 : index
    %96 = vector.load %arg7[%c0_121, %c0_122, %c0_123] : memref<3x1x32xf32, #tpu.memory_space<vmem>>, vector<1x1x32xf32>
    %97 = vector.shape_cast %96 : vector<1x1x32xf32> to vector<1x32xf32>
    %c0_124 = arith.constant 0 : index
    %c0_125 = arith.constant 0 : index
    %c0_126 = arith.constant 0 : index
    %98 = vector.load %arg14[%c0_124, %c0_125, %c0_126] : memref<10x10x32xbf16, #tpu.memory_space<vmem>>, vector<8x8x32xbf16>
    %99 = vector.shape_cast %98 : vector<8x8x32xbf16> to vector<64x32xbf16>
    %c0_127 = arith.constant 0 : index
    %c1_128 = arith.constant 1 : index
    %c0_129 = arith.constant 0 : index
    %100 = vector.load %arg14[%c0_127, %c1_128, %c0_129] : memref<10x10x32xbf16, #tpu.memory_space<vmem>>, vector<8x8x32xbf16>
    %101 = vector.shape_cast %100 : vector<8x8x32xbf16> to vector<64x32xbf16>
    %c0_130 = arith.constant 0 : index
    %c2_131 = arith.constant 2 : index
    %c0_132 = arith.constant 0 : index
    %102 = vector.load %arg14[%c0_130, %c2_131, %c0_132] : memref<10x10x32xbf16, #tpu.memory_space<vmem>>, vector<8x8x32xbf16>
    %103 = vector.shape_cast %102 : vector<8x8x32xbf16> to vector<64x32xbf16>
    %c1_133 = arith.constant 1 : index
    %c0_134 = arith.constant 0 : index
    %c0_135 = arith.constant 0 : index
    %104 = vector.load %arg14[%c1_133, %c0_134, %c0_135] : memref<10x10x32xbf16, #tpu.memory_space<vmem>>, vector<8x8x32xbf16>
    %105 = vector.shape_cast %104 : vector<8x8x32xbf16> to vector<64x32xbf16>
    %c1_136 = arith.constant 1 : index
    %c1_137 = arith.constant 1 : index
    %c0_138 = arith.constant 0 : index
    %106 = vector.load %arg14[%c1_136, %c1_137, %c0_138] : memref<10x10x32xbf16, #tpu.memory_space<vmem>>, vector<8x8x32xbf16>
    %107 = vector.shape_cast %106 : vector<8x8x32xbf16> to vector<64x32xbf16>
    %c1_139 = arith.constant 1 : index
    %c2_140 = arith.constant 2 : index
    %c0_141 = arith.constant 0 : index
    %108 = vector.load %arg14[%c1_139, %c2_140, %c0_141] : memref<10x10x32xbf16, #tpu.memory_space<vmem>>, vector<8x8x32xbf16>
    %109 = vector.shape_cast %108 : vector<8x8x32xbf16> to vector<64x32xbf16>
    %c2_142 = arith.constant 2 : index
    %c0_143 = arith.constant 0 : index
    %c0_144 = arith.constant 0 : index
    %110 = vector.load %arg14[%c2_142, %c0_143, %c0_144] : memref<10x10x32xbf16, #tpu.memory_space<vmem>>, vector<8x8x32xbf16>
    %111 = vector.shape_cast %110 : vector<8x8x32xbf16> to vector<64x32xbf16>
    %c2_145 = arith.constant 2 : index
    %c1_146 = arith.constant 1 : index
    %c0_147 = arith.constant 0 : index
    %112 = vector.load %arg14[%c2_145, %c1_146, %c0_147] : memref<10x10x32xbf16, #tpu.memory_space<vmem>>, vector<8x8x32xbf16>
    %113 = vector.shape_cast %112 : vector<8x8x32xbf16> to vector<64x32xbf16>
    %c2_148 = arith.constant 2 : index
    %c2_149 = arith.constant 2 : index
    %c0_150 = arith.constant 0 : index
    %114 = vector.load %arg14[%c2_148, %c2_149, %c0_150] : memref<10x10x32xbf16, #tpu.memory_space<vmem>>, vector<8x8x32xbf16>
    %115 = vector.shape_cast %114 : vector<8x8x32xbf16> to vector<64x32xbf16>
    %116 = tpu.concatenate %99, %101, %103, %105, %107, %109, %111, %113, %115 in 1 : vector<64x32xbf16>, vector<64x32xbf16>, vector<64x32xbf16>, vector<64x32xbf16>, vector<64x32xbf16>, vector<64x32xbf16>, vector<64x32xbf16>, vector<64x32xbf16>, vector<64x32xbf16> -> vector<64x288xbf16>
    %cst_151 = arith.constant dense<0.000000e+00> : vector<64x32xf32>
    %117 = tpu.matmul %116, %95, %cst_151 {dimension_numbers = #tpu.dot_dimension_numbers<[1], [0], [0], [1], [0, 0, 1, 1], [], []>} : vector<64x288xbf16>, vector<288x32xbf16>, vector<64x32xf32> -> vector<64x32xf32>
    %118 = vector.broadcast %97 : vector<1x32xf32> to vector<64x32xf32>
    %119 = arith.addf %117, %118 : vector<64x32xf32>
    %cst_152 = arith.constant 0.000000e+00 : f32
    %120 = vector.broadcast %cst_152 : f32 to vector<64x32xf32>
    %121 = arith.maximumf %119, %120 : vector<64x32xf32>
    %122 = arith.truncf %121 : vector<64x32xf32> to vector<64x32xbf16>
    %123 = vector.shape_cast %122 : vector<64x32xbf16> to vector<8x8x32xbf16>
    %c1_153 = arith.constant 1 : index
    %c1_154 = arith.constant 1 : index
    %c0_155 = arith.constant 0 : index
    %124 = vector.load %arg14[%c1_153, %c1_154, %c0_155] : memref<10x10x32xbf16, #tpu.memory_space<vmem>>, vector<8x8x32xbf16>
    tpu.vector_store %arg14[%c1_153, %c1_154, %c0_155], %123 {strides = array<i32>} : memref<10x10x32xbf16, #tpu.memory_space<vmem>>, vector<8x8x32xbf16>,
    %c1_156 = arith.constant 1 : index
    %c0_157 = arith.constant 0 : index
    %c0_158 = arith.constant 0 : index
    %125 = vector.load %arg6[%c1_156, %c0_157, %c0_158] : memref<3x288x32xbf16, #tpu.memory_space<vmem>>, vector<1x288x32xbf16>
    %126 = vector.shape_cast %125 : vector<1x288x32xbf16> to vector<288x32xbf16>
    %c1_159 = arith.constant 1 : index
    %c0_160 = arith.constant 0 : index
    %c0_161 = arith.constant 0 : index
    %127 = vector.load %arg7[%c1_159, %c0_160, %c0_161] : memref<3x1x32xf32, #tpu.memory_space<vmem>>, vector<1x1x32xf32>
    %128 = vector.shape_cast %127 : vector<1x1x32xf32> to vector<1x32xf32>
    %c0_162 = arith.constant 0 : index
    %c0_163 = arith.constant 0 : index
    %c0_164 = arith.constant 0 : index
    %129 = vector.load %arg14[%c0_162, %c0_163, %c0_164] : memref<10x10x32xbf16, #tpu.memory_space<vmem>>, vector<8x8x32xbf16>
    %130 = vector.shape_cast %129 : vector<8x8x32xbf16> to vector<64x32xbf16>
    %c0_165 = arith.constant 0 : index
    %c1_166 = arith.constant 1 : index
    %c0_167 = arith.constant 0 : index
    %131 = vector.load %arg14[%c0_165, %c1_166, %c0_167] : memref<10x10x32xbf16, #tpu.memory_space<vmem>>, vector<8x8x32xbf16>
    %132 = vector.shape_cast %131 : vector<8x8x32xbf16> to vector<64x32xbf16>
    %c0_168 = arith.constant 0 : index
    %c2_169 = arith.constant 2 : index
    %c0_170 = arith.constant 0 : index
    %133 = vector.load %arg14[%c0_168, %c2_169, %c0_170] : memref<10x10x32xbf16, #tpu.memory_space<vmem>>, vector<8x8x32xbf16>
    %134 = vector.shape_cast %133 : vector<8x8x32xbf16> to vector<64x32xbf16>
    %c1_171 = arith.constant 1 : index
    %c0_172 = arith.constant 0 : index
    %c0_173 = arith.constant 0 : index
    %135 = vector.load %arg14[%c1_171, %c0_172, %c0_173] : memref<10x10x32xbf16, #tpu.memory_space<vmem>>, vector<8x8x32xbf16>
    %136 = vector.shape_cast %135 : vector<8x8x32xbf16> to vector<64x32xbf16>
    %c1_174 = arith.constant 1 : index
    %c1_175 = arith.constant 1 : index
    %c0_176 = arith.constant 0 : index
    %137 = vector.load %arg14[%c1_174, %c1_175, %c0_176] : memref<10x10x32xbf16, #tpu.memory_space<vmem>>, vector<8x8x32xbf16>
    %138 = vector.shape_cast %137 : vector<8x8x32xbf16> to vector<64x32xbf16>
    %c1_177 = arith.constant 1 : index
    %c2_178 = arith.constant 2 : index
    %c0_179 = arith.constant 0 : index
    %139 = vector.load %arg14[%c1_177, %c2_178, %c0_179] : memref<10x10x32xbf16, #tpu.memory_space<vmem>>, vector<8x8x32xbf16>
    %140 = vector.shape_cast %139 : vector<8x8x32xbf16> to vector<64x32xbf16>
    %c2_180 = arith.constant 2 : index
    %c0_181 = arith.constant 0 : index
    %c0_182 = arith.constant 0 : index
    %141 = vector.load %arg14[%c2_180, %c0_181, %c0_182] : memref<10x10x32xbf16, #tpu.memory_space<vmem>>, vector<8x8x32xbf16>
    %142 = vector.shape_cast %141 : vector<8x8x32xbf16> to vector<64x32xbf16>
    %c2_183 = arith.constant 2 : index
    %c1_184 = arith.constant 1 : index
    %c0_185 = arith.constant 0 : index
    %143 = vector.load %arg14[%c2_183, %c1_184, %c0_185] : memref<10x10x32xbf16, #tpu.memory_space<vmem>>, vector<8x8x32xbf16>
    %144 = vector.shape_cast %143 : vector<8x8x32xbf16> to vector<64x32xbf16>
    %c2_186 = arith.constant 2 : index
    %c2_187 = arith.constant 2 : index
    %c0_188 = arith.constant 0 : index
    %145 = vector.load %arg14[%c2_186, %c2_187, %c0_188] : memref<10x10x32xbf16, #tpu.memory_space<vmem>>, vector<8x8x32xbf16>
    %146 = vector.shape_cast %145 : vector<8x8x32xbf16> to vector<64x32xbf16>
    %147 = tpu.concatenate %130, %132, %134, %136, %138, %140, %142, %144, %146 in 1 : vector<64x32xbf16>, vector<64x32xbf16>, vector<64x32xbf16>, vector<64x32xbf16>, vector<64x32xbf16>, vector<64x32xbf16>, vector<64x32xbf16>, vector<64x32xbf16>, vector<64x32xbf16> -> vector<64x288xbf16>
    %cst_189 = arith.constant dense<0.000000e+00> : vector<64x32xf32>
    %148 = tpu.matmul %147, %126, %cst_189 {dimension_numbers = #tpu.dot_dimension_numbers<[1], [0], [0], [1], [0, 0, 1, 1], [], []>} : vector<64x288xbf16>, vector<288x32xbf16>, vector<64x32xf32> -> vector<64x32xf32>
    %149 = vector.broadcast %128 : vector<1x32xf32> to vector<64x32xf32>
    %150 = arith.addf %148, %149 : vector<64x32xf32>
    %cst_190 = arith.constant 0.000000e+00 : f32
    %151 = vector.broadcast %cst_190 : f32 to vector<64x32xf32>
    %152 = arith.maximumf %150, %151 : vector<64x32xf32>
    %153 = arith.truncf %152 : vector<64x32xf32> to vector<64x32xbf16>
    %154 = vector.shape_cast %153 : vector<64x32xbf16> to vector<8x8x32xbf16>
    %c1_191 = arith.constant 1 : index
    %c1_192 = arith.constant 1 : index
    %c0_193 = arith.constant 0 : index
    %155 = vector.load %arg14[%c1_191, %c1_192, %c0_193] : memref<10x10x32xbf16, #tpu.memory_space<vmem>>, vector<8x8x32xbf16>
    tpu.vector_store %arg14[%c1_191, %c1_192, %c0_193], %154 {strides = array<i32>} : memref<10x10x32xbf16, #tpu.memory_space<vmem>>, vector<8x8x32xbf16>,
    %c2_194 = arith.constant 2 : index
    %c0_195 = arith.constant 0 : index
    %c0_196 = arith.constant 0 : index
    %156 = vector.load %arg6[%c2_194, %c0_195, %c0_196] : memref<3x288x32xbf16, #tpu.memory_space<vmem>>, vector<1x288x32xbf16>
    %157 = vector.shape_cast %156 : vector<1x288x32xbf16> to vector<288x32xbf16>
    %c2_197 = arith.constant 2 : index
    %c0_198 = arith.constant 0 : index
    %c0_199 = arith.constant 0 : index
    %158 = vector.load %arg7[%c2_197, %c0_198, %c0_199] : memref<3x1x32xf32, #tpu.memory_space<vmem>>, vector<1x1x32xf32>
    %159 = vector.shape_cast %158 : vector<1x1x32xf32> to vector<1x32xf32>
    %c0_200 = arith.constant 0 : index
    %c0_201 = arith.constant 0 : index
    %c0_202 = arith.constant 0 : index
    %160 = vector.load %arg14[%c0_200, %c0_201, %c0_202] : memref<10x10x32xbf16, #tpu.memory_space<vmem>>, vector<8x8x32xbf16>
    %161 = vector.shape_cast %160 : vector<8x8x32xbf16> to vector<64x32xbf16>
    %c0_203 = arith.constant 0 : index
    %c1_204 = arith.constant 1 : index
    %c0_205 = arith.constant 0 : index
    %162 = vector.load %arg14[%c0_203, %c1_204, %c0_205] : memref<10x10x32xbf16, #tpu.memory_space<vmem>>, vector<8x8x32xbf16>
    %163 = vector.shape_cast %162 : vector<8x8x32xbf16> to vector<64x32xbf16>
    %c0_206 = arith.constant 0 : index
    %c2_207 = arith.constant 2 : index
    %c0_208 = arith.constant 0 : index
    %164 = vector.load %arg14[%c0_206, %c2_207, %c0_208] : memref<10x10x32xbf16, #tpu.memory_space<vmem>>, vector<8x8x32xbf16>
    %165 = vector.shape_cast %164 : vector<8x8x32xbf16> to vector<64x32xbf16>
    %c1_209 = arith.constant 1 : index
    %c0_210 = arith.constant 0 : index
    %c0_211 = arith.constant 0 : index
    %166 = vector.load %arg14[%c1_209, %c0_210, %c0_211] : memref<10x10x32xbf16, #tpu.memory_space<vmem>>, vector<8x8x32xbf16>
    %167 = vector.shape_cast %166 : vector<8x8x32xbf16> to vector<64x32xbf16>
    %c1_212 = arith.constant 1 : index
    %c1_213 = arith.constant 1 : index
    %c0_214 = arith.constant 0 : index
    %168 = vector.load %arg14[%c1_212, %c1_213, %c0_214] : memref<10x10x32xbf16, #tpu.memory_space<vmem>>, vector<8x8x32xbf16>
    %169 = vector.shape_cast %168 : vector<8x8x32xbf16> to vector<64x32xbf16>
    %c1_215 = arith.constant 1 : index
    %c2_216 = arith.constant 2 : index
    %c0_217 = arith.constant 0 : index
    %170 = vector.load %arg14[%c1_215, %c2_216, %c0_217] : memref<10x10x32xbf16, #tpu.memory_space<vmem>>, vector<8x8x32xbf16>
    %171 = vector.shape_cast %170 : vector<8x8x32xbf16> to vector<64x32xbf16>
    %c2_218 = arith.constant 2 : index
    %c0_219 = arith.constant 0 : index
    %c0_220 = arith.constant 0 : index
    %172 = vector.load %arg14[%c2_218, %c0_219, %c0_220] : memref<10x10x32xbf16, #tpu.memory_space<vmem>>, vector<8x8x32xbf16>
    %173 = vector.shape_cast %172 : vector<8x8x32xbf16> to vector<64x32xbf16>
    %c2_221 = arith.constant 2 : index
    %c1_222 = arith.constant 1 : index
    %c0_223 = arith.constant 0 : index
    %174 = vector.load %arg14[%c2_221, %c1_222, %c0_223] : memref<10x10x32xbf16, #tpu.memory_space<vmem>>, vector<8x8x32xbf16>
    %175 = vector.shape_cast %174 : vector<8x8x32xbf16> to vector<64x32xbf16>
    %c2_224 = arith.constant 2 : index
    %c2_225 = arith.constant 2 : index
    %c0_226 = arith.constant 0 : index
    %176 = vector.load %arg14[%c2_224, %c2_225, %c0_226] : memref<10x10x32xbf16, #tpu.memory_space<vmem>>, vector<8x8x32xbf16>
    %177 = vector.shape_cast %176 : vector<8x8x32xbf16> to vector<64x32xbf16>
    %178 = tpu.concatenate %161, %163, %165, %167, %169, %171, %173, %175, %177 in 1 : vector<64x32xbf16>, vector<64x32xbf16>, vector<64x32xbf16>, vector<64x32xbf16>, vector<64x32xbf16>, vector<64x32xbf16>, vector<64x32xbf16>, vector<64x32xbf16>, vector<64x32xbf16> -> vector<64x288xbf16>
    %cst_227 = arith.constant dense<0.000000e+00> : vector<64x32xf32>
    %179 = tpu.matmul %178, %157, %cst_227 {dimension_numbers = #tpu.dot_dimension_numbers<[1], [0], [0], [1], [0, 0, 1, 1], [], []>} : vector<64x288xbf16>, vector<288x32xbf16>, vector<64x32xf32> -> vector<64x32xf32>
    %180 = vector.broadcast %159 : vector<1x32xf32> to vector<64x32xf32>
    %181 = arith.addf %179, %180 : vector<64x32xf32>
    %cst_228 = arith.constant 0.000000e+00 : f32
    %182 = vector.broadcast %cst_228 : f32 to vector<64x32xf32>
    %183 = arith.maximumf %181, %182 : vector<64x32xf32>
    %184 = arith.truncf %183 : vector<64x32xf32> to vector<64x32xbf16>
    %185 = vector.shape_cast %184 : vector<64x32xbf16> to vector<8x8x32xbf16>
    %c1_229 = arith.constant 1 : index
    %c1_230 = arith.constant 1 : index
    %c0_231 = arith.constant 0 : index
    %186 = vector.load %arg14[%c1_229, %c1_230, %c0_231] : memref<10x10x32xbf16, #tpu.memory_space<vmem>>, vector<8x8x32xbf16>
    tpu.vector_store %arg14[%c1_229, %c1_230, %c0_231], %185 {strides = array<i32>} : memref<10x10x32xbf16, #tpu.memory_space<vmem>>, vector<8x8x32xbf16>,
    %c0_232 = arith.constant 0 : index
    %c0_233 = arith.constant 0 : index
    %187 = vector.load %arg10[%c0_232, %c0_233] : memref<288x5xbf16, #tpu.memory_space<vmem>>, vector<288x5xbf16>
    %c0_234 = arith.constant 0 : index
    %c0_235 = arith.constant 0 : index
    %188 = vector.load %arg11[%c0_234, %c0_235] : memref<1x5xf32, #tpu.memory_space<vmem>>, vector<1x5xf32>
    %c0_236 = arith.constant 0 : index
    %c0_237 = arith.constant 0 : index
    %c0_238 = arith.constant 0 : index
    %189 = vector.load %arg14[%c0_236, %c0_237, %c0_238] : memref<10x10x32xbf16, #tpu.memory_space<vmem>>, vector<8x8x32xbf16>
    %190 = vector.shape_cast %189 : vector<8x8x32xbf16> to vector<64x32xbf16>
    %c0_239 = arith.constant 0 : index
    %c1_240 = arith.constant 1 : index
    %c0_241 = arith.constant 0 : index
    %191 = vector.load %arg14[%c0_239, %c1_240, %c0_241] : memref<10x10x32xbf16, #tpu.memory_space<vmem>>, vector<8x8x32xbf16>
    %192 = vector.shape_cast %191 : vector<8x8x32xbf16> to vector<64x32xbf16>
    %c0_242 = arith.constant 0 : index
    %c2_243 = arith.constant 2 : index
    %c0_244 = arith.constant 0 : index
    %193 = vector.load %arg14[%c0_242, %c2_243, %c0_244] : memref<10x10x32xbf16, #tpu.memory_space<vmem>>, vector<8x8x32xbf16>
    %194 = vector.shape_cast %193 : vector<8x8x32xbf16> to vector<64x32xbf16>
    %c1_245 = arith.constant 1 : index
    %c0_246 = arith.constant 0 : index
    %c0_247 = arith.constant 0 : index
    %195 = vector.load %arg14[%c1_245, %c0_246, %c0_247] : memref<10x10x32xbf16, #tpu.memory_space<vmem>>, vector<8x8x32xbf16>
    %196 = vector.shape_cast %195 : vector<8x8x32xbf16> to vector<64x32xbf16>
    %c1_248 = arith.constant 1 : index
    %c1_249 = arith.constant 1 : index
    %c0_250 = arith.constant 0 : index
    %197 = vector.load %arg14[%c1_248, %c1_249, %c0_250] : memref<10x10x32xbf16, #tpu.memory_space<vmem>>, vector<8x8x32xbf16>
    %198 = vector.shape_cast %197 : vector<8x8x32xbf16> to vector<64x32xbf16>
    %c1_251 = arith.constant 1 : index
    %c2_252 = arith.constant 2 : index
    %c0_253 = arith.constant 0 : index
    %199 = vector.load %arg14[%c1_251, %c2_252, %c0_253] : memref<10x10x32xbf16, #tpu.memory_space<vmem>>, vector<8x8x32xbf16>
    %200 = vector.shape_cast %199 : vector<8x8x32xbf16> to vector<64x32xbf16>
    %c2_254 = arith.constant 2 : index
    %c0_255 = arith.constant 0 : index
    %c0_256 = arith.constant 0 : index
    %201 = vector.load %arg14[%c2_254, %c0_255, %c0_256] : memref<10x10x32xbf16, #tpu.memory_space<vmem>>, vector<8x8x32xbf16>
    %202 = vector.shape_cast %201 : vector<8x8x32xbf16> to vector<64x32xbf16>
    %c2_257 = arith.constant 2 : index
    %c1_258 = arith.constant 1 : index
    %c0_259 = arith.constant 0 : index
    %203 = vector.load %arg14[%c2_257, %c1_258, %c0_259] : memref<10x10x32xbf16, #tpu.memory_space<vmem>>, vector<8x8x32xbf16>
    %204 = vector.shape_cast %203 : vector<8x8x32xbf16> to vector<64x32xbf16>
    %c2_260 = arith.constant 2 : index
    %c2_261 = arith.constant 2 : index
    %c0_262 = arith.constant 0 : index
    %205 = vector.load %arg14[%c2_260, %c2_261, %c0_262] : memref<10x10x32xbf16, #tpu.memory_space<vmem>>, vector<8x8x32xbf16>
    %206 = vector.shape_cast %205 : vector<8x8x32xbf16> to vector<64x32xbf16>
    %207 = tpu.concatenate %190, %192, %194, %196, %198, %200, %202, %204, %206 in 1 : vector<64x32xbf16>, vector<64x32xbf16>, vector<64x32xbf16>, vector<64x32xbf16>, vector<64x32xbf16>, vector<64x32xbf16>, vector<64x32xbf16>, vector<64x32xbf16>, vector<64x32xbf16> -> vector<64x288xbf16>
    %cst_263 = arith.constant dense<0.000000e+00> : vector<64x5xf32>
    %208 = tpu.matmul %207, %187, %cst_263 {dimension_numbers = #tpu.dot_dimension_numbers<[1], [0], [0], [1], [0, 0, 1, 1], [], []>} : vector<64x288xbf16>, vector<288x5xbf16>, vector<64x5xf32> -> vector<64x5xf32>
    %209 = vector.broadcast %188 : vector<1x5xf32> to vector<64x5xf32>
    %210 = arith.addf %208, %209 : vector<64x5xf32>
    %211 = vector.extract_strided_slice %210 {offsets = [0, 0], sizes = [64, 1], strides = [1, 1]} : vector<64x5xf32> to vector<64x1xf32>
    %212 = vector.extract_strided_slice %210 {offsets = [0, 1], sizes = [64, 4], strides = [1, 1]} : vector<64x5xf32> to vector<64x4xf32>
    %213 = math.exp %89 : vector<64x8xf32>
    %cst_264 = arith.constant 1.000000e+08 : f32
    %214 = vector.broadcast %cst_264 : f32 to vector<64x8xf32>
    %215 = arith.minimumf %213, %214 : vector<64x8xf32>
    %216 = math.exp %211 : vector<64x1xf32>
    %cst_265 = arith.constant 1.000000e+08 : f32
    %217 = vector.broadcast %cst_265 : f32 to vector<64x1xf32>
    %218 = arith.minimumf %216, %217 : vector<64x1xf32>
    %219 = vector.broadcast %211 : vector<64x1xf32> to vector<64x8xf32>
    %220 = arith.addf %89, %219 : vector<64x8xf32>
    %cst_266 = arith.constant 1.000000e+00 : f32
    %221 = vector.broadcast %cst_266 : f32 to vector<64x8xf32>
    %222 = arith.addf %221, %215 : vector<64x8xf32>
    %223 = vector.broadcast %218 : vector<64x1xf32> to vector<64x8xf32>
    %224 = arith.addf %222, %223 : vector<64x8xf32>
    %225 = math.log %224 : vector<64x8xf32>
    %226 = arith.subf %220, %225 : vector<64x8xf32>
    %227 = tpu.concatenate %226, %212 in 1 : vector<64x8xf32>, vector<64x4xf32> -> vector<64x12xf32>
    %c0_267 = arith.constant 0 : index
    %c0_268 = arith.constant 0 : index
    %c0_269 = arith.constant 0 : index
    %228 = vector.load %arg12[%c0_267, %c0_268, %c0_269] : memref<1x64x12xf32, #tpu.memory_space<vmem>>, vector<1x64x12xf32>
    %229 = vector.shape_cast %228 : vector<1x64x12xf32> to vector<64x12xf32>
    %230 = vector.shape_cast %227 : vector<64x12xf32> to vector<1x64x12xf32>
    tpu.vector_store %arg12[%c0_267, %c0_268, %c0_269], %230 {strides = array<i32>} : memref<1x64x12xf32, #tpu.memory_space<vmem>>, vector<1x64x12xf32>,
    return
  }
  func.func @transform_0(%arg0: i32) -> (i32, i32, i32, i32) {
    %c0_i32 = arith.constant 0 : i32
    %c0_i32_0 = arith.constant 0 : i32
    %c0_i32_1 = arith.constant 0 : i32
    %c0_i32_2 = arith.constant 0 : i32
    return %arg0, %c0_i32, %c0_i32_0, %c0_i32_1 : i32, i32, i32, i32
  }
  func.func @transform_1(%arg0: i32) -> (i32, i32) {
    %c0_i32 = arith.constant 0 : i32
    %c0_i32_0 = arith.constant 0 : i32
    %c0_i32_1 = arith.constant 0 : i32
    return %c0_i32, %c0_i32_0 : i32, i32
  }
  func.func @transform_2(%arg0: i32) -> (i32, i32) {
    %c0_i32 = arith.constant 0 : i32
    %c0_i32_0 = arith.constant 0 : i32
    %c0_i32_1 = arith.constant 0 : i32
    return %c0_i32, %c0_i32_0 : i32, i32
  }
  func.func @transform_3(%arg0: i32) -> (i32, i32) {
    %c0_i32 = arith.constant 0 : i32
    %c0_i32_0 = arith.constant 0 : i32
    %c0_i32_1 = arith.constant 0 : i32
    return %c0_i32, %c0_i32_0 : i32, i32
  }
  func.func @transform_4(%arg0: i32) -> (i32, i32) {
    %c0_i32 = arith.constant 0 : i32
    %c0_i32_0 = arith.constant 0 : i32
    %c0_i32_1 = arith.constant 0 : i32
    return %c0_i32, %c0_i32_0 : i32, i32
  }
  func.func @transform_5(%arg0: i32) -> (i32, i32, i32) {
    %c0_i32 = arith.constant 0 : i32
    %c0_i32_0 = arith.constant 0 : i32
    %c0_i32_1 = arith.constant 0 : i32
    %c0_i32_2 = arith.constant 0 : i32
    return %c0_i32, %c0_i32_0, %c0_i32_1 : i32, i32, i32
  }
  func.func @transform_6(%arg0: i32) -> (i32, i32, i32) {
    %c0_i32 = arith.constant 0 : i32
    %c0_i32_0 = arith.constant 0 : i32
    %c0_i32_1 = arith.constant 0 : i32
    %c0_i32_2 = arith.constant 0 : i32
    return %c0_i32, %c0_i32_0, %c0_i32_1 : i32, i32, i32
  }
  func.func @transform_7(%arg0: i32) -> (i32, i32) {
    %c0_i32 = arith.constant 0 : i32
    %c0_i32_0 = arith.constant 0 : i32
    %c0_i32_1 = arith.constant 0 : i32
    return %c0_i32, %c0_i32_0 : i32, i32
  }
  func.func @transform_8(%arg0: i32) -> (i32, i32) {
    %c0_i32 = arith.constant 0 : i32
    %c0_i32_0 = arith.constant 0 : i32
    %c0_i32_1 = arith.constant 0 : i32
    return %c0_i32, %c0_i32_0 : i32, i32
  }
  func.func @transform_9(%arg0: i32) -> (i32, i32) {
    %c0_i32 = arith.constant 0 : i32
    %c0_i32_0 = arith.constant 0 : i32
    %c0_i32_1 = arith.constant 0 : i32
    return %c0_i32, %c0_i32_0 : i32, i32
  }
  func.func @transform_10(%arg0: i32) -> (i32, i32) {
    %c0_i32 = arith.constant 0 : i32
    %c0_i32_0 = arith.constant 0 : i32
    %c0_i32_1 = arith.constant 0 : i32
    return %c0_i32, %c0_i32_0 : i32, i32
  }
  func.func @transform_11(%arg0: i32) -> (i32, i32, i32) {
    %c0_i32 = arith.constant 0 : i32
    %c0_i32_0 = arith.constant 0 : i32
    %c0_i32_1 = arith.constant 0 : i32
    return %arg0, %c0_i32, %c0_i32_0 : i32, i32, i32
  }
}

</mosaic_0001>

<llo_original>
// kernel: decoupled_head_forward.1
$region0: #{decoupled_head_forward.1}
  #allocation0 [shape = 'u32[]', space=smem, size = 0x4, offset = 0x4, fixed_abs, tag = 'smem constant byte address 0x4 - core index']
  #allocation1 [shape = 'u32[144,128]{1,0:T(1,128)}', space=vmem, size = 0x12000, scoped, tag = 'internal scratch']
  #allocation2 [shape = 'bf16[10,10,32]{2,1,0:T(8,128)(2,1)}', space=vmem, size = 0xa000, scoped, tag = 'scratch operand']
  #allocation3 [shape = 'bf16[10,10,32]{2,1,0:T(8,128)(2,1)}', space=vmem, size = 0xa000, scoped, tag = 'scratch operand']
  %s0 = inlined_call_operand.vmem [shape: bf16[2,8,8,32], index: 0, kind: input, shape index: {}]
  %s1 = inlined_call_operand.vmem [shape: bf16[288,64], index: 1, kind: input, shape index: {}]
  %s2 = inlined_call_operand.vmem [shape: f32[1,64], index: 2, kind: input, shape index: {}]
  %s3 = inlined_call_operand.vmem [shape: bf16[288,32], index: 3, kind: input, shape index: {}]
  %s4 = inlined_call_operand.vmem [shape: f32[1,32], index: 4, kind: input, shape index: {}]
  %s5 = inlined_call_operand.vmem [shape: bf16[3,288,32], index: 5, kind: input, shape index: {}]
  %s6 = inlined_call_operand.vmem [shape: f32[3,1,32], index: 6, kind: input, shape index: {}]
  %s7 = inlined_call_operand.vmem [shape: bf16[288,8], index: 7, kind: input, shape index: {}]
  %s8 = inlined_call_operand.vmem [shape: f32[1,8], index: 8, kind: input, shape index: {}]
  %s9 = inlined_call_operand.vmem [shape: bf16[288,5], index: 9, kind: input, shape index: {}]
  %s10 = inlined_call_operand.vmem [shape: f32[1,5], index: 10, kind: input, shape index: {}]
  %s11 = inlined_call_operand.vmem [shape: f32[2,64,12], index: 11, kind: output, shape index: {}]
  %s12 = sld [smem:[#allocation0]]
  $region77: #{decoupled_head_forward.1} parent=0
    _
  %s14 = ssub.s32 1, %s12
  %s15 = scalar_select 0, %s14, %s12
  loop: start=0, step=1, limit=4
  $region2: #{decoupled_head_forward.1} parent=0 // loop_pre_header
    _
  $region3: #{decoupled_head_forward.1} parent=0 // loop_header
    %s17 = sphi 0, %s21
    %p18 = scmp.ge.s32.totalorder %s17, 4
    %s27 = sphi 0, %s29
    %s30 = sphi 0, %s27
    %s31 = sphi 0, %s30
    %s47 = sphi 0, %s31
    %s51 = sphi 0, %s51
    %s53 = sphi 0, %s51
    %s54 = sphi 0, %s53
    %s68 = sphi 0, %s54
    %s72 = sphi 0, %s72
    %s74 = sphi 0, %s72
    %s75 = sphi 0, %s74
    %s89 = sphi 0, %s75
    %s93 = sphi 0, %s93
    %s95 = sphi 0, %s93
    %s96 = sphi 0, %s95
    %s110 = sphi 0, %s96
    %s114 = sphi 0, %s114
    %s116 = sphi 0, %s114
    %s117 = sphi 0, %s116
    %s131 = sphi 0, %s117
    %s135 = sphi 0, %s135
    %s137 = sphi 0, %s135
    %s138 = sphi 0, %s137
    %s152 = sphi 0, %s138
    %s156 = sphi 0, %s156
    %s158 = sphi 0, %s156
    %s159 = sphi 0, %s158
    %s173 = sphi 0, %s159
    %s177 = sphi 0, %s177
    %s179 = sphi 0, %s177
    %s180 = sphi 0, %s179
    %s194 = sphi 0, %s180
    %s198 = sphi 0, %s198
    %s200 = sphi 0, %s198
    %s201 = sphi 0, %s200
    %s215 = sphi 0, %s201
    %s219 = sphi 0, %s219
    %s221 = sphi 0, %s219
    %s222 = sphi 0, %s221
    %s236 = sphi 0, %s222
    %s240 = sphi 0, %s240
    %s242 = sphi 0, %s240
    %s243 = sphi 0, %s242
    %s257 = sphi 0, %s243
    %s263 = sphi 0, %s265
    %s266 = sphi 0, %s263
    %s267 = sphi 0, %s266
    %s283 = sphi 0, %s267
  $region4: #{decoupled_head_forward.1} parent=0 // loop_header_branch
    %20 = sbr.rel (%p18) target = $region8
  $region5: #{decoupled_head_forward.1} parent=0 // loop_body
    %s22 = ssub.s32 %s17, 1
    %s23 = ssub.s32 %s17, 2
    %s24 = sadd.s32 %s17, 1
    %s25 = ssub.s32 %s17, %s24
    %p26 = scmp.eq.s32.totalorder %s25, 0
    %s28 = sadd.s32 %s27, 1
    %s29 = scalar_select %p26, %s27, %s28
    %p32 = pneg %p26
    %p33 = scmp.eq.s32.totalorder %s17, 1
    %p34 = por %p32, %p33
    %p35 = scmp.ne.s32.totalorder %s27, %s30
    %p36 = scmp.eq.s32.totalorder %s17, 0
    %p37 = por %p35, %p36
    %p38 = scmp.ne.s32.totalorder %s27, %s30
    %p39 = scmp.eq.s32.totalorder %s22, 1
    %p40 = por %p38, %p39
    %p41 = scmp.ne.s32.totalorder %s30, %s31
    %p42 = scmp.eq.s32.totalorder %s22, 0
    %p43 = por %p41, %p42
    %p44 = scmp.ne.s32.totalorder %s30, %s31
    %p45 = scmp.eq.s32.totalorder %s23, 1
    %p46 = por %p44, %p45
    %p48 = scmp.ne.s32.totalorder %s31, %s47
    %p49 = scmp.eq.s32.totalorder %s23, 0
    %p50 = por %p48, %p49
    %s52 = sadd.s32 %s51, 1
    %p55 = scmp.eq.s32.totalorder %s17, 1
    %p56 = scmp.ne.s32.totalorder %s51, %s53
    %p57 = scmp.eq.s32.totalorder %s17, 0
    %p58 = por %p56, %p57
    %p59 = scmp.ne.s32.totalorder %s51, %s53
    %p60 = scmp.eq.s32.totalorder %s22, 1
    %p61 = por %p59, %p60
    %p62 = scmp.ne.s32.totalorder %s53, %s54
    %p63 = scmp.eq.s32.totalorder %s22, 0
    %p64 = por %p62, %p63
    %p65 = scmp.ne.s32.totalorder %s53, %s54
    %p66 = scmp.eq.s32.totalorder %s23, 1
    %p67 = por %p65, %p66
    %p69 = scmp.ne.s32.totalorder %s54, %s68
    %p70 = scmp.eq.s32.totalorder %s23, 0
    %p71 = por %p69, %p70
    %s73 = sadd.s32 %s72, 1
    %p76 = scmp.eq.s32.totalorder %s17, 1
    %p77 = scmp.ne.s32.totalorder %s72, %s74
    %p78 = scmp.eq.s32.totalorder %s17, 0
    %p79 = por %p77, %p78
    %p80 = scmp.ne.s32.totalorder %s72, %s74
    %p81 = scmp.eq.s32.totalorder %s22, 1
    %p82 = por %p80, %p81
    %p83 = scmp.ne.s32.totalorder %s74, %s75
    %p84 = scmp.eq.s32.totalorder %s22, 0
    %p85 = por %p83, %p84
    %p86 = scmp.ne.s32.totalorder %s74, %s75
    %p87 = scmp.eq.s32.totalorder %s23, 1
    %p88 = por %p86, %p87
    %p90 = scmp.ne.s32.totalorder %s75, %s89
    %p91 = scmp.eq.s32.totalorder %s23, 0
    %p92 = por %p90, %p91
    %s94 = sadd.s32 %s93, 1
    %p97 = scmp.eq.s32.totalorder %s17, 1
    %p98 = scmp.ne.s32.totalorder %s93, %s95
    %p99 = scmp.eq.s32.totalorder %s17, 0
    %p100 = por %p98, %p99
    %p101 = scmp.ne.s32.totalorder %s93, %s95
    %p102 = scmp.eq.s32.totalorder %s22, 1
    %p103 = por %p101, %p102
    %p104 = scmp.ne.s32.totalorder %s95, %s96
    %p105 = scmp.eq.s32.totalorder %s22, 0
    %p106 = por %p104, %p105
    %p107 = scmp.ne.s32.totalorder %s95, %s96
    %p108 = scmp.eq.s32.totalorder %s23, 1
    %p109 = por %p107, %p108
    %p111 = scmp.ne.s32.totalorder %s96, %s110
    %p112 = scmp.eq.s32.totalorder %s23, 0
    %p113 = por %p111, %p112
    %s115 = sadd.s32 %s114, 1
    %p118 = scmp.eq.s32.totalorder %s17, 1
    %p119 = scmp.ne.s32.totalorder %s114, %s116
    %p120 = scmp.eq.s32.totalorder %s17, 0
    %p121 = por %p119, %p120
    %p122 = scmp.ne.s32.totalorder %s114, %s116
    %p123 = scmp.eq.s32.totalorder %s22, 1
    %p124 = por %p122, %p123
    %p125 = scmp.ne.s32.totalorder %s116, %s117
    %p126 = scmp.eq.s32.totalorder %s22, 0
    %p127 = por %p125, %p126
    %p128 = scmp.ne.s32.totalorder %s116, %s117
    %p129 = scmp.eq.s32.totalorder %s23, 1
    %p130 = por %p128, %p129
    %p132 = scmp.ne.s32.totalorder %s117, %s131
    %p133 = scmp.eq.s32.totalorder %s23, 0
    %p134 = por %p132, %p133
    %s136 = sadd.s32 %s135, 1
    %p139 = scmp.eq.s32.totalorder %s17, 1
    %p140 = scmp.ne.s32.totalorder %s135, %s137
    %p141 = scmp.eq.s32.totalorder %s17, 0
    %p142 = por %p140, %p141
    %p143 = scmp.ne.s32.totalorder %s135, %s137
    %p144 = scmp.eq.s32.totalorder %s22, 1
    %p145 = por %p143, %p144
    %p146 = scmp.ne.s32.totalorder %s137, %s138
    %p147 = scmp.eq.s32.totalorder %s22, 0
    %p148 = por %p146, %p147
    %p149 = scmp.ne.s32.totalorder %s137, %s138
    %p150 = scmp.eq.s32.totalorder %s23, 1
    %p151 = por %p149, %p150
    %p153 = scmp.ne.s32.totalorder %s138, %s152
    %p154 = scmp.eq.s32.totalorder %s23, 0
    %p155 = por %p153, %p154
    %s157 = sadd.s32 %s156, 1
    %p160 = scmp.eq.s32.totalorder %s17, 1
    %p161 = scmp.ne.s32.totalorder %s156, %s158
    %p162 = scmp.eq.s32.totalorder %s17, 0
    %p163 = por %p161, %p162
    %p164 = scmp.ne.s32.totalorder %s156, %s158
    %p165 = scmp.eq.s32.totalorder %s22, 1
    %p166 = por %p164, %p165
    %p167 = scmp.ne.s32.totalorder %s158, %s159
    %p168 = scmp.eq.s32.totalorder %s22, 0
    %p169 = por %p167, %p168
    %p170 = scmp.ne.s32.totalorder %s158, %s159
    %p171 = scmp.eq.s32.totalorder %s23, 1
    %p172 = por %p170, %p171
    %p174 = scmp.ne.s32.totalorder %s159, %s173
    %p175 = scmp.eq.s32.totalorder %s23, 0
    %p176 = por %p174, %p175
    %s178 = sadd.s32 %s177, 1
    %p181 = scmp.eq.s32.totalorder %s17, 1
    %p182 = scmp.ne.s32.totalorder %s177, %s179
    %p183 = scmp.eq.s32.totalorder %s17, 0
    %p184 = por %p182, %p183
    %p185 = scmp.ne.s32.totalorder %s177, %s179
    %p186 = scmp.eq.s32.totalorder %s22, 1
    %p187 = por %p185, %p186
    %p188 = scmp.ne.s32.totalorder %s179, %s180
    %p189 = scmp.eq.s32.totalorder %s22, 0
    %p190 = por %p188, %p189
    %p191 = scmp.ne.s32.totalorder %s179, %s180
    %p192 = scmp.eq.s32.totalorder %s23, 1
    %p193 = por %p191, %p192
    %p195 = scmp.ne.s32.totalorder %s180, %s194
    %p196 = scmp.eq.s32.totalorder %s23, 0
    %p197 = por %p195, %p196
    %s199 = sadd.s32 %s198, 1
    %p202 = scmp.eq.s32.totalorder %s17, 1
    %p203 = scmp.ne.s32.totalorder %s198, %s200
    %p204 = scmp.eq.s32.totalorder %s17, 0
    %p205 = por %p203, %p204
    %p206 = scmp.ne.s32.totalorder %s198, %s200
    %p207 = scmp.eq.s32.totalorder %s22, 1
    %p208 = por %p206, %p207
    %p209 = scmp.ne.s32.totalorder %s200, %s201
    %p210 = scmp.eq.s32.totalorder %s22, 0
    %p211 = por %p209, %p210
    %p212 = scmp.ne.s32.totalorder %s200, %s201
    %p213 = scmp.eq.s32.totalorder %s23, 1
    %p214 = por %p212, %p213
    %p216 = scmp.ne.s32.totalorder %s201, %s215
    %p217 = scmp.eq.s32.totalorder %s23, 0
    %p218 = por %p216, %p217
    %s220 = sadd.s32 %s219, 1
    %p223 = scmp.eq.s32.totalorder %s17, 1
    %p224 = scmp.ne.s32.totalorder %s219, %s221
    %p225 = scmp.eq.s32.totalorder %s17, 0
    %p226 = por %p224, %p225
    %p227 = scmp.ne.s32.totalorder %s219, %s221
    %p228 = scmp.eq.s32.totalorder %s22, 1
    %p229 = por %p227, %p228
    %p230 = scmp.ne.s32.totalorder %s221, %s222
    %p231 = scmp.eq.s32.totalorder %s22, 0
    %p232 = por %p230, %p231
    %p233 = scmp.ne.s32.totalorder %s221, %s222
    %p234 = scmp.eq.s32.totalorder %s23, 1
    %p235 = por %p233, %p234
    %p237 = scmp.ne.s32.totalorder %s222, %s236
    %p238 = scmp.eq.s32.totalorder %s23, 0
    %p239 = por %p237, %p238
    %s241 = sadd.s32 %s240, 1
    %p244 = scmp.eq.s32.totalorder %s17, 1
    %p245 = scmp.ne.s32.totalorder %s240, %s242
    %p246 = scmp.eq.s32.totalorder %s17, 0
    %p247 = por %p245, %p246
    %p248 = scmp.ne.s32.totalorder %s240, %s242
    %p249 = scmp.eq.s32.totalorder %s22, 1
    %p250 = por %p248, %p249
    %p251 = scmp.ne.s32.totalorder %s242, %s243
    %p252 = scmp.eq.s32.totalorder %s22, 0
    %p253 = por %p251, %p252
    %p254 = scmp.ne.s32.totalorder %s242, %s243
    %p255 = scmp.eq.s32.totalorder %s23, 1
    %p256 = por %p254, %p255
    %p258 = scmp.ne.s32.totalorder %s243, %s257
    %p259 = scmp.eq.s32.totalorder %s23, 0
    %p260 = por %p258, %p259
    %s261 = ssub.s32 %s17, %s24
    %p262 = scmp.eq.s32.totalorder %s261, 0
    %s264 = sadd.s32 %s263, 1
    %s265 = scalar_select %p262, %s263, %s264
    %p268 = pneg %p262
    %p269 = scmp.eq.s32.totalorder %s17, 1
    %p270 = por %p268, %p269
    %p271 = scmp.ne.s32.totalorder %s263, %s266
    %p272 = scmp.eq.s32.totalorder %s17, 0
    %p273 = por %p271, %p272
    %p274 = scmp.ne.s32.totalorder %s263, %s266
    %p275 = scmp.eq.s32.totalorder %s22, 1
    %p276 = por %p274, %p275
    %p277 = scmp.ne.s32.totalorder %s266, %s267
    %p278 = scmp.eq.s32.totalorder %s22, 0
    %p279 = por %p277, %p278
    %p280 = scmp.ne.s32.totalorder %s266, %s267
    %p281 = scmp.eq.s32.totalorder %s23, 1
    %p282 = por %p280, %p281
    %p284 = scmp.ne.s32.totalorder %s267, %s283
    %p285 = scmp.eq.s32.totalorder %s23, 0
    %p286 = por %p284, %p285
    %p287 = scmp.le.s32.totalorder 1, %s17
    %p288 = scmp.lt.s32.totalorder %s17, 3
    %p289 = pnand %p287, %p288
    %p290 = pneg %p289
    // Predicated region
    $region9: #{decoupled_head_forward.1} parent=5 // pred_check
      _
    $region10: #{decoupled_head_forward.1} parent=5 // pred_check_branch
      %292 = sbr.rel (%p289) target = $region12
    $region11: #{decoupled_head_forward.1} parent=5 // pred_region
      %s293 = ssub.s32 %s17, 1
      // Predicated region
      $region13: #{decoupled_head_forward.1} parent=11 // pred_check
        %p294 = pneg %p64
      $region14: #{decoupled_head_forward.1} parent=11 // pred_check_branch
        %296 = sbr.rel (%p294) target = $region16
      $region15: #{decoupled_head_forward.1} parent=11 // pred_region
        _
      $region16: #{decoupled_head_forward.1} parent=11 // pred_fallthru
        _
      // Predicated region
      $region17: #{decoupled_head_forward.1} parent=11 // pred_check
        %p297 = pneg %p85
      $region18: #{decoupled_head_forward.1} parent=11 // pred_check_branch
        %299 = sbr.rel (%p297) target = $region20
      $region19: #{decoupled_head_forward.1} parent=11 // pred_region
        _
      $region20: #{decoupled_head_forward.1} parent=11 // pred_fallthru
        _
      // Predicated region
      $region21: #{decoupled_head_forward.1} parent=11 // pred_check
        %p300 = pneg %p106
      $region22: #{decoupled_head_forward.1} parent=11 // pred_check_branch
        %302 = sbr.rel (%p300) target = $region24
      $region23: #{decoupled_head_forward.1} parent=11 // pred_region
        _
      $region24: #{decoupled_head_forward.1} parent=11 // pred_fallthru
        _
      // Predicated region
      $region25: #{decoupled_head_forward.1} parent=11 // pred_check
        %p303 = pneg %p127
      $region26: #{decoupled_head_forward.1} parent=11 // pred_check_branch
        %305 = sbr.rel (%p303) target = $region28
      $region27: #{decoupled_head_forward.1} parent=11 // pred_region
        _
      $region28: #{decoupled_head_forward.1} parent=11 // pred_fallthru
        _
      // Predicated region
      $region29: #{decoupled_head_forward.1} parent=11 // pred_check
        %p306 = pneg %p148
      $region30: #{decoupled_head_forward.1} parent=11 // pred_check_branch
        %308 = sbr.rel (%p306) target = $region32
      $region31: #{decoupled_head_forward.1} parent=11 // pred_region
        _
      $region32: #{decoupled_head_forward.1} parent=11 // pred_fallthru
        _
      // Predicated region
      $region33: #{decoupled_head_forward.1} parent=11 // pred_check
        %p309 = pneg %p169
      $region34: #{decoupled_head_forward.1} parent=11 // pred_check_branch
        %311 = sbr.rel (%p309) target = $region36
      $region35: #{decoupled_head_forward.1} parent=11 // pred_region
        _
      $region36: #{decoupled_head_forward.1} parent=11 // pred_fallthru
        _
      // Predicated region
      $region37: #{decoupled_head_forward.1} parent=11 // pred_check
        %p312 = pneg %p190
      $region38: #{decoupled_head_forward.1} parent=11 // pred_check_branch
        %314 = sbr.rel (%p312) target = $region40
      $region39: #{decoupled_head_forward.1} parent=11 // pred_region
        _
      $region40: #{decoupled_head_forward.1} parent=11 // pred_fallthru
        _
      // Predicated region
      $region41: #{decoupled_head_forward.1} parent=11 // pred_check
        %p315 = pneg %p211
      $region42: #{decoupled_head_forward.1} parent=11 // pred_check_branch
        %317 = sbr.rel (%p315) target = $region44
      $region43: #{decoupled_head_forward.1} parent=11 // pred_region
        _
      $region44: #{decoupled_head_forward.1} parent=11 // pred_fallthru
        _
      // Predicated region
      $region45: #{decoupled_head_forward.1} parent=11 // pred_check
        %p318 = pneg %p232
      $region46: #{decoupled_head_forward.1} parent=11 // pred_check_branch
        %320 = sbr.rel (%p318) target = $region48
      $region47: #{decoupled_head_forward.1} parent=11 // pred_region
        _
      $region48: #{decoupled_head_forward.1} parent=11 // pred_fallthru
        _
      // Predicated region
      $region49: #{decoupled_head_forward.1} parent=11 // pred_check
        %p321 = pneg %p253
      $region50: #{decoupled_head_forward.1} parent=11 // pred_check_branch
        %323 = sbr.rel (%p321) target = $region52
      $region51: #{decoupled_head_forward.1} parent=11 // pred_region
        _
      $region52: #{decoupled_head_forward.1} parent=11 // pred_fallthru
        _
    $region12: #{decoupled_head_forward.1} parent=5 // pred_fallthru
      _
    %p324 = scmp.lt.s32.totalorder %s17, 2
    // Predicated region
    $region53: #{decoupled_head_forward.1} parent=5 // pred_check
      %p325 = pneg %p324
    $region54: #{decoupled_head_forward.1} parent=5 // pred_check_branch
      %327 = sbr.rel (%p325) target = $region56
    $region55: #{decoupled_head_forward.1} parent=5 // pred_region
      // Predicated region
      $region57: #{decoupled_head_forward.1} parent=55 // pred_check
        %p328 = pneg %p37
      $region58: #{decoupled_head_forward.1} parent=55 // pred_check_branch
        %330 = sbr.rel (%p328) target = $region60
      $region59: #{decoupled_head_forward.1} parent=55 // pred_region
        %p331 = scmp.lt.s32.totalorder %s17, 1
        %s332 = scalar_select %p331, %s17, 1
        %s333 = smul.addr %s332, 8
        %s334 = smul.addr %s333, 4
        %s335 = scalar_lea.vmem %s0, %s334
      $region60: #{decoupled_head_forward.1} parent=55 // pred_fallthru
        _
    $region56: #{decoupled_head_forward.1} parent=5 // pred_fallthru
      _
    %p336 = scmp.le.s32.totalorder 1, %s17
    %p337 = scmp.lt.s32.totalorder %s17, 3
    %p338 = pnand %p336, %p337
    %p339 = pneg %p338
    // Predicated region
    $region61: #{decoupled_head_forward.1} parent=5 // pred_check
      _
    $region62: #{decoupled_head_forward.1} parent=5 // pred_check_branch
      %341 = sbr.rel (%p338) target = $region64
    $region63: #{decoupled_head_forward.1} parent=5 // pred_region
      %s342 = ssub.s32 %s17, 1
      %p343 = scmp.lt.s32.totalorder %s22, 1
      %s344 = scalar_select %p343, %s22, 1
      %s345 = smul.addr %s344, 8
      %s346 = smul.addr %s345, 4
      %s347 = scalar_lea.vmem %s0, %s346
      %p348 = pneg %p43
      %p349 = pneg %p40
      %p350 = pneg %p64
      %p351 = pneg %p61
      %p352 = pneg %p85
      %p353 = pneg %p82
      %p354 = pneg %p106
      %p355 = pneg %p103
      %p356 = pneg %p127
      %p357 = pneg %p124
      %p358 = pneg %p148
      %p359 = pneg %p145
      %p360 = pneg %p169
      %p361 = pneg %p166
      %p362 = pneg %p190
      %p363 = pneg %p187
      %p364 = pneg %p211
      %p365 = pneg %p208
      %p366 = pneg %p232
      %p367 = pneg %p229
      %p368 = pneg %p253
      %p369 = pneg %p250
      %p370 = pneg %p279
      %p371 = pneg %p276
      %p372 = scmp.lt.s32.totalorder %s22, 1
      %s373 = scalar_select %p372, %s22, 1
      %s374 = smul.addr %s373, 8
      %s375 = smul.addr %s374, 8
      %s376 = scalar_lea.vmem %s11, %s375
      %p377 = scmp.lt.s32.totalorder %s22, 1
      %s378 = scalar_select %p377, %s22, 1
      %s379 = smul.addr %s378, 8
      %s380 = smul.addr %s379, 4
      %s381 = scalar_lea.vmem %s0, %s380
      %p382 = scmp.lt.s32.totalorder %s22, 1
      %s383 = scalar_select %p382, %s22, 1
      %s384 = smul.addr %s383, 8
      %s385 = smul.addr %s384, 8
      %s386 = scalar_lea.vmem %s11, %s385
      %vm388 = vcmask 257024
      %389 = vst.msk [vmem:[#allocation2] sm:$0xf] %vm388, 0
      %vm390 = vcmask 253952
      %391 = vst.msk [vmem:[#allocation2 + $0x4] sm:$0x1] %vm390, 0
      %392 = vst.msk [vmem:[#allocation2 + $0x8] sm:$0xf] %vm388, 0
      %393 = vst.msk [vmem:[#allocation2 + $0xc] sm:$0x1] %vm390, 0
      %394 = vst.msk [vmem:[#allocation2 + $0x10] sm:$0xf] %vm388, 0
      %395 = vst.msk [vmem:[#allocation2 + $0x14] sm:$0x1] %vm390, 0
      %396 = vst.msk [vmem:[#allocation2 + $0x18] sm:$0xf] %vm388, 0
      %397 = vst.msk [vmem:[#allocation2 + $0x1c] sm:$0x1] %vm390, 0
      %398 = vst.msk [vmem:[#allocation2 + $0x20] sm:$0xf] %vm388, 0
      %399 = vst.msk [vmem:[#allocation2 + $0x24] sm:$0x1] %vm390, 0
      %400 = vst.msk [vmem:[#allocation2 + $0x28] sm:$0xf] %vm388, 0
      %401 = vst.msk [vmem:[#allocation2 + $0x2c] sm:$0x1] %vm390, 0
      %402 = vst.msk [vmem:[#allocation2 + $0x30] sm:$0xf] %vm388, 0
      %403 = vst.msk [vmem:[#allocation2 + $0x34] sm:$0x1] %vm390, 0
      %404 = vst.msk [vmem:[#allocation2 + $0x38] sm:$0xf] %vm388, 0
      %405 = vst.msk [vmem:[#allocation2 + $0x3c] sm:$0x1] %vm390, 0
      %406 = vst.msk [vmem:[#allocation2 + $0x40] sm:$0xf] %vm388, 0
      %407 = vst.msk [vmem:[#allocation2 + $0x44] sm:$0x1] %vm390, 0
      %408 = vst.msk [vmem:[#allocation2 + $0x48] sm:$0xf] %vm388, 0
      %409 = vst.msk [vmem:[#allocation2 + $0x4c] sm:$0x1] %vm390, 0
      %410 = vst.msk [vmem:[#allocation3] sm:$0xf] %vm388, 0
      %411 = vst.msk [vmem:[#allocation3 + $0x4] sm:$0x1] %vm390, 0
      %412 = vst.msk [vmem:[#allocation3 + $0x8] sm:$0xf] %vm388, 0
      %413 = vst.msk [vmem:[#allocation3 + $0xc] sm:$0x1] %vm390, 0
      %414 = vst.msk [vmem:[#allocation3 + $0x10] sm:$0xf] %vm388, 0
      %415 = vst.msk [vmem:[#allocation3 + $0x14] sm:$0x1] %vm390, 0
      %416 = vst.msk [vmem:[#allocation3 + $0x18] sm:$0xf] %vm388, 0
      %417 = vst.msk [vmem:[#allocation3 + $0x1c] sm:$0x1] %vm390, 0
      %418 = vst.msk [vmem:[#allocation3 + $0x20] sm:$0xf] %vm388, 0
      %419 = vst.msk [vmem:[#allocation3 + $0x24] sm:$0x1] %vm390, 0
      %420 = vst.msk [vmem:[#allocation3 + $0x28] sm:$0xf] %vm388, 0
      %421 = vst.msk [vmem:[#allocation3 + $0x2c] sm:$0x1] %vm390, 0
      %422 = vst.msk [vmem:[#allocation3 + $0x30] sm:$0xf] %vm388, 0
      %423 = vst.msk [vmem:[#allocation3 + $0x34] sm:$0x1] %vm390, 0
      %424 = vst.msk [vmem:[#allocation3 + $0x38] sm:$0xf] %vm388, 0
      %425 = vst.msk [vmem:[#allocation3 + $0x3c] sm:$0x1] %vm390, 0
      %426 = vst.msk [vmem:[#allocation3 + $0x40] sm:$0xf] %vm388, 0
      %427 = vst.msk [vmem:[#allocation3 + $0x44] sm:$0x1] %vm390, 0
      %428 = vst.msk [vmem:[#allocation3 + $0x48] sm:$0xf] %vm388, 0
      %429 = vst.msk [vmem:[#allocation3 + $0x4c] sm:$0x1] %vm390, 0
      %v430 = vld [vmem:[%s381] sm:$0xf]
      %v431 = vld [vmem:[%s381 + $0x4] sm:$0xf]
      %v432 = vld [vmem:[%s381 + $0x8] sm:$0xf]
      %v433 = vld [vmem:[%s381 + $0xc] sm:$0xf]
      %v434 = vld [vmem:[%s381 + $0x10] sm:$0xf]
      %v435 = vld [vmem:[%s381 + $0x14] sm:$0xf]
      %v436 = vld [vmem:[%s381 + $0x18] sm:$0xf]
      %v437 = vld [vmem:[%s381 + $0x1c] sm:$0xf]
      %v439 = vshrl.u32 %v430, 16
      %v441 = vrot.slane %v439, 7
      %v442 = vshll.u32 %v430, 16
      %v444 = vor.u32 %v441, %v442
      %v445 = vrot.slane %v441, 4
      %v447 = vshrl.u32 %v431, 16
      %v449 = vrot.slane %v447, 7
      %v450 = vshll.u32 %v431, 16
      %v452 = vor.u32 %v449, %v450
      %v453 = vrot.slane %v449, 4
      %v455 = vshrl.u32 %v432, 16
      %v457 = vrot.slane %v455, 7
      %v458 = vshll.u32 %v432, 16
      %v460 = vor.u32 %v457, %v458
      %v461 = vrot.slane %v457, 4
      %v463 = vshrl.u32 %v433, 16
      %v465 = vrot.slane %v463, 7
      %v466 = vshll.u32 %v433, 16
      %v468 = vor.u32 %v465, %v466
      %v469 = vrot.slane %v465, 4
      %v471 = vshrl.u32 %v434, 16
      %v473 = vrot.slane %v471, 7
      %v474 = vshll.u32 %v434, 16
      %v476 = vor.u32 %v473, %v474
      %v477 = vrot.slane %v473, 4
      %v479 = vshrl.u32 %v435, 16
      %v481 = vrot.slane %v479, 7
      %v482 = vshll.u32 %v435, 16
      %v484 = vor.u32 %v481, %v482
      %v485 = vrot.slane %v481, 4
      %v487 = vshrl.u32 %v436, 16
      %v489 = vrot.slane %v487, 7
      %v490 = vshll.u32 %v436, 16
      %v492 = vor.u32 %v489, %v490
      %v493 = vrot.slane %v489, 4
      %v495 = vshrl.u32 %v437, 16
      %v497 = vrot.slane %v495, 7
      %v498 = vshll.u32 %v437, 16
      %v500 = vor.u32 %v497, %v498
      %v501 = vrot.slane %v497, 4
      %s518 = scalar_lea.vmem [#allocation2], 8
      %vm519 = vcmask 257024
      %vm520 = vsmask.f32 7938
      %vm521 = vmand %vm519, %vm520
      %v522 = vld [vmem:[%s518] sm:$0xf]
      %v523 = vsel %vm521, %v444, %v522
      %524 = vst [vmem:[%s518] sm:$0xf] %v523
      %vm525 = vcmask 253952
      %vm526 = vsmask.f32 256
      %vm527 = vmand %vm525, %vm526
      %v528 = vld [vmem:[%s518 + $0x4] sm:$0x1]
      %v529 = vsel %vm527, %v445, %v528
      %530 = vst [vmem:[%s518 + $0x4] sm:$0x1] %v529
      %v531 = vld [vmem:[%s518 + $0x8] sm:$0xf]
      %v532 = vsel %vm521, %v452, %v531
      %533 = vst [vmem:[%s518 + $0x8] sm:$0xf] %v532
      %v534 = vld [vmem:[%s518 + $0xc] sm:$0x1]
      %v535 = vsel %vm527, %v453, %v534
      %536 = vst [vmem:[%s518 + $0xc] sm:$0x1] %v535
      %v537 = vld [vmem:[%s518 + $0x10] sm:$0xf]
      %v538 = vsel %vm521, %v460, %v537
      %539 = vst [vmem:[%s518 + $0x10] sm:$0xf] %v538
      %v540 = vld [vmem:[%s518 + $0x14] sm:$0x1]
      %v541 = vsel %vm527, %v461, %v540
      %542 = vst [vmem:[%s518 + $0x14] sm:$0x1] %v541
      %v543 = vld [vmem:[%s518 + $0x18] sm:$0xf]
      %v544 = vsel %vm521, %v468, %v543
      %545 = vst [vmem:[%s518 + $0x18] sm:$0xf] %v544
      %v546 = vld [vmem:[%s518 + $0x1c] sm:$0x1]
      %v547 = vsel %vm527, %v469, %v546
      %548 = vst [vmem:[%s518 + $0x1c] sm:$0x1] %v547
      %v549 = vld [vmem:[%s518 + $0x20] sm:$0xf]
      %v550 = vsel %vm521, %v476, %v549
      %551 = vst [vmem:[%s518 + $0x20] sm:$0xf] %v550
      %v552 = vld [vmem:[%s518 + $0x24] sm:$0x1]
      %v553 = vsel %vm527, %v477, %v552
      %554 = vst [vmem:[%s518 + $0x24] sm:$0x1] %v553
      %v555 = vld [vmem:[%s518 + $0x28] sm:$0xf]
      %v556 = vsel %vm521, %v484, %v555
      %557 = vst [vmem:[%s518 + $0x28] sm:$0xf] %v556
      %v558 = vld [vmem:[%s518 + $0x2c] sm:$0x1]
      %v559 = vsel %vm527, %v485, %v558
      %560 = vst [vmem:[%s518 + $0x2c] sm:$0x1] %v559
      %v561 = vld [vmem:[%s518 + $0x30] sm:$0xf]
      %v562 = vsel %vm521, %v492, %v561
      %563 = vst [vmem:[%s518 + $0x30] sm:$0xf] %v562
      %v564 = vld [vmem:[%s518 + $0x34] sm:$0x1]
      %v565 = vsel %vm527, %v493, %v564
      %566 = vst [vmem:[%s518 + $0x34] sm:$0x1] %v565
      %v567 = vld [vmem:[%s518 + $0x38] sm:$0xf]
      %v568 = vsel %vm521, %v500, %v567
      %569 = vst [vmem:[%s518 + $0x38] sm:$0xf] %v568
      %v570 = vld [vmem:[%s518 + $0x3c] sm:$0x1]
      %v571 = vsel %vm527, %v501, %v570
      %572 = vst [vmem:[%s518 + $0x3c] sm:$0x1] %v571
      %v573 = vld [vmem:[%s1] sm:$0xf]
      %v574 = vld [vmem:[%s1 + $0x4] sm:$0xf]
      %v575 = vld [vmem:[%s1 + $0x8] sm:$0xf]
      %v576 = vld [vmem:[%s1 + $0xc] sm:$0xf]
      %v577 = vld [vmem:[%s1 + $0x10] sm:$0xf]
      %v578 = vld [vmem:[%s1 + $0x14] sm:$0xf]
      %v579 = vld [vmem:[%s1 + $0x18] sm:$0xf]
      %v580 = vld [vmem:[%s1 + $0x1c] sm:$0xf]
      %v581 = vld [vmem:[%s1 + $0x20] sm:$0xf]
      %v582 = vld [vmem:[%s1 + $0x24] sm:$0xf]
      %v583 = vld [vmem:[%s1 + $0x28] sm:$0xf]
      %v584 = vld [vmem:[%s1 + $0x2c] sm:$0xf]
      %v585 = vld [vmem:[%s1 + $0x30] sm:$0xf]
      %v586 = vld [vmem:[%s1 + $0x34] sm:$0xf]
      %v587 = vld [vmem:[%s1 + $0x38] sm:$0xf]
      %v588 = vld [vmem:[%s1 + $0x3c] sm:$0xf]
      %v589 = vld [vmem:[%s1 + $0x40] sm:$0xf]
      %v590 = vld [vmem:[%s1 + $0x44] sm:$0xf]
      %v591 = vld [vmem:[%s1 + $0x48] sm:$0xf]
      %v592 = vld [vmem:[%s1 + $0x4c] sm:$0xf]
      %v593 = vld [vmem:[%s1 + $0x50] sm:$0xf]
      %v594 = vld [vmem:[%s1 + $0x54] sm:$0xf]
      %v595 = vld [vmem:[%s1 + $0x58] sm:$0xf]
      %v596 = vld [vmem:[%s1 + $0x5c] sm:$0xf]
      %v597 = vld [vmem:[%s1 + $0x60] sm:$0xf]
      %v598 = vld [vmem:[%s1 + $0x64] sm:$0xf]
      %v599 = vld [vmem:[%s1 + $0x68] sm:$0xf]
      %v600 = vld [vmem:[%s1 + $0x6c] sm:$0xf]
      %v601 = vld [vmem:[%s1 + $0x70] sm:$0xf]
      %v602 = vld [vmem:[%s1 + $0x74] sm:$0xf]
      %v603 = vld [vmem:[%s1 + $0x78] sm:$0xf]
      %v604 = vld [vmem:[%s1 + $0x7c] sm:$0xf]
      %v605 = vld [vmem:[%s1 + $0x80] sm:$0xf]
      %v606 = vld [vmem:[%s1 + $0x84] sm:$0xf]
      %v607 = vld [vmem:[%s1 + $0x88] sm:$0xf]
      %v608 = vld [vmem:[%s1 + $0x8c] sm:$0xf]
      %v609 = vld [vmem:[%s2] sm:$0x1]
      %v610 = vld [vmem:[#allocation2] sm:$0xf]
      %v611 = vld [vmem:[#allocation2 + $0x8] sm:$0xf]
      %v612 = vld [vmem:[#allocation2 + $0x10] sm:$0xf]
      %v613 = vld [vmem:[#allocation2 + $0x18] sm:$0xf]
      %v614 = vld [vmem:[#allocation2 + $0x20] sm:$0xf]
      %v615 = vld [vmem:[#allocation2 + $0x28] sm:$0xf]
      %v616 = vld [vmem:[#allocation2 + $0x30] sm:$0xf]
      %v617 = vld [vmem:[#allocation2 + $0x38] sm:$0xf]
      %v618 = vld [vmem:[#allocation2 + $0x4] sm:$0x1]
      %v619 = vld [vmem:[#allocation2 + $0xc] sm:$0x1]
      %v620 = vld [vmem:[#allocation2 + $0x14] sm:$0x1]
      %v621 = vld [vmem:[#allocation2 + $0x1c] sm:$0x1]
      %v622 = vld [vmem:[#allocation2 + $0x24] sm:$0x1]
      %v623 = vld [vmem:[#allocation2 + $0x2c] sm:$0x1]
      %v624 = vld [vmem:[#allocation2 + $0x34] sm:$0x1]
      %v625 = vld [vmem:[#allocation2 + $0x3c] sm:$0x1]
      %vm626 = vsmask.f32 3328
      %vm627 = vsmask.f32 7440
      %vm628 = vmor %vm626, %vm627
      %v630 = vshrl.u32 %v610, 16
      %v632 = vrot.slane %v630, 4
      %v633 = vshll.u32 %v610, 16
      %v635 = vrot.slane %v633, 5
      %v636 = vor.u32 %v632, %v635
      %v637 = vrot.slane %v636, 4
      %v639 = vshll.u32 %v618, 16
      %v641 = vrot.slane %v639, 5
      %v642 = vsel %vm628, %v637, %v641
      %v644 = vshrl.u32 %v611, 16
      %v646 = vrot.slane %v644, 4
      %v647 = vshll.u32 %v611, 16
      %v649 = vrot.slane %v647, 5
      %v650 = vor.u32 %v646, %v649
      %v651 = vrot.slane %v650, 4
      %v653 = vshll.u32 %v619, 16
      %v655 = vrot.slane %v653, 5
      %v656 = vsel %vm628, %v651, %v655
      %v658 = vshrl.u32 %v612, 16
      %v660 = vrot.slane %v658, 4
      %v661 = vshll.u32 %v612, 16
      %v663 = vrot.slane %v661, 5
      %v664 = vor.u32 %v660, %v663
      %v665 = vrot.slane %v664, 4
      %v667 = vshll.u32 %v620, 16
      %v669 = vrot.slane %v667, 5
      %v670 = vsel %vm628, %v665, %v669
      %v672 = vshrl.u32 %v613, 16
      %v674 = vrot.slane %v672, 4
      %v675 = vshll.u32 %v613, 16
      %v677 = vrot.slane %v675, 5
      %v678 = vor.u32 %v674, %v677
      %v679 = vrot.slane %v678, 4
      %v681 = vshll.u32 %v621, 16
      %v683 = vrot.slane %v681, 5
      %v684 = vsel %vm628, %v679, %v683
      %v686 = vshrl.u32 %v614, 16
      %v688 = vrot.slane %v686, 4
      %v689 = vshll.u32 %v614, 16
      %v691 = vrot.slane %v689, 5
      %v692 = vor.u32 %v688, %v691
      %v693 = vrot.slane %v692, 4
      %v695 = vshll.u32 %v622, 16
      %v697 = vrot.slane %v695, 5
      %v698 = vsel %vm628, %v693, %v697
      %v700 = vshrl.u32 %v615, 16
      %v702 = vrot.slane %v700, 4
      %v703 = vshll.u32 %v615, 16
      %v705 = vrot.slane %v703, 5
      %v706 = vor.u32 %v702, %v705
      %v707 = vrot.slane %v706, 4
      %v709 = vshll.u32 %v623, 16
      %v711 = vrot.slane %v709, 5
      %v712 = vsel %vm628, %v707, %v711
      %v714 = vshrl.u32 %v616, 16
      %v716 = vrot.slane %v714, 4
      %v717 = vshll.u32 %v616, 16
      %v719 = vrot.slane %v717, 5
      %v720 = vor.u32 %v716, %v719
      %v721 = vrot.slane %v720, 4
      %v723 = vshll.u32 %v624, 16
      %v725 = vrot.slane %v723, 5
      %v726 = vsel %vm628, %v721, %v725
      %v728 = vshrl.u32 %v617, 16
      %v730 = vrot.slane %v728, 4
      %v731 = vshll.u32 %v617, 16
      %v733 = vrot.slane %v731, 5
      %v734 = vor.u32 %v730, %v733
      %v735 = vrot.slane %v734, 4
      %v737 = vshll.u32 %v625, 16
      %v739 = vrot.slane %v737, 5
      %v740 = vsel %vm628, %v735, %v739
      %v741 = vld [vmem:[#allocation2] sm:$0xe]
      %v742 = vld [vmem:[#allocation2 + $0x8] sm:$0xe]
      %v743 = vld [vmem:[#allocation2 + $0x10] sm:$0xe]
      %v744 = vld [vmem:[#allocation2 + $0x18] sm:$0xe]
      %v745 = vld [vmem:[#allocation2 + $0x20] sm:$0xe]
      %v746 = vld [vmem:[#allocation2 + $0x28] sm:$0xe]
      %v747 = vld [vmem:[#allocation2 + $0x30] sm:$0xe]
      %v748 = vld [vmem:[#allocation2 + $0x38] sm:$0xe]
      %vm765 = vcmask 1042432
      %vm766 = vcmask 1046532
      %vm767 = vmor %vm765, %vm766
      %v768 = vrot.slane %v741, 5
      %v769 = vrot.slane %v768, 4
      %v770 = vrot.slane %v618, 5
      %v771 = vsel %vm767, %v769, %v770
      %v772 = vrot.slane %v742, 5
      %v773 = vrot.slane %v772, 4
      %v774 = vrot.slane %v619, 5
      %v775 = vsel %vm767, %v773, %v774
      %v776 = vrot.slane %v743, 5
      %v777 = vrot.slane %v776, 4
      %v778 = vrot.slane %v620, 5
      %v779 = vsel %vm767, %v777, %v778
      %v780 = vrot.slane %v744, 5
      %v781 = vrot.slane %v780, 4
      %v782 = vrot.slane %v621, 5
      %v783 = vsel %vm767, %v781, %v782
      %v784 = vrot.slane %v745, 5
      %v785 = vrot.slane %v784, 4
      %v786 = vrot.slane %v622, 5
      %v787 = vsel %vm767, %v785, %v786
      %v788 = vrot.slane %v746, 5
      %v789 = vrot.slane %v788, 4
      %v790 = vrot.slane %v623, 5
      %v791 = vsel %vm767, %v789, %v790
      %v792 = vrot.slane %v747, 5
      %v793 = vrot.slane %v792, 4
      %v794 = vrot.slane %v624, 5
      %v795 = vsel %vm767, %v793, %v794
      %v796 = vrot.slane %v748, 5
      %v797 = vrot.slane %v796, 4
      %v798 = vrot.slane %v625, 5
      %v799 = vsel %vm767, %v797, %v798
      %v800 = vld [vmem:[%s518] sm:$0xf]
      %v801 = vld [vmem:[%s518 + $0x8] sm:$0xf]
      %v802 = vld [vmem:[%s518 + $0x10] sm:$0xf]
      %v803 = vld [vmem:[%s518 + $0x18] sm:$0xf]
      %v804 = vld [vmem:[%s518 + $0x20] sm:$0xf]
      %v805 = vld [vmem:[%s518 + $0x28] sm:$0xf]
      %v806 = vld [vmem:[%s518 + $0x30] sm:$0xf]
      %v807 = vld [vmem:[%s518 + $0x38] sm:$0xf]
      %v808 = vld [vmem:[%s518 + $0x4] sm:$0x1]
      %v809 = vld [vmem:[%s518 + $0xc] sm:$0x1]
      %v810 = vld [vmem:[%s518 + $0x14] sm:$0x1]
      %v811 = vld [vmem:[%s518 + $0x1c] sm:$0x1]
      %v812 = vld [vmem:[%s518 + $0x24] sm:$0x1]
      %v813 = vld [vmem:[%s518 + $0x2c] sm:$0x1]
      %v814 = vld [vmem:[%s518 + $0x34] sm:$0x1]
      %v815 = vld [vmem:[%s518 + $0x3c] sm:$0x1]
      %v817 = vshrl.u32 %v800, 16
      %v819 = vrot.slane %v817, 4
      %v820 = vshll.u32 %v800, 16
      %v822 = vrot.slane %v820, 5
      %v823 = vor.u32 %v819, %v822
      %v824 = vrot.slane %v823, 4
      %v826 = vshll.u32 %v808, 16
      %v828 = vrot.slane %v826, 5
      %v829 = vsel %vm628, %v824, %v828
      %v831 = vshrl.u32 %v801, 16
      %v833 = vrot.slane %v831, 4
      %v834 = vshll.u32 %v801, 16
      %v836 = vrot.slane %v834, 5
      %v837 = vor.u32 %v833, %v836
      %v838 = vrot.slane %v837, 4
      %v840 = vshll.u32 %v809, 16
      %v842 = vrot.slane %v840, 5
      %v843 = vsel %vm628, %v838, %v842
      %v845 = vshrl.u32 %v802, 16
      %v847 = vrot.slane %v845, 4
      %v848 = vshll.u32 %v802, 16
      %v850 = vrot.slane %v848, 5
      %v851 = vor.u32 %v847, %v850
      %v852 = vrot.slane %v851, 4
      %v854 = vshll.u32 %v810, 16
      %v856 = vrot.slane %v854, 5
      %v857 = vsel %vm628, %v852, %v856
      %v859 = vshrl.u32 %v803, 16
      %v861 = vrot.slane %v859, 4
      %v862 = vshll.u32 %v803, 16
      %v864 = vrot.slane %v862, 5
      %v865 = vor.u32 %v861, %v864
      %v866 = vrot.slane %v865, 4
      %v868 = vshll.u32 %v811, 16
      %v870 = vrot.slane %v868, 5
      %v871 = vsel %vm628, %v866, %v870
      %v873 = vshrl.u32 %v804, 16
      %v875 = vrot.slane %v873, 4
      %v876 = vshll.u32 %v804, 16
      %v878 = vrot.slane %v876, 5
      %v879 = vor.u32 %v875, %v878
      %v880 = vrot.slane %v879, 4
      %v882 = vshll.u32 %v812, 16
      %v884 = vrot.slane %v882, 5
      %v885 = vsel %vm628, %v880, %v884
      %v887 = vshrl.u32 %v805, 16
      %v889 = vrot.slane %v887, 4
      %v890 = vshll.u32 %v805, 16
      %v892 = vrot.slane %v890, 5
      %v893 = vor.u32 %v889, %v892
      %v894 = vrot.slane %v893, 4
      %v896 = vshll.u32 %v813, 16
      %v898 = vrot.slane %v896, 5
      %v899 = vsel %vm628, %v894, %v898
      %v901 = vshrl.u32 %v806, 16
      %v903 = vrot.slane %v901, 4
      %v904 = vshll.u32 %v806, 16
      %v906 = vrot.slane %v904, 5
      %v907 = vor.u32 %v903, %v906
      %v908 = vrot.slane %v907, 4
      %v910 = vshll.u32 %v814, 16
      %v912 = vrot.slane %v910, 5
      %v913 = vsel %vm628, %v908, %v912
      %v915 = vshrl.u32 %v807, 16
      %v917 = vrot.slane %v915, 4
      %v918 = vshll.u32 %v807, 16
      %v920 = vrot.slane %v918, 5
      %v921 = vor.u32 %v917, %v920
      %v922 = vrot.slane %v921, 4
      %v924 = vshll.u32 %v815, 16
      %v926 = vrot.slane %v924, 5
      %v927 = vsel %vm628, %v922, %v926
      %v928 = vld [vmem:[%s518] sm:$0xe]
      %v929 = vld [vmem:[%s518 + $0x8] sm:$0xe]
      %v930 = vld [vmem:[%s518 + $0x10] sm:$0xe]
      %v931 = vld [vmem:[%s518 + $0x18] sm:$0xe]
      %v932 = vld [vmem:[%s518 + $0x20] sm:$0xe]
      %v933 = vld [vmem:[%s518 + $0x28] sm:$0xe]
      %v934 = vld [vmem:[%s518 + $0x30] sm:$0xe]
      %v935 = vld [vmem:[%s518 + $0x38] sm:$0xe]
      %v952 = vrot.slane %v928, 5
      %v953 = vrot.slane %v952, 4
      %v954 = vrot.slane %v808, 5
      %v955 = vsel %vm767, %v953, %v954
      %v956 = vrot.slane %v929, 5
      %v957 = vrot.slane %v956, 4
      %v958 = vrot.slane %v809, 5
      %v959 = vsel %vm767, %v957, %v958
      %v960 = vrot.slane %v930, 5
      %v961 = vrot.slane %v960, 4
      %v962 = vrot.slane %v810, 5
      %v963 = vsel %vm767, %v961, %v962
      %v964 = vrot.slane %v931, 5
      %v965 = vrot.slane %v964, 4
      %v966 = vrot.slane %v811, 5
      %v967 = vsel %vm767, %v965, %v966
      %v968 = vrot.slane %v932, 5
      %v969 = vrot.slane %v968, 4
      %v970 = vrot.slane %v812, 5
      %v971 = vsel %vm767, %v969, %v970
      %v972 = vrot.slane %v933, 5
      %v973 = vrot.slane %v972, 4
      %v974 = vrot.slane %v813, 5
      %v975 = vsel %vm767, %v973, %v974
      %v976 = vrot.slane %v934, 5
      %v977 = vrot.slane %v976, 4
      %v978 = vrot.slane %v814, 5
      %v979 = vsel %vm767, %v977, %v978
      %v980 = vrot.slane %v935, 5
      %v981 = vrot.slane %v980, 4
      %v982 = vrot.slane %v815, 5
      %v983 = vsel %vm767, %v981, %v982
      %s984 = scalar_lea.vmem [#allocation2], 16
      %v985 = vld [vmem:[%s984] sm:$0xf]
      %v986 = vld [vmem:[%s984 + $0x8] sm:$0xf]
      %v987 = vld [vmem:[%s984 + $0x10] sm:$0xf]
      %v988 = vld [vmem:[%s984 + $0x18] sm:$0xf]
      %v989 = vld [vmem:[%s984 + $0x20] sm:$0xf]
      %v990 = vld [vmem:[%s984 + $0x28] sm:$0xf]
      %v991 = vld [vmem:[%s984 + $0x30] sm:$0xf]
      %v992 = vld [vmem:[%s984 + $0x38] sm:$0xf]
      %v993 = vld [vmem:[%s984 + $0x4] sm:$0x1]
      %v994 = vld [vmem:[%s984 + $0xc] sm:$0x1]
      %v995 = vld [vmem:[%s984 + $0x14] sm:$0x1]
      %v996 = vld [vmem:[%s984 + $0x1c] sm:$0x1]
      %v997 = vld [vmem:[%s984 + $0x24] sm:$0x1]
      %v998 = vld [vmem:[%s984 + $0x2c] sm:$0x1]
      %v999 = vld [vmem:[%s984 + $0x34] sm:$0x1]
      %v1000 = vld [vmem:[%s984 + $0x3c] sm:$0x1]
      %v1002 = vshrl.u32 %v985, 16
      %v1004 = vrot.slane %v1002, 4
      %v1005 = vshll.u32 %v985, 16
      %v1007 = vrot.slane %v1005, 5
      %v1008 = vor.u32 %v1004, %v1007
      %v1009 = vrot.slane %v1008, 4
      %v1011 = vshll.u32 %v993, 16
      %v1013 = vrot.slane %v1011, 5
      %v1014 = vsel %vm628, %v1009, %v1013
      %v1016 = vshrl.u32 %v986, 16
      %v1018 = vrot.slane %v1016, 4
      %v1019 = vshll.u32 %v986, 16
      %v1021 = vrot.slane %v1019, 5
      %v1022 = vor.u32 %v1018, %v1021
      %v1023 = vrot.slane %v1022, 4
      %v1025 = vshll.u32 %v994, 16
      %v1027 = vrot.slane %v1025, 5
      %v1028 = vsel %vm628, %v1023, %v1027
      %v1030 = vshrl.u32 %v987, 16
      %v1032 = vrot.slane %v1030, 4
      %v1033 = vshll.u32 %v987, 16
      %v1035 = vrot.slane %v1033, 5
      %v1036 = vor.u32 %v1032, %v1035
      %v1037 = vrot.slane %v1036, 4
      %v1039 = vshll.u32 %v995, 16
      %v1041 = vrot.slane %v1039, 5
      %v1042 = vsel %vm628, %v1037, %v1041
      %v1044 = vshrl.u32 %v988, 16
      %v1046 = vrot.slane %v1044, 4
      %v1047 = vshll.u32 %v988, 16
      %v1049 = vrot.slane %v1047, 5
      %v1050 = vor.u32 %v1046, %v1049
      %v1051 = vrot.slane %v1050, 4
      %v1053 = vshll.u32 %v996, 16
      %v1055 = vrot.slane %v1053, 5
      %v1056 = vsel %vm628, %v1051, %v1055
      %v1058 = vshrl.u32 %v989, 16
      %v1060 = vrot.slane %v1058, 4
      %v1061 = vshll.u32 %v989, 16
      %v1063 = vrot.slane %v1061, 5
      %v1064 = vor.u32 %v1060, %v1063
      %v1065 = vrot.slane %v1064, 4
      %v1067 = vshll.u32 %v997, 16
      %v1069 = vrot.slane %v1067, 5
      %v1070 = vsel %vm628, %v1065, %v1069
      %v1072 = vshrl.u32 %v990, 16
      %v1074 = vrot.slane %v1072, 4
      %v1075 = vshll.u32 %v990, 16
      %v1077 = vrot.slane %v1075, 5
      %v1078 = vor.u32 %v1074, %v1077
      %v1079 = vrot.slane %v1078, 4
      %v1081 = vshll.u32 %v998, 16
      %v1083 = vrot.slane %v1081, 5
      %v1084 = vsel %vm628, %v1079, %v1083
      %v1086 = vshrl.u32 %v991, 16
      %v1088 = vrot.slane %v1086, 4
      %v1089 = vshll.u32 %v991, 16
      %v1091 = vrot.slane %v1089, 5
      %v1092 = vor.u32 %v1088, %v1091
      %v1093 = vrot.slane %v1092, 4
      %v1095 = vshll.u32 %v999, 16
      %v1097 = vrot.slane %v1095, 5
      %v1098 = vsel %vm628, %v1093, %v1097
      %v1100 = vshrl.u32 %v992, 16
      %v1102 = vrot.slane %v1100, 4
      %v1103 = vshll.u32 %v992, 16
      %v1105 = vrot.slane %v1103, 5
      %v1106 = vor.u32 %v1102, %v1105
      %v1107 = vrot.slane %v1106, 4
      %v1109 = vshll.u32 %v1000, 16
      %v1111 = vrot.slane %v1109, 5
      %v1112 = vsel %vm628, %v1107, %v1111
      %v1113 = vld [vmem:[%s984] sm:$0xe]
      %v1114 = vld [vmem:[%s984 + $0x8] sm:$0xe]
      %v1115 = vld [vmem:[%s984 + $0x10] sm:$0xe]
      %v1116 = vld [vmem:[%s984 + $0x18] sm:$0xe]
      %v1117 = vld [vmem:[%s984 + $0x20] sm:$0xe]
      %v1118 = vld [vmem:[%s984 + $0x28] sm:$0xe]
      %v1119 = vld [vmem:[%s984 + $0x30] sm:$0xe]
      %v1120 = vld [vmem:[%s984 + $0x38] sm:$0xe]
      %v1137 = vrot.slane %v1113, 5
      %v1138 = vrot.slane %v1137, 4
      %v1139 = vrot.slane %v993, 5
      %v1140 = vsel %vm767, %v1138, %v1139
      %v1141 = vrot.slane %v1114, 5
      %v1142 = vrot.slane %v1141, 4
      %v1143 = vrot.slane %v994, 5
      %v1144 = vsel %vm767, %v1142, %v1143
      %v1145 = vrot.slane %v1115, 5
      %v1146 = vrot.slane %v1145, 4
      %v1147 = vrot.slane %v995, 5
      %v1148 = vsel %vm767, %v1146, %v1147
      %v1149 = vrot.slane %v1116, 5
      %v1150 = vrot.slane %v1149, 4
      %v1151 = vrot.slane %v996, 5
      %v1152 = vsel %vm767, %v1150, %v1151
      %v1153 = vrot.slane %v1117, 5
      %v1154 = vrot.slane %v1153, 4
      %v1155 = vrot.slane %v997, 5
      %v1156 = vsel %vm767, %v1154, %v1155
      %v1157 = vrot.slane %v1118, 5
      %v1158 = vrot.slane %v1157, 4
      %v1159 = vrot.slane %v998, 5
      %v1160 = vsel %vm767, %v1158, %v1159
      %v1161 = vrot.slane %v1119, 5
      %v1162 = vrot.slane %v1161, 4
      %v1163 = vrot.slane %v999, 5
      %v1164 = vsel %vm767, %v1162, %v1163
      %v1165 = vrot.slane %v1120, 5
      %v1166 = vrot.slane %v1165, 4
      %v1167 = vrot.slane %v1000, 5
      %v1168 = vsel %vm767, %v1166, %v1167
      %v1177 = vunpack.c.l.b16 %v610
      %v1178 = vunpack.c.l.b16 %v611
      %v1179 = vunpack.c.l.b16 %v612
      %v1180 = vunpack.c.l.b16 %v613
      %v1181 = vunpack.c.l.b16 %v614
      %v1182 = vunpack.c.l.b16 %v615
      %v1183 = vunpack.c.l.b16 %v616
      %v1184 = vunpack.c.l.b16 %v617
      %v1185 = vpack.c.b16 %v1178, %v1177
      %v1186 = vpack.c.b16 %v1180, %v1179
      %v1187 = vpack.c.b16 %v1182, %v1181
      %v1188 = vpack.c.b16 %v1184, %v1183
      %v1189 = vunpack.c.l.b16 %v642
      %v1190 = vunpack.c.l.b16 %v656
      %v1191 = vunpack.c.l.b16 %v670
      %v1192 = vunpack.c.l.b16 %v684
      %v1193 = vunpack.c.l.b16 %v698
      %v1194 = vunpack.c.l.b16 %v712
      %v1195 = vunpack.c.l.b16 %v726
      %v1196 = vunpack.c.l.b16 %v740
      %v1197 = vpack.c.b16 %v1190, %v1189
      %v1198 = vpack.c.b16 %v1192, %v1191
      %v1199 = vpack.c.b16 %v1194, %v1193
      %v1200 = vpack.c.b16 %v1196, %v1195
      %1201 = vrot.lane.b32.xlu0 %v1197, 32
      %v1202 = vpop.permute.xlu0 %1201
      %1203 = vrot.lane.b32.xlu0 %v1198, 32
      %v1204 = vpop.permute.xlu0 %1203
      %1205 = vrot.lane.b32.xlu0 %v1199, 32
      %v1206 = vpop.permute.xlu0 %1205
      %1207 = vrot.lane.b32.xlu0 %v1200, 32
      %v1208 = vpop.permute.xlu0 %1207
      %v1209 = vunpack.c.l.b16 %v771
      %v1210 = vunpack.c.l.b16 %v775
      %v1211 = vunpack.c.l.b16 %v779
      %v1212 = vunpack.c.l.b16 %v783
      %v1213 = vunpack.c.l.b16 %v787
      %v1214 = vunpack.c.l.b16 %v791
      %v1215 = vunpack.c.l.b16 %v795
      %v1216 = vunpack.c.l.b16 %v799
      %v1217 = vpack.c.b16 %v1210, %v1209
      %v1218 = vpack.c.b16 %v1212, %v1211
      %v1219 = vpack.c.b16 %v1214, %v1213
      %v1220 = vpack.c.b16 %v1216, %v1215
      %1221 = vrot.lane.b32.xlu0 %v1217, 64
      %v1222 = vpop.permute.xlu0 %1221
      %1223 = vrot.lane.b32.xlu0 %v1218, 64
      %v1224 = vpop.permute.xlu0 %1223
      %1225 = vrot.lane.b32.xlu0 %v1219, 64
      %v1226 = vpop.permute.xlu0 %1225
      %1227 = vrot.lane.b32.xlu0 %v1220, 64
      %v1228 = vpop.permute.xlu0 %1227
      %v1237 = vunpack.c.l.b16 %v800
      %v1238 = vunpack.c.l.b16 %v801
      %v1239 = vunpack.c.l.b16 %v802
      %v1240 = vunpack.c.l.b16 %v803
      %v1241 = vunpack.c.l.b16 %v804
      %v1242 = vunpack.c.l.b16 %v805
      %v1243 = vunpack.c.l.b16 %v806
      %v1244 = vunpack.c.l.b16 %v807
      %v1245 = vpack.c.b16 %v1238, %v1237
      %v1246 = vpack.c.b16 %v1240, %v1239
      %v1247 = vpack.c.b16 %v1242, %v1241
      %v1248 = vpack.c.b16 %v1244, %v1243
      %1249 = vrot.lane.b32.xlu0 %v1245, 96
      %v1250 = vpop.permute.xlu0 %1249
      %1251 = vrot.lane.b32.xlu0 %v1246, 96
      %v1252 = vpop.permute.xlu0 %1251
      %1253 = vrot.lane.b32.xlu0 %v1247, 96
      %v1254 = vpop.permute.xlu0 %1253
      %1255 = vrot.lane.b32.xlu0 %v1248, 96
      %v1256 = vpop.permute.xlu0 %1255
      %v1257 = vunpack.c.l.b16 %v829
      %v1258 = vunpack.c.l.b16 %v843
      %v1259 = vunpack.c.l.b16 %v857
      %v1260 = vunpack.c.l.b16 %v871
      %v1261 = vunpack.c.l.b16 %v885
      %v1262 = vunpack.c.l.b16 %v899
      %v1263 = vunpack.c.l.b16 %v913
      %v1264 = vunpack.c.l.b16 %v927
      %v1265 = vpack.c.b16 %v1258, %v1257
      %v1266 = vpack.c.b16 %v1260, %v1259
      %v1267 = vpack.c.b16 %v1262, %v1261
      %v1268 = vpack.c.b16 %v1264, %v1263
      %v1269 = vunpack.c.l.b16 %v955
      %v1270 = vunpack.c.l.b16 %v959
      %v1271 = vunpack.c.l.b16 %v963
      %v1272 = vunpack.c.l.b16 %v967
      %v1273 = vunpack.c.l.b16 %v971
      %v1274 = vunpack.c.l.b16 %v975
      %v1275 = vunpack.c.l.b16 %v979
      %v1276 = vunpack.c.l.b16 %v983
      %v1277 = vpack.c.b16 %v1270, %v1269
      %v1278 = vpack.c.b16 %v1272, %v1271
      %v1279 = vpack.c.b16 %v1274, %v1273
      %v1280 = vpack.c.b16 %v1276, %v1275
      %1281 = vrot.lane.b32.xlu0 %v1277, 32
      %v1282 = vpop.permute.xlu0 %1281
      %1283 = vrot.lane.b32.xlu0 %v1278, 32
      %v1284 = vpop.permute.xlu0 %1283
      %1285 = vrot.lane.b32.xlu0 %v1279, 32
      %v1286 = vpop.permute.xlu0 %1285
      %1287 = vrot.lane.b32.xlu0 %v1280, 32
      %v1288 = vpop.permute.xlu0 %1287
      %v1297 = vunpack.c.l.b16 %v985
      %v1298 = vunpack.c.l.b16 %v986
      %v1299 = vunpack.c.l.b16 %v987
      %v1300 = vunpack.c.l.b16 %v988
      %v1301 = vunpack.c.l.b16 %v989
      %v1302 = vunpack.c.l.b16 %v990
      %v1303 = vunpack.c.l.b16 %v991
      %v1304 = vunpack.c.l.b16 %v992
      %v1305 = vpack.c.b16 %v1298, %v1297
      %v1306 = vpack.c.b16 %v1300, %v1299
      %v1307 = vpack.c.b16 %v1302, %v1301
      %v1308 = vpack.c.b16 %v1304, %v1303
      %1309 = vrot.lane.b32.xlu0 %v1305, 64
      %v1310 = vpop.permute.xlu0 %1309
      %1311 = vrot.lane.b32.xlu0 %v1306, 64
      %v1312 = vpop.permute.xlu0 %1311
      %1313 = vrot.lane.b32.xlu0 %v1307, 64
      %v1314 = vpop.permute.xlu0 %1313
      %1315 = vrot.lane.b32.xlu0 %v1308, 64
      %v1316 = vpop.permute.xlu0 %1315
      %v1317 = vunpack.c.l.b16 %v1014
      %v1318 = vunpack.c.l.b16 %v1028
      %v1319 = vunpack.c.l.b16 %v1042
      %v1320 = vunpack.c.l.b16 %v1056
      %v1321 = vunpack.c.l.b16 %v1070
      %v1322 = vunpack.c.l.b16 %v1084
      %v1323 = vunpack.c.l.b16 %v1098
      %v1324 = vunpack.c.l.b16 %v1112
      %v1325 = vpack.c.b16 %v1318, %v1317
      %v1326 = vpack.c.b16 %v1320, %v1319
      %v1327 = vpack.c.b16 %v1322, %v1321
      %v1328 = vpack.c.b16 %v1324, %v1323
      %1329 = vrot.lane.b32.xlu0 %v1325, 96
      %v1330 = vpop.permute.xlu0 %1329
      %1331 = vrot.lane.b32.xlu0 %v1326, 96
      %v1332 = vpop.permute.xlu0 %1331
      %1333 = vrot.lane.b32.xlu0 %v1327, 96
      %v1334 = vpop.permute.xlu0 %1333
      %1335 = vrot.lane.b32.xlu0 %v1328, 96
      %v1336 = vpop.permute.xlu0 %1335
      %v1337 = vunpack.c.l.b16 %v1140
      %v1338 = vunpack.c.l.b16 %v1144
      %v1339 = vunpack.c.l.b16 %v1148
      %v1340 = vunpack.c.l.b16 %v1152
      %v1341 = vunpack.c.l.b16 %v1156
      %v1342 = vunpack.c.l.b16 %v1160
      %v1343 = vunpack.c.l.b16 %v1164
      %v1344 = vunpack.c.l.b16 %v1168
      %v1345 = vpack.c.b16 %v1338, %v1337
      %v1346 = vpack.c.b16 %v1340, %v1339
      %v1347 = vpack.c.b16 %v1342, %v1341
      %v1348 = vpack.c.b16 %v1344, %v1343
      %vm1349 = vcmask 261120
      %v1352 = vsel %vm1349, %v1185, %v1202
      %v1355 = vsel %vm1349, %v1186, %v1204
      %v1358 = vsel %vm1349, %v1187, %v1206
      %v1361 = vsel %vm1349, %v1188, %v1208
      %vm1362 = vcmask 523264
      %v1364 = vsel %vm1362, %v1352, %v1222
      %v1366 = vsel %vm1362, %v1355, %v1224
      %v1368 = vsel %vm1362, %v1358, %v1226
      %v1370 = vsel %vm1362, %v1361, %v1228
      %vm1371 = vcmask 785408
      %v1373 = vsel %vm1371, %v1364, %v1250
      %v1376 = vsel %vm1371, %v1366, %v1252
      %v1379 = vsel %vm1371, %v1368, %v1254
      %v1382 = vsel %vm1371, %v1370, %v1256
      %v1386 = vsel %vm1349, %v1265, %v1282
      %v1389 = vsel %vm1349, %v1266, %v1284
      %v1392 = vsel %vm1349, %v1267, %v1286
      %v1395 = vsel %vm1349, %v1268, %v1288
      %v1397 = vsel %vm1362, %v1386, %v1310
      %v1399 = vsel %vm1362, %v1389, %v1312
      %v1401 = vsel %vm1362, %v1392, %v1314
      %v1403 = vsel %vm1362, %v1395, %v1316
      %v1405 = vsel %vm1371, %v1397, %v1330
      %v1408 = vsel %vm1371, %v1399, %v1332
      %v1411 = vsel %vm1371, %v1401, %v1334
      %v1414 = vsel %vm1371, %v1403, %v1336
      %v1417 = vlaneseq
      %v1418 = vshrl.u32 %v1417, 7
      %v1419 = vsub.s32 0, %v1418
      %v1420 = vrot.slane %v609, %v1419
      %v1458 = vunpack.c.l.b16 %v573
      %v1459 = vunpack.c.l.b16 %v574
      %v1460 = vunpack.c.l.b16 %v575
      %v1461 = vunpack.c.l.b16 %v576
      %v1462 = vunpack.c.l.b16 %v577
      %v1463 = vunpack.c.l.b16 %v578
      %v1464 = vunpack.c.l.b16 %v579
      %v1465 = vunpack.c.l.b16 %v580
      %v1466 = vunpack.c.l.b16 %v581
      %v1467 = vunpack.c.l.b16 %v582
      %v1468 = vunpack.c.l.b16 %v583
      %v1469 = vunpack.c.l.b16 %v584
      %v1470 = vunpack.c.l.b16 %v585
      %v1471 = vunpack.c.l.b16 %v586
      %v1472 = vunpack.c.l.b16 %v587
      %v1473 = vunpack.c.l.b16 %v588
      %v1474 = vunpack.c.l.b16 %v589
      %v1475 = vunpack.c.l.b16 %v590
      %v1476 = vunpack.c.l.b16 %v591
      %v1477 = vunpack.c.l.b16 %v592
      %v1478 = vunpack.c.l.b16 %v593
      %v1479 = vunpack.c.l.b16 %v594
      %v1480 = vunpack.c.l.b16 %v595
      %v1481 = vunpack.c.l.b16 %v596
      %v1482 = vunpack.c.l.b16 %v597
      %v1483 = vunpack.c.l.b16 %v598
      %v1484 = vunpack.c.l.b16 %v599
      %v1485 = vunpack.c.l.b16 %v600
      %v1486 = vunpack.c.l.b16 %v601
      %v1487 = vunpack.c.l.b16 %v602
      %v1488 = vunpack.c.l.b16 %v603
      %v1489 = vunpack.c.l.b16 %v604
      %v1490 = vunpack.c.l.b16 %v605
      %v1491 = vunpack.c.l.b16 %v606
      %v1492 = vunpack.c.l.b16 %v607
      %v1493 = vunpack.c.l.b16 %v608
      %v1494 = vpack.c.b16 %v1459, %v1458
      %v1495 = vpack.c.b16 %v1461, %v1460
      %v1496 = vpack.c.b16 %v1463, %v1462
      %v1497 = vpack.c.b16 %v1465, %v1464
      %v1498 = vpack.c.b16 %v1467, %v1466
      %v1499 = vpack.c.b16 %v1469, %v1468
      %v1500 = vpack.c.b16 %v1471, %v1470
      %v1501 = vpack.c.b16 %v1473, %v1472
      %v1502 = vpack.c.b16 %v1475, %v1474
      %v1503 = vpack.c.b16 %v1477, %v1476
      %v1504 = vpack.c.b16 %v1479, %v1478
      %v1505 = vpack.c.b16 %v1481, %v1480
      %v1506 = vpack.c.b16 %v1483, %v1482
      %v1507 = vpack.c.b16 %v1485, %v1484
      %v1508 = vpack.c.b16 %v1487, %v1486
      %v1509 = vpack.c.b16 %v1489, %v1488
      %v1510 = vpack.c.b16 %v1491, %v1490
      %v1511 = vpack.c.b16 %v1493, %v1492
      %v1531 = vsel %vm1349, %v1345, 0
      %v1534 = vsel %vm1349, %v1346, 0
      %v1537 = vsel %vm1349, %v1347, 0
      %v1540 = vsel %vm1349, %v1348, 0
      %1542 = vmatprep.subr.bf16.mxu0 0
      %1543 = vmatpush1.bf16.msra.mxu0 %v1494
      %1544 = vmatprep.subr.bf16.mxu0 0
      %1545 = vmatpush1.bf16.msra.mxu0 %v1495
      %1546 = vmatprep.subr.bf16.mxu0 0
      %1547 = vmatpush1.bf16.msra.mxu0 %v1496
      %1548 = vmatprep.subr.bf16.mxu0 0
      %1549 = vmatpush1.bf16.msra.mxu0 %v1497
      %1550 = vmatprep.subr.bf16.mxu0 0
      %1551 = vmatpush1.bf16.msra.mxu0 %v1498
      %1552 = vmatprep.subr.bf16.mxu0 0
      %1553 = vmatpush1.bf16.msra.mxu0 %v1499
      %1554 = vmatprep.subr.bf16.mxu0 0
      %1555 = vmatpush1.bf16.msra.mxu0 %v1500
      %1556 = vmatprep.subr.bf16.mxu0 0
      %1557 = vmatpush1.bf16.msra.mxu0 %v1501
      %1558 = vmatprep.subr.bf16.mxu0 0
      %1559 = vmatpush1.bf16.msra.mxu0 %v1502
      %1560 = vmatprep.subr.bf16.mxu0 0
      %1561 = vmatpush1.bf16.msra.mxu0 %v1503
      %1562 = vmatprep.subr.bf16.mxu0 0
      %1563 = vmatpush1.bf16.msra.mxu0 %v1504
      %1564 = vmatprep.subr.bf16.mxu0 0
      %1565 = vmatpush1.bf16.msra.mxu0 %v1505
      %1566 = vmatprep.subr.bf16.mxu0 0
      %1567 = vmatpush1.bf16.msra.mxu0 %v1506
      %1568 = vmatprep.subr.bf16.mxu0 0
      %1569 = vmatpush1.bf16.msra.mxu0 %v1507
      %1570 = vmatprep.subr.bf16.mxu0 0
      %1571 = vmatpush1.bf16.msra.mxu0 %v1508
      %1572 = vmatprep.subr.bf16.mxu0 0
      %1573 = vmatpush1.bf16.msra.mxu0 %v1509
      %1574 = vmatprep.mubr.bf16.mxu0 %v1405
      %1575 = vmatmul.mubr.bf16.gmra.mrb[0].mxu0 %v1373
      %v1576 = vpop.f32.mrb[0].mxu0
      %v1577 = vadd.f32 %v1420, %v1576
      %v1578 = vpop.f32.mrb[0].mxu0
      %v1579 = vpop.f32.mrb[0].mxu0
      %v1580 = vadd.f32 %v1420, %v1579
      %v1581 = vpop.f32.mrb[0].mxu0
      %1582 = vmatprep.mubr.bf16.mxu0 %v1408
      %1583 = vmatmul.mubr.bf16.gmra.mrb[0].mxu0 %v1376
      %v1584 = vpop.f32.mrb[0].mxu0
      %v1585 = vadd.f32 %v1420, %v1584
      %v1586 = vpop.f32.mrb[0].mxu0
      %v1587 = vpop.f32.mrb[0].mxu0
      %v1588 = vadd.f32 %v1420, %v1587
      %v1589 = vpop.f32.mrb[0].mxu0
      %1590 = vmatprep.mubr.bf16.mxu0 %v1411
      %1591 = vmatmul.mubr.bf16.gmra.mrb[0].mxu0 %v1379
      %v1592 = vpop.f32.mrb[0].mxu0
      %v1593 = vadd.f32 %v1420, %v1592
      %v1594 = vpop.f32.mrb[0].mxu0
      %v1595 = vpop.f32.mrb[0].mxu0
      %v1596 = vadd.f32 %v1420, %v1595
      %v1597 = vpop.f32.mrb[0].mxu0
      %1598 = vmatprep.mubr.bf16.mxu0 %v1414
      %1599 = vmatmul.mubr.bf16.gmra.mrb[0].mxu0 %v1382
      %v1600 = vpop.f32.mrb[0].mxu0
      %v1601 = vadd.f32 %v1420, %v1600
      %v1602 = vpop.f32.mrb[0].mxu0
      %v1603 = vpop.f32.mrb[0].mxu0
      %v1604 = vadd.f32 %v1420, %v1603
      %v1605 = vpop.f32.mrb[0].mxu0
      %1606 = vdwg.mxu0
      %1607 = vmatprep.subr.bf16.mxu0 0
      %1608 = vmatpush1.bf16.msra.mxu0 %v1510
      %1609 = vmatprep.subr.bf16.mxu0 0
      %1610 = vmatpush1.bf16.msra.mxu0 %v1511
      %1611 = vmatprep.subr.bf16.mxu0 0
      %1612 = vmatpush1.bf16.msra.mxu0 0
      %1613 = vmatprep.subr.bf16.mxu0 0
      %1614 = vmatpush1.bf16.msra.mxu0 0
      %1615 = vmatprep.subr.bf16.mxu0 0
      %1616 = vmatpush1.bf16.msra.mxu0 0
      %1617 = vmatprep.subr.bf16.mxu0 0
      %1618 = vmatpush1.bf16.msra.mxu0 0
      %1619 = vmatprep.subr.bf16.mxu0 0
      %1620 = vmatpush1.bf16.msra.mxu0 0
      %1621 = vmatprep.subr.bf16.mxu0 0
      %1622 = vmatpush1.bf16.msra.mxu0 0
      %1623 = vmatprep.subr.bf16.mxu0 0
      %1624 = vmatpush1.bf16.msra.mxu0 0
      %1625 = vmatprep.subr.bf16.mxu0 0
      %1626 = vmatpush1.bf16.msra.mxu0 0
      %1627 = vmatprep.subr.bf16.mxu0 0
      %1628 = vmatpush1.bf16.msra.mxu0 0
      %1629 = vmatprep.subr.bf16.mxu0 0
      %1630 = vmatpush1.bf16.msra.mxu0 0
      %1631 = vmatprep.subr.bf16.mxu0 0
      %1632 = vmatpush1.bf16.msra.mxu0 0
      %1633 = vmatprep.subr.bf16.mxu0 0
      %1634 = vmatpush1.bf16.msra.mxu0 0
      %1635 = vmatprep.subr.bf16.mxu0 0
      %1636 = vmatpush1.bf16.msra.mxu0 0
      %1637 = vmatprep.subr.bf16.mxu0 0
      %1638 = vmatpush1.bf16.msra.mxu0 0
      %1639 = vmatprep.mubr.bf16.mxu0 0
      %1640 = vmatmul.mubr.bf16.gmra.mrb[0].mxu0 %v1531
      %v1641 = vpop.f32.mrb[0].mxu0
      %v1642 = vadd.f32 %v1577, %v1641
      %v1643 = vpop.f32.mrb[0].mxu0
      %v1644 = vpop.f32.mrb[0].mxu0
      %v1645 = vadd.f32 %v1580, %v1644
      %v1646 = vpop.f32.mrb[0].mxu0
      %1647 = vmatprep.mubr.bf16.mxu0 0
      %1648 = vmatmul.mubr.bf16.gmra.mrb[0].mxu0 %v1534
      %v1649 = vpop.f32.mrb[0].mxu0
      %v1650 = vadd.f32 %v1585, %v1649
      %v1651 = vpop.f32.mrb[0].mxu0
      %v1652 = vpop.f32.mrb[0].mxu0
      %v1653 = vadd.f32 %v1588, %v1652
      %v1654 = vpop.f32.mrb[0].mxu0
      %1655 = vmatprep.mubr.bf16.mxu0 0
      %1656 = vmatmul.mubr.bf16.gmra.mrb[0].mxu0 %v1537
      %v1657 = vpop.f32.mrb[0].mxu0
      %v1658 = vadd.f32 %v1593, %v1657
      %v1659 = vpop.f32.mrb[0].mxu0
      %v1660 = vpop.f32.mrb[0].mxu0
      %v1661 = vadd.f32 %v1596, %v1660
      %v1662 = vpop.f32.mrb[0].mxu0
      %1663 = vmatprep.mubr.bf16.mxu0 0
      %1664 = vmatmul.mubr.bf16.gmra.mrb[0].mxu0 %v1540
      %v1665 = vpop.f32.mrb[0].mxu0
      %v1666 = vadd.f32 %v1601, %v1665
      %v1667 = vpop.f32.mrb[0].mxu0
      %v1668 = vpop.f32.mrb[0].mxu0
      %v1669 = vadd.f32 %v1604, %v1668
      %v1670 = vpop.f32.mrb[0].mxu0
      %1671 = vdwg.mxu0
      %v1672 = vmax.f32 %v1642, 0.0
      %v1673 = vmax.f32 %v1645, 0.0
      %v1674 = vmax.f32 %v1650, 0.0
      %v1675 = vmax.f32 %v1653, 0.0
      %v1676 = vmax.f32 %v1658, 0.0
      %v1677 = vmax.f32 %v1661, 0.0
      %v1678 = vmax.f32 %v1666, 0.0
      %v1679 = vmax.f32 %v1669, 0.0
      %v1680 = vpack.c.bf16 %v1673, %v1672
      %v1681 = vpack.c.bf16 %v1675, %v1674
      %v1682 = vpack.c.bf16 %v1677, %v1676
      %v1683 = vpack.c.bf16 %v1679, %v1678
      %v1688 = vunpack.c.l.b16 %v1680
      %v1689 = vunpack.c.h.b16 %v1680
      %v1690 = vunpack.c.l.b16 %v1681
      %v1691 = vunpack.c.h.b16 %v1681
      %v1692 = vunpack.c.l.b16 %v1682
      %v1693 = vunpack.c.h.b16 %v1682
      %v1694 = vunpack.c.l.b16 %v1683
      %v1695 = vunpack.c.h.b16 %v1683
      %v1696 = vpack.c.b16 %v1688, %v1688
      %v1697 = vpack.c.b16 %v1689, %v1689
      %v1698 = vpack.c.b16 %v1690, %v1690
      %v1699 = vpack.c.b16 %v1691, %v1691
      %v1700 = vpack.c.b16 %v1692, %v1692
      %v1701 = vpack.c.b16 %v1693, %v1693
      %v1702 = vpack.c.b16 %v1694, %v1694
      %v1703 = vpack.c.b16 %v1695, %v1695
      %v1705 = vshrl.u32 %v1696, 16
      %v1707 = vrot.slane %v1705, 7
      %v1708 = vshll.u32 %v1696, 16
      %v1710 = vor.u32 %v1707, %v1708
      %v1711 = vrot.slane %v1707, 4
      %v1713 = vshrl.u32 %v1697, 16
      %v1715 = vrot.slane %v1713, 7
      %v1716 = vshll.u32 %v1697, 16
      %v1718 = vor.u32 %v1715, %v1716
      %v1719 = vrot.slane %v1715, 4
      %v1721 = vshrl.u32 %v1698, 16
      %v1723 = vrot.slane %v1721, 7
      %v1724 = vshll.u32 %v1698, 16
      %v1726 = vor.u32 %v1723, %v1724
      %v1727 = vrot.slane %v1723, 4
      %v1729 = vshrl.u32 %v1699, 16
      %v1731 = vrot.slane %v1729, 7
      %v1732 = vshll.u32 %v1699, 16
      %v1734 = vor.u32 %v1731, %v1732
      %v1735 = vrot.slane %v1731, 4
      %v1737 = vshrl.u32 %v1700, 16
      %v1739 = vrot.slane %v1737, 7
      %v1740 = vshll.u32 %v1700, 16
      %v1742 = vor.u32 %v1739, %v1740
      %v1743 = vrot.slane %v1739, 4
      %v1745 = vshrl.u32 %v1701, 16
      %v1747 = vrot.slane %v1745, 7
      %v1748 = vshll.u32 %v1701, 16
      %v1750 = vor.u32 %v1747, %v1748
      %v1751 = vrot.slane %v1747, 4
      %v1753 = vshrl.u32 %v1702, 16
      %v1755 = vrot.slane %v1753, 7
      %v1756 = vshll.u32 %v1702, 16
      %v1758 = vor.u32 %v1755, %v1756
      %v1759 = vrot.slane %v1755, 4
      %v1761 = vshrl.u32 %v1703, 16
      %v1763 = vrot.slane %v1761, 7
      %v1764 = vshll.u32 %v1703, 16
      %v1766 = vor.u32 %v1763, %v1764
      %v1767 = vrot.slane %v1763, 4
      %v1784 = vsel %vm521, %v1710, %v800
      %1785 = vst [vmem:[%s518] sm:$0xf] %v1784
      %v1786 = vld [vmem:[%s518 + $0x4] sm:$0x1]
      %v1787 = vsel %vm527, %v1711, %v1786
      %1788 = vst [vmem:[%s518 + $0x4] sm:$0x1] %v1787
      %v1789 = vld [vmem:[%s518 + $0x8] sm:$0xf]
      %v1790 = vsel %vm521, %v1718, %v1789
      %1791 = vst [vmem:[%s518 + $0x8] sm:$0xf] %v1790
      %v1792 = vld [vmem:[%s518 + $0xc] sm:$0x1]
      %v1793 = vsel %vm527, %v1719, %v1792
      %1794 = vst [vmem:[%s518 + $0xc] sm:$0x1] %v1793
      %v1795 = vld [vmem:[%s518 + $0x10] sm:$0xf]
      %v1796 = vsel %vm521, %v1726, %v1795
      %1797 = vst [vmem:[%s518 + $0x10] sm:$0xf] %v1796
      %v1798 = vld [vmem:[%s518 + $0x14] sm:$0x1]
      %v1799 = vsel %vm527, %v1727, %v1798
      %1800 = vst [vmem:[%s518 + $0x14] sm:$0x1] %v1799
      %v1801 = vld [vmem:[%s518 + $0x18] sm:$0xf]
      %v1802 = vsel %vm521, %v1734, %v1801
      %1803 = vst [vmem:[%s518 + $0x18] sm:$0xf] %v1802
      %v1804 = vld [vmem:[%s518 + $0x1c] sm:$0x1]
      %v1805 = vsel %vm527, %v1735, %v1804
      %1806 = vst [vmem:[%s518 + $0x1c] sm:$0x1] %v1805
      %v1807 = vld [vmem:[%s518 + $0x20] sm:$0xf]
      %v1808 = vsel %vm521, %v1742, %v1807
      %1809 = vst [vmem:[%s518 + $0x20] sm:$0xf] %v1808
      %v1810 = vld [vmem:[%s518 + $0x24] sm:$0x1]
      %v1811 = vsel %vm527, %v1743, %v1810
      %1812 = vst [vmem:[%s518 + $0x24] sm:$0x1] %v1811
      %v1813 = vld [vmem:[%s518 + $0x28] sm:$0xf]
      %v1814 = vsel %vm521, %v1750, %v1813
      %1815 = vst [vmem:[%s518 + $0x28] sm:$0xf] %v1814
      %v1816 = vld [vmem:[%s518 + $0x2c] sm:$0x1]
      %v1817 = vsel %vm527, %v1751, %v1816
      %1818 = vst [vmem:[%s518 + $0x2c] sm:$0x1] %v1817
      %v1819 = vld [vmem:[%s518 + $0x30] sm:$0xf]
      %v1820 = vsel %vm521, %v1758, %v1819
      %1821 = vst [vmem:[%s518 + $0x30] sm:$0xf] %v1820
      %v1822 = vld [vmem:[%s518 + $0x34] sm:$0x1]
      %v1823 = vsel %vm527, %v1759, %v1822
      %1824 = vst [vmem:[%s518 + $0x34] sm:$0x1] %v1823
      %v1825 = vld [vmem:[%s518 + $0x38] sm:$0xf]
      %v1826 = vsel %vm521, %v1766, %v1825
      %1827 = vst [vmem:[%s518 + $0x38] sm:$0xf] %v1826
      %v1828 = vld [vmem:[%s518 + $0x3c] sm:$0x1]
      %v1829 = vsel %vm527, %v1767, %v1828
      %1830 = vst [vmem:[%s518 + $0x3c] sm:$0x1] %v1829
      %v1831 = vld [vmem:[%s3] sm:$0xf]
      %v1832 = vld [vmem:[%s3 + $0x4] sm:$0xf]
      %v1833 = vld [vmem:[%s3 + $0x8] sm:$0xf]
      %v1834 = vld [vmem:[%s3 + $0xc] sm:$0xf]
      %v1835 = vld [vmem:[%s3 + $0x10] sm:$0xf]
      %v1836 = vld [vmem:[%s3 + $0x14] sm:$0xf]
      %v1837 = vld [vmem:[%s3 + $0x18] sm:$0xf]
      %v1838 = vld [vmem:[%s3 + $0x1c] sm:$0xf]
      %v1839 = vld [vmem:[%s3 + $0x20] sm:$0xf]
      %v1840 = vld [vmem:[%s3 + $0x24] sm:$0xf]
      %v1841 = vld [vmem:[%s3 + $0x28] sm:$0xf]
      %v1842 = vld [vmem:[%s3 + $0x2c] sm:$0xf]
      %v1843 = vld [vmem:[%s3 + $0x30] sm:$0xf]
      %v1844 = vld [vmem:[%s3 + $0x34] sm:$0xf]
      %v1845 = vld [vmem:[%s3 + $0x38] sm:$0xf]
      %v1846 = vld [vmem:[%s3 + $0x3c] sm:$0xf]
      %v1847 = vld [vmem:[%s3 + $0x40] sm:$0xf]
      %v1848 = vld [vmem:[%s3 + $0x44] sm:$0xf]
      %v1849 = vld [vmem:[%s3 + $0x48] sm:$0xf]
      %v1850 = vld [vmem:[%s3 + $0x4c] sm:$0xf]
      %v1851 = vld [vmem:[%s3 + $0x50] sm:$0xf]
      %v1852 = vld [vmem:[%s3 + $0x54] sm:$0xf]
      %v1853 = vld [vmem:[%s3 + $0x58] sm:$0xf]
      %v1854 = vld [vmem:[%s3 + $0x5c] sm:$0xf]
      %v1855 = vld [vmem:[%s3 + $0x60] sm:$0xf]
      %v1856 = vld [vmem:[%s3 + $0x64] sm:$0xf]
      %v1857 = vld [vmem:[%s3 + $0x68] sm:$0xf]
      %v1858 = vld [vmem:[%s3 + $0x6c] sm:$0xf]
      %v1859 = vld [vmem:[%s3 + $0x70] sm:$0xf]
      %v1860 = vld [vmem:[%s3 + $0x74] sm:$0xf]
      %v1861 = vld [vmem:[%s3 + $0x78] sm:$0xf]
      %v1862 = vld [vmem:[%s3 + $0x7c] sm:$0xf]
      %v1863 = vld [vmem:[%s3 + $0x80] sm:$0xf]
      %v1864 = vld [vmem:[%s3 + $0x84] sm:$0xf]
      %v1865 = vld [vmem:[%s3 + $0x88] sm:$0xf]
      %v1866 = vld [vmem:[%s3 + $0x8c] sm:$0xf]
      %v1867 = vld [vmem:[%s4] sm:$0x1]
      %v1868 = vld [vmem:[#allocation2] sm:$0xf]
      %v1869 = vld [vmem:[#allocation2 + $0x8] sm:$0xf]
      %v1870 = vld [vmem:[#allocation2 + $0x10] sm:$0xf]
      %v1871 = vld [vmem:[#allocation2 + $0x18] sm:$0xf]
      %v1872 = vld [vmem:[#allocation2 + $0x20] sm:$0xf]
      %v1873 = vld [vmem:[#allocation2 + $0x28] sm:$0xf]
      %v1874 = vld [vmem:[#allocation2 + $0x30] sm:$0xf]
      %v1875 = vld [vmem:[#allocation2 + $0x38] sm:$0xf]
      %v1876 = vld [vmem:[#allocation2 + $0x4] sm:$0x1]
      %v1877 = vld [vmem:[#allocation2 + $0xc] sm:$0x1]
      %v1878 = vld [vmem:[#allocation2 + $0x14] sm:$0x1]
      %v1879 = vld [vmem:[#allocation2 + $0x1c] sm:$0x1]
      %v1880 = vld [vmem:[#allocation2 + $0x24] sm:$0x1]
      %v1881 = vld [vmem:[#allocation2 + $0x2c] sm:$0x1]
      %v1882 = vld [vmem:[#allocation2 + $0x34] sm:$0x1]
      %v1883 = vld [vmem:[#allocation2 + $0x3c] sm:$0x1]
      %v1885 = vshrl.u32 %v1868, 16
      %v1887 = vrot.slane %v1885, 4
      %v1888 = vshll.u32 %v1868, 16
      %v1890 = vrot.slane %v1888, 5
      %v1891 = vor.u32 %v1887, %v1890
      %v1892 = vrot.slane %v1891, 4
      %v1894 = vshll.u32 %v1876, 16
      %v1896 = vrot.slane %v1894, 5
      %v1897 = vsel %vm628, %v1892, %v1896
      %v1899 = vshrl.u32 %v1869, 16
      %v1901 = vrot.slane %v1899, 4
      %v1902 = vshll.u32 %v1869, 16
      %v1904 = vrot.slane %v1902, 5
      %v1905 = vor.u32 %v1901, %v1904
      %v1906 = vrot.slane %v1905, 4
      %v1908 = vshll.u32 %v1877, 16
      %v1910 = vrot.slane %v1908, 5
      %v1911 = vsel %vm628, %v1906, %v1910
      %v1913 = vshrl.u32 %v1870, 16
      %v1915 = vrot.slane %v1913, 4
      %v1916 = vshll.u32 %v1870, 16
      %v1918 = vrot.slane %v1916, 5
      %v1919 = vor.u32 %v1915, %v1918
      %v1920 = vrot.slane %v1919, 4
      %v1922 = vshll.u32 %v1878, 16
      %v1924 = vrot.slane %v1922, 5
      %v1925 = vsel %vm628, %v1920, %v1924
      %v1927 = vshrl.u32 %v1871, 16
      %v1929 = vrot.slane %v1927, 4
      %v1930 = vshll.u32 %v1871, 16
      %v1932 = vrot.slane %v1930, 5
      %v1933 = vor.u32 %v1929, %v1932
      %v1934 = vrot.slane %v1933, 4
      %v1936 = vshll.u32 %v1879, 16
      %v1938 = vrot.slane %v1936, 5
      %v1939 = vsel %vm628, %v1934, %v1938
      %v1941 = vshrl.u32 %v1872, 16
      %v1943 = vrot.slane %v1941, 4
      %v1944 = vshll.u32 %v1872, 16
      %v1946 = vrot.slane %v1944, 5
      %v1947 = vor.u32 %v1943, %v1946
      %v1948 = vrot.slane %v1947, 4
      %v1950 = vshll.u32 %v1880, 16
      %v1952 = vrot.slane %v1950, 5
      %v1953 = vsel %vm628, %v1948, %v1952
      %v1955 = vshrl.u32 %v1873, 16
      %v1957 = vrot.slane %v1955, 4
      %v1958 = vshll.u32 %v1873, 16
      %v1960 = vrot.slane %v1958, 5
      %v1961 = vor.u32 %v1957, %v1960
      %v1962 = vrot.slane %v1961, 4
      %v1964 = vshll.u32 %v1881, 16
      %v1966 = vrot.slane %v1964, 5
      %v1967 = vsel %vm628, %v1962, %v1966
      %v1969 = vshrl.u32 %v1874, 16
      %v1971 = vrot.slane %v1969, 4
      %v1972 = vshll.u32 %v1874, 16
      %v1974 = vrot.slane %v1972, 5
      %v1975 = vor.u32 %v1971, %v1974
      %v1976 = vrot.slane %v1975, 4
      %v1978 = vshll.u32 %v1882, 16
      %v1980 = vrot.slane %v1978, 5
      %v1981 = vsel %vm628, %v1976, %v1980
      %v1983 = vshrl.u32 %v1875, 16
      %v1985 = vrot.slane %v1983, 4
      %v1986 = vshll.u32 %v1875, 16
      %v1988 = vrot.slane %v1986, 5
      %v1989 = vor.u32 %v1985, %v1988
      %v1990 = vrot.slane %v1989, 4
      %v1992 = vshll.u32 %v1883, 16
      %v1994 = vrot.slane %v1992, 5
      %v1995 = vsel %vm628, %v1990, %v1994
      %v1996 = vld [vmem:[#allocation2] sm:$0xe]
      %v1997 = vld [vmem:[#allocation2 + $0x8] sm:$0xe]
      %v1998 = vld [vmem:[#allocation2 + $0x10] sm:$0xe]
      %v1999 = vld [vmem:[#allocation2 + $0x18] sm:$0xe]
      %v2000 = vld [vmem:[#allocation2 + $0x20] sm:$0xe]
      %v2001 = vld [vmem:[#allocation2 + $0x28] sm:$0xe]
      %v2002 = vld [vmem:[#allocation2 + $0x30] sm:$0xe]
      %v2003 = vld [vmem:[#allocation2 + $0x38] sm:$0xe]
      %v2020 = vrot.slane %v1996, 5
      %v2021 = vrot.slane %v2020, 4
      %v2022 = vrot.slane %v1876, 5
      %v2023 = vsel %vm767, %v2021, %v2022
      %v2024 = vrot.slane %v1997, 5
      %v2025 = vrot.slane %v2024, 4
      %v2026 = vrot.slane %v1877, 5
      %v2027 = vsel %vm767, %v2025, %v2026
      %v2028 = vrot.slane %v1998, 5
      %v2029 = vrot.slane %v2028, 4
      %v2030 = vrot.slane %v1878, 5
      %v2031 = vsel %vm767, %v2029, %v2030
      %v2032 = vrot.slane %v1999, 5
      %v2033 = vrot.slane %v2032, 4
      %v2034 = vrot.slane %v1879, 5
      %v2035 = vsel %vm767, %v2033, %v2034
      %v2036 = vrot.slane %v2000, 5
      %v2037 = vrot.slane %v2036, 4
      %v2038 = vrot.slane %v1880, 5
      %v2039 = vsel %vm767, %v2037, %v2038
      %v2040 = vrot.slane %v2001, 5
      %v2041 = vrot.slane %v2040, 4
      %v2042 = vrot.slane %v1881, 5
      %v2043 = vsel %vm767, %v2041, %v2042
      %v2044 = vrot.slane %v2002, 5
      %v2045 = vrot.slane %v2044, 4
      %v2046 = vrot.slane %v1882, 5
      %v2047 = vsel %vm767, %v2045, %v2046
      %v2048 = vrot.slane %v2003, 5
      %v2049 = vrot.slane %v2048, 4
      %v2050 = vrot.slane %v1883, 5
      %v2051 = vsel %vm767, %v2049, %v2050
      %v2052 = vld [vmem:[%s518] sm:$0xf]
      %v2053 = vld [vmem:[%s518 + $0x8] sm:$0xf]
      %v2054 = vld [vmem:[%s518 + $0x10] sm:$0xf]
      %v2055 = vld [vmem:[%s518 + $0x18] sm:$0xf]
      %v2056 = vld [vmem:[%s518 + $0x20] sm:$0xf]
      %v2057 = vld [vmem:[%s518 + $0x28] sm:$0xf]
      %v2058 = vld [vmem:[%s518 + $0x30] sm:$0xf]
      %v2059 = vld [vmem:[%s518 + $0x38] sm:$0xf]
      %v2060 = vld [vmem:[%s518 + $0x4] sm:$0x1]
      %v2061 = vld [vmem:[%s518 + $0xc] sm:$0x1]
      %v2062 = vld [vmem:[%s518 + $0x14] sm:$0x1]
      %v2063 = vld [vmem:[%s518 + $0x1c] sm:$0x1]
      %v2064 = vld [vmem:[%s518 + $0x24] sm:$0x1]
      %v2065 = vld [vmem:[%s518 + $0x2c] sm:$0x1]
      %v2066 = vld [vmem:[%s518 + $0x34] sm:$0x1]
      %v2067 = vld [vmem:[%s518 + $0x3c] sm:$0x1]
      %v2069 = vshrl.u32 %v2052, 16
      %v2071 = vrot.slane %v2069, 4
      %v2072 = vshll.u32 %v2052, 16
      %v2074 = vrot.slane %v2072, 5
      %v2075 = vor.u32 %v2071, %v2074
      %v2076 = vrot.slane %v2075, 4
      %v2078 = vshll.u32 %v2060, 16
      %v2080 = vrot.slane %v2078, 5
      %v2081 = vsel %vm628, %v2076, %v2080
      %v2083 = vshrl.u32 %v2053, 16
      %v2085 = vrot.slane %v2083, 4
      %v2086 = vshll.u32 %v2053, 16
      %v2088 = vrot.slane %v2086, 5
      %v2089 = vor.u32 %v2085, %v2088
      %v2090 = vrot.slane %v2089, 4
      %v2092 = vshll.u32 %v2061, 16
      %v2094 = vrot.slane %v2092, 5
      %v2095 = vsel %vm628, %v2090, %v2094
      %v2097 = vshrl.u32 %v2054, 16
      %v2099 = vrot.slane %v2097, 4
      %v2100 = vshll.u32 %v2054, 16
      %v2102 = vrot.slane %v2100, 5
      %v2103 = vor.u32 %v2099, %v2102
      %v2104 = vrot.slane %v2103, 4
      %v2106 = vshll.u32 %v2062, 16
      %v2108 = vrot.slane %v2106, 5
      %v2109 = vsel %vm628, %v2104, %v2108
      %v2111 = vshrl.u32 %v2055, 16
      %v2113 = vrot.slane %v2111, 4
      %v2114 = vshll.u32 %v2055, 16
      %v2116 = vrot.slane %v2114, 5
      %v2117 = vor.u32 %v2113, %v2116
      %v2118 = vrot.slane %v2117, 4
      %v2120 = vshll.u32 %v2063, 16
      %v2122 = vrot.slane %v2120, 5
      %v2123 = vsel %vm628, %v2118, %v2122
      %v2125 = vshrl.u32 %v2056, 16
      %v2127 = vrot.slane %v2125, 4
      %v2128 = vshll.u32 %v2056, 16
      %v2130 = vrot.slane %v2128, 5
      %v2131 = vor.u32 %v2127, %v2130
      %v2132 = vrot.slane %v2131, 4
      %v2134 = vshll.u32 %v2064, 16
      %v2136 = vrot.slane %v2134, 5
      %v2137 = vsel %vm628, %v2132, %v2136
      %v2139 = vshrl.u32 %v2057, 16
      %v2141 = vrot.slane %v2139, 4
      %v2142 = vshll.u32 %v2057, 16
      %v2144 = vrot.slane %v2142, 5
      %v2145 = vor.u32 %v2141, %v2144
      %v2146 = vrot.slane %v2145, 4
      %v2148 = vshll.u32 %v2065, 16
      %v2150 = vrot.slane %v2148, 5
      %v2151 = vsel %vm628, %v2146, %v2150
      %v2153 = vshrl.u32 %v2058, 16
      %v2155 = vrot.slane %v2153, 4
      %v2156 = vshll.u32 %v2058, 16
      %v2158 = vrot.slane %v2156, 5
      %v2159 = vor.u32 %v2155, %v2158
      %v2160 = vrot.slane %v2159, 4
      %v2162 = vshll.u32 %v2066, 16
      %v2164 = vrot.slane %v2162, 5
      %v2165 = vsel %vm628, %v2160, %v2164
      %v2167 = vshrl.u32 %v2059, 16
      %v2169 = vrot.slane %v2167, 4
      %v2170 = vshll.u32 %v2059, 16
      %v2172 = vrot.slane %v2170, 5
      %v2173 = vor.u32 %v2169, %v2172
      %v2174 = vrot.slane %v2173, 4
      %v2176 = vshll.u32 %v2067, 16
      %v2178 = vrot.slane %v2176, 5
      %v2179 = vsel %vm628, %v2174, %v2178
      %v2180 = vld [vmem:[%s518] sm:$0xe]
      %v2181 = vld [vmem:[%s518 + $0x8] sm:$0xe]
      %v2182 = vld [vmem:[%s518 + $0x10] sm:$0xe]
      %v2183 = vld [vmem:[%s518 + $0x18] sm:$0xe]
      %v2184 = vld [vmem:[%s518 + $0x20] sm:$0xe]
      %v2185 = vld [vmem:[%s518 + $0x28] sm:$0xe]
      %v2186 = vld [vmem:[%s518 + $0x30] sm:$0xe]
      %v2187 = vld [vmem:[%s518 + $0x38] sm:$0xe]
      %v2204 = vrot.slane %v2180, 5
      %v2205 = vrot.slane %v2204, 4
      %v2206 = vrot.slane %v2060, 5
      %v2207 = vsel %vm767, %v2205, %v2206
      %v2208 = vrot.slane %v2181, 5
      %v2209 = vrot.slane %v2208, 4
      %v2210 = vrot.slane %v2061, 5
      %v2211 = vsel %vm767, %v2209, %v2210
      %v2212 = vrot.slane %v2182, 5
      %v2213 = vrot.slane %v2212, 4
      %v2214 = vrot.slane %v2062, 5
      %v2215 = vsel %vm767, %v2213, %v2214
      %v2216 = vrot.slane %v2183, 5
      %v2217 = vrot.slane %v2216, 4
      %v2218 = vrot.slane %v2063, 5
      %v2219 = vsel %vm767, %v2217, %v2218
      %v2220 = vrot.slane %v2184, 5
      %v2221 = vrot.slane %v2220, 4
      %v2222 = vrot.slane %v2064, 5
      %v2223 = vsel %vm767, %v2221, %v2222
      %v2224 = vrot.slane %v2185, 5
      %v2225 = vrot.slane %v2224, 4
      %v2226 = vrot.slane %v2065, 5
      %v2227 = vsel %vm767, %v2225, %v2226
      %v2228 = vrot.slane %v2186, 5
      %v2229 = vrot.slane %v2228, 4
      %v2230 = vrot.slane %v2066, 5
      %v2231 = vsel %vm767, %v2229, %v2230
      %v2232 = vrot.slane %v2187, 5
      %v2233 = vrot.slane %v2232, 4
      %v2234 = vrot.slane %v2067, 5
      %v2235 = vsel %vm767, %v2233, %v2234
      %v2236 = vld [vmem:[%s984] sm:$0xf]
      %v2237 = vld [vmem:[%s984 + $0x8] sm:$0xf]
      %v2238 = vld [vmem:[%s984 + $0x10] sm:$0xf]
      %v2239 = vld [vmem:[%s984 + $0x18] sm:$0xf]
      %v2240 = vld [vmem:[%s984 + $0x20] sm:$0xf]
      %v2241 = vld [vmem:[%s984 + $0x28] sm:$0xf]
      %v2242 = vld [vmem:[%s984 + $0x30] sm:$0xf]
      %v2243 = vld [vmem:[%s984 + $0x38] sm:$0xf]
      %v2244 = vld [vmem:[%s984 + $0x4] sm:$0x1]
      %v2245 = vld [vmem:[%s984 + $0xc] sm:$0x1]
      %v2246 = vld [vmem:[%s984 + $0x14] sm:$0x1]
      %v2247 = vld [vmem:[%s984 + $0x1c] sm:$0x1]
      %v2248 = vld [vmem:[%s984 + $0x24] sm:$0x1]
      %v2249 = vld [vmem:[%s984 + $0x2c] sm:$0x1]
      %v2250 = vld [vmem:[%s984 + $0x34] sm:$0x1]
      %v2251 = vld [vmem:[%s984 + $0x3c] sm:$0x1]
      %v2253 = vshrl.u32 %v2236, 16
      %v2255 = vrot.slane %v2253, 4
      %v2256 = vshll.u32 %v2236, 16
      %v2258 = vrot.slane %v2256, 5
      %v2259 = vor.u32 %v2255, %v2258
      %v2260 = vrot.slane %v2259, 4
      %v2262 = vshll.u32 %v2244, 16
      %v2264 = vrot.slane %v2262, 5
      %v2265 = vsel %vm628, %v2260, %v2264
      %v2267 = vshrl.u32 %v2237, 16
      %v2269 = vrot.slane %v2267, 4
      %v2270 = vshll.u32 %v2237, 16
      %v2272 = vrot.slane %v2270, 5
      %v2273 = vor.u32 %v2269, %v2272
      %v2274 = vrot.slane %v2273, 4
      %v2276 = vshll.u32 %v2245, 16
      %v2278 = vrot.slane %v2276, 5
      %v2279 = vsel %vm628, %v2274, %v2278
      %v2281 = vshrl.u32 %v2238, 16
      %v2283 = vrot.slane %v2281, 4
      %v2284 = vshll.u32 %v2238, 16
      %v2286 = vrot.slane %v2284, 5
      %v2287 = vor.u32 %v2283, %v2286
      %v2288 = vrot.slane %v2287, 4
      %v2290 = vshll.u32 %v2246, 16
      %v2292 = vrot.slane %v2290, 5
      %v2293 = vsel %vm628, %v2288, %v2292
      %v2295 = vshrl.u32 %v2239, 16
      %v2297 = vrot.slane %v2295, 4
      %v2298 = vshll.u32 %v2239, 16
      %v2300 = vrot.slane %v2298, 5
      %v2301 = vor.u32 %v2297, %v2300
      %v2302 = vrot.slane %v2301, 4
      %v2304 = vshll.u32 %v2247, 16
      %v2306 = vrot.slane %v2304, 5
      %v2307 = vsel %vm628, %v2302, %v2306
      %v2309 = vshrl.u32 %v2240, 16
      %v2311 = vrot.slane %v2309, 4
      %v2312 = vshll.u32 %v2240, 16
      %v2314 = vrot.slane %v2312, 5
      %v2315 = vor.u32 %v2311, %v2314
      %v2316 = vrot.slane %v2315, 4
      %v2318 = vshll.u32 %v2248, 16
      %v2320 = vrot.slane %v2318, 5
      %v2321 = vsel %vm628, %v2316, %v2320
      %v2323 = vshrl.u32 %v2241, 16
      %v2325 = vrot.slane %v2323, 4
      %v2326 = vshll.u32 %v2241, 16
      %v2328 = vrot.slane %v2326, 5
      %v2329 = vor.u32 %v2325, %v2328
      %v2330 = vrot.slane %v2329, 4
      %v2332 = vshll.u32 %v2249, 16
      %v2334 = vrot.slane %v2332, 5
      %v2335 = vsel %vm628, %v2330, %v2334
      %v2337 = vshrl.u32 %v2242, 16
      %v2339 = vrot.slane %v2337, 4
      %v2340 = vshll.u32 %v2242, 16
      %v2342 = vrot.slane %v2340, 5
      %v2343 = vor.u32 %v2339, %v2342
      %v2344 = vrot.slane %v2343, 4
      %v2346 = vshll.u32 %v2250, 16
      %v2348 = vrot.slane %v2346, 5
      %v2349 = vsel %vm628, %v2344, %v2348
      %v2351 = vshrl.u32 %v2243, 16
      %v2353 = vrot.slane %v2351, 4
      %v2354 = vshll.u32 %v2243, 16
      %v2356 = vrot.slane %v2354, 5
      %v2357 = vor.u32 %v2353, %v2356
      %v2358 = vrot.slane %v2357, 4
      %v2360 = vshll.u32 %v2251, 16
      %v2362 = vrot.slane %v2360, 5
      %v2363 = vsel %vm628, %v2358, %v2362
      %v2364 = vld [vmem:[%s984] sm:$0xe]
      %v2365 = vld [vmem:[%s984 + $0x8] sm:$0xe]
      %v2366 = vld [vmem:[%s984 + $0x10] sm:$0xe]
      %v2367 = vld [vmem:[%s984 + $0x18] sm:$0xe]
      %v2368 = vld [vmem:[%s984 + $0x20] sm:$0xe]
      %v2369 = vld [vmem:[%s984 + $0x28] sm:$0xe]
      %v2370 = vld [vmem:[%s984 + $0x30] sm:$0xe]
      %v2371 = vld [vmem:[%s984 + $0x38] sm:$0xe]
      %v2388 = vrot.slane %v2364, 5
      %v2389 = vrot.slane %v2388, 4
      %v2390 = vrot.slane %v2244, 5
      %v2391 = vsel %vm767, %v2389, %v2390
      %v2392 = vrot.slane %v2365, 5
      %v2393 = vrot.slane %v2392, 4
      %v2394 = vrot.slane %v2245, 5
      %v2395 = vsel %vm767, %v2393, %v2394
      %v2396 = vrot.slane %v2366, 5
      %v2397 = vrot.slane %v2396, 4
      %v2398 = vrot.slane %v2246, 5
      %v2399 = vsel %vm767, %v2397, %v2398
      %v2400 = vrot.slane %v2367, 5
      %v2401 = vrot.slane %v2400, 4
      %v2402 = vrot.slane %v2247, 5
      %v2403 = vsel %vm767, %v2401, %v2402
      %v2404 = vrot.slane %v2368, 5
      %v2405 = vrot.slane %v2404, 4
      %v2406 = vrot.slane %v2248, 5
      %v2407 = vsel %vm767, %v2405, %v2406
      %v2408 = vrot.slane %v2369, 5
      %v2409 = vrot.slane %v2408, 4
      %v2410 = vrot.slane %v2249, 5
      %v2411 = vsel %vm767, %v2409, %v2410
      %v2412 = vrot.slane %v2370, 5
      %v2413 = vrot.slane %v2412, 4
      %v2414 = vrot.slane %v2250, 5
      %v2415 = vsel %vm767, %v2413, %v2414
      %v2416 = vrot.slane %v2371, 5
      %v2417 = vrot.slane %v2416, 4
      %v2418 = vrot.slane %v2251, 5
      %v2419 = vsel %vm767, %v2417, %v2418
      %v2428 = vunpack.c.l.b16 %v1868
      %v2429 = vunpack.c.l.b16 %v1869
      %v2430 = vunpack.c.l.b16 %v1870
      %v2431 = vunpack.c.l.b16 %v1871
      %v2432 = vunpack.c.l.b16 %v1872
      %v2433 = vunpack.c.l.b16 %v1873
      %v2434 = vunpack.c.l.b16 %v1874
      %v2435 = vunpack.c.l.b16 %v1875
      %v2436 = vpack.c.b16 %v2429, %v2428
      %v2437 = vpack.c.b16 %v2431, %v2430
      %v2438 = vpack.c.b16 %v2433, %v2432
      %v2439 = vpack.c.b16 %v2435, %v2434
      %v2440 = vunpack.c.l.b16 %v1897
      %v2441 = vunpack.c.l.b16 %v1911
      %v2442 = vunpack.c.l.b16 %v1925
      %v2443 = vunpack.c.l.b16 %v1939
      %v2444 = vunpack.c.l.b16 %v1953
      %v2445 = vunpack.c.l.b16 %v1967
      %v2446 = vunpack.c.l.b16 %v1981
      %v2447 = vunpack.c.l.b16 %v1995
      %v2448 = vpack.c.b16 %v2441, %v2440
      %v2449 = vpack.c.b16 %v2443, %v2442
      %v2450 = vpack.c.b16 %v2445, %v2444
      %v2451 = vpack.c.b16 %v2447, %v2446
      %2452 = vrot.lane.b32.xlu0 %v2448, 32
      %v2453 = vpop.permute.xlu0 %2452
      %2454 = vrot.lane.b32.xlu0 %v2449, 32
      %v2455 = vpop.permute.xlu0 %2454
      %2456 = vrot.lane.b32.xlu0 %v2450, 32
      %v2457 = vpop.permute.xlu0 %2456
      %2458 = vrot.lane.b32.xlu0 %v2451, 32
      %v2459 = vpop.permute.xlu0 %2458
      %v2460 = vunpack.c.l.b16 %v2023
      %v2461 = vunpack.c.l.b16 %v2027
      %v2462 = vunpack.c.l.b16 %v2031
      %v2463 = vunpack.c.l.b16 %v2035
      %v2464 = vunpack.c.l.b16 %v2039
      %v2465 = vunpack.c.l.b16 %v2043
      %v2466 = vunpack.c.l.b16 %v2047
      %v2467 = vunpack.c.l.b16 %v2051
      %v2468 = vpack.c.b16 %v2461, %v2460
      %v2469 = vpack.c.b16 %v2463, %v2462
      %v2470 = vpack.c.b16 %v2465, %v2464
      %v2471 = vpack.c.b16 %v2467, %v2466
      %2472 = vrot.lane.b32.xlu0 %v2468, 64
      %v2473 = vpop.permute.xlu0 %2472
      %2474 = vrot.lane.b32.xlu0 %v2469, 64
      %v2475 = vpop.permute.xlu0 %2474
      %2476 = vrot.lane.b32.xlu0 %v2470, 64
      %v2477 = vpop.permute.xlu0 %2476
      %2478 = vrot.lane.b32.xlu0 %v2471, 64
      %v2479 = vpop.permute.xlu0 %2478
      %v2488 = vunpack.c.l.b16 %v2052
      %v2489 = vunpack.c.l.b16 %v2053
      %v2490 = vunpack.c.l.b16 %v2054
      %v2491 = vunpack.c.l.b16 %v2055
      %v2492 = vunpack.c.l.b16 %v2056
      %v2493 = vunpack.c.l.b16 %v2057
      %v2494 = vunpack.c.l.b16 %v2058
      %v2495 = vunpack.c.l.b16 %v2059
      %v2496 = vpack.c.b16 %v2489, %v2488
      %v2497 = vpack.c.b16 %v2491, %v2490
      %v2498 = vpack.c.b16 %v2493, %v2492
      %v2499 = vpack.c.b16 %v2495, %v2494
      %2500 = vrot.lane.b32.xlu0 %v2496, 96
      %v2501 = vpop.permute.xlu0 %2500
      %2502 = vrot.lane.b32.xlu0 %v2497, 96
      %v2503 = vpop.permute.xlu0 %2502
      %2504 = vrot.lane.b32.xlu0 %v2498, 96
      %v2505 = vpop.permute.xlu0 %2504
      %2506 = vrot.lane.b32.xlu0 %v2499, 96
      %v2507 = vpop.permute.xlu0 %2506
      %v2508 = vunpack.c.l.b16 %v2081
      %v2509 = vunpack.c.l.b16 %v2095
      %v2510 = vunpack.c.l.b16 %v2109
      %v2511 = vunpack.c.l.b16 %v2123
      %v2512 = vunpack.c.l.b16 %v2137
      %v2513 = vunpack.c.l.b16 %v2151
      %v2514 = vunpack.c.l.b16 %v2165
      %v2515 = vunpack.c.l.b16 %v2179
      %v2516 = vpack.c.b16 %v2509, %v2508
      %v2517 = vpack.c.b16 %v2511, %v2510
      %v2518 = vpack.c.b16 %v2513, %v2512
      %v2519 = vpack.c.b16 %v2515, %v2514
      %v2520 = vunpack.c.l.b16 %v2207
      %v2521 = vunpack.c.l.b16 %v2211
      %v2522 = vunpack.c.l.b16 %v2215
      %v2523 = vunpack.c.l.b16 %v2219
      %v2524 = vunpack.c.l.b16 %v2223
      %v2525 = vunpack.c.l.b16 %v2227
      %v2526 = vunpack.c.l.b16 %v2231
      %v2527 = vunpack.c.l.b16 %v2235
      %v2528 = vpack.c.b16 %v2521, %v2520
      %v2529 = vpack.c.b16 %v2523, %v2522
      %v2530 = vpack.c.b16 %v2525, %v2524
      %v2531 = vpack.c.b16 %v2527, %v2526
      %2532 = vrot.lane.b32.xlu0 %v2528, 32
      %v2533 = vpop.permute.xlu0 %2532
      %2534 = vrot.lane.b32.xlu0 %v2529, 32
      %v2535 = vpop.permute.xlu0 %2534
      %2536 = vrot.lane.b32.xlu0 %v2530, 32
      %v2537 = vpop.permute.xlu0 %2536
      %2538 = vrot.lane.b32.xlu0 %v2531, 32
      %v2539 = vpop.permute.xlu0 %2538
      %v2548 = vunpack.c.l.b16 %v2236
      %v2549 = vunpack.c.l.b16 %v2237
      %v2550 = vunpack.c.l.b16 %v2238
      %v2551 = vunpack.c.l.b16 %v2239
      %v2552 = vunpack.c.l.b16 %v2240
      %v2553 = vunpack.c.l.b16 %v2241
      %v2554 = vunpack.c.l.b16 %v2242
      %v2555 = vunpack.c.l.b16 %v2243
      %v2556 = vpack.c.b16 %v2549, %v2548
      %v2557 = vpack.c.b16 %v2551, %v2550
      %v2558 = vpack.c.b16 %v2553, %v2552
      %v2559 = vpack.c.b16 %v2555, %v2554
      %2560 = vrot.lane.b32.xlu0 %v2556, 64
      %v2561 = vpop.permute.xlu0 %2560
      %2562 = vrot.lane.b32.xlu0 %v2557, 64
      %v2563 = vpop.permute.xlu0 %2562
      %2564 = vrot.lane.b32.xlu0 %v2558, 64
      %v2565 = vpop.permute.xlu0 %2564
      %2566 = vrot.lane.b32.xlu0 %v2559, 64
      %v2567 = vpop.permute.xlu0 %2566
      %v2568 = vunpack.c.l.b16 %v2265
      %v2569 = vunpack.c.l.b16 %v2279
      %v2570 = vunpack.c.l.b16 %v2293
      %v2571 = vunpack.c.l.b16 %v2307
      %v2572 = vunpack.c.l.b16 %v2321
      %v2573 = vunpack.c.l.b16 %v2335
      %v2574 = vunpack.c.l.b16 %v2349
      %v2575 = vunpack.c.l.b16 %v2363
      %v2576 = vpack.c.b16 %v2569, %v2568
      %v2577 = vpack.c.b16 %v2571, %v2570
      %v2578 = vpack.c.b16 %v2573, %v2572
      %v2579 = vpack.c.b16 %v2575, %v2574
      %2580 = vrot.lane.b32.xlu0 %v2576, 96
      %v2581 = vpop.permute.xlu0 %2580
      %2582 = vrot.lane.b32.xlu0 %v2577, 96
      %v2583 = vpop.permute.xlu0 %2582
      %2584 = vrot.lane.b32.xlu0 %v2578, 96
      %v2585 = vpop.permute.xlu0 %2584
      %2586 = vrot.lane.b32.xlu0 %v2579, 96
      %v2587 = vpop.permute.xlu0 %2586
      %v2588 = vunpack.c.l.b16 %v2391
      %v2589 = vunpack.c.l.b16 %v2395
      %v2590 = vunpack.c.l.b16 %v2399
      %v2591 = vunpack.c.l.b16 %v2403
      %v2592 = vunpack.c.l.b16 %v2407
      %v2593 = vunpack.c.l.b16 %v2411
      %v2594 = vunpack.c.l.b16 %v2415
      %v2595 = vunpack.c.l.b16 %v2419
      %v2596 = vpack.c.b16 %v2589, %v2588
      %v2597 = vpack.c.b16 %v2591, %v2590
      %v2598 = vpack.c.b16 %v2593, %v2592
      %v2599 = vpack.c.b16 %v2595, %v2594
      %v2602 = vsel %vm1349, %v2436, %v2453
      %v2605 = vsel %vm1349, %v2437, %v2455
      %v2608 = vsel %vm1349, %v2438, %v2457
      %v2611 = vsel %vm1349, %v2439, %v2459
      %v2613 = vsel %vm1362, %v2602, %v2473
      %v2615 = vsel %vm1362, %v2605, %v2475
      %v2617 = vsel %vm1362, %v2608, %v2477
      %v2619 = vsel %vm1362, %v2611, %v2479
      %v2621 = vsel %vm1371, %v2613, %v2501
      %v2624 = vsel %vm1371, %v2615, %v2503
      %v2627 = vsel %vm1371, %v2617, %v2505
      %v2630 = vsel %vm1371, %v2619, %v2507
      %v2634 = vsel %vm1349, %v2516, %v2533
      %v2637 = vsel %vm1349, %v2517, %v2535
      %v2640 = vsel %vm1349, %v2518, %v2537
      %v2643 = vsel %vm1349, %v2519, %v2539
      %v2645 = vsel %vm1362, %v2634, %v2561
      %v2647 = vsel %vm1362, %v2637, %v2563
      %v2649 = vsel %vm1362, %v2640, %v2565
      %v2651 = vsel %vm1362, %v2643, %v2567
      %v2653 = vsel %vm1371, %v2645, %v2581
      %v2656 = vsel %vm1371, %v2647, %v2583
      %v2659 = vsel %vm1371, %v2649, %v2585
      %v2662 = vsel %vm1371, %v2651, %v2587
      %v2665 = vlaneseq
      %v2666 = vshrl.u32 %v2665, 7
      %v2667 = vsub.s32 0, %v2666
      %v2668 = vrot.slane %v1867, %v2667
      %v2706 = vunpack.c.l.b16 %v1831
      %v2707 = vunpack.c.l.b16 %v1832
      %v2708 = vunpack.c.l.b16 %v1833
      %v2709 = vunpack.c.l.b16 %v1834
      %v2710 = vunpack.c.l.b16 %v1835
      %v2711 = vunpack.c.l.b16 %v1836
      %v2712 = vunpack.c.l.b16 %v1837
      %v2713 = vunpack.c.l.b16 %v1838
      %v2714 = vunpack.c.l.b16 %v1839
      %v2715 = vunpack.c.l.b16 %v1840
      %v2716 = vunpack.c.l.b16 %v1841
      %v2717 = vunpack.c.l.b16 %v1842
      %v2718 = vunpack.c.l.b16 %v1843
      %v2719 = vunpack.c.l.b16 %v1844
      %v2720 = vunpack.c.l.b16 %v1845
      %v2721 = vunpack.c.l.b16 %v1846
      %v2722 = vunpack.c.l.b16 %v1847
      %v2723 = vunpack.c.l.b16 %v1848
      %v2724 = vunpack.c.l.b16 %v1849
      %v2725 = vunpack.c.l.b16 %v1850
      %v2726 = vunpack.c.l.b16 %v1851
      %v2727 = vunpack.c.l.b16 %v1852
      %v2728 = vunpack.c.l.b16 %v1853
      %v2729 = vunpack.c.l.b16 %v1854
      %v2730 = vunpack.c.l.b16 %v1855
      %v2731 = vunpack.c.l.b16 %v1856
      %v2732 = vunpack.c.l.b16 %v1857
      %v2733 = vunpack.c.l.b16 %v1858
      %v2734 = vunpack.c.l.b16 %v1859
      %v2735 = vunpack.c.l.b16 %v1860
      %v2736 = vunpack.c.l.b16 %v1861
      %v2737 = vunpack.c.l.b16 %v1862
      %v2738 = vunpack.c.l.b16 %v1863
      %v2739 = vunpack.c.l.b16 %v1864
      %v2740 = vunpack.c.l.b16 %v1865
      %v2741 = vunpack.c.l.b16 %v1866
      %v2742 = vpack.c.b16 %v2707, %v2706
      %v2743 = vpack.c.b16 %v2709, %v2708
      %v2744 = vpack.c.b16 %v2711, %v2710
      %v2745 = vpack.c.b16 %v2713, %v2712
      %v2746 = vpack.c.b16 %v2715, %v2714
      %v2747 = vpack.c.b16 %v2717, %v2716
      %v2748 = vpack.c.b16 %v2719, %v2718
      %v2749 = vpack.c.b16 %v2721, %v2720
      %v2750 = vpack.c.b16 %v2723, %v2722
      %v2751 = vpack.c.b16 %v2725, %v2724
      %v2752 = vpack.c.b16 %v2727, %v2726
      %v2753 = vpack.c.b16 %v2729, %v2728
      %v2754 = vpack.c.b16 %v2731, %v2730
      %v2755 = vpack.c.b16 %v2733, %v2732
      %v2756 = vpack.c.b16 %v2735, %v2734
      %v2757 = vpack.c.b16 %v2737, %v2736
      %v2758 = vpack.c.b16 %v2739, %v2738
      %v2759 = vpack.c.b16 %v2741, %v2740
      %v2779 = vsel %vm1349, %v2596, 0
      %v2782 = vsel %vm1349, %v2597, 0
      %v2785 = vsel %vm1349, %v2598, 0
      %v2788 = vsel %vm1349, %v2599, 0
      %2790 = vmatprep.subr.bf16.mxu0 0
      %2791 = vmatpush1.bf16.msra.mxu0 %v2742
      %2792 = vmatprep.subr.bf16.mxu0 0
      %2793 = vmatpush1.bf16.msra.mxu0 %v2743
      %2794 = vmatprep.subr.bf16.mxu0 0
      %2795 = vmatpush1.bf16.msra.mxu0 %v2744
      %2796 = vmatprep.subr.bf16.mxu0 0
      %2797 = vmatpush1.bf16.msra.mxu0 %v2745
      %2798 = vmatprep.subr.bf16.mxu0 0
      %2799 = vmatpush1.bf16.msra.mxu0 %v2746
      %2800 = vmatprep.subr.bf16.mxu0 0
      %2801 = vmatpush1.bf16.msra.mxu0 %v2747
      %2802 = vmatprep.subr.bf16.mxu0 0
      %2803 = vmatpush1.bf16.msra.mxu0 %v2748
      %2804 = vmatprep.subr.bf16.mxu0 0
      %2805 = vmatpush1.bf16.msra.mxu0 %v2749
      %2806 = vmatprep.subr.bf16.mxu0 0
      %2807 = vmatpush1.bf16.msra.mxu0 %v2750
      %2808 = vmatprep.subr.bf16.mxu0 0
      %2809 = vmatpush1.bf16.msra.mxu0 %v2751
      %2810 = vmatprep.subr.bf16.mxu0 0
      %2811 = vmatpush1.bf16.msra.mxu0 %v2752
      %2812 = vmatprep.subr.bf16.mxu0 0
      %2813 = vmatpush1.bf16.msra.mxu0 %v2753
      %2814 = vmatprep.subr.bf16.mxu0 0
      %2815 = vmatpush1.bf16.msra.mxu0 %v2754
      %2816 = vmatprep.subr.bf16.mxu0 0
      %2817 = vmatpush1.bf16.msra.mxu0 %v2755
      %2818 = vmatprep.subr.bf16.mxu0 0
      %2819 = vmatpush1.bf16.msra.mxu0 %v2756
      %2820 = vmatprep.subr.bf16.mxu0 0
      %2821 = vmatpush1.bf16.msra.mxu0 %v2757
      %2822 = vmatprep.mubr.bf16.mxu0 %v2653
      %2823 = vmatmul.mubr.bf16.gmra.mrb[0].mxu0 %v2621
      %v2824 = vpop.f32.mrb[0].mxu0
      %v2825 = vadd.f32 %v2668, %v2824
      %v2826 = vpop.f32.mrb[0].mxu0
      %v2827 = vpop.f32.mrb[0].mxu0
      %v2828 = vadd.f32 %v2668, %v2827
      %v2829 = vpop.f32.mrb[0].mxu0
      %2830 = vmatprep.mubr.bf16.mxu0 %v2656
      %2831 = vmatmul.mubr.bf16.gmra.mrb[0].mxu0 %v2624
      %v2832 = vpop.f32.mrb[0].mxu0
      %v2833 = vadd.f32 %v2668, %v2832
      %v2834 = vpop.f32.mrb[0].mxu0
      %v2835 = vpop.f32.mrb[0].mxu0
      %v2836 = vadd.f32 %v2668, %v2835
      %v2837 = vpop.f32.mrb[0].mxu0
      %2838 = vmatprep.mubr.bf16.mxu0 %v2659
      %2839 = vmatmul.mubr.bf16.gmra.mrb[0].mxu0 %v2627
      %v2840 = vpop.f32.mrb[0].mxu0
      %v2841 = vadd.f32 %v2668, %v2840
      %v2842 = vpop.f32.mrb[0].mxu0
      %v2843 = vpop.f32.mrb[0].mxu0
      %v2844 = vadd.f32 %v2668, %v2843
      %v2845 = vpop.f32.mrb[0].mxu0
      %2846 = vmatprep.mubr.bf16.mxu0 %v2662
      %2847 = vmatmul.mubr.bf16.gmra.mrb[0].mxu0 %v2630
      %v2848 = vpop.f32.mrb[0].mxu0
      %v2849 = vadd.f32 %v2668, %v2848
      %v2850 = vpop.f32.mrb[0].mxu0
      %v2851 = vpop.f32.mrb[0].mxu0
      %v2852 = vadd.f32 %v2668, %v2851
      %v2853 = vpop.f32.mrb[0].mxu0
      %2854 = vdwg.mxu0
      %2855 = vmatprep.subr.bf16.mxu0 0
      %2856 = vmatpush1.bf16.msra.mxu0 %v2758
      %2857 = vmatprep.subr.bf16.mxu0 0
      %2858 = vmatpush1.bf16.msra.mxu0 %v2759
      %2859 = vmatprep.subr.bf16.mxu0 0
      %2860 = vmatpush1.bf16.msra.mxu0 0
      %2861 = vmatprep.subr.bf16.mxu0 0
      %2862 = vmatpush1.bf16.msra.mxu0 0
      %2863 = vmatprep.subr.bf16.mxu0 0
      %2864 = vmatpush1.bf16.msra.mxu0 0
      %2865 = vmatprep.subr.bf16.mxu0 0
      %2866 = vmatpush1.bf16.msra.mxu0 0
      %2867 = vmatprep.subr.bf16.mxu0 0
      %2868 = vmatpush1.bf16.msra.mxu0 0
      %2869 = vmatprep.subr.bf16.mxu0 0
      %2870 = vmatpush1.bf16.msra.mxu0 0
      %2871 = vmatprep.subr.bf16.mxu0 0
      %2872 = vmatpush1.bf16.msra.mxu0 0
      %2873 = vmatprep.subr.bf16.mxu0 0
      %2874 = vmatpush1.bf16.msra.mxu0 0
      %2875 = vmatprep.subr.bf16.mxu0 0
      %2876 = vmatpush1.bf16.msra.mxu0 0
      %2877 = vmatprep.subr.bf16.mxu0 0
      %2878 = vmatpush1.bf16.msra.mxu0 0
      %2879 = vmatprep.subr.bf16.mxu0 0
      %2880 = vmatpush1.bf16.msra.mxu0 0
      %2881 = vmatprep.subr.bf16.mxu0 0
      %2882 = vmatpush1.bf16.msra.mxu0 0
      %2883 = vmatprep.subr.bf16.mxu0 0
      %2884 = vmatpush1.bf16.msra.mxu0 0
      %2885 = vmatprep.subr.bf16.mxu0 0
      %2886 = vmatpush1.bf16.msra.mxu0 0
      %2887 = vmatprep.mubr.bf16.mxu0 0
      %2888 = vmatmul.mubr.bf16.gmra.mrb[0].mxu0 %v2779
      %v2889 = vpop.f32.mrb[0].mxu0
      %v2890 = vadd.f32 %v2825, %v2889
      %v2891 = vpop.f32.mrb[0].mxu0
      %v2892 = vpop.f32.mrb[0].mxu0
      %v2893 = vadd.f32 %v2828, %v2892
      %v2894 = vpop.f32.mrb[0].mxu0
      %2895 = vmatprep.mubr.bf16.mxu0 0
      %2896 = vmatmul.mubr.bf16.gmra.mrb[0].mxu0 %v2782
      %v2897 = vpop.f32.mrb[0].mxu0
      %v2898 = vadd.f32 %v2833, %v2897
      %v2899 = vpop.f32.mrb[0].mxu0
      %v2900 = vpop.f32.mrb[0].mxu0
      %v2901 = vadd.f32 %v2836, %v2900
      %v2902 = vpop.f32.mrb[0].mxu0
      %2903 = vmatprep.mubr.bf16.mxu0 0
      %2904 = vmatmul.mubr.bf16.gmra.mrb[0].mxu0 %v2785
      %v2905 = vpop.f32.mrb[0].mxu0
      %v2906 = vadd.f32 %v2841, %v2905
      %v2907 = vpop.f32.mrb[0].mxu0
      %v2908 = vpop.f32.mrb[0].mxu0
      %v2909 = vadd.f32 %v2844, %v2908
      %v2910 = vpop.f32.mrb[0].mxu0
      %2911 = vmatprep.mubr.bf16.mxu0 0
      %2912 = vmatmul.mubr.bf16.gmra.mrb[0].mxu0 %v2788
      %v2913 = vpop.f32.mrb[0].mxu0
      %v2914 = vadd.f32 %v2849, %v2913
      %v2915 = vpop.f32.mrb[0].mxu0
      %v2916 = vpop.f32.mrb[0].mxu0
      %v2917 = vadd.f32 %v2852, %v2916
      %v2918 = vpop.f32.mrb[0].mxu0
      %2919 = vdwg.mxu0
      %v2920 = vmax.f32 %v2890, 0.0
      %v2921 = vmax.f32 %v2893, 0.0
      %v2922 = vmax.f32 %v2898, 0.0
      %v2923 = vmax.f32 %v2901, 0.0
      %v2924 = vmax.f32 %v2906, 0.0
      %v2925 = vmax.f32 %v2909, 0.0
      %v2926 = vmax.f32 %v2914, 0.0
      %v2927 = vmax.f32 %v2917, 0.0
      %v2928 = vpack.c.bf16 %v2921, %v2920
      %v2929 = vpack.c.bf16 %v2923, %v2922
      %v2930 = vpack.c.bf16 %v2925, %v2924
      %v2931 = vpack.c.bf16 %v2927, %v2926
      %v2936 = vunpack.c.l.b16 %v2928
      %v2937 = vunpack.c.h.b16 %v2928
      %v2938 = vunpack.c.l.b16 %v2929
      %v2939 = vunpack.c.h.b16 %v2929
      %v2940 = vunpack.c.l.b16 %v2930
      %v2941 = vunpack.c.h.b16 %v2930
      %v2942 = vunpack.c.l.b16 %v2931
      %v2943 = vunpack.c.h.b16 %v2931
      %v2944 = vpack.c.b16 %v2936, %v2936
      %v2945 = vpack.c.b16 %v2937, %v2937
      %v2946 = vpack.c.b16 %v2938, %v2938
      %v2947 = vpack.c.b16 %v2939, %v2939
      %v2948 = vpack.c.b16 %v2940, %v2940
      %v2949 = vpack.c.b16 %v2941, %v2941
      %v2950 = vpack.c.b16 %v2942, %v2942
      %v2951 = vpack.c.b16 %v2943, %v2943
      %v2953 = vshrl.u32 %v2944, 16
      %v2955 = vrot.slane %v2953, 7
      %v2956 = vshll.u32 %v2944, 16
      %v2958 = vor.u32 %v2955, %v2956
      %v2959 = vrot.slane %v2955, 4
      %v2961 = vshrl.u32 %v2945, 16
      %v2963 = vrot.slane %v2961, 7
      %v2964 = vshll.u32 %v2945, 16
      %v2966 = vor.u32 %v2963, %v2964
      %v2967 = vrot.slane %v2963, 4
      %v2969 = vshrl.u32 %v2946, 16
      %v2971 = vrot.slane %v2969, 7
      %v2972 = vshll.u32 %v2946, 16
      %v2974 = vor.u32 %v2971, %v2972
      %v2975 = vrot.slane %v2971, 4
      %v2977 = vshrl.u32 %v2947, 16
      %v2979 = vrot.slane %v2977, 7
      %v2980 = vshll.u32 %v2947, 16
      %v2982 = vor.u32 %v2979, %v2980
      %v2983 = vrot.slane %v2979, 4
      %v2985 = vshrl.u32 %v2948, 16
      %v2987 = vrot.slane %v2985, 7
      %v2988 = vshll.u32 %v2948, 16
      %v2990 = vor.u32 %v2987, %v2988
      %v2991 = vrot.slane %v2987, 4
      %v2993 = vshrl.u32 %v2949, 16
      %v2995 = vrot.slane %v2993, 7
      %v2996 = vshll.u32 %v2949, 16
      %v2998 = vor.u32 %v2995, %v2996
      %v2999 = vrot.slane %v2995, 4
      %v3001 = vshrl.u32 %v2950, 16
      %v3003 = vrot.slane %v3001, 7
      %v3004 = vshll.u32 %v2950, 16
      %v3006 = vor.u32 %v3003, %v3004
      %v3007 = vrot.slane %v3003, 4
      %v3009 = vshrl.u32 %v2951, 16
      %v3011 = vrot.slane %v3009, 7
      %v3012 = vshll.u32 %v2951, 16
      %v3014 = vor.u32 %v3011, %v3012
      %v3015 = vrot.slane %v3011, 4
      %v3032 = vsel %vm521, %v2958, %v2052
      %3033 = vst [vmem:[%s518] sm:$0xf] %v3032
      %v3034 = vld [vmem:[%s518 + $0x4] sm:$0x1]
      %v3035 = vsel %vm527, %v2959, %v3034
      %3036 = vst [vmem:[%s518 + $0x4] sm:$0x1] %v3035
      %v3037 = vld [vmem:[%s518 + $0x8] sm:$0xf]
      %v3038 = vsel %vm521, %v2966, %v3037
      %3039 = vst [vmem:[%s518 + $0x8] sm:$0xf] %v3038
      %v3040 = vld [vmem:[%s518 + $0xc] sm:$0x1]
      %v3041 = vsel %vm527, %v2967, %v3040
      %3042 = vst [vmem:[%s518 + $0xc] sm:$0x1] %v3041
      %v3043 = vld [vmem:[%s518 + $0x10] sm:$0xf]
      %v3044 = vsel %vm521, %v2974, %v3043
      %3045 = vst [vmem:[%s518 + $0x10] sm:$0xf] %v3044
      %v3046 = vld [vmem:[%s518 + $0x14] sm:$0x1]
      %v3047 = vsel %vm527, %v2975, %v3046
      %3048 = vst [vmem:[%s518 + $0x14] sm:$0x1] %v3047
      %v3049 = vld [vmem:[%s518 + $0x18] sm:$0xf]
      %v3050 = vsel %vm521, %v2982, %v3049
      %3051 = vst [vmem:[%s518 + $0x18] sm:$0xf] %v3050
      %v3052 = vld [vmem:[%s518 + $0x1c] sm:$0x1]
      %v3053 = vsel %vm527, %v2983, %v3052
      %3054 = vst [vmem:[%s518 + $0x1c] sm:$0x1] %v3053
      %v3055 = vld [vmem:[%s518 + $0x20] sm:$0xf]
      %v3056 = vsel %vm521, %v2990, %v3055
      %3057 = vst [vmem:[%s518 + $0x20] sm:$0xf] %v3056
      %v3058 = vld [vmem:[%s518 + $0x24] sm:$0x1]
      %v3059 = vsel %vm527, %v2991, %v3058
      %3060 = vst [vmem:[%s518 + $0x24] sm:$0x1] %v3059
      %v3061 = vld [vmem:[%s518 + $0x28] sm:$0xf]
      %v3062 = vsel %vm521, %v2998, %v3061
      %3063 = vst [vmem:[%s518 + $0x28] sm:$0xf] %v3062
      %v3064 = vld [vmem:[%s518 + $0x2c] sm:$0x1]
      %v3065 = vsel %vm527, %v2999, %v3064
      %3066 = vst [vmem:[%s518 + $0x2c] sm:$0x1] %v3065
      %v3067 = vld [vmem:[%s518 + $0x30] sm:$0xf]
      %v3068 = vsel %vm521, %v3006, %v3067
      %3069 = vst [vmem:[%s518 + $0x30] sm:$0xf] %v3068
      %v3070 = vld [vmem:[%s518 + $0x34] sm:$0x1]
      %v3071 = vsel %vm527, %v3007, %v3070
      %3072 = vst [vmem:[%s518 + $0x34] sm:$0x1] %v3071
      %v3073 = vld [vmem:[%s518 + $0x38] sm:$0xf]
      %v3074 = vsel %vm521, %v3014, %v3073
      %3075 = vst [vmem:[%s518 + $0x38] sm:$0xf] %v3074
      %v3076 = vld [vmem:[%s518 + $0x3c] sm:$0x1]
      %v3077 = vsel %vm527, %v3015, %v3076
      %3078 = vst [vmem:[%s518 + $0x3c] sm:$0x1] %v3077
      %v3079 = vld [vmem:[%s7] sm:$0xf]
      %v3080 = vld [vmem:[%s7 + $0x4] sm:$0xf]
      %v3081 = vld [vmem:[%s7 + $0x8] sm:$0xf]
      %v3082 = vld [vmem:[%s7 + $0xc] sm:$0xf]
      %v3083 = vld [vmem:[%s7 + $0x10] sm:$0xf]
      %v3084 = vld [vmem:[%s7 + $0x14] sm:$0xf]
      %v3085 = vld [vmem:[%s7 + $0x18] sm:$0xf]
      %v3086 = vld [vmem:[%s7 + $0x1c] sm:$0xf]
      %v3087 = vld [vmem:[%s7 + $0x20] sm:$0xf]
      %v3088 = vld [vmem:[%s7 + $0x24] sm:$0xf]
      %v3089 = vld [vmem:[%s7 + $0x28] sm:$0xf]
      %v3090 = vld [vmem:[%s7 + $0x2c] sm:$0xf]
      %v3091 = vld [vmem:[%s7 + $0x30] sm:$0xf]
      %v3092 = vld [vmem:[%s7 + $0x34] sm:$0xf]
      %v3093 = vld [vmem:[%s7 + $0x38] sm:$0xf]
      %v3094 = vld [vmem:[%s7 + $0x3c] sm:$0xf]
      %v3095 = vld [vmem:[%s7 + $0x40] sm:$0xf]
      %v3096 = vld [vmem:[%s7 + $0x44] sm:$0xf]
      %v3097 = vld [vmem:[%s7 + $0x48] sm:$0xf]
      %v3098 = vld [vmem:[%s7 + $0x4c] sm:$0xf]
      %v3099 = vld [vmem:[%s7 + $0x50] sm:$0xf]
      %v3100 = vld [vmem:[%s7 + $0x54] sm:$0xf]
      %v3101 = vld [vmem:[%s7 + $0x58] sm:$0xf]
      %v3102 = vld [vmem:[%s7 + $0x5c] sm:$0xf]
      %v3103 = vld [vmem:[%s7 + $0x60] sm:$0xf]
      %v3104 = vld [vmem:[%s7 + $0x64] sm:$0xf]
      %v3105 = vld [vmem:[%s7 + $0x68] sm:$0xf]
      %v3106 = vld [vmem:[%s7 + $0x6c] sm:$0xf]
      %v3107 = vld [vmem:[%s7 + $0x70] sm:$0xf]
      %v3108 = vld [vmem:[%s7 + $0x74] sm:$0xf]
      %v3109 = vld [vmem:[%s7 + $0x78] sm:$0xf]
      %v3110 = vld [vmem:[%s7 + $0x7c] sm:$0xf]
      %v3111 = vld [vmem:[%s7 + $0x80] sm:$0xf]
      %v3112 = vld [vmem:[%s7 + $0x84] sm:$0xf]
      %v3113 = vld [vmem:[%s7 + $0x88] sm:$0xf]
      %v3114 = vld [vmem:[%s7 + $0x8c] sm:$0xf]
      %v3115 = vld [vmem:[%s8] sm:$0x1]
      %v3116 = vld [vmem:[#allocation2] sm:$0xf]
      %v3117 = vld [vmem:[#allocation2 + $0x8] sm:$0xf]
      %v3118 = vld [vmem:[#allocation2 + $0x10] sm:$0xf]
      %v3119 = vld [vmem:[#allocation2 + $0x18] sm:$0xf]
      %v3120 = vld [vmem:[#allocation2 + $0x20] sm:$0xf]
      %v3121 = vld [vmem:[#allocation2 + $0x28] sm:$0xf]
      %v3122 = vld [vmem:[#allocation2 + $0x30] sm:$0xf]
      %v3123 = vld [vmem:[#allocation2 + $0x38] sm:$0xf]
      %v3124 = vld [vmem:[#allocation2 + $0x4] sm:$0x1]
      %v3125 = vld [vmem:[#allocation2 + $0xc] sm:$0x1]
      %v3126 = vld [vmem:[#allocation2 + $0x14] sm:$0x1]
      %v3127 = vld [vmem:[#allocation2 + $0x1c] sm:$0x1]
      %v3128 = vld [vmem:[#allocation2 + $0x24] sm:$0x1]
      %v3129 = vld [vmem:[#allocation2 + $0x2c] sm:$0x1]
      %v3130 = vld [vmem:[#allocation2 + $0x34] sm:$0x1]
      %v3131 = vld [vmem:[#allocation2 + $0x3c] sm:$0x1]
      %v3133 = vshrl.u32 %v3116, 16
      %v3135 = vrot.slane %v3133, 4
      %v3136 = vshll.u32 %v3116, 16
      %v3138 = vrot.slane %v3136, 5
      %v3139 = vor.u32 %v3135, %v3138
      %v3140 = vrot.slane %v3139, 4
      %v3142 = vshll.u32 %v3124, 16
      %v3144 = vrot.slane %v3142, 5
      %v3145 = vsel %vm628, %v3140, %v3144
      %v3147 = vshrl.u32 %v3117, 16
      %v3149 = vrot.slane %v3147, 4
      %v3150 = vshll.u32 %v3117, 16
      %v3152 = vrot.slane %v3150, 5
      %v3153 = vor.u32 %v3149, %v3152
      %v3154 = vrot.slane %v3153, 4
      %v3156 = vshll.u32 %v3125, 16
      %v3158 = vrot.slane %v3156, 5
      %v3159 = vsel %vm628, %v3154, %v3158
      %v3161 = vshrl.u32 %v3118, 16
      %v3163 = vrot.slane %v3161, 4
      %v3164 = vshll.u32 %v3118, 16
      %v3166 = vrot.slane %v3164, 5
      %v3167 = vor.u32 %v3163, %v3166
      %v3168 = vrot.slane %v3167, 4
      %v3170 = vshll.u32 %v3126, 16
      %v3172 = vrot.slane %v3170, 5
      %v3173 = vsel %vm628, %v3168, %v3172
      %v3175 = vshrl.u32 %v3119, 16
      %v3177 = vrot.slane %v3175, 4
      %v3178 = vshll.u32 %v3119, 16
      %v3180 = vrot.slane %v3178, 5
      %v3181 = vor.u32 %v3177, %v3180
      %v3182 = vrot.slane %v3181, 4
      %v3184 = vshll.u32 %v3127, 16
      %v3186 = vrot.slane %v3184, 5
      %v3187 = vsel %vm628, %v3182, %v3186
      %v3189 = vshrl.u32 %v3120, 16
      %v3191 = vrot.slane %v3189, 4
      %v3192 = vshll.u32 %v3120, 16
      %v3194 = vrot.slane %v3192, 5
      %v3195 = vor.u32 %v3191, %v3194
      %v3196 = vrot.slane %v3195, 4
      %v3198 = vshll.u32 %v3128, 16
      %v3200 = vrot.slane %v3198, 5
      %v3201 = vsel %vm628, %v3196, %v3200
      %v3203 = vshrl.u32 %v3121, 16
      %v3205 = vrot.slane %v3203, 4
      %v3206 = vshll.u32 %v3121, 16
      %v3208 = vrot.slane %v3206, 5
      %v3209 = vor.u32 %v3205, %v3208
      %v3210 = vrot.slane %v3209, 4
      %v3212 = vshll.u32 %v3129, 16
      %v3214 = vrot.slane %v3212, 5
      %v3215 = vsel %vm628, %v3210, %v3214
      %v3217 = vshrl.u32 %v3122, 16
      %v3219 = vrot.slane %v3217, 4
      %v3220 = vshll.u32 %v3122, 16
      %v3222 = vrot.slane %v3220, 5
      %v3223 = vor.u32 %v3219, %v3222
      %v3224 = vrot.slane %v3223, 4
      %v3226 = vshll.u32 %v3130, 16
      %v3228 = vrot.slane %v3226, 5
      %v3229 = vsel %vm628, %v3224, %v3228
      %v3231 = vshrl.u32 %v3123, 16
      %v3233 = vrot.slane %v3231, 4
      %v3234 = vshll.u32 %v3123, 16
      %v3236 = vrot.slane %v3234, 5
      %v3237 = vor.u32 %v3233, %v3236
      %v3238 = vrot.slane %v3237, 4
      %v3240 = vshll.u32 %v3131, 16
      %v3242 = vrot.slane %v3240, 5
      %v3243 = vsel %vm628, %v3238, %v3242
      %v3244 = vld [vmem:[#allocation2] sm:$0xe]
      %v3245 = vld [vmem:[#allocation2 + $0x8] sm:$0xe]
      %v3246 = vld [vmem:[#allocation2 + $0x10] sm:$0xe]
      %v3247 = vld [vmem:[#allocation2 + $0x18] sm:$0xe]
      %v3248 = vld [vmem:[#allocation2 + $0x20] sm:$0xe]
      %v3249 = vld [vmem:[#allocation2 + $0x28] sm:$0xe]
      %v3250 = vld [vmem:[#allocation2 + $0x30] sm:$0xe]
      %v3251 = vld [vmem:[#allocation2 + $0x38] sm:$0xe]
      %v3268 = vrot.slane %v3244, 5
      %v3269 = vrot.slane %v3268, 4
      %v3270 = vrot.slane %v3124, 5
      %v3271 = vsel %vm767, %v3269, %v3270
      %v3272 = vrot.slane %v3245, 5
      %v3273 = vrot.slane %v3272, 4
      %v3274 = vrot.slane %v3125, 5
      %v3275 = vsel %vm767, %v3273, %v3274
      %v3276 = vrot.slane %v3246, 5
      %v3277 = vrot.slane %v3276, 4
      %v3278 = vrot.slane %v3126, 5
      %v3279 = vsel %vm767, %v3277, %v3278
      %v3280 = vrot.slane %v3247, 5
      %v3281 = vrot.slane %v3280, 4
      %v3282 = vrot.slane %v3127, 5
      %v3283 = vsel %vm767, %v3281, %v3282
      %v3284 = vrot.slane %v3248, 5
      %v3285 = vrot.slane %v3284, 4
      %v3286 = vrot.slane %v3128, 5
      %v3287 = vsel %vm767, %v3285, %v3286
      %v3288 = vrot.slane %v3249, 5
      %v3289 = vrot.slane %v3288, 4
      %v3290 = vrot.slane %v3129, 5
      %v3291 = vsel %vm767, %v3289, %v3290
      %v3292 = vrot.slane %v3250, 5
      %v3293 = vrot.slane %v3292, 4
      %v3294 = vrot.slane %v3130, 5
      %v3295 = vsel %vm767, %v3293, %v3294
      %v3296 = vrot.slane %v3251, 5
      %v3297 = vrot.slane %v3296, 4
      %v3298 = vrot.slane %v3131, 5
      %v3299 = vsel %vm767, %v3297, %v3298
      %v3300 = vld [vmem:[%s518] sm:$0xf]
      %v3301 = vld [vmem:[%s518 + $0x8] sm:$0xf]
      %v3302 = vld [vmem:[%s518 + $0x10] sm:$0xf]
      %v3303 = vld [vmem:[%s518 + $0x18] sm:$0xf]
      %v3304 = vld [vmem:[%s518 + $0x20] sm:$0xf]
      %v3305 = vld [vmem:[%s518 + $0x28] sm:$0xf]
      %v3306 = vld [vmem:[%s518 + $0x30] sm:$0xf]
      %v3307 = vld [vmem:[%s518 + $0x38] sm:$0xf]
      %v3308 = vld [vmem:[%s518 + $0x4] sm:$0x1]
      %v3309 = vld [vmem:[%s518 + $0xc] sm:$0x1]
      %v3310 = vld [vmem:[%s518 + $0x14] sm:$0x1]
      %v3311 = vld [vmem:[%s518 + $0x1c] sm:$0x1]
      %v3312 = vld [vmem:[%s518 + $0x24] sm:$0x1]
      %v3313 = vld [vmem:[%s518 + $0x2c] sm:$0x1]
      %v3314 = vld [vmem:[%s518 + $0x34] sm:$0x1]
      %v3315 = vld [vmem:[%s518 + $0x3c] sm:$0x1]
      %v3317 = vshrl.u32 %v3300, 16
      %v3319 = vrot.slane %v3317, 4
      %v3320 = vshll.u32 %v3300, 16
      %v3322 = vrot.slane %v3320, 5
      %v3323 = vor.u32 %v3319, %v3322
      %v3324 = vrot.slane %v3323, 4
      %v3326 = vshll.u32 %v3308, 16
      %v3328 = vrot.slane %v3326, 5
      %v3329 = vsel %vm628, %v3324, %v3328
      %v3331 = vshrl.u32 %v3301, 16
      %v3333 = vrot.slane %v3331, 4
      %v3334 = vshll.u32 %v3301, 16
      %v3336 = vrot.slane %v3334, 5
      %v3337 = vor.u32 %v3333, %v3336
      %v3338 = vrot.slane %v3337, 4
      %v3340 = vshll.u32 %v3309, 16
      %v3342 = vrot.slane %v3340, 5
      %v3343 = vsel %vm628, %v3338, %v3342
      %v3345 = vshrl.u32 %v3302, 16
      %v3347 = vrot.slane %v3345, 4
      %v3348 = vshll.u32 %v3302, 16
      %v3350 = vrot.slane %v3348, 5
      %v3351 = vor.u32 %v3347, %v3350
      %v3352 = vrot.slane %v3351, 4
      %v3354 = vshll.u32 %v3310, 16
      %v3356 = vrot.slane %v3354, 5
      %v3357 = vsel %vm628, %v3352, %v3356
      %v3359 = vshrl.u32 %v3303, 16
      %v3361 = vrot.slane %v3359, 4
      %v3362 = vshll.u32 %v3303, 16
      %v3364 = vrot.slane %v3362, 5
      %v3365 = vor.u32 %v3361, %v3364
      %v3366 = vrot.slane %v3365, 4
      %v3368 = vshll.u32 %v3311, 16
      %v3370 = vrot.slane %v3368, 5
      %v3371 = vsel %vm628, %v3366, %v3370
      %v3373 = vshrl.u32 %v3304, 16
      %v3375 = vrot.slane %v3373, 4
      %v3376 = vshll.u32 %v3304, 16
      %v3378 = vrot.slane %v3376, 5
      %v3379 = vor.u32 %v3375, %v3378
      %v3380 = vrot.slane %v3379, 4
      %v3382 = vshll.u32 %v3312, 16
      %v3384 = vrot.slane %v3382, 5
      %v3385 = vsel %vm628, %v3380, %v3384
      %v3387 = vshrl.u32 %v3305, 16
      %v3389 = vrot.slane %v3387, 4
      %v3390 = vshll.u32 %v3305, 16
      %v3392 = vrot.slane %v3390, 5
      %v3393 = vor.u32 %v3389, %v3392
      %v3394 = vrot.slane %v3393, 4
      %v3396 = vshll.u32 %v3313, 16
      %v3398 = vrot.slane %v3396, 5
      %v3399 = vsel %vm628, %v3394, %v3398
      %v3401 = vshrl.u32 %v3306, 16
      %v3403 = vrot.slane %v3401, 4
      %v3404 = vshll.u32 %v3306, 16
      %v3406 = vrot.slane %v3404, 5
      %v3407 = vor.u32 %v3403, %v3406
      %v3408 = vrot.slane %v3407, 4
      %v3410 = vshll.u32 %v3314, 16
      %v3412 = vrot.slane %v3410, 5
      %v3413 = vsel %vm628, %v3408, %v3412
      %v3415 = vshrl.u32 %v3307, 16
      %v3417 = vrot.slane %v3415, 4
      %v3418 = vshll.u32 %v3307, 16
      %v3420 = vrot.slane %v3418, 5
      %v3421 = vor.u32 %v3417, %v3420
      %v3422 = vrot.slane %v3421, 4
      %v3424 = vshll.u32 %v3315, 16
      %v3426 = vrot.slane %v3424, 5
      %v3427 = vsel %vm628, %v3422, %v3426
      %v3428 = vld [vmem:[%s518] sm:$0xe]
      %v3429 = vld [vmem:[%s518 + $0x8] sm:$0xe]
      %v3430 = vld [vmem:[%s518 + $0x10] sm:$0xe]
      %v3431 = vld [vmem:[%s518 + $0x18] sm:$0xe]
      %v3432 = vld [vmem:[%s518 + $0x20] sm:$0xe]
      %v3433 = vld [vmem:[%s518 + $0x28] sm:$0xe]
      %v3434 = vld [vmem:[%s518 + $0x30] sm:$0xe]
      %v3435 = vld [vmem:[%s518 + $0x38] sm:$0xe]
      %v3452 = vrot.slane %v3428, 5
      %v3453 = vrot.slane %v3452, 4
      %v3454 = vrot.slane %v3308, 5
      %v3455 = vsel %vm767, %v3453, %v3454
      %v3456 = vrot.slane %v3429, 5
      %v3457 = vrot.slane %v3456, 4
      %v3458 = vrot.slane %v3309, 5
      %v3459 = vsel %vm767, %v3457, %v3458
      %v3460 = vrot.slane %v3430, 5
      %v3461 = vrot.slane %v3460, 4
      %v3462 = vrot.slane %v3310, 5
      %v3463 = vsel %vm767, %v3461, %v3462
      %v3464 = vrot.slane %v3431, 5
      %v3465 = vrot.slane %v3464, 4
      %v3466 = vrot.slane %v3311, 5
      %v3467 = vsel %vm767, %v3465, %v3466
      %v3468 = vrot.slane %v3432, 5
      %v3469 = vrot.slane %v3468, 4
      %v3470 = vrot.slane %v3312, 5
      %v3471 = vsel %vm767, %v3469, %v3470
      %v3472 = vrot.slane %v3433, 5
      %v3473 = vrot.slane %v3472, 4
      %v3474 = vrot.slane %v3313, 5
      %v3475 = vsel %vm767, %v3473, %v3474
      %v3476 = vrot.slane %v3434, 5
      %v3477 = vrot.slane %v3476, 4
      %v3478 = vrot.slane %v3314, 5
      %v3479 = vsel %vm767, %v3477, %v3478
      %v3480 = vrot.slane %v3435, 5
      %v3481 = vrot.slane %v3480, 4
      %v3482 = vrot.slane %v3315, 5
      %v3483 = vsel %vm767, %v3481, %v3482
      %v3484 = vld [vmem:[%s984] sm:$0xf]
      %v3485 = vld [vmem:[%s984 + $0x8] sm:$0xf]
      %v3486 = vld [vmem:[%s984 + $0x10] sm:$0xf]
      %v3487 = vld [vmem:[%s984 + $0x18] sm:$0xf]
      %v3488 = vld [vmem:[%s984 + $0x20] sm:$0xf]
      %v3489 = vld [vmem:[%s984 + $0x28] sm:$0xf]
      %v3490 = vld [vmem:[%s984 + $0x30] sm:$0xf]
      %v3491 = vld [vmem:[%s984 + $0x38] sm:$0xf]
      %v3492 = vld [vmem:[%s984 + $0x4] sm:$0x1]
      %v3493 = vld [vmem:[%s984 + $0xc] sm:$0x1]
      %v3494 = vld [vmem:[%s984 + $0x14] sm:$0x1]
      %v3495 = vld [vmem:[%s984 + $0x1c] sm:$0x1]
      %v3496 = vld [vmem:[%s984 + $0x24] sm:$0x1]
      %v3497 = vld [vmem:[%s984 + $0x2c] sm:$0x1]
      %v3498 = vld [vmem:[%s984 + $0x34] sm:$0x1]
      %v3499 = vld [vmem:[%s984 + $0x3c] sm:$0x1]
      %v3501 = vshrl.u32 %v3484, 16
      %v3503 = vrot.slane %v3501, 4
      %v3504 = vshll.u32 %v3484, 16
      %v3506 = vrot.slane %v3504, 5
      %v3507 = vor.u32 %v3503, %v3506
      %v3508 = vrot.slane %v3507, 4
      %v3510 = vshll.u32 %v3492, 16
      %v3512 = vrot.slane %v3510, 5
      %v3513 = vsel %vm628, %v3508, %v3512
      %v3515 = vshrl.u32 %v3485, 16
      %v3517 = vrot.slane %v3515, 4
      %v3518 = vshll.u32 %v3485, 16
      %v3520 = vrot.slane %v3518, 5
      %v3521 = vor.u32 %v3517, %v3520
      %v3522 = vrot.slane %v3521, 4
      %v3524 = vshll.u32 %v3493, 16
      %v3526 = vrot.slane %v3524, 5
      %v3527 = vsel %vm628, %v3522, %v3526
      %v3529 = vshrl.u32 %v3486, 16
      %v3531 = vrot.slane %v3529, 4
      %v3532 = vshll.u32 %v3486, 16
      %v3534 = vrot.slane %v3532, 5
      %v3535 = vor.u32 %v3531, %v3534
      %v3536 = vrot.slane %v3535, 4
      %v3538 = vshll.u32 %v3494, 16
      %v3540 = vrot.slane %v3538, 5
      %v3541 = vsel %vm628, %v3536, %v3540
      %v3543 = vshrl.u32 %v3487, 16
      %v3545 = vrot.slane %v3543, 4
      %v3546 = vshll.u32 %v3487, 16
      %v3548 = vrot.slane %v3546, 5
      %v3549 = vor.u32 %v3545, %v3548
      %v3550 = vrot.slane %v3549, 4
      %v3552 = vshll.u32 %v3495, 16
      %v3554 = vrot.slane %v3552, 5
      %v3555 = vsel %vm628, %v3550, %v3554
      %v3557 = vshrl.u32 %v3488, 16
      %v3559 = vrot.slane %v3557, 4
      %v3560 = vshll.u32 %v3488, 16
      %v3562 = vrot.slane %v3560, 5
      %v3563 = vor.u32 %v3559, %v3562
      %v3564 = vrot.slane %v3563, 4
      %v3566 = vshll.u32 %v3496, 16
      %v3568 = vrot.slane %v3566, 5
      %v3569 = vsel %vm628, %v3564, %v3568
      %v3571 = vshrl.u32 %v3489, 16
      %v3573 = vrot.slane %v3571, 4
      %v3574 = vshll.u32 %v3489, 16
      %v3576 = vrot.slane %v3574, 5
      %v3577 = vor.u32 %v3573, %v3576
      %v3578 = vrot.slane %v3577, 4
      %v3580 = vshll.u32 %v3497, 16
      %v3582 = vrot.slane %v3580, 5
      %v3583 = vsel %vm628, %v3578, %v3582
      %v3585 = vshrl.u32 %v3490, 16
      %v3587 = vrot.slane %v3585, 4
      %v3588 = vshll.u32 %v3490, 16
      %v3590 = vrot.slane %v3588, 5
      %v3591 = vor.u32 %v3587, %v3590
      %v3592 = vrot.slane %v3591, 4
      %v3594 = vshll.u32 %v3498, 16
      %v3596 = vrot.slane %v3594, 5
      %v3597 = vsel %vm628, %v3592, %v3596
      %v3599 = vshrl.u32 %v3491, 16
      %v3601 = vrot.slane %v3599, 4
      %v3602 = vshll.u32 %v3491, 16
      %v3604 = vrot.slane %v3602, 5
      %v3605 = vor.u32 %v3601, %v3604
      %v3606 = vrot.slane %v3605, 4
      %v3608 = vshll.u32 %v3499, 16
      %v3610 = vrot.slane %v3608, 5
      %v3611 = vsel %vm628, %v3606, %v3610
      %v3612 = vld [vmem:[%s984] sm:$0xe]
      %v3613 = vld [vmem:[%s984 + $0x8] sm:$0xe]
      %v3614 = vld [vmem:[%s984 + $0x10] sm:$0xe]
      %v3615 = vld [vmem:[%s984 + $0x18] sm:$0xe]
      %v3616 = vld [vmem:[%s984 + $0x20] sm:$0xe]
      %v3617 = vld [vmem:[%s984 + $0x28] sm:$0xe]
      %v3618 = vld [vmem:[%s984 + $0x30] sm:$0xe]
      %v3619 = vld [vmem:[%s984 + $0x38] sm:$0xe]
      %v3636 = vrot.slane %v3612, 5
      %v3637 = vrot.slane %v3636, 4
      %v3638 = vrot.slane %v3492, 5
      %v3639 = vsel %vm767, %v3637, %v3638
      %v3640 = vrot.slane %v3613, 5
      %v3641 = vrot.slane %v3640, 4
      %v3642 = vrot.slane %v3493, 5
      %v3643 = vsel %vm767, %v3641, %v3642
      %v3644 = vrot.slane %v3614, 5
      %v3645 = vrot.slane %v3644, 4
      %v3646 = vrot.slane %v3494, 5
      %v3647 = vsel %vm767, %v3645, %v3646
      %v3648 = vrot.slane %v3615, 5
      %v3649 = vrot.slane %v3648, 4
      %v3650 = vrot.slane %v3495, 5
      %v3651 = vsel %vm767, %v3649, %v3650
      %v3652 = vrot.slane %v3616, 5
      %v3653 = vrot.slane %v3652, 4
      %v3654 = vrot.slane %v3496, 5
      %v3655 = vsel %vm767, %v3653, %v3654
      %v3656 = vrot.slane %v3617, 5
      %v3657 = vrot.slane %v3656, 4
      %v3658 = vrot.slane %v3497, 5
      %v3659 = vsel %vm767, %v3657, %v3658
      %v3660 = vrot.slane %v3618, 5
      %v3661 = vrot.slane %v3660, 4
      %v3662 = vrot.slane %v3498, 5
      %v3663 = vsel %vm767, %v3661, %v3662
      %v3664 = vrot.slane %v3619, 5
      %v3665 = vrot.slane %v3664, 4
      %v3666 = vrot.slane %v3499, 5
      %v3667 = vsel %vm767, %v3665, %v3666
      %v3676 = vunpack.c.l.b16 %v3116
      %v3677 = vunpack.c.l.b16 %v3117
      %v3678 = vunpack.c.l.b16 %v3118
      %v3679 = vunpack.c.l.b16 %v3119
      %v3680 = vunpack.c.l.b16 %v3120
      %v3681 = vunpack.c.l.b16 %v3121
      %v3682 = vunpack.c.l.b16 %v3122
      %v3683 = vunpack.c.l.b16 %v3123
      %v3684 = vpack.c.b16 %v3677, %v3676
      %v3685 = vpack.c.b16 %v3679, %v3678
      %v3686 = vpack.c.b16 %v3681, %v3680
      %v3687 = vpack.c.b16 %v3683, %v3682
      %v3688 = vunpack.c.l.b16 %v3145
      %v3689 = vunpack.c.l.b16 %v3159
      %v3690 = vunpack.c.l.b16 %v3173
      %v3691 = vunpack.c.l.b16 %v3187
      %v3692 = vunpack.c.l.b16 %v3201
      %v3693 = vunpack.c.l.b16 %v3215
      %v3694 = vunpack.c.l.b16 %v3229
      %v3695 = vunpack.c.l.b16 %v3243
      %v3696 = vpack.c.b16 %v3689, %v3688
      %v3697 = vpack.c.b16 %v3691, %v3690
      %v3698 = vpack.c.b16 %v3693, %v3692
      %v3699 = vpack.c.b16 %v3695, %v3694
      %3700 = vrot.lane.b32.xlu0 %v3696, 32
      %v3701 = vpop.permute.xlu0 %3700
      %3702 = vrot.lane.b32.xlu0 %v3697, 32
      %v3703 = vpop.permute.xlu0 %3702
      %3704 = vrot.lane.b32.xlu0 %v3698, 32
      %v3705 = vpop.permute.xlu0 %3704
      %3706 = vrot.lane.b32.xlu0 %v3699, 32
      %v3707 = vpop.permute.xlu0 %3706
      %v3708 = vunpack.c.l.b16 %v3271
      %v3709 = vunpack.c.l.b16 %v3275
      %v3710 = vunpack.c.l.b16 %v3279
      %v3711 = vunpack.c.l.b16 %v3283
      %v3712 = vunpack.c.l.b16 %v3287
      %v3713 = vunpack.c.l.b16 %v3291
      %v3714 = vunpack.c.l.b16 %v3295
      %v3715 = vunpack.c.l.b16 %v3299
      %v3716 = vpack.c.b16 %v3709, %v3708
      %v3717 = vpack.c.b16 %v3711, %v3710
      %v3718 = vpack.c.b16 %v3713, %v3712
      %v3719 = vpack.c.b16 %v3715, %v3714
      %3720 = vrot.lane.b32.xlu0 %v3716, 64
      %v3721 = vpop.permute.xlu0 %3720
      %3722 = vrot.lane.b32.xlu0 %v3717, 64
      %v3723 = vpop.permute.xlu0 %3722
      %3724 = vrot.lane.b32.xlu0 %v3718, 64
      %v3725 = vpop.permute.xlu0 %3724
      %3726 = vrot.lane.b32.xlu0 %v3719, 64
      %v3727 = vpop.permute.xlu0 %3726
      %v3736 = vunpack.c.l.b16 %v3300
      %v3737 = vunpack.c.l.b16 %v3301
      %v3738 = vunpack.c.l.b16 %v3302
      %v3739 = vunpack.c.l.b16 %v3303
      %v3740 = vunpack.c.l.b16 %v3304
      %v3741 = vunpack.c.l.b16 %v3305
      %v3742 = vunpack.c.l.b16 %v3306
      %v3743 = vunpack.c.l.b16 %v3307
      %v3744 = vpack.c.b16 %v3737, %v3736
      %v3745 = vpack.c.b16 %v3739, %v3738
      %v3746 = vpack.c.b16 %v3741, %v3740
      %v3747 = vpack.c.b16 %v3743, %v3742
      %3748 = vrot.lane.b32.xlu0 %v3744, 96
      %v3749 = vpop.permute.xlu0 %3748
      %3750 = vrot.lane.b32.xlu0 %v3745, 96
      %v3751 = vpop.permute.xlu0 %3750
      %3752 = vrot.lane.b32.xlu0 %v3746, 96
      %v3753 = vpop.permute.xlu0 %3752
      %3754 = vrot.lane.b32.xlu0 %v3747, 96
      %v3755 = vpop.permute.xlu0 %3754
      %v3756 = vunpack.c.l.b16 %v3329
      %v3757 = vunpack.c.l.b16 %v3343
      %v3758 = vunpack.c.l.b16 %v3357
      %v3759 = vunpack.c.l.b16 %v3371
      %v3760 = vunpack.c.l.b16 %v3385
      %v3761 = vunpack.c.l.b16 %v3399
      %v3762 = vunpack.c.l.b16 %v3413
      %v3763 = vunpack.c.l.b16 %v3427
      %v3764 = vpack.c.b16 %v3757, %v3756
      %v3765 = vpack.c.b16 %v3759, %v3758
      %v3766 = vpack.c.b16 %v3761, %v3760
      %v3767 = vpack.c.b16 %v3763, %v3762
      %v3768 = vunpack.c.l.b16 %v3455
      %v3769 = vunpack.c.l.b16 %v3459
      %v3770 = vunpack.c.l.b16 %v3463
      %v3771 = vunpack.c.l.b16 %v3467
      %v3772 = vunpack.c.l.b16 %v3471
      %v3773 = vunpack.c.l.b16 %v3475
      %v3774 = vunpack.c.l.b16 %v3479
      %v3775 = vunpack.c.l.b16 %v3483
      %v3776 = vpack.c.b16 %v3769, %v3768
      %v3777 = vpack.c.b16 %v3771, %v3770
      %v3778 = vpack.c.b16 %v3773, %v3772
      %v3779 = vpack.c.b16 %v3775, %v3774
      %3780 = vrot.lane.b32.xlu0 %v3776, 32
      %v3781 = vpop.permute.xlu0 %3780
      %3782 = vrot.lane.b32.xlu0 %v3777, 32
      %v3783 = vpop.permute.xlu0 %3782
      %3784 = vrot.lane.b32.xlu0 %v3778, 32
      %v3785 = vpop.permute.xlu0 %3784
      %3786 = vrot.lane.b32.xlu0 %v3779, 32
      %v3787 = vpop.permute.xlu0 %3786
      %v3796 = vunpack.c.l.b16 %v3484
      %v3797 = vunpack.c.l.b16 %v3485
      %v3798 = vunpack.c.l.b16 %v3486
      %v3799 = vunpack.c.l.b16 %v3487
      %v3800 = vunpack.c.l.b16 %v3488
      %v3801 = vunpack.c.l.b16 %v3489
      %v3802 = vunpack.c.l.b16 %v3490
      %v3803 = vunpack.c.l.b16 %v3491
      %v3804 = vpack.c.b16 %v3797, %v3796
      %v3805 = vpack.c.b16 %v3799, %v3798
      %v3806 = vpack.c.b16 %v3801, %v3800
      %v3807 = vpack.c.b16 %v3803, %v3802
      %3808 = vrot.lane.b32.xlu0 %v3804, 64
      %v3809 = vpop.permute.xlu0 %3808
      %3810 = vrot.lane.b32.xlu0 %v3805, 64
      %v3811 = vpop.permute.xlu0 %3810
      %3812 = vrot.lane.b32.xlu0 %v3806, 64
      %v3813 = vpop.permute.xlu0 %3812
      %3814 = vrot.lane.b32.xlu0 %v3807, 64
      %v3815 = vpop.permute.xlu0 %3814
      %v3816 = vunpack.c.l.b16 %v3513
      %v3817 = vunpack.c.l.b16 %v3527
      %v3818 = vunpack.c.l.b16 %v3541
      %v3819 = vunpack.c.l.b16 %v3555
      %v3820 = vunpack.c.l.b16 %v3569
      %v3821 = vunpack.c.l.b16 %v3583
      %v3822 = vunpack.c.l.b16 %v3597
      %v3823 = vunpack.c.l.b16 %v3611
      %v3824 = vpack.c.b16 %v3817, %v3816
      %v3825 = vpack.c.b16 %v3819, %v3818
      %v3826 = vpack.c.b16 %v3821, %v3820
      %v3827 = vpack.c.b16 %v3823, %v3822
      %3828 = vrot.lane.b32.xlu0 %v3824, 96
      %v3829 = vpop.permute.xlu0 %3828
      %3830 = vrot.lane.b32.xlu0 %v3825, 96
      %v3831 = vpop.permute.xlu0 %3830
      %3832 = vrot.lane.b32.xlu0 %v3826, 96
      %v3833 = vpop.permute.xlu0 %3832
      %3834 = vrot.lane.b32.xlu0 %v3827, 96
      %v3835 = vpop.permute.xlu0 %3834
      %v3836 = vunpack.c.l.b16 %v3639
      %v3837 = vunpack.c.l.b16 %v3643
      %v3838 = vunpack.c.l.b16 %v3647
      %v3839 = vunpack.c.l.b16 %v3651
      %v3840 = vunpack.c.l.b16 %v3655
      %v3841 = vunpack.c.l.b16 %v3659
      %v3842 = vunpack.c.l.b16 %v3663
      %v3843 = vunpack.c.l.b16 %v3667
      %v3844 = vpack.c.b16 %v3837, %v3836
      %v3845 = vpack.c.b16 %v3839, %v3838
      %v3846 = vpack.c.b16 %v3841, %v3840
      %v3847 = vpack.c.b16 %v3843, %v3842
      %v3850 = vsel %vm1349, %v3684, %v3701
      %v3853 = vsel %vm1349, %v3685, %v3703
      %v3856 = vsel %vm1349, %v3686, %v3705
      %v3859 = vsel %vm1349, %v3687, %v3707
      %v3861 = vsel %vm1362, %v3850, %v3721
      %v3863 = vsel %vm1362, %v3853, %v3723
      %v3865 = vsel %vm1362, %v3856, %v3725
      %v3867 = vsel %vm1362, %v3859, %v3727
      %v3869 = vsel %vm1371, %v3861, %v3749
      %v3872 = vsel %vm1371, %v3863, %v3751
      %v3875 = vsel %vm1371, %v3865, %v3753
      %v3878 = vsel %vm1371, %v3867, %v3755
      %v3882 = vsel %vm1349, %v3764, %v3781
      %v3885 = vsel %vm1349, %v3765, %v3783
      %v3888 = vsel %vm1349, %v3766, %v3785
      %v3891 = vsel %vm1349, %v3767, %v3787
      %v3893 = vsel %vm1362, %v3882, %v3809
      %v3895 = vsel %vm1362, %v3885, %v3811
      %v3897 = vsel %vm1362, %v3888, %v3813
      %v3899 = vsel %vm1362, %v3891, %v3815
      %v3901 = vsel %vm1371, %v3893, %v3829
      %v3904 = vsel %vm1371, %v3895, %v3831
      %v3907 = vsel %vm1371, %v3897, %v3833
      %v3910 = vsel %vm1371, %v3899, %v3835
      %v3913 = vlaneseq
      %v3914 = vshrl.u32 %v3913, 7
      %v3915 = vsub.s32 0, %v3914
      %v3916 = vrot.slane %v3115, %v3915
      %v3954 = vunpack.c.l.b16 %v3079
      %v3955 = vunpack.c.l.b16 %v3080
      %v3956 = vunpack.c.l.b16 %v3081
      %v3957 = vunpack.c.l.b16 %v3082
      %v3958 = vunpack.c.l.b16 %v3083
      %v3959 = vunpack.c.l.b16 %v3084
      %v3960 = vunpack.c.l.b16 %v3085
      %v3961 = vunpack.c.l.b16 %v3086
      %v3962 = vunpack.c.l.b16 %v3087
      %v3963 = vunpack.c.l.b16 %v3088
      %v3964 = vunpack.c.l.b16 %v3089
      %v3965 = vunpack.c.l.b16 %v3090
      %v3966 = vunpack.c.l.b16 %v3091
      %v3967 = vunpack.c.l.b16 %v3092
      %v3968 = vunpack.c.l.b16 %v3093
      %v3969 = vunpack.c.l.b16 %v3094
      %v3970 = vunpack.c.l.b16 %v3095
      %v3971 = vunpack.c.l.b16 %v3096
      %v3972 = vunpack.c.l.b16 %v3097
      %v3973 = vunpack.c.l.b16 %v3098
      %v3974 = vunpack.c.l.b16 %v3099
      %v3975 = vunpack.c.l.b16 %v3100
      %v3976 = vunpack.c.l.b16 %v3101
      %v3977 = vunpack.c.l.b16 %v3102
      %v3978 = vunpack.c.l.b16 %v3103
      %v3979 = vunpack.c.l.b16 %v3104
      %v3980 = vunpack.c.l.b16 %v3105
      %v3981 = vunpack.c.l.b16 %v3106
      %v3982 = vunpack.c.l.b16 %v3107
      %v3983 = vunpack.c.l.b16 %v3108
      %v3984 = vunpack.c.l.b16 %v3109
      %v3985 = vunpack.c.l.b16 %v3110
      %v3986 = vunpack.c.l.b16 %v3111
      %v3987 = vunpack.c.l.b16 %v3112
      %v3988 = vunpack.c.l.b16 %v3113
      %v3989 = vunpack.c.l.b16 %v3114
      %v3990 = vpack.c.b16 %v3955, %v3954
      %v3991 = vpack.c.b16 %v3957, %v3956
      %v3992 = vpack.c.b16 %v3959, %v3958
      %v3993 = vpack.c.b16 %v3961, %v3960
      %v3994 = vpack.c.b16 %v3963, %v3962
      %v3995 = vpack.c.b16 %v3965, %v3964
      %v3996 = vpack.c.b16 %v3967, %v3966
      %v3997 = vpack.c.b16 %v3969, %v3968
      %v3998 = vpack.c.b16 %v3971, %v3970
      %v3999 = vpack.c.b16 %v3973, %v3972
      %v4000 = vpack.c.b16 %v3975, %v3974
      %v4001 = vpack.c.b16 %v3977, %v3976
      %v4002 = vpack.c.b16 %v3979, %v3978
      %v4003 = vpack.c.b16 %v3981, %v3980
      %v4004 = vpack.c.b16 %v3983, %v3982
      %v4005 = vpack.c.b16 %v3985, %v3984
      %v4006 = vpack.c.b16 %v3987, %v3986
      %v4007 = vpack.c.b16 %v3989, %v3988
      %v4027 = vsel %vm1349, %v3844, 0
      %v4030 = vsel %vm1349, %v3845, 0
      %v4033 = vsel %vm1349, %v3846, 0
      %v4036 = vsel %vm1349, %v3847, 0
      %4038 = vmatprep.subr.bf16.mxu0 0
      %4039 = vmatpush1.bf16.msra.mxu0 %v3990
      %4040 = vmatprep.subr.bf16.mxu0 0
      %4041 = vmatpush1.bf16.msra.mxu0 %v3991
      %4042 = vmatprep.subr.bf16.mxu0 0
      %4043 = vmatpush1.bf16.msra.mxu0 %v3992
      %4044 = vmatprep.subr.bf16.mxu0 0
      %4045 = vmatpush1.bf16.msra.mxu0 %v3993
      %4046 = vmatprep.subr.bf16.mxu0 0
      %4047 = vmatpush1.bf16.msra.mxu0 %v3994
      %4048 = vmatprep.subr.bf16.mxu0 0
      %4049 = vmatpush1.bf16.msra.mxu0 %v3995
      %4050 = vmatprep.subr.bf16.mxu0 0
      %4051 = vmatpush1.bf16.msra.mxu0 %v3996
      %4052 = vmatprep.subr.bf16.mxu0 0
      %4053 = vmatpush1.bf16.msra.mxu0 %v3997
      %4054 = vmatprep.subr.bf16.mxu0 0
      %4055 = vmatpush1.bf16.msra.mxu0 %v3998
      %4056 = vmatprep.subr.bf16.mxu0 0
      %4057 = vmatpush1.bf16.msra.mxu0 %v3999
      %4058 = vmatprep.subr.bf16.mxu0 0
      %4059 = vmatpush1.bf16.msra.mxu0 %v4000
      %4060 = vmatprep.subr.bf16.mxu0 0
      %4061 = vmatpush1.bf16.msra.mxu0 %v4001
      %4062 = vmatprep.subr.bf16.mxu0 0
      %4063 = vmatpush1.bf16.msra.mxu0 %v4002
      %4064 = vmatprep.subr.bf16.mxu0 0
      %4065 = vmatpush1.bf16.msra.mxu0 %v4003
      %4066 = vmatprep.subr.bf16.mxu0 0
      %4067 = vmatpush1.bf16.msra.mxu0 %v4004
      %4068 = vmatprep.subr.bf16.mxu0 0
      %4069 = vmatpush1.bf16.msra.mxu0 %v4005
      %4070 = vmatprep.mubr.bf16.mxu0 %v3901
      %4071 = vmatmul.mubr.bf16.gmra.mrb[0].mxu0 %v3869
      %v4072 = vpop.f32.mrb[0].mxu0
      %v4073 = vadd.f32 %v3916, %v4072
      %v4074 = vpop.f32.mrb[0].mxu0
      %v4075 = vpop.f32.mrb[0].mxu0
      %v4076 = vadd.f32 %v3916, %v4075
      %v4077 = vpop.f32.mrb[0].mxu0
      %4078 = vmatprep.mubr.bf16.mxu0 %v3904
      %4079 = vmatmul.mubr.bf16.gmra.mrb[0].mxu0 %v3872
      %v4080 = vpop.f32.mrb[0].mxu0
      %v4081 = vadd.f32 %v3916, %v4080
      %v4082 = vpop.f32.mrb[0].mxu0
      %v4083 = vpop.f32.mrb[0].mxu0
      %v4084 = vadd.f32 %v3916, %v4083
      %v4085 = vpop.f32.mrb[0].mxu0
      %4086 = vmatprep.mubr.bf16.mxu0 %v3907
      %4087 = vmatmul.mubr.bf16.gmra.mrb[0].mxu0 %v3875
      %v4088 = vpop.f32.mrb[0].mxu0
      %v4089 = vadd.f32 %v3916, %v4088
      %v4090 = vpop.f32.mrb[0].mxu0
      %v4091 = vpop.f32.mrb[0].mxu0
      %v4092 = vadd.f32 %v3916, %v4091
      %v4093 = vpop.f32.mrb[0].mxu0
      %4094 = vmatprep.mubr.bf16.mxu0 %v3910
      %4095 = vmatmul.mubr.bf16.gmra.mrb[0].mxu0 %v3878
      %v4096 = vpop.f32.mrb[0].mxu0
      %v4097 = vadd.f32 %v3916, %v4096
      %v4098 = vpop.f32.mrb[0].mxu0
      %v4099 = vpop.f32.mrb[0].mxu0
      %v4100 = vadd.f32 %v3916, %v4099
      %v4101 = vpop.f32.mrb[0].mxu0
      %4102 = vdwg.mxu0
      %4103 = vmatprep.subr.bf16.mxu0 0
      %4104 = vmatpush1.bf16.msra.mxu0 %v4006
      %4105 = vmatprep.subr.bf16.mxu0 0
      %4106 = vmatpush1.bf16.msra.mxu0 %v4007
      %4107 = vmatprep.subr.bf16.mxu0 0
      %4108 = vmatpush1.bf16.msra.mxu0 0
      %4109 = vmatprep.subr.bf16.mxu0 0
      %4110 = vmatpush1.bf16.msra.mxu0 0
      %4111 = vmatprep.subr.bf16.mxu0 0
      %4112 = vmatpush1.bf16.msra.mxu0 0
      %4113 = vmatprep.subr.bf16.mxu0 0
      %4114 = vmatpush1.bf16.msra.mxu0 0
      %4115 = vmatprep.subr.bf16.mxu0 0
      %4116 = vmatpush1.bf16.msra.mxu0 0
      %4117 = vmatprep.subr.bf16.mxu0 0
      %4118 = vmatpush1.bf16.msra.mxu0 0
      %4119 = vmatprep.subr.bf16.mxu0 0
      %4120 = vmatpush1.bf16.msra.mxu0 0
      %4121 = vmatprep.subr.bf16.mxu0 0
      %4122 = vmatpush1.bf16.msra.mxu0 0
      %4123 = vmatprep.subr.bf16.mxu0 0
      %4124 = vmatpush1.bf16.msra.mxu0 0
      %4125 = vmatprep.subr.bf16.mxu0 0
      %4126 = vmatpush1.bf16.msra.mxu0 0
      %4127 = vmatprep.subr.bf16.mxu0 0
      %4128 = vmatpush1.bf16.msra.mxu0 0
      %4129 = vmatprep.subr.bf16.mxu0 0
      %4130 = vmatpush1.bf16.msra.mxu0 0
      %4131 = vmatprep.subr.bf16.mxu0 0
      %4132 = vmatpush1.bf16.msra.mxu0 0
      %4133 = vmatprep.subr.bf16.mxu0 0
      %4134 = vmatpush1.bf16.msra.mxu0 0
      %4135 = vmatprep.mubr.bf16.mxu0 0
      %4136 = vmatmul.mubr.bf16.gmra.mrb[0].mxu0 %v4027
      %v4137 = vpop.f32.mrb[0].mxu0
      %v4138 = vadd.f32 %v4073, %v4137
      %v4139 = vpop.f32.mrb[0].mxu0
      %v4140 = vpop.f32.mrb[0].mxu0
      %v4141 = vadd.f32 %v4076, %v4140
      %v4142 = vpop.f32.mrb[0].mxu0
      %4143 = vmatprep.mubr.bf16.mxu0 0
      %4144 = vmatmul.mubr.bf16.gmra.mrb[0].mxu0 %v4030
      %v4145 = vpop.f32.mrb[0].mxu0
      %v4146 = vadd.f32 %v4081, %v4145
      %v4147 = vpop.f32.mrb[0].mxu0
      %v4148 = vpop.f32.mrb[0].mxu0
      %v4149 = vadd.f32 %v4084, %v4148
      %v4150 = vpop.f32.mrb[0].mxu0
      %4151 = vmatprep.mubr.bf16.mxu0 0
      %4152 = vmatmul.mubr.bf16.gmra.mrb[0].mxu0 %v4033
      %v4153 = vpop.f32.mrb[0].mxu0
      %v4154 = vadd.f32 %v4089, %v4153
      %v4155 = vpop.f32.mrb[0].mxu0
      %v4156 = vpop.f32.mrb[0].mxu0
      %v4157 = vadd.f32 %v4092, %v4156
      %v4158 = vpop.f32.mrb[0].mxu0
      %4159 = vmatprep.mubr.bf16.mxu0 0
      %4160 = vmatmul.mubr.bf16.gmra.mrb[0].mxu0 %v4036
      %v4161 = vpop.f32.mrb[0].mxu0
      %v4162 = vadd.f32 %v4097, %v4161
      %v4163 = vpop.f32.mrb[0].mxu0
      %v4164 = vpop.f32.mrb[0].mxu0
      %v4165 = vadd.f32 %v4100, %v4164
      %v4166 = vpop.f32.mrb[0].mxu0
      %4167 = vdwg.mxu0
      %4168 = vrot.lane.b32.xlu0 %v1710, 96
      %v4169 = vpop.permute.xlu0 %4168
      %4170 = vrot.lane.b32.xlu0 %v1711, 96
      %v4171 = vpop.permute.xlu0 %4170
      %4172 = vrot.lane.b32.xlu0 %v1718, 96
      %v4173 = vpop.permute.xlu0 %4172
      %4174 = vrot.lane.b32.xlu0 %v1719, 96
      %v4175 = vpop.permute.xlu0 %4174
      %4176 = vrot.lane.b32.xlu0 %v1726, 96
      %v4177 = vpop.permute.xlu0 %4176
      %4178 = vrot.lane.b32.xlu0 %v1727, 96
      %v4179 = vpop.permute.xlu0 %4178
      %4180 = vrot.lane.b32.xlu0 %v1734, 96
      %v4181 = vpop.permute.xlu0 %4180
      %4182 = vrot.lane.b32.xlu0 %v1735, 96
      %v4183 = vpop.permute.xlu0 %4182
      %4184 = vrot.lane.b32.xlu0 %v1742, 96
      %v4185 = vpop.permute.xlu0 %4184
      %4186 = vrot.lane.b32.xlu0 %v1743, 96
      %v4187 = vpop.permute.xlu0 %4186
      %4188 = vrot.lane.b32.xlu0 %v1750, 96
      %v4189 = vpop.permute.xlu0 %4188
      %4190 = vrot.lane.b32.xlu0 %v1751, 96
      %v4191 = vpop.permute.xlu0 %4190
      %4192 = vrot.lane.b32.xlu0 %v1758, 96
      %v4193 = vpop.permute.xlu0 %4192
      %4194 = vrot.lane.b32.xlu0 %v1759, 96
      %v4195 = vpop.permute.xlu0 %4194
      %4196 = vrot.lane.b32.xlu0 %v1766, 96
      %v4197 = vpop.permute.xlu0 %4196
      %4198 = vrot.lane.b32.xlu0 %v1767, 96
      %v4199 = vpop.permute.xlu0 %4198
      %s4216 = scalar_lea.vmem [#allocation3], 8
      %v4217 = vld [vmem:[%s4216] sm:$0xf]
      %v4218 = vsel %vm521, %v4169, %v4217
      %4219 = vst [vmem:[%s4216] sm:$0xf] %v4218
      %v4220 = vld [vmem:[%s4216 + $0x4] sm:$0x1]
      %v4221 = vsel %vm527, %v4171, %v4220
      %4222 = vst [vmem:[%s4216 + $0x4] sm:$0x1] %v4221
      %v4223 = vld [vmem:[%s4216 + $0x8] sm:$0xf]
      %v4224 = vsel %vm521, %v4173, %v4223
      %4225 = vst [vmem:[%s4216 + $0x8] sm:$0xf] %v4224
      %v4226 = vld [vmem:[%s4216 + $0xc] sm:$0x1]
      %v4227 = vsel %vm527, %v4175, %v4226
      %4228 = vst [vmem:[%s4216 + $0xc] sm:$0x1] %v4227
      %v4229 = vld [vmem:[%s4216 + $0x10] sm:$0xf]
      %v4230 = vsel %vm521, %v4177, %v4229
      %4231 = vst [vmem:[%s4216 + $0x10] sm:$0xf] %v4230
      %v4232 = vld [vmem:[%s4216 + $0x14] sm:$0x1]
      %v4233 = vsel %vm527, %v4179, %v4232
      %4234 = vst [vmem:[%s4216 + $0x14] sm:$0x1] %v4233
      %v4235 = vld [vmem:[%s4216 + $0x18] sm:$0xf]
      %v4236 = vsel %vm521, %v4181, %v4235
      %4237 = vst [vmem:[%s4216 + $0x18] sm:$0xf] %v4236
      %v4238 = vld [vmem:[%s4216 + $0x1c] sm:$0x1]
      %v4239 = vsel %vm527, %v4183, %v4238
      %4240 = vst [vmem:[%s4216 + $0x1c] sm:$0x1] %v4239
      %v4241 = vld [vmem:[%s4216 + $0x20] sm:$0xf]
      %v4242 = vsel %vm521, %v4185, %v4241
      %4243 = vst [vmem:[%s4216 + $0x20] sm:$0xf] %v4242
      %v4244 = vld [vmem:[%s4216 + $0x24] sm:$0x1]
      %v4245 = vsel %vm527, %v4187, %v4244
      %4246 = vst [vmem:[%s4216 + $0x24] sm:$0x1] %v4245
      %v4247 = vld [vmem:[%s4216 + $0x28] sm:$0xf]
      %v4248 = vsel %vm521, %v4189, %v4247
      %4249 = vst [vmem:[%s4216 + $0x28] sm:$0xf] %v4248
      %v4250 = vld [vmem:[%s4216 + $0x2c] sm:$0x1]
      %v4251 = vsel %vm527, %v4191, %v4250
      %4252 = vst [vmem:[%s4216 + $0x2c] sm:$0x1] %v4251
      %v4253 = vld [vmem:[%s4216 + $0x30] sm:$0xf]
      %v4254 = vsel %vm521, %v4193, %v4253
      %4255 = vst [vmem:[%s4216 + $0x30] sm:$0xf] %v4254
      %v4256 = vld [vmem:[%s4216 + $0x34] sm:$0x1]
      %v4257 = vsel %vm527, %v4195, %v4256
      %4258 = vst [vmem:[%s4216 + $0x34] sm:$0x1] %v4257
      %v4259 = vld [vmem:[%s4216 + $0x38] sm:$0xf]
      %v4260 = vsel %vm521, %v4197, %v4259
      %4261 = vst [vmem:[%s4216 + $0x38] sm:$0xf] %v4260
      %v4262 = vld [vmem:[%s4216 + $0x3c] sm:$0x1]
      %v4263 = vsel %vm527, %v4199, %v4262
      %4264 = vst [vmem:[%s4216 + $0x3c] sm:$0x1] %v4263
      %v4265 = vld [vmem:[%s5] sm:$0xf]
      %v4266 = vld [vmem:[%s5 + $0x4] sm:$0xf]
      %v4267 = vld [vmem:[%s5 + $0x8] sm:$0xf]
      %v4268 = vld [vmem:[%s5 + $0xc] sm:$0xf]
      %v4269 = vld [vmem:[%s5 + $0x10] sm:$0xf]
      %v4270 = vld [vmem:[%s5 + $0x14] sm:$0xf]
      %v4271 = vld [vmem:[%s5 + $0x18] sm:$0xf]
      %v4272 = vld [vmem:[%s5 + $0x1c] sm:$0xf]
      %v4273 = vld [vmem:[%s5 + $0x20] sm:$0xf]
      %v4274 = vld [vmem:[%s5 + $0x24] sm:$0xf]
      %v4275 = vld [vmem:[%s5 + $0x28] sm:$0xf]
      %v4276 = vld [vmem:[%s5 + $0x2c] sm:$0xf]
      %v4277 = vld [vmem:[%s5 + $0x30] sm:$0xf]
      %v4278 = vld [vmem:[%s5 + $0x34] sm:$0xf]
      %v4279 = vld [vmem:[%s5 + $0x38] sm:$0xf]
      %v4280 = vld [vmem:[%s5 + $0x3c] sm:$0xf]
      %v4281 = vld [vmem:[%s5 + $0x40] sm:$0xf]
      %v4282 = vld [vmem:[%s5 + $0x44] sm:$0xf]
      %v4283 = vld [vmem:[%s5 + $0x48] sm:$0xf]
      %v4284 = vld [vmem:[%s5 + $0x4c] sm:$0xf]
      %v4285 = vld [vmem:[%s5 + $0x50] sm:$0xf]
      %v4286 = vld [vmem:[%s5 + $0x54] sm:$0xf]
      %v4287 = vld [vmem:[%s5 + $0x58] sm:$0xf]
      %v4288 = vld [vmem:[%s5 + $0x5c] sm:$0xf]
      %v4289 = vld [vmem:[%s5 + $0x60] sm:$0xf]
      %v4290 = vld [vmem:[%s5 + $0x64] sm:$0xf]
      %v4291 = vld [vmem:[%s5 + $0x68] sm:$0xf]
      %v4292 = vld [vmem:[%s5 + $0x6c] sm:$0xf]
      %v4293 = vld [vmem:[%s5 + $0x70] sm:$0xf]
      %v4294 = vld [vmem:[%s5 + $0x74] sm:$0xf]
      %v4295 = vld [vmem:[%s5 + $0x78] sm:$0xf]
      %v4296 = vld [vmem:[%s5 + $0x7c] sm:$0xf]
      %v4297 = vld [vmem:[%s5 + $0x80] sm:$0xf]
      %v4298 = vld [vmem:[%s5 + $0x84] sm:$0xf]
      %v4299 = vld [vmem:[%s5 + $0x88] sm:$0xf]
      %v4300 = vld [vmem:[%s5 + $0x8c] sm:$0xf]
      %v4301 = vld [vmem:[%s6] sm:$0x1]
      %v4302 = vld [vmem:[#allocation3] sm:$0xf]
      %v4303 = vld [vmem:[#allocation3 + $0x8] sm:$0xf]
      %v4304 = vld [vmem:[#allocation3 + $0x10] sm:$0xf]
      %v4305 = vld [vmem:[#allocation3 + $0x18] sm:$0xf]
      %v4306 = vld [vmem:[#allocation3 + $0x20] sm:$0xf]
      %v4307 = vld [vmem:[#allocation3 + $0x28] sm:$0xf]
      %v4308 = vld [vmem:[#allocation3 + $0x30] sm:$0xf]
      %v4309 = vld [vmem:[#allocation3 + $0x38] sm:$0xf]
      %v4310 = vld [vmem:[#allocation3 + $0x4] sm:$0x1]
      %v4311 = vld [vmem:[#allocation3 + $0xc] sm:$0x1]
      %v4312 = vld [vmem:[#allocation3 + $0x14] sm:$0x1]
      %v4313 = vld [vmem:[#allocation3 + $0x1c] sm:$0x1]
      %v4314 = vld [vmem:[#allocation3 + $0x24] sm:$0x1]
      %v4315 = vld [vmem:[#allocation3 + $0x2c] sm:$0x1]
      %v4316 = vld [vmem:[#allocation3 + $0x34] sm:$0x1]
      %v4317 = vld [vmem:[#allocation3 + $0x3c] sm:$0x1]
      %v4319 = vshrl.u32 %v4302, 16
      %v4321 = vrot.slane %v4319, 4
      %v4322 = vshll.u32 %v4302, 16
      %v4324 = vrot.slane %v4322, 5
      %v4325 = vor.u32 %v4321, %v4324
      %v4326 = vrot.slane %v4325, 4
      %v4328 = vshll.u32 %v4310, 16
      %v4330 = vrot.slane %v4328, 5
      %v4331 = vsel %vm628, %v4326, %v4330
      %v4333 = vshrl.u32 %v4303, 16
      %v4335 = vrot.slane %v4333, 4
      %v4336 = vshll.u32 %v4303, 16
      %v4338 = vrot.slane %v4336, 5
      %v4339 = vor.u32 %v4335, %v4338
      %v4340 = vrot.slane %v4339, 4
      %v4342 = vshll.u32 %v4311, 16
      %v4344 = vrot.slane %v4342, 5
      %v4345 = vsel %vm628, %v4340, %v4344
      %v4347 = vshrl.u32 %v4304, 16
      %v4349 = vrot.slane %v4347, 4
      %v4350 = vshll.u32 %v4304, 16
      %v4352 = vrot.slane %v4350, 5
      %v4353 = vor.u32 %v4349, %v4352
      %v4354 = vrot.slane %v4353, 4
      %v4356 = vshll.u32 %v4312, 16
      %v4358 = vrot.slane %v4356, 5
      %v4359 = vsel %vm628, %v4354, %v4358
      %v4361 = vshrl.u32 %v4305, 16
      %v4363 = vrot.slane %v4361, 4
      %v4364 = vshll.u32 %v4305, 16
      %v4366 = vrot.slane %v4364, 5
      %v4367 = vor.u32 %v4363, %v4366
      %v4368 = vrot.slane %v4367, 4
      %v4370 = vshll.u32 %v4313, 16
      %v4372 = vrot.slane %v4370, 5
      %v4373 = vsel %vm628, %v4368, %v4372
      %v4375 = vshrl.u32 %v4306, 16
      %v4377 = vrot.slane %v4375, 4
      %v4378 = vshll.u32 %v4306, 16
      %v4380 = vrot.slane %v4378, 5
      %v4381 = vor.u32 %v4377, %v4380
      %v4382 = vrot.slane %v4381, 4
      %v4384 = vshll.u32 %v4314, 16
      %v4386 = vrot.slane %v4384, 5
      %v4387 = vsel %vm628, %v4382, %v4386
      %v4389 = vshrl.u32 %v4307, 16
      %v4391 = vrot.slane %v4389, 4
      %v4392 = vshll.u32 %v4307, 16
      %v4394 = vrot.slane %v4392, 5
      %v4395 = vor.u32 %v4391, %v4394
      %v4396 = vrot.slane %v4395, 4
      %v4398 = vshll.u32 %v4315, 16
      %v4400 = vrot.slane %v4398, 5
      %v4401 = vsel %vm628, %v4396, %v4400
      %v4403 = vshrl.u32 %v4308, 16
      %v4405 = vrot.slane %v4403, 4
      %v4406 = vshll.u32 %v4308, 16
      %v4408 = vrot.slane %v4406, 5
      %v4409 = vor.u32 %v4405, %v4408
      %v4410 = vrot.slane %v4409, 4
      %v4412 = vshll.u32 %v4316, 16
      %v4414 = vrot.slane %v4412, 5
      %v4415 = vsel %vm628, %v4410, %v4414
      %v4417 = vshrl.u32 %v4309, 16
      %v4419 = vrot.slane %v4417, 4
      %v4420 = vshll.u32 %v4309, 16
      %v4422 = vrot.slane %v4420, 5
      %v4423 = vor.u32 %v4419, %v4422
      %v4424 = vrot.slane %v4423, 4
      %v4426 = vshll.u32 %v4317, 16
      %v4428 = vrot.slane %v4426, 5
      %v4429 = vsel %vm628, %v4424, %v4428
      %v4430 = vld [vmem:[#allocation3] sm:$0xe]
      %v4431 = vld [vmem:[#allocation3 + $0x8] sm:$0xe]
      %v4432 = vld [vmem:[#allocation3 + $0x10] sm:$0xe]
      %v4433 = vld [vmem:[#allocation3 + $0x18] sm:$0xe]
      %v4434 = vld [vmem:[#allocation3 + $0x20] sm:$0xe]
      %v4435 = vld [vmem:[#allocation3 + $0x28] sm:$0xe]
      %v4436 = vld [vmem:[#allocation3 + $0x30] sm:$0xe]
      %v4437 = vld [vmem:[#allocation3 + $0x38] sm:$0xe]
      %v4454 = vrot.slane %v4430, 5
      %v4455 = vrot.slane %v4454, 4
      %v4456 = vrot.slane %v4310, 5
      %v4457 = vsel %vm767, %v4455, %v4456
      %v4458 = vrot.slane %v4431, 5
      %v4459 = vrot.slane %v4458, 4
      %v4460 = vrot.slane %v4311, 5
      %v4461 = vsel %vm767, %v4459, %v4460
      %v4462 = vrot.slane %v4432, 5
      %v4463 = vrot.slane %v4462, 4
      %v4464 = vrot.slane %v4312, 5
      %v4465 = vsel %vm767, %v4463, %v4464
      %v4466 = vrot.slane %v4433, 5
      %v4467 = vrot.slane %v4466, 4
      %v4468 = vrot.slane %v4313, 5
      %v4469 = vsel %vm767, %v4467, %v4468
      %v4470 = vrot.slane %v4434, 5
      %v4471 = vrot.slane %v4470, 4
      %v4472 = vrot.slane %v4314, 5
      %v4473 = vsel %vm767, %v4471, %v4472
      %v4474 = vrot.slane %v4435, 5
      %v4475 = vrot.slane %v4474, 4
      %v4476 = vrot.slane %v4315, 5
      %v4477 = vsel %vm767, %v4475, %v4476
      %v4478 = vrot.slane %v4436, 5
      %v4479 = vrot.slane %v4478, 4
      %v4480 = vrot.slane %v4316, 5
      %v4481 = vsel %vm767, %v4479, %v4480
      %v4482 = vrot.slane %v4437, 5
      %v4483 = vrot.slane %v4482, 4
      %v4484 = vrot.slane %v4317, 5
      %v4485 = vsel %vm767, %v4483, %v4484
      %v4486 = vld [vmem:[%s4216] sm:$0xf]
      %v4487 = vld [vmem:[%s4216 + $0x8] sm:$0xf]
      %v4488 = vld [vmem:[%s4216 + $0x10] sm:$0xf]
      %v4489 = vld [vmem:[%s4216 + $0x18] sm:$0xf]
      %v4490 = vld [vmem:[%s4216 + $0x20] sm:$0xf]
      %v4491 = vld [vmem:[%s4216 + $0x28] sm:$0xf]
      %v4492 = vld [vmem:[%s4216 + $0x30] sm:$0xf]
      %v4493 = vld [vmem:[%s4216 + $0x38] sm:$0xf]
      %v4494 = vld [vmem:[%s4216 + $0x4] sm:$0x1]
      %v4495 = vld [vmem:[%s4216 + $0xc] sm:$0x1]
      %v4496 = vld [vmem:[%s4216 + $0x14] sm:$0x1]
      %v4497 = vld [vmem:[%s4216 + $0x1c] sm:$0x1]
      %v4498 = vld [vmem:[%s4216 + $0x24] sm:$0x1]
      %v4499 = vld [vmem:[%s4216 + $0x2c] sm:$0x1]
      %v4500 = vld [vmem:[%s4216 + $0x34] sm:$0x1]
      %v4501 = vld [vmem:[%s4216 + $0x3c] sm:$0x1]
      %v4503 = vshrl.u32 %v4486, 16
      %v4505 = vrot.slane %v4503, 4
      %v4506 = vshll.u32 %v4486, 16
      %v4508 = vrot.slane %v4506, 5
      %v4509 = vor.u32 %v4505, %v4508
      %v4510 = vrot.slane %v4509, 4
      %v4512 = vshll.u32 %v4494, 16
      %v4514 = vrot.slane %v4512, 5
      %v4515 = vsel %vm628, %v4510, %v4514
      %v4517 = vshrl.u32 %v4487, 16
      %v4519 = vrot.slane %v4517, 4
      %v4520 = vshll.u32 %v4487, 16
      %v4522 = vrot.slane %v4520, 5
      %v4523 = vor.u32 %v4519, %v4522
      %v4524 = vrot.slane %v4523, 4
      %v4526 = vshll.u32 %v4495, 16
      %v4528 = vrot.slane %v4526, 5
      %v4529 = vsel %vm628, %v4524, %v4528
      %v4531 = vshrl.u32 %v4488, 16
      %v4533 = vrot.slane %v4531, 4
      %v4534 = vshll.u32 %v4488, 16
      %v4536 = vrot.slane %v4534, 5
      %v4537 = vor.u32 %v4533, %v4536
      %v4538 = vrot.slane %v4537, 4
      %v4540 = vshll.u32 %v4496, 16
      %v4542 = vrot.slane %v4540, 5
      %v4543 = vsel %vm628, %v4538, %v4542
      %v4545 = vshrl.u32 %v4489, 16
      %v4547 = vrot.slane %v4545, 4
      %v4548 = vshll.u32 %v4489, 16
      %v4550 = vrot.slane %v4548, 5
      %v4551 = vor.u32 %v4547, %v4550
      %v4552 = vrot.slane %v4551, 4
      %v4554 = vshll.u32 %v4497, 16
      %v4556 = vrot.slane %v4554, 5
      %v4557 = vsel %vm628, %v4552, %v4556
      %v4559 = vshrl.u32 %v4490, 16
      %v4561 = vrot.slane %v4559, 4
      %v4562 = vshll.u32 %v4490, 16
      %v4564 = vrot.slane %v4562, 5
      %v4565 = vor.u32 %v4561, %v4564
      %v4566 = vrot.slane %v4565, 4
      %v4568 = vshll.u32 %v4498, 16
      %v4570 = vrot.slane %v4568, 5
      %v4571 = vsel %vm628, %v4566, %v4570
      %v4573 = vshrl.u32 %v4491, 16
      %v4575 = vrot.slane %v4573, 4
      %v4576 = vshll.u32 %v4491, 16
      %v4578 = vrot.slane %v4576, 5
      %v4579 = vor.u32 %v4575, %v4578
      %v4580 = vrot.slane %v4579, 4
      %v4582 = vshll.u32 %v4499, 16
      %v4584 = vrot.slane %v4582, 5
      %v4585 = vsel %vm628, %v4580, %v4584
      %v4587 = vshrl.u32 %v4492, 16
      %v4589 = vrot.slane %v4587, 4
      %v4590 = vshll.u32 %v4492, 16
      %v4592 = vrot.slane %v4590, 5
      %v4593 = vor.u32 %v4589, %v4592
      %v4594 = vrot.slane %v4593, 4
      %v4596 = vshll.u32 %v4500, 16
      %v4598 = vrot.slane %v4596, 5
      %v4599 = vsel %vm628, %v4594, %v4598
      %v4601 = vshrl.u32 %v4493, 16
      %v4603 = vrot.slane %v4601, 4
      %v4604 = vshll.u32 %v4493, 16
      %v4606 = vrot.slane %v4604, 5
      %v4607 = vor.u32 %v4603, %v4606
      %v4608 = vrot.slane %v4607, 4
      %v4610 = vshll.u32 %v4501, 16
      %v4612 = vrot.slane %v4610, 5
      %v4613 = vsel %vm628, %v4608, %v4612
      %v4614 = vld [vmem:[%s4216] sm:$0xe]
      %v4615 = vld [vmem:[%s4216 + $0x8] sm:$0xe]
      %v4616 = vld [vmem:[%s4216 + $0x10] sm:$0xe]
      %v4617 = vld [vmem:[%s4216 + $0x18] sm:$0xe]
      %v4618 = vld [vmem:[%s4216 + $0x20] sm:$0xe]
      %v4619 = vld [vmem:[%s4216 + $0x28] sm:$0xe]
      %v4620 = vld [vmem:[%s4216 + $0x30] sm:$0xe]
      %v4621 = vld [vmem:[%s4216 + $0x38] sm:$0xe]
      %v4638 = vrot.slane %v4614, 5
      %v4639 = vrot.slane %v4638, 4
      %v4640 = vrot.slane %v4494, 5
      %v4641 = vsel %vm767, %v4639, %v4640
      %v4642 = vrot.slane %v4615, 5
      %v4643 = vrot.slane %v4642, 4
      %v4644 = vrot.slane %v4495, 5
      %v4645 = vsel %vm767, %v4643, %v4644
      %v4646 = vrot.slane %v4616, 5
      %v4647 = vrot.slane %v4646, 4
      %v4648 = vrot.slane %v4496, 5
      %v4649 = vsel %vm767, %v4647, %v4648
      %v4650 = vrot.slane %v4617, 5
      %v4651 = vrot.slane %v4650, 4
      %v4652 = vrot.slane %v4497, 5
      %v4653 = vsel %vm767, %v4651, %v4652
      %v4654 = vrot.slane %v4618, 5
      %v4655 = vrot.slane %v4654, 4
      %v4656 = vrot.slane %v4498, 5
      %v4657 = vsel %vm767, %v4655, %v4656
      %v4658 = vrot.slane %v4619, 5
      %v4659 = vrot.slane %v4658, 4
      %v4660 = vrot.slane %v4499, 5
      %v4661 = vsel %vm767, %v4659, %v4660
      %v4662 = vrot.slane %v4620, 5
      %v4663 = vrot.slane %v4662, 4
      %v4664 = vrot.slane %v4500, 5
      %v4665 = vsel %vm767, %v4663, %v4664
      %v4666 = vrot.slane %v4621, 5
      %v4667 = vrot.slane %v4666, 4
      %v4668 = vrot.slane %v4501, 5
      %v4669 = vsel %vm767, %v4667, %v4668
      %s4670 = scalar_lea.vmem [#allocation3], 16
      %v4671 = vld [vmem:[%s4670] sm:$0xf]
      %v4672 = vld [vmem:[%s4670 + $0x8] sm:$0xf]
      %v4673 = vld [vmem:[%s4670 + $0x10] sm:$0xf]
      %v4674 = vld [vmem:[%s4670 + $0x18] sm:$0xf]
      %v4675 = vld [vmem:[%s4670 + $0x20] sm:$0xf]
      %v4676 = vld [vmem:[%s4670 + $0x28] sm:$0xf]
      %v4677 = vld [vmem:[%s4670 + $0x30] sm:$0xf]
      %v4678 = vld [vmem:[%s4670 + $0x38] sm:$0xf]
      %v4679 = vld [vmem:[%s4670 + $0x4] sm:$0x1]
      %v4680 = vld [vmem:[%s4670 + $0xc] sm:$0x1]
      %v4681 = vld [vmem:[%s4670 + $0x14] sm:$0x1]
      %v4682 = vld [vmem:[%s4670 + $0x1c] sm:$0x1]
      %v4683 = vld [vmem:[%s4670 + $0x24] sm:$0x1]
      %v4684 = vld [vmem:[%s4670 + $0x2c] sm:$0x1]
      %v4685 = vld [vmem:[%s4670 + $0x34] sm:$0x1]
      %v4686 = vld [vmem:[%s4670 + $0x3c] sm:$0x1]
      %v4688 = vshrl.u32 %v4671, 16
      %v4690 = vrot.slane %v4688, 4
      %v4691 = vshll.u32 %v4671, 16
      %v4693 = vrot.slane %v4691, 5
      %v4694 = vor.u32 %v4690, %v4693
      %v4695 = vrot.slane %v4694, 4
      %v4697 = vshll.u32 %v4679, 16
      %v4699 = vrot.slane %v4697, 5
      %v4700 = vsel %vm628, %v4695, %v4699
      %v4702 = vshrl.u32 %v4672, 16
      %v4704 = vrot.slane %v4702, 4
      %v4705 = vshll.u32 %v4672, 16
      %v4707 = vrot.slane %v4705, 5
      %v4708 = vor.u32 %v4704, %v4707
      %v4709 = vrot.slane %v4708, 4
      %v4711 = vshll.u32 %v4680, 16
      %v4713 = vrot.slane %v4711, 5
      %v4714 = vsel %vm628, %v4709, %v4713
      %v4716 = vshrl.u32 %v4673, 16
      %v4718 = vrot.slane %v4716, 4
      %v4719 = vshll.u32 %v4673, 16
      %v4721 = vrot.slane %v4719, 5
      %v4722 = vor.u32 %v4718, %v4721
      %v4723 = vrot.slane %v4722, 4
      %v4725 = vshll.u32 %v4681, 16
      %v4727 = vrot.slane %v4725, 5
      %v4728 = vsel %vm628, %v4723, %v4727
      %v4730 = vshrl.u32 %v4674, 16
      %v4732 = vrot.slane %v4730, 4
      %v4733 = vshll.u32 %v4674, 16
      %v4735 = vrot.slane %v4733, 5
      %v4736 = vor.u32 %v4732, %v4735
      %v4737 = vrot.slane %v4736, 4
      %v4739 = vshll.u32 %v4682, 16
      %v4741 = vrot.slane %v4739, 5
      %v4742 = vsel %vm628, %v4737, %v4741
      %v4744 = vshrl.u32 %v4675, 16
      %v4746 = vrot.slane %v4744, 4
      %v4747 = vshll.u32 %v4675, 16
      %v4749 = vrot.slane %v4747, 5
      %v4750 = vor.u32 %v4746, %v4749
      %v4751 = vrot.slane %v4750, 4
      %v4753 = vshll.u32 %v4683, 16
      %v4755 = vrot.slane %v4753, 5
      %v4756 = vsel %vm628, %v4751, %v4755
      %v4758 = vshrl.u32 %v4676, 16
      %v4760 = vrot.slane %v4758, 4
      %v4761 = vshll.u32 %v4676, 16
      %v4763 = vrot.slane %v4761, 5
      %v4764 = vor.u32 %v4760, %v4763
      %v4765 = vrot.slane %v4764, 4
      %v4767 = vshll.u32 %v4684, 16
      %v4769 = vrot.slane %v4767, 5
      %v4770 = vsel %vm628, %v4765, %v4769
      %v4772 = vshrl.u32 %v4677, 16
      %v4774 = vrot.slane %v4772, 4
      %v4775 = vshll.u32 %v4677, 16
      %v4777 = vrot.slane %v4775, 5
      %v4778 = vor.u32 %v4774, %v4777
      %v4779 = vrot.slane %v4778, 4
      %v4781 = vshll.u32 %v4685, 16
      %v4783 = vrot.slane %v4781, 5
      %v4784 = vsel %vm628, %v4779, %v4783
      %v4786 = vshrl.u32 %v4678, 16
      %v4788 = vrot.slane %v4786, 4
      %v4789 = vshll.u32 %v4678, 16
      %v4791 = vrot.slane %v4789, 5
      %v4792 = vor.u32 %v4788, %v4791
      %v4793 = vrot.slane %v4792, 4
      %v4795 = vshll.u32 %v4686, 16
      %v4797 = vrot.slane %v4795, 5
      %v4798 = vsel %vm628, %v4793, %v4797
      %v4799 = vld [vmem:[%s4670] sm:$0xe]
      %v4800 = vld [vmem:[%s4670 + $0x8] sm:$0xe]
      %v4801 = vld [vmem:[%s4670 + $0x10] sm:$0xe]
      %v4802 = vld [vmem:[%s4670 + $0x18] sm:$0xe]
      %v4803 = vld [vmem:[%s4670 + $0x20] sm:$0xe]
      %v4804 = vld [vmem:[%s4670 + $0x28] sm:$0xe]
      %v4805 = vld [vmem:[%s4670 + $0x30] sm:$0xe]
      %v4806 = vld [vmem:[%s4670 + $0x38] sm:$0xe]
      %v4823 = vrot.slane %v4799, 5
      %v4824 = vrot.slane %v4823, 4
      %v4825 = vrot.slane %v4679, 5
      %v4826 = vsel %vm767, %v4824, %v4825
      %v4827 = vrot.slane %v4800, 5
      %v4828 = vrot.slane %v4827, 4
      %v4829 = vrot.slane %v4680, 5
      %v4830 = vsel %vm767, %v4828, %v4829
      %v4831 = vrot.slane %v4801, 5
      %v4832 = vrot.slane %v4831, 4
      %v4833 = vrot.slane %v4681, 5
      %v4834 = vsel %vm767, %v4832, %v4833
      %v4835 = vrot.slane %v4802, 5
      %v4836 = vrot.slane %v4835, 4
      %v4837 = vrot.slane %v4682, 5
      %v4838 = vsel %vm767, %v4836, %v4837
      %v4839 = vrot.slane %v4803, 5
      %v4840 = vrot.slane %v4839, 4
      %v4841 = vrot.slane %v4683, 5
      %v4842 = vsel %vm767, %v4840, %v4841
      %v4843 = vrot.slane %v4804, 5
      %v4844 = vrot.slane %v4843, 4
      %v4845 = vrot.slane %v4684, 5
      %v4846 = vsel %vm767, %v4844, %v4845
      %v4847 = vrot.slane %v4805, 5
      %v4848 = vrot.slane %v4847, 4
      %v4849 = vrot.slane %v4685, 5
      %v4850 = vsel %vm767, %v4848, %v4849
      %v4851 = vrot.slane %v4806, 5
      %v4852 = vrot.slane %v4851, 4
      %v4853 = vrot.slane %v4686, 5
      %v4854 = vsel %vm767, %v4852, %v4853
      %v4863 = vunpack.c.l.b16 %v4302
      %v4864 = vunpack.c.l.b16 %v4303
      %v4865 = vunpack.c.l.b16 %v4304
      %v4866 = vunpack.c.l.b16 %v4305
      %v4867 = vunpack.c.l.b16 %v4306
      %v4868 = vunpack.c.l.b16 %v4307
      %v4869 = vunpack.c.l.b16 %v4308
      %v4870 = vunpack.c.l.b16 %v4309
      %v4871 = vpack.c.b16 %v4864, %v4863
      %v4872 = vpack.c.b16 %v4866, %v4865
      %v4873 = vpack.c.b16 %v4868, %v4867
      %v4874 = vpack.c.b16 %v4870, %v4869
      %v4875 = vunpack.c.l.b16 %v4331
      %v4876 = vunpack.c.l.b16 %v4345
      %v4877 = vunpack.c.l.b16 %v4359
      %v4878 = vunpack.c.l.b16 %v4373
      %v4879 = vunpack.c.l.b16 %v4387
      %v4880 = vunpack.c.l.b16 %v4401
      %v4881 = vunpack.c.l.b16 %v4415
      %v4882 = vunpack.c.l.b16 %v4429
      %v4883 = vpack.c.b16 %v4876, %v4875
      %v4884 = vpack.c.b16 %v4878, %v4877
      %v4885 = vpack.c.b16 %v4880, %v4879
      %v4886 = vpack.c.b16 %v4882, %v4881
      %4887 = vrot.lane.b32.xlu0 %v4883, 32
      %v4888 = vpop.permute.xlu0 %4887
      %4889 = vrot.lane.b32.xlu0 %v4884, 32
      %v4890 = vpop.permute.xlu0 %4889
      %4891 = vrot.lane.b32.xlu0 %v4885, 32
      %v4892 = vpop.permute.xlu0 %4891
      %4893 = vrot.lane.b32.xlu0 %v4886, 32
      %v4894 = vpop.permute.xlu0 %4893
      %v4895 = vunpack.c.l.b16 %v4457
      %v4896 = vunpack.c.l.b16 %v4461
      %v4897 = vunpack.c.l.b16 %v4465
      %v4898 = vunpack.c.l.b16 %v4469
      %v4899 = vunpack.c.l.b16 %v4473
      %v4900 = vunpack.c.l.b16 %v4477
      %v4901 = vunpack.c.l.b16 %v4481
      %v4902 = vunpack.c.l.b16 %v4485
      %v4903 = vpack.c.b16 %v4896, %v4895
      %v4904 = vpack.c.b16 %v4898, %v4897
      %v4905 = vpack.c.b16 %v4900, %v4899
      %v4906 = vpack.c.b16 %v4902, %v4901
      %4907 = vrot.lane.b32.xlu0 %v4903, 64
      %v4908 = vpop.permute.xlu0 %4907
      %4909 = vrot.lane.b32.xlu0 %v4904, 64
      %v4910 = vpop.permute.xlu0 %4909
      %4911 = vrot.lane.b32.xlu0 %v4905, 64
      %v4912 = vpop.permute.xlu0 %4911
      %4913 = vrot.lane.b32.xlu0 %v4906, 64
      %v4914 = vpop.permute.xlu0 %4913
      %v4923 = vunpack.c.l.b16 %v4486
      %v4924 = vunpack.c.l.b16 %v4487
      %v4925 = vunpack.c.l.b16 %v4488
      %v4926 = vunpack.c.l.b16 %v4489
      %v4927 = vunpack.c.l.b16 %v4490
      %v4928 = vunpack.c.l.b16 %v4491
      %v4929 = vunpack.c.l.b16 %v4492
      %v4930 = vunpack.c.l.b16 %v4493
      %v4931 = vpack.c.b16 %v4924, %v4923
      %v4932 = vpack.c.b16 %v4926, %v4925
      %v4933 = vpack.c.b16 %v4928, %v4927
      %v4934 = vpack.c.b16 %v4930, %v4929
      %4935 = vrot.lane.b32.xlu0 %v4931, 96
      %v4936 = vpop.permute.xlu0 %4935
      %4937 = vrot.lane.b32.xlu0 %v4932, 96
      %v4938 = vpop.permute.xlu0 %4937
      %4939 = vrot.lane.b32.xlu0 %v4933, 96
      %v4940 = vpop.permute.xlu0 %4939
      %4941 = vrot.lane.b32.xlu0 %v4934, 96
      %v4942 = vpop.permute.xlu0 %4941
      %v4943 = vunpack.c.l.b16 %v4515
      %v4944 = vunpack.c.l.b16 %v4529
      %v4945 = vunpack.c.l.b16 %v4543
      %v4946 = vunpack.c.l.b16 %v4557
      %v4947 = vunpack.c.l.b16 %v4571
      %v4948 = vunpack.c.l.b16 %v4585
      %v4949 = vunpack.c.l.b16 %v4599
      %v4950 = vunpack.c.l.b16 %v4613
      %v4951 = vpack.c.b16 %v4944, %v4943
      %v4952 = vpack.c.b16 %v4946, %v4945
      %v4953 = vpack.c.b16 %v4948, %v4947
      %v4954 = vpack.c.b16 %v4950, %v4949
      %v4955 = vunpack.c.l.b16 %v4641
      %v4956 = vunpack.c.l.b16 %v4645
      %v4957 = vunpack.c.l.b16 %v4649
      %v4958 = vunpack.c.l.b16 %v4653
      %v4959 = vunpack.c.l.b16 %v4657
      %v4960 = vunpack.c.l.b16 %v4661
      %v4961 = vunpack.c.l.b16 %v4665
      %v4962 = vunpack.c.l.b16 %v4669
      %v4963 = vpack.c.b16 %v4956, %v4955
      %v4964 = vpack.c.b16 %v4958, %v4957
      %v4965 = vpack.c.b16 %v4960, %v4959
      %v4966 = vpack.c.b16 %v4962, %v4961
      %4967 = vrot.lane.b32.xlu0 %v4963, 32
      %v4968 = vpop.permute.xlu0 %4967
      %4969 = vrot.lane.b32.xlu0 %v4964, 32
      %v4970 = vpop.permute.xlu0 %4969
      %4971 = vrot.lane.b32.xlu0 %v4965, 32
      %v4972 = vpop.permute.xlu0 %4971
      %4973 = vrot.lane.b32.xlu0 %v4966, 32
      %v4974 = vpop.permute.xlu0 %4973
      %v4983 = vunpack.c.l.b16 %v4671
      %v4984 = vunpack.c.l.b16 %v4672
      %v4985 = vunpack.c.l.b16 %v4673
      %v4986 = vunpack.c.l.b16 %v4674
      %v4987 = vunpack.c.l.b16 %v4675
      %v4988 = vunpack.c.l.b16 %v4676
      %v4989 = vunpack.c.l.b16 %v4677
      %v4990 = vunpack.c.l.b16 %v4678
      %v4991 = vpack.c.b16 %v4984, %v4983
      %v4992 = vpack.c.b16 %v4986, %v4985
      %v4993 = vpack.c.b16 %v4988, %v4987
      %v4994 = vpack.c.b16 %v4990, %v4989
      %4995 = vrot.lane.b32.xlu0 %v4991, 64
      %v4996 = vpop.permute.xlu0 %4995
      %4997 = vrot.lane.b32.xlu0 %v4992, 64
      %v4998 = vpop.permute.xlu0 %4997
      %4999 = vrot.lane.b32.xlu0 %v4993, 64
      %v5000 = vpop.permute.xlu0 %4999
      %5001 = vrot.lane.b32.xlu0 %v4994, 64
      %v5002 = vpop.permute.xlu0 %5001
      %v5003 = vunpack.c.l.b16 %v4700
      %v5004 = vunpack.c.l.b16 %v4714
      %v5005 = vunpack.c.l.b16 %v4728
      %v5006 = vunpack.c.l.b16 %v4742
      %v5007 = vunpack.c.l.b16 %v4756
      %v5008 = vunpack.c.l.b16 %v4770
      %v5009 = vunpack.c.l.b16 %v4784
      %v5010 = vunpack.c.l.b16 %v4798
      %v5011 = vpack.c.b16 %v5004, %v5003
      %v5012 = vpack.c.b16 %v5006, %v5005
      %v5013 = vpack.c.b16 %v5008, %v5007
      %v5014 = vpack.c.b16 %v5010, %v5009
      %5015 = vrot.lane.b32.xlu0 %v5011, 96
      %v5016 = vpop.permute.xlu0 %5015
      %5017 = vrot.lane.b32.xlu0 %v5012, 96
      %v5018 = vpop.permute.xlu0 %5017
      %5019 = vrot.lane.b32.xlu0 %v5013, 96
      %v5020 = vpop.permute.xlu0 %5019
      %5021 = vrot.lane.b32.xlu0 %v5014, 96
      %v5022 = vpop.permute.xlu0 %5021
      %v5023 = vunpack.c.l.b16 %v4826
      %v5024 = vunpack.c.l.b16 %v4830
      %v5025 = vunpack.c.l.b16 %v4834
      %v5026 = vunpack.c.l.b16 %v4838
      %v5027 = vunpack.c.l.b16 %v4842
      %v5028 = vunpack.c.l.b16 %v4846
      %v5029 = vunpack.c.l.b16 %v4850
      %v5030 = vunpack.c.l.b16 %v4854
      %v5031 = vpack.c.b16 %v5024, %v5023
      %v5032 = vpack.c.b16 %v5026, %v5025
      %v5033 = vpack.c.b16 %v5028, %v5027
      %v5034 = vpack.c.b16 %v5030, %v5029
      %v5037 = vsel %vm1349, %v4871, %v4888
      %v5040 = vsel %vm1349, %v4872, %v4890
      %v5043 = vsel %vm1349, %v4873, %v4892
      %v5046 = vsel %vm1349, %v4874, %v4894
      %v5048 = vsel %vm1362, %v5037, %v4908
      %v5050 = vsel %vm1362, %v5040, %v4910
      %v5052 = vsel %vm1362, %v5043, %v4912
      %v5054 = vsel %vm1362, %v5046, %v4914
      %v5056 = vsel %vm1371, %v5048, %v4936
      %v5059 = vsel %vm1371, %v5050, %v4938
      %v5062 = vsel %vm1371, %v5052, %v4940
      %v5065 = vsel %vm1371, %v5054, %v4942
      %v5069 = vsel %vm1349, %v4951, %v4968
      %v5072 = vsel %vm1349, %v4952, %v4970
      %v5075 = vsel %vm1349, %v4953, %v4972
      %v5078 = vsel %vm1349, %v4954, %v4974
      %v5080 = vsel %vm1362, %v5069, %v4996
      %v5082 = vsel %vm1362, %v5072, %v4998
      %v5084 = vsel %vm1362, %v5075, %v5000
      %v5086 = vsel %vm1362, %v5078, %v5002
      %v5088 = vsel %vm1371, %v5080, %v5016
      %v5091 = vsel %vm1371, %v5082, %v5018
      %v5094 = vsel %vm1371, %v5084, %v5020
      %v5097 = vsel %vm1371, %v5086, %v5022
      %v5100 = vlaneseq
      %v5101 = vshrl.u32 %v5100, 7
      %v5102 = vsub.s32 0, %v5101
      %v5103 = vrot.slane %v4301, %v5102
      %v5141 = vunpack.c.l.b16 %v4265
      %v5142 = vunpack.c.l.b16 %v4266
      %v5143 = vunpack.c.l.b16 %v4267
      %v5144 = vunpack.c.l.b16 %v4268
      %v5145 = vunpack.c.l.b16 %v4269
      %v5146 = vunpack.c.l.b16 %v4270
      %v5147 = vunpack.c.l.b16 %v4271
      %v5148 = vunpack.c.l.b16 %v4272
      %v5149 = vunpack.c.l.b16 %v4273
      %v5150 = vunpack.c.l.b16 %v4274
      %v5151 = vunpack.c.l.b16 %v4275
      %v5152 = vunpack.c.l.b16 %v4276
      %v5153 = vunpack.c.l.b16 %v4277
      %v5154 = vunpack.c.l.b16 %v4278
      %v5155 = vunpack.c.l.b16 %v4279
      %v5156 = vunpack.c.l.b16 %v4280
      %v5157 = vunpack.c.l.b16 %v4281
      %v5158 = vunpack.c.l.b16 %v4282
      %v5159 = vunpack.c.l.b16 %v4283
      %v5160 = vunpack.c.l.b16 %v4284
      %v5161 = vunpack.c.l.b16 %v4285
      %v5162 = vunpack.c.l.b16 %v4286
      %v5163 = vunpack.c.l.b16 %v4287
      %v5164 = vunpack.c.l.b16 %v4288
      %v5165 = vunpack.c.l.b16 %v4289
      %v5166 = vunpack.c.l.b16 %v4290
      %v5167 = vunpack.c.l.b16 %v4291
      %v5168 = vunpack.c.l.b16 %v4292
      %v5169 = vunpack.c.l.b16 %v4293
      %v5170 = vunpack.c.l.b16 %v4294
      %v5171 = vunpack.c.l.b16 %v4295
      %v5172 = vunpack.c.l.b16 %v4296
      %v5173 = vunpack.c.l.b16 %v4297
      %v5174 = vunpack.c.l.b16 %v4298
      %v5175 = vunpack.c.l.b16 %v4299
      %v5176 = vunpack.c.l.b16 %v4300
      %v5177 = vpack.c.b16 %v5142, %v5141
      %v5178 = vpack.c.b16 %v5144, %v5143
      %v5179 = vpack.c.b16 %v5146, %v5145
      %v5180 = vpack.c.b16 %v5148, %v5147
      %v5181 = vpack.c.b16 %v5150, %v5149
      %v5182 = vpack.c.b16 %v5152, %v5151
      %v5183 = vpack.c.b16 %v5154, %v5153
      %v5184 = vpack.c.b16 %v5156, %v5155
      %v5185 = vpack.c.b16 %v5158, %v5157
      %v5186 = vpack.c.b16 %v5160, %v5159
      %v5187 = vpack.c.b16 %v5162, %v5161
      %v5188 = vpack.c.b16 %v5164, %v5163
      %v5189 = vpack.c.b16 %v5166, %v5165
      %v5190 = vpack.c.b16 %v5168, %v5167
      %v5191 = vpack.c.b16 %v5170, %v5169
      %v5192 = vpack.c.b16 %v5172, %v5171
      %v5193 = vpack.c.b16 %v5174, %v5173
      %v5194 = vpack.c.b16 %v5176, %v5175
      %v5214 = vsel %vm1349, %v5031, 0
      %v5217 = vsel %vm1349, %v5032, 0
      %v5220 = vsel %vm1349, %v5033, 0
      %v5223 = vsel %vm1349, %v5034, 0
      %5225 = vmatprep.subr.bf16.mxu0 0
      %5226 = vmatpush1.bf16.msra.mxu0 %v5177
      %5227 = vmatprep.subr.bf16.mxu0 0
      %5228 = vmatpush1.bf16.msra.mxu0 %v5178
      %5229 = vmatprep.subr.bf16.mxu0 0
      %5230 = vmatpush1.bf16.msra.mxu0 %v5179
      %5231 = vmatprep.subr.bf16.mxu0 0
      %5232 = vmatpush1.bf16.msra.mxu0 %v5180
      %5233 = vmatprep.subr.bf16.mxu0 0
      %5234 = vmatpush1.bf16.msra.mxu0 %v5181
      %5235 = vmatprep.subr.bf16.mxu0 0
      %5236 = vmatpush1.bf16.msra.mxu0 %v5182
      %5237 = vmatprep.subr.bf16.mxu0 0
      %5238 = vmatpush1.bf16.msra.mxu0 %v5183
      %5239 = vmatprep.subr.bf16.mxu0 0
      %5240 = vmatpush1.bf16.msra.mxu0 %v5184
      %5241 = vmatprep.subr.bf16.mxu0 0
      %5242 = vmatpush1.bf16.msra.mxu0 %v5185
      %5243 = vmatprep.subr.bf16.mxu0 0
      %5244 = vmatpush1.bf16.msra.mxu0 %v5186
      %5245 = vmatprep.subr.bf16.mxu0 0
      %5246 = vmatpush1.bf16.msra.mxu0 %v5187
      %5247 = vmatprep.subr.bf16.mxu0 0
      %5248 = vmatpush1.bf16.msra.mxu0 %v5188
      %5249 = vmatprep.subr.bf16.mxu0 0
      %5250 = vmatpush1.bf16.msra.mxu0 %v5189
      %5251 = vmatprep.subr.bf16.mxu0 0
      %5252 = vmatpush1.bf16.msra.mxu0 %v5190
      %5253 = vmatprep.subr.bf16.mxu0 0
      %5254 = vmatpush1.bf16.msra.mxu0 %v5191
      %5255 = vmatprep.subr.bf16.mxu0 0
      %5256 = vmatpush1.bf16.msra.mxu0 %v5192
      %5257 = vmatprep.mubr.bf16.mxu0 %v5088
      %5258 = vmatmul.mubr.bf16.gmra.mrb[0].mxu0 %v5056
      %v5259 = vpop.f32.mrb[0].mxu0
      %v5260 = vadd.f32 %v5103, %v5259
      %v5261 = vpop.f32.mrb[0].mxu0
      %v5262 = vpop.f32.mrb[0].mxu0
      %v5263 = vadd.f32 %v5103, %v5262
      %v5264 = vpop.f32.mrb[0].mxu0
      %5265 = vmatprep.mubr.bf16.mxu0 %v5091
      %5266 = vmatmul.mubr.bf16.gmra.mrb[0].mxu0 %v5059
      %v5267 = vpop.f32.mrb[0].mxu0
      %v5268 = vadd.f32 %v5103, %v5267
      %v5269 = vpop.f32.mrb[0].mxu0
      %v5270 = vpop.f32.mrb[0].mxu0
      %v5271 = vadd.f32 %v5103, %v5270
      %v5272 = vpop.f32.mrb[0].mxu0
      %5273 = vmatprep.mubr.bf16.mxu0 %v5094
      %5274 = vmatmul.mubr.bf16.gmra.mrb[0].mxu0 %v5062
      %v5275 = vpop.f32.mrb[0].mxu0
      %v5276 = vadd.f32 %v5103, %v5275
      %v5277 = vpop.f32.mrb[0].mxu0
      %v5278 = vpop.f32.mrb[0].mxu0
      %v5279 = vadd.f32 %v5103, %v5278
      %v5280 = vpop.f32.mrb[0].mxu0
      %5281 = vmatprep.mubr.bf16.mxu0 %v5097
      %5282 = vmatmul.mubr.bf16.gmra.mrb[0].mxu0 %v5065
      %v5283 = vpop.f32.mrb[0].mxu0
      %v5284 = vadd.f32 %v5103, %v5283
      %v5285 = vpop.f32.mrb[0].mxu0
      %v5286 = vpop.f32.mrb[0].mxu0
      %v5287 = vadd.f32 %v5103, %v5286
      %v5288 = vpop.f32.mrb[0].mxu0
      %5289 = vdwg.mxu0
      %5290 = vmatprep.subr.bf16.mxu0 0
      %5291 = vmatpush1.bf16.msra.mxu0 %v5193
      %5292 = vmatprep.subr.bf16.mxu0 0
      %5293 = vmatpush1.bf16.msra.mxu0 %v5194
      %5294 = vmatprep.subr.bf16.mxu0 0
      %5295 = vmatpush1.bf16.msra.mxu0 0
      %5296 = vmatprep.subr.bf16.mxu0 0
      %5297 = vmatpush1.bf16.msra.mxu0 0
      %5298 = vmatprep.subr.bf16.mxu0 0
      %5299 = vmatpush1.bf16.msra.mxu0 0
      %5300 = vmatprep.subr.bf16.mxu0 0
      %5301 = vmatpush1.bf16.msra.mxu0 0
      %5302 = vmatprep.subr.bf16.mxu0 0
      %5303 = vmatpush1.bf16.msra.mxu0 0
      %5304 = vmatprep.subr.bf16.mxu0 0
      %5305 = vmatpush1.bf16.msra.mxu0 0
      %5306 = vmatprep.subr.bf16.mxu0 0
      %5307 = vmatpush1.bf16.msra.mxu0 0
      %5308 = vmatprep.subr.bf16.mxu0 0
      %5309 = vmatpush1.bf16.msra.mxu0 0
      %5310 = vmatprep.subr.bf16.mxu0 0
      %5311 = vmatpush1.bf16.msra.mxu0 0
      %5312 = vmatprep.subr.bf16.mxu0 0
      %5313 = vmatpush1.bf16.msra.mxu0 0
      %5314 = vmatprep.subr.bf16.mxu0 0
      %5315 = vmatpush1.bf16.msra.mxu0 0
      %5316 = vmatprep.subr.bf16.mxu0 0
      %5317 = vmatpush1.bf16.msra.mxu0 0
      %5318 = vmatprep.subr.bf16.mxu0 0
      %5319 = vmatpush1.bf16.msra.mxu0 0
      %5320 = vmatprep.subr.bf16.mxu0 0
      %5321 = vmatpush1.bf16.msra.mxu0 0
      %5322 = vmatprep.mubr.bf16.mxu0 0
      %5323 = vmatmul.mubr.bf16.gmra.mrb[0].mxu0 %v5214
      %v5324 = vpop.f32.mrb[0].mxu0
      %v5325 = vadd.f32 %v5260, %v5324
      %v5326 = vpop.f32.mrb[0].mxu0
      %v5327 = vpop.f32.mrb[0].mxu0
      %v5328 = vadd.f32 %v5263, %v5327
      %v5329 = vpop.f32.mrb[0].mxu0
      %5330 = vmatprep.mubr.bf16.mxu0 0
      %5331 = vmatmul.mubr.bf16.gmra.mrb[0].mxu0 %v5217
      %v5332 = vpop.f32.mrb[0].mxu0
      %v5333 = vadd.f32 %v5268, %v5332
      %v5334 = vpop.f32.mrb[0].mxu0
      %v5335 = vpop.f32.mrb[0].mxu0
      %v5336 = vadd.f32 %v5271, %v5335
      %v5337 = vpop.f32.mrb[0].mxu0
      %5338 = vmatprep.mubr.bf16.mxu0 0
      %5339 = vmatmul.mubr.bf16.gmra.mrb[0].mxu0 %v5220
      %v5340 = vpop.f32.mrb[0].mxu0
      %v5341 = vadd.f32 %v5276, %v5340
      %v5342 = vpop.f32.mrb[0].mxu0
      %v5343 = vpop.f32.mrb[0].mxu0
      %v5344 = vadd.f32 %v5279, %v5343
      %v5345 = vpop.f32.mrb[0].mxu0
      %5346 = vmatprep.mubr.bf16.mxu0 0
      %5347 = vmatmul.mubr.bf16.gmra.mrb[0].mxu0 %v5223
      %v5348 = vpop.f32.mrb[0].mxu0
      %v5349 = vadd.f32 %v5284, %v5348
      %v5350 = vpop.f32.mrb[0].mxu0
      %v5351 = vpop.f32.mrb[0].mxu0
      %v5352 = vadd.f32 %v5287, %v5351
      %v5353 = vpop.f32.mrb[0].mxu0
      %5354 = vdwg.mxu0
      %v5355 = vmax.f32 %v5325, 0.0
      %v5356 = vmax.f32 %v5328, 0.0
      %v5357 = vmax.f32 %v5333, 0.0
      %v5358 = vmax.f32 %v5336, 0.0
      %v5359 = vmax.f32 %v5341, 0.0
      %v5360 = vmax.f32 %v5344, 0.0
      %v5361 = vmax.f32 %v5349, 0.0
      %v5362 = vmax.f32 %v5352, 0.0
      %v5363 = vpack.c.bf16 %v5356, %v5355
      %v5364 = vpack.c.bf16 %v5358, %v5357
      %v5365 = vpack.c.bf16 %v5360, %v5359
      %v5366 = vpack.c.bf16 %v5362, %v5361
      %v5371 = vunpack.c.l.b16 %v5363
      %v5372 = vunpack.c.h.b16 %v5363
      %v5373 = vunpack.c.l.b16 %v5364
      %v5374 = vunpack.c.h.b16 %v5364
      %v5375 = vunpack.c.l.b16 %v5365
      %v5376 = vunpack.c.h.b16 %v5365
      %v5377 = vunpack.c.l.b16 %v5366
      %v5378 = vunpack.c.h.b16 %v5366
      %v5379 = vpack.c.b16 %v5371, %v5371
      %v5380 = vpack.c.b16 %v5372, %v5372
      %v5381 = vpack.c.b16 %v5373, %v5373
      %v5382 = vpack.c.b16 %v5374, %v5374
      %v5383 = vpack.c.b16 %v5375, %v5375
      %v5384 = vpack.c.b16 %v5376, %v5376
      %v5385 = vpack.c.b16 %v5377, %v5377
      %v5386 = vpack.c.b16 %v5378, %v5378
      %v5388 = vshrl.u32 %v5379, 16
      %v5390 = vrot.slane %v5388, 7
      %v5391 = vshll.u32 %v5379, 16
      %v5393 = vor.u32 %v5390, %v5391
      %v5394 = vrot.slane %v5390, 4
      %v5396 = vshrl.u32 %v5380, 16
      %v5398 = vrot.slane %v5396, 7
      %v5399 = vshll.u32 %v5380, 16
      %v5401 = vor.u32 %v5398, %v5399
      %v5402 = vrot.slane %v5398, 4
      %v5404 = vshrl.u32 %v5381, 16
      %v5406 = vrot.slane %v5404, 7
      %v5407 = vshll.u32 %v5381, 16
      %v5409 = vor.u32 %v5406, %v5407
      %v5410 = vrot.slane %v5406, 4
      %v5412 = vshrl.u32 %v5382, 16
      %v5414 = vrot.slane %v5412, 7
      %v5415 = vshll.u32 %v5382, 16
      %v5417 = vor.u32 %v5414, %v5415
      %v5418 = vrot.slane %v5414, 4
      %v5420 = vshrl.u32 %v5383, 16
      %v5422 = vrot.slane %v5420, 7
      %v5423 = vshll.u32 %v5383, 16
      %v5425 = vor.u32 %v5422, %v5423
      %v5426 = vrot.slane %v5422, 4
      %v5428 = vshrl.u32 %v5384, 16
      %v5430 = vrot.slane %v5428, 7
      %v5431 = vshll.u32 %v5384, 16
      %v5433 = vor.u32 %v5430, %v5431
      %v5434 = vrot.slane %v5430, 4
      %v5436 = vshrl.u32 %v5385, 16
      %v5438 = vrot.slane %v5436, 7
      %v5439 = vshll.u32 %v5385, 16
      %v5441 = vor.u32 %v5438, %v5439
      %v5442 = vrot.slane %v5438, 4
      %v5444 = vshrl.u32 %v5386, 16
      %v5446 = vrot.slane %v5444, 7
      %v5447 = vshll.u32 %v5386, 16
      %v5449 = vor.u32 %v5446, %v5447
      %v5450 = vrot.slane %v5446, 4
      %v5467 = vsel %vm521, %v5393, %v4486
      %5468 = vst [vmem:[%s4216] sm:$0xf] %v5467
      %v5469 = vld [vmem:[%s4216 + $0x4] sm:$0x1]
      %v5470 = vsel %vm527, %v5394, %v5469
      %5471 = vst [vmem:[%s4216 + $0x4] sm:$0x1] %v5470
      %v5472 = vld [vmem:[%s4216 + $0x8] sm:$0xf]
      %v5473 = vsel %vm521, %v5401, %v5472
      %5474 = vst [vmem:[%s4216 + $0x8] sm:$0xf] %v5473
      %v5475 = vld [vmem:[%s4216 + $0xc] sm:$0x1]
      %v5476 = vsel %vm527, %v5402, %v5475
      %5477 = vst [vmem:[%s4216 + $0xc] sm:$0x1] %v5476
      %v5478 = vld [vmem:[%s4216 + $0x10] sm:$0xf]
      %v5479 = vsel %vm521, %v5409, %v5478
      %5480 = vst [vmem:[%s4216 + $0x10] sm:$0xf] %v5479
      %v5481 = vld [vmem:[%s4216 + $0x14] sm:$0x1]
      %v5482 = vsel %vm527, %v5410, %v5481
      %5483 = vst [vmem:[%s4216 + $0x14] sm:$0x1] %v5482
      %v5484 = vld [vmem:[%s4216 + $0x18] sm:$0xf]
      %v5485 = vsel %vm521, %v5417, %v5484
      %5486 = vst [vmem:[%s4216 + $0x18] sm:$0xf] %v5485
      %v5487 = vld [vmem:[%s4216 + $0x1c] sm:$0x1]
      %v5488 = vsel %vm527, %v5418, %v5487
      %5489 = vst [vmem:[%s4216 + $0x1c] sm:$0x1] %v5488
      %v5490 = vld [vmem:[%s4216 + $0x20] sm:$0xf]
      %v5491 = vsel %vm521, %v5425, %v5490
      %5492 = vst [vmem:[%s4216 + $0x20] sm:$0xf] %v5491
      %v5493 = vld [vmem:[%s4216 + $0x24] sm:$0x1]
      %v5494 = vsel %vm527, %v5426, %v5493
      %5495 = vst [vmem:[%s4216 + $0x24] sm:$0x1] %v5494
      %v5496 = vld [vmem:[%s4216 + $0x28] sm:$0xf]
      %v5497 = vsel %vm521, %v5433, %v5496
      %5498 = vst [vmem:[%s4216 + $0x28] sm:$0xf] %v5497
      %v5499 = vld [vmem:[%s4216 + $0x2c] sm:$0x1]
      %v5500 = vsel %vm527, %v5434, %v5499
      %5501 = vst [vmem:[%s4216 + $0x2c] sm:$0x1] %v5500
      %v5502 = vld [vmem:[%s4216 + $0x30] sm:$0xf]
      %v5503 = vsel %vm521, %v5441, %v5502
      %5504 = vst [vmem:[%s4216 + $0x30] sm:$0xf] %v5503
      %v5505 = vld [vmem:[%s4216 + $0x34] sm:$0x1]
      %v5506 = vsel %vm527, %v5442, %v5505
      %5507 = vst [vmem:[%s4216 + $0x34] sm:$0x1] %v5506
      %v5508 = vld [vmem:[%s4216 + $0x38] sm:$0xf]
      %v5509 = vsel %vm521, %v5449, %v5508
      %5510 = vst [vmem:[%s4216 + $0x38] sm:$0xf] %v5509
      %v5511 = vld [vmem:[%s4216 + $0x3c] sm:$0x1]
      %v5512 = vsel %vm527, %v5450, %v5511
      %5513 = vst [vmem:[%s4216 + $0x3c] sm:$0x1] %v5512
      %s5514 = scalar_lea.vmem %s5, 144
      %v5515 = vld [vmem:[%s5514] sm:$0xf]
      %v5516 = vld [vmem:[%s5514 + $0x4] sm:$0xf]
      %v5517 = vld [vmem:[%s5514 + $0x8] sm:$0xf]
      %v5518 = vld [vmem:[%s5514 + $0xc] sm:$0xf]
      %v5519 = vld [vmem:[%s5514 + $0x10] sm:$0xf]
      %v5520 = vld [vmem:[%s5514 + $0x14] sm:$0xf]
      %v5521 = vld [vmem:[%s5514 + $0x18] sm:$0xf]
      %v5522 = vld [vmem:[%s5514 + $0x1c] sm:$0xf]
      %v5523 = vld [vmem:[%s5514 + $0x20] sm:$0xf]
      %v5524 = vld [vmem:[%s5514 + $0x24] sm:$0xf]
      %v5525 = vld [vmem:[%s5514 + $0x28] sm:$0xf]
      %v5526 = vld [vmem:[%s5514 + $0x2c] sm:$0xf]
      %v5527 = vld [vmem:[%s5514 + $0x30] sm:$0xf]
      %v5528 = vld [vmem:[%s5514 + $0x34] sm:$0xf]
      %v5529 = vld [vmem:[%s5514 + $0x38] sm:$0xf]
      %v5530 = vld [vmem:[%s5514 + $0x3c] sm:$0xf]
      %v5531 = vld [vmem:[%s5514 + $0x40] sm:$0xf]
      %v5532 = vld [vmem:[%s5514 + $0x44] sm:$0xf]
      %v5533 = vld [vmem:[%s5514 + $0x48] sm:$0xf]
      %v5534 = vld [vmem:[%s5514 + $0x4c] sm:$0xf]
      %v5535 = vld [vmem:[%s5514 + $0x50] sm:$0xf]
      %v5536 = vld [vmem:[%s5514 + $0x54] sm:$0xf]
      %v5537 = vld [vmem:[%s5514 + $0x58] sm:$0xf]
      %v5538 = vld [vmem:[%s5514 + $0x5c] sm:$0xf]
      %v5539 = vld [vmem:[%s5514 + $0x60] sm:$0xf]
      %v5540 = vld [vmem:[%s5514 + $0x64] sm:$0xf]
      %v5541 = vld [vmem:[%s5514 + $0x68] sm:$0xf]
      %v5542 = vld [vmem:[%s5514 + $0x6c] sm:$0xf]
      %v5543 = vld [vmem:[%s5514 + $0x70] sm:$0xf]
      %v5544 = vld [vmem:[%s5514 + $0x74] sm:$0xf]
      %v5545 = vld [vmem:[%s5514 + $0x78] sm:$0xf]
      %v5546 = vld [vmem:[%s5514 + $0x7c] sm:$0xf]
      %v5547 = vld [vmem:[%s5514 + $0x80] sm:$0xf]
      %v5548 = vld [vmem:[%s5514 + $0x84] sm:$0xf]
      %v5549 = vld [vmem:[%s5514 + $0x88] sm:$0xf]
      %v5550 = vld [vmem:[%s5514 + $0x8c] sm:$0xf]
      %s5551 = scalar_lea.vmem %s6, 1
      %v5552 = vld [vmem:[%s5551] sm:$0x1]
      %v5553 = vld [vmem:[#allocation3] sm:$0xf]
      %v5554 = vld [vmem:[#allocation3 + $0x8] sm:$0xf]
      %v5555 = vld [vmem:[#allocation3 + $0x10] sm:$0xf]
      %v5556 = vld [vmem:[#allocation3 + $0x18] sm:$0xf]
      %v5557 = vld [vmem:[#allocation3 + $0x20] sm:$0xf]
      %v5558 = vld [vmem:[#allocation3 + $0x28] sm:$0xf]
      %v5559 = vld [vmem:[#allocation3 + $0x30] sm:$0xf]
      %v5560 = vld [vmem:[#allocation3 + $0x38] sm:$0xf]
      %v5561 = vld [vmem:[#allocation3 + $0x4] sm:$0x1]
      %v5562 = vld [vmem:[#allocation3 + $0xc] sm:$0x1]
      %v5563 = vld [vmem:[#allocation3 + $0x14] sm:$0x1]
      %v5564 = vld [vmem:[#allocation3 + $0x1c] sm:$0x1]
      %v5565 = vld [vmem:[#allocation3 + $0x24] sm:$0x1]
      %v5566 = vld [vmem:[#allocation3 + $0x2c] sm:$0x1]
      %v5567 = vld [vmem:[#allocation3 + $0x34] sm:$0x1]
      %v5568 = vld [vmem:[#allocation3 + $0x3c] sm:$0x1]
      %v5570 = vshrl.u32 %v5553, 16
      %v5572 = vrot.slane %v5570, 4
      %v5573 = vshll.u32 %v5553, 16
      %v5575 = vrot.slane %v5573, 5
      %v5576 = vor.u32 %v5572, %v5575
      %v5577 = vrot.slane %v5576, 4
      %v5579 = vshll.u32 %v5561, 16
      %v5581 = vrot.slane %v5579, 5
      %v5582 = vsel %vm628, %v5577, %v5581
      %v5584 = vshrl.u32 %v5554, 16
      %v5586 = vrot.slane %v5584, 4
      %v5587 = vshll.u32 %v5554, 16
      %v5589 = vrot.slane %v5587, 5
      %v5590 = vor.u32 %v5586, %v5589
      %v5591 = vrot.slane %v5590, 4
      %v5593 = vshll.u32 %v5562, 16
      %v5595 = vrot.slane %v5593, 5
      %v5596 = vsel %vm628, %v5591, %v5595
      %v5598 = vshrl.u32 %v5555, 16
      %v5600 = vrot.slane %v5598, 4
      %v5601 = vshll.u32 %v5555, 16
      %v5603 = vrot.slane %v5601, 5
      %v5604 = vor.u32 %v5600, %v5603
      %v5605 = vrot.slane %v5604, 4
      %v5607 = vshll.u32 %v5563, 16
      %v5609 = vrot.slane %v5607, 5
      %v5610 = vsel %vm628, %v5605, %v5609
      %v5612 = vshrl.u32 %v5556, 16
      %v5614 = vrot.slane %v5612, 4
      %v5615 = vshll.u32 %v5556, 16
      %v5617 = vrot.slane %v5615, 5
      %v5618 = vor.u32 %v5614, %v5617
      %v5619 = vrot.slane %v5618, 4
      %v5621 = vshll.u32 %v5564, 16
      %v5623 = vrot.slane %v5621, 5
      %v5624 = vsel %vm628, %v5619, %v5623
      %v5626 = vshrl.u32 %v5557, 16
      %v5628 = vrot.slane %v5626, 4
      %v5629 = vshll.u32 %v5557, 16
      %v5631 = vrot.slane %v5629, 5
      %v5632 = vor.u32 %v5628, %v5631
      %v5633 = vrot.slane %v5632, 4
      %v5635 = vshll.u32 %v5565, 16
      %v5637 = vrot.slane %v5635, 5
      %v5638 = vsel %vm628, %v5633, %v5637
      %v5640 = vshrl.u32 %v5558, 16
      %v5642 = vrot.slane %v5640, 4
      %v5643 = vshll.u32 %v5558, 16
      %v5645 = vrot.slane %v5643, 5
      %v5646 = vor.u32 %v5642, %v5645
      %v5647 = vrot.slane %v5646, 4
      %v5649 = vshll.u32 %v5566, 16
      %v5651 = vrot.slane %v5649, 5
      %v5652 = vsel %vm628, %v5647, %v5651
      %v5654 = vshrl.u32 %v5559, 16
      %v5656 = vrot.slane %v5654, 4
      %v5657 = vshll.u32 %v5559, 16
      %v5659 = vrot.slane %v5657, 5
      %v5660 = vor.u32 %v5656, %v5659
      %v5661 = vrot.slane %v5660, 4
      %v5663 = vshll.u32 %v5567, 16
      %v5665 = vrot.slane %v5663, 5
      %v5666 = vsel %vm628, %v5661, %v5665
      %v5668 = vshrl.u32 %v5560, 16
      %v5670 = vrot.slane %v5668, 4
      %v5671 = vshll.u32 %v5560, 16
      %v5673 = vrot.slane %v5671, 5
      %v5674 = vor.u32 %v5670, %v5673
      %v5675 = vrot.slane %v5674, 4
      %v5677 = vshll.u32 %v5568, 16
      %v5679 = vrot.slane %v5677, 5
      %v5680 = vsel %vm628, %v5675, %v5679
      %v5681 = vld [vmem:[#allocation3] sm:$0xe]
      %v5682 = vld [vmem:[#allocation3 + $0x8] sm:$0xe]
      %v5683 = vld [vmem:[#allocation3 + $0x10] sm:$0xe]
      %v5684 = vld [vmem:[#allocation3 + $0x18] sm:$0xe]
      %v5685 = vld [vmem:[#allocation3 + $0x20] sm:$0xe]
      %v5686 = vld [vmem:[#allocation3 + $0x28] sm:$0xe]
      %v5687 = vld [vmem:[#allocation3 + $0x30] sm:$0xe]
      %v5688 = vld [vmem:[#allocation3 + $0x38] sm:$0xe]
      %v5705 = vrot.slane %v5681, 5
      %v5706 = vrot.slane %v5705, 4
      %v5707 = vrot.slane %v5561, 5
      %v5708 = vsel %vm767, %v5706, %v5707
      %v5709 = vrot.slane %v5682, 5
      %v5710 = vrot.slane %v5709, 4
      %v5711 = vrot.slane %v5562, 5
      %v5712 = vsel %vm767, %v5710, %v5711
      %v5713 = vrot.slane %v5683, 5
      %v5714 = vrot.slane %v5713, 4
      %v5715 = vrot.slane %v5563, 5
      %v5716 = vsel %vm767, %v5714, %v5715
      %v5717 = vrot.slane %v5684, 5
      %v5718 = vrot.slane %v5717, 4
      %v5719 = vrot.slane %v5564, 5
      %v5720 = vsel %vm767, %v5718, %v5719
      %v5721 = vrot.slane %v5685, 5
      %v5722 = vrot.slane %v5721, 4
      %v5723 = vrot.slane %v5565, 5
      %v5724 = vsel %vm767, %v5722, %v5723
      %v5725 = vrot.slane %v5686, 5
      %v5726 = vrot.slane %v5725, 4
      %v5727 = vrot.slane %v5566, 5
      %v5728 = vsel %vm767, %v5726, %v5727
      %v5729 = vrot.slane %v5687, 5
      %v5730 = vrot.slane %v5729, 4
      %v5731 = vrot.slane %v5567, 5
      %v5732 = vsel %vm767, %v5730, %v5731
      %v5733 = vrot.slane %v5688, 5
      %v5734 = vrot.slane %v5733, 4
      %v5735 = vrot.slane %v5568, 5
      %v5736 = vsel %vm767, %v5734, %v5735
      %v5737 = vld [vmem:[%s4216] sm:$0xf]
      %v5738 = vld [vmem:[%s4216 + $0x8] sm:$0xf]
      %v5739 = vld [vmem:[%s4216 + $0x10] sm:$0xf]
      %v5740 = vld [vmem:[%s4216 + $0x18] sm:$0xf]
      %v5741 = vld [vmem:[%s4216 + $0x20] sm:$0xf]
      %v5742 = vld [vmem:[%s4216 + $0x28] sm:$0xf]
      %v5743 = vld [vmem:[%s4216 + $0x30] sm:$0xf]
      %v5744 = vld [vmem:[%s4216 + $0x38] sm:$0xf]
      %v5745 = vld [vmem:[%s4216 + $0x4] sm:$0x1]
      %v5746 = vld [vmem:[%s4216 + $0xc] sm:$0x1]
      %v5747 = vld [vmem:[%s4216 + $0x14] sm:$0x1]
      %v5748 = vld [vmem:[%s4216 + $0x1c] sm:$0x1]
      %v5749 = vld [vmem:[%s4216 + $0x24] sm:$0x1]
      %v5750 = vld [vmem:[%s4216 + $0x2c] sm:$0x1]
      %v5751 = vld [vmem:[%s4216 + $0x34] sm:$0x1]
      %v5752 = vld [vmem:[%s4216 + $0x3c] sm:$0x1]
      %v5754 = vshrl.u32 %v5737, 16
      %v5756 = vrot.slane %v5754, 4
      %v5757 = vshll.u32 %v5737, 16
      %v5759 = vrot.slane %v5757, 5
      %v5760 = vor.u32 %v5756, %v5759
      %v5761 = vrot.slane %v5760, 4
      %v5763 = vshll.u32 %v5745, 16
      %v5765 = vrot.slane %v5763, 5
      %v5766 = vsel %vm628, %v5761, %v5765
      %v5768 = vshrl.u32 %v5738, 16
      %v5770 = vrot.slane %v5768, 4
      %v5771 = vshll.u32 %v5738, 16
      %v5773 = vrot.slane %v5771, 5
      %v5774 = vor.u32 %v5770, %v5773
      %v5775 = vrot.slane %v5774, 4
      %v5777 = vshll.u32 %v5746, 16
      %v5779 = vrot.slane %v5777, 5
      %v5780 = vsel %vm628, %v5775, %v5779
      %v5782 = vshrl.u32 %v5739, 16
      %v5784 = vrot.slane %v5782, 4
      %v5785 = vshll.u32 %v5739, 16
      %v5787 = vrot.slane %v5785, 5
      %v5788 = vor.u32 %v5784, %v5787
      %v5789 = vrot.slane %v5788, 4
      %v5791 = vshll.u32 %v5747, 16
      %v5793 = vrot.slane %v5791, 5
      %v5794 = vsel %vm628, %v5789, %v5793
      %v5796 = vshrl.u32 %v5740, 16
      %v5798 = vrot.slane %v5796, 4
      %v5799 = vshll.u32 %v5740, 16
      %v5801 = vrot.slane %v5799, 5
      %v5802 = vor.u32 %v5798, %v5801
      %v5803 = vrot.slane %v5802, 4
      %v5805 = vshll.u32 %v5748, 16
      %v5807 = vrot.slane %v5805, 5
      %v5808 = vsel %vm628, %v5803, %v5807
      %v5810 = vshrl.u32 %v5741, 16
      %v5812 = vrot.slane %v5810, 4
      %v5813 = vshll.u32 %v5741, 16
      %v5815 = vrot.slane %v5813, 5
      %v5816 = vor.u32 %v5812, %v5815
      %v5817 = vrot.slane %v5816, 4
      %v5819 = vshll.u32 %v5749, 16
      %v5821 = vrot.slane %v5819, 5
      %v5822 = vsel %vm628, %v5817, %v5821
      %v5824 = vshrl.u32 %v5742, 16
      %v5826 = vrot.slane %v5824, 4
      %v5827 = vshll.u32 %v5742, 16
      %v5829 = vrot.slane %v5827, 5
      %v5830 = vor.u32 %v5826, %v5829
      %v5831 = vrot.slane %v5830, 4
      %v5833 = vshll.u32 %v5750, 16
      %v5835 = vrot.slane %v5833, 5
      %v5836 = vsel %vm628, %v5831, %v5835
      %v5838 = vshrl.u32 %v5743, 16
      %v5840 = vrot.slane %v5838, 4
      %v5841 = vshll.u32 %v5743, 16
      %v5843 = vrot.slane %v5841, 5
      %v5844 = vor.u32 %v5840, %v5843
      %v5845 = vrot.slane %v5844, 4
      %v5847 = vshll.u32 %v5751, 16
      %v5849 = vrot.slane %v5847, 5
      %v5850 = vsel %vm628, %v5845, %v5849
      %v5852 = vshrl.u32 %v5744, 16
      %v5854 = vrot.slane %v5852, 4
      %v5855 = vshll.u32 %v5744, 16
      %v5857 = vrot.slane %v5855, 5
      %v5858 = vor.u32 %v5854, %v5857
      %v5859 = vrot.slane %v5858, 4
      %v5861 = vshll.u32 %v5752, 16
      %v5863 = vrot.slane %v5861, 5
      %v5864 = vsel %vm628, %v5859, %v5863
      %v5865 = vld [vmem:[%s4216] sm:$0xe]
      %v5866 = vld [vmem:[%s4216 + $0x8] sm:$0xe]
      %v5867 = vld [vmem:[%s4216 + $0x10] sm:$0xe]
      %v5868 = vld [vmem:[%s4216 + $0x18] sm:$0xe]
      %v5869 = vld [vmem:[%s4216 + $0x20] sm:$0xe]
      %v5870 = vld [vmem:[%s4216 + $0x28] sm:$0xe]
      %v5871 = vld [vmem:[%s4216 + $0x30] sm:$0xe]
      %v5872 = vld [vmem:[%s4216 + $0x38] sm:$0xe]
      %v5889 = vrot.slane %v5865, 5
      %v5890 = vrot.slane %v5889, 4
      %v5891 = vrot.slane %v5745, 5
      %v5892 = vsel %vm767, %v5890, %v5891
      %v5893 = vrot.slane %v5866, 5
      %v5894 = vrot.slane %v5893, 4
      %v5895 = vrot.slane %v5746, 5
      %v5896 = vsel %vm767, %v5894, %v5895
      %v5897 = vrot.slane %v5867, 5
      %v5898 = vrot.slane %v5897, 4
      %v5899 = vrot.slane %v5747, 5
      %v5900 = vsel %vm767, %v5898, %v5899
      %v5901 = vrot.slane %v5868, 5
      %v5902 = vrot.slane %v5901, 4
      %v5903 = vrot.slane %v5748, 5
      %v5904 = vsel %vm767, %v5902, %v5903
      %v5905 = vrot.slane %v5869, 5
      %v5906 = vrot.slane %v5905, 4
      %v5907 = vrot.slane %v5749, 5
      %v5908 = vsel %vm767, %v5906, %v5907
      %v5909 = vrot.slane %v5870, 5
      %v5910 = vrot.slane %v5909, 4
      %v5911 = vrot.slane %v5750, 5
      %v5912 = vsel %vm767, %v5910, %v5911
      %v5913 = vrot.slane %v5871, 5
      %v5914 = vrot.slane %v5913, 4
      %v5915 = vrot.slane %v5751, 5
      %v5916 = vsel %vm767, %v5914, %v5915
      %v5917 = vrot.slane %v5872, 5
      %v5918 = vrot.slane %v5917, 4
      %v5919 = vrot.slane %v5752, 5
      %v5920 = vsel %vm767, %v5918, %v5919
      %v5921 = vld [vmem:[%s4670] sm:$0xf]
      %v5922 = vld [vmem:[%s4670 + $0x8] sm:$0xf]
      %v5923 = vld [vmem:[%s4670 + $0x10] sm:$0xf]
      %v5924 = vld [vmem:[%s4670 + $0x18] sm:$0xf]
      %v5925 = vld [vmem:[%s4670 + $0x20] sm:$0xf]
      %v5926 = vld [vmem:[%s4670 + $0x28] sm:$0xf]
      %v5927 = vld [vmem:[%s4670 + $0x30] sm:$0xf]
      %v5928 = vld [vmem:[%s4670 + $0x38] sm:$0xf]
      %v5929 = vld [vmem:[%s4670 + $0x4] sm:$0x1]
      %v5930 = vld [vmem:[%s4670 + $0xc] sm:$0x1]
      %v5931 = vld [vmem:[%s4670 + $0x14] sm:$0x1]
      %v5932 = vld [vmem:[%s4670 + $0x1c] sm:$0x1]
      %v5933 = vld [vmem:[%s4670 + $0x24] sm:$0x1]
      %v5934 = vld [vmem:[%s4670 + $0x2c] sm:$0x1]
      %v5935 = vld [vmem:[%s4670 + $0x34] sm:$0x1]
      %v5936 = vld [vmem:[%s4670 + $0x3c] sm:$0x1]
      %v5938 = vshrl.u32 %v5921, 16
      %v5940 = vrot.slane %v5938, 4
      %v5941 = vshll.u32 %v5921, 16
      %v5943 = vrot.slane %v5941, 5
      %v5944 = vor.u32 %v5940, %v5943
      %v5945 = vrot.slane %v5944, 4
      %v5947 = vshll.u32 %v5929, 16
      %v5949 = vrot.slane %v5947, 5
      %v5950 = vsel %vm628, %v5945, %v5949
      %v5952 = vshrl.u32 %v5922, 16
      %v5954 = vrot.slane %v5952, 4
      %v5955 = vshll.u32 %v5922, 16
      %v5957 = vrot.slane %v5955, 5
      %v5958 = vor.u32 %v5954, %v5957
      %v5959 = vrot.slane %v5958, 4
      %v5961 = vshll.u32 %v5930, 16
      %v5963 = vrot.slane %v5961, 5
      %v5964 = vsel %vm628, %v5959, %v5963
      %v5966 = vshrl.u32 %v5923, 16
      %v5968 = vrot.slane %v5966, 4
      %v5969 = vshll.u32 %v5923, 16
      %v5971 = vrot.slane %v5969, 5
      %v5972 = vor.u32 %v5968, %v5971
      %v5973 = vrot.slane %v5972, 4
      %v5975 = vshll.u32 %v5931, 16
      %v5977 = vrot.slane %v5975, 5
      %v5978 = vsel %vm628, %v5973, %v5977
      %v5980 = vshrl.u32 %v5924, 16
      %v5982 = vrot.slane %v5980, 4
      %v5983 = vshll.u32 %v5924, 16
      %v5985 = vrot.slane %v5983, 5
      %v5986 = vor.u32 %v5982, %v5985
      %v5987 = vrot.slane %v5986, 4
      %v5989 = vshll.u32 %v5932, 16
      %v5991 = vrot.slane %v5989, 5
      %v5992 = vsel %vm628, %v5987, %v5991
      %v5994 = vshrl.u32 %v5925, 16
      %v5996 = vrot.slane %v5994, 4
      %v5997 = vshll.u32 %v5925, 16
      %v5999 = vrot.slane %v5997, 5
      %v6000 = vor.u32 %v5996, %v5999
      %v6001 = vrot.slane %v6000, 4
      %v6003 = vshll.u32 %v5933, 16
      %v6005 = vrot.slane %v6003, 5
      %v6006 = vsel %vm628, %v6001, %v6005
      %v6008 = vshrl.u32 %v5926, 16
      %v6010 = vrot.slane %v6008, 4
      %v6011 = vshll.u32 %v5926, 16
      %v6013 = vrot.slane %v6011, 5
      %v6014 = vor.u32 %v6010, %v6013
      %v6015 = vrot.slane %v6014, 4
      %v6017 = vshll.u32 %v5934, 16
      %v6019 = vrot.slane %v6017, 5
      %v6020 = vsel %vm628, %v6015, %v6019
      %v6022 = vshrl.u32 %v5927, 16
      %v6024 = vrot.slane %v6022, 4
      %v6025 = vshll.u32 %v5927, 16
      %v6027 = vrot.slane %v6025, 5
      %v6028 = vor.u32 %v6024, %v6027
      %v6029 = vrot.slane %v6028, 4
      %v6031 = vshll.u32 %v5935, 16
      %v6033 = vrot.slane %v6031, 5
      %v6034 = vsel %vm628, %v6029, %v6033
      %v6036 = vshrl.u32 %v5928, 16
      %v6038 = vrot.slane %v6036, 4
      %v6039 = vshll.u32 %v5928, 16
      %v6041 = vrot.slane %v6039, 5
      %v6042 = vor.u32 %v6038, %v6041
      %v6043 = vrot.slane %v6042, 4
      %v6045 = vshll.u32 %v5936, 16
      %v6047 = vrot.slane %v6045, 5
      %v6048 = vsel %vm628, %v6043, %v6047
      %v6049 = vld [vmem:[%s4670] sm:$0xe]
      %v6050 = vld [vmem:[%s4670 + $0x8] sm:$0xe]
      %v6051 = vld [vmem:[%s4670 + $0x10] sm:$0xe]
      %v6052 = vld [vmem:[%s4670 + $0x18] sm:$0xe]
      %v6053 = vld [vmem:[%s4670 + $0x20] sm:$0xe]
      %v6054 = vld [vmem:[%s4670 + $0x28] sm:$0xe]
      %v6055 = vld [vmem:[%s4670 + $0x30] sm:$0xe]
      %v6056 = vld [vmem:[%s4670 + $0x38] sm:$0xe]
      %v6073 = vrot.slane %v6049, 5
      %v6074 = vrot.slane %v6073, 4
      %v6075 = vrot.slane %v5929, 5
      %v6076 = vsel %vm767, %v6074, %v6075
      %v6077 = vrot.slane %v6050, 5
      %v6078 = vrot.slane %v6077, 4
      %v6079 = vrot.slane %v5930, 5
      %v6080 = vsel %vm767, %v6078, %v6079
      %v6081 = vrot.slane %v6051, 5
      %v6082 = vrot.slane %v6081, 4
      %v6083 = vrot.slane %v5931, 5
      %v6084 = vsel %vm767, %v6082, %v6083
      %v6085 = vrot.slane %v6052, 5
      %v6086 = vrot.slane %v6085, 4
      %v6087 = vrot.slane %v5932, 5
      %v6088 = vsel %vm767, %v6086, %v6087
      %v6089 = vrot.slane %v6053, 5
      %v6090 = vrot.slane %v6089, 4
      %v6091 = vrot.slane %v5933, 5
      %v6092 = vsel %vm767, %v6090, %v6091
      %v6093 = vrot.slane %v6054, 5
      %v6094 = vrot.slane %v6093, 4
      %v6095 = vrot.slane %v5934, 5
      %v6096 = vsel %vm767, %v6094, %v6095
      %v6097 = vrot.slane %v6055, 5
      %v6098 = vrot.slane %v6097, 4
      %v6099 = vrot.slane %v5935, 5
      %v6100 = vsel %vm767, %v6098, %v6099
      %v6101 = vrot.slane %v6056, 5
      %v6102 = vrot.slane %v6101, 4
      %v6103 = vrot.slane %v5936, 5
      %v6104 = vsel %vm767, %v6102, %v6103
      %v6113 = vunpack.c.l.b16 %v5553
      %v6114 = vunpack.c.l.b16 %v5554
      %v6115 = vunpack.c.l.b16 %v5555
      %v6116 = vunpack.c.l.b16 %v5556
      %v6117 = vunpack.c.l.b16 %v5557
      %v6118 = vunpack.c.l.b16 %v5558
      %v6119 = vunpack.c.l.b16 %v5559
      %v6120 = vunpack.c.l.b16 %v5560
      %v6121 = vpack.c.b16 %v6114, %v6113
      %v6122 = vpack.c.b16 %v6116, %v6115
      %v6123 = vpack.c.b16 %v6118, %v6117
      %v6124 = vpack.c.b16 %v6120, %v6119
      %v6125 = vunpack.c.l.b16 %v5582
      %v6126 = vunpack.c.l.b16 %v5596
      %v6127 = vunpack.c.l.b16 %v5610
      %v6128 = vunpack.c.l.b16 %v5624
      %v6129 = vunpack.c.l.b16 %v5638
      %v6130 = vunpack.c.l.b16 %v5652
      %v6131 = vunpack.c.l.b16 %v5666
      %v6132 = vunpack.c.l.b16 %v5680
      %v6133 = vpack.c.b16 %v6126, %v6125
      %v6134 = vpack.c.b16 %v6128, %v6127
      %v6135 = vpack.c.b16 %v6130, %v6129
      %v6136 = vpack.c.b16 %v6132, %v6131
      %6137 = vrot.lane.b32.xlu0 %v6133, 32
      %v6138 = vpop.permute.xlu0 %6137
      %6139 = vrot.lane.b32.xlu0 %v6134, 32
      %v6140 = vpop.permute.xlu0 %6139
      %6141 = vrot.lane.b32.xlu0 %v6135, 32
      %v6142 = vpop.permute.xlu0 %6141
      %6143 = vrot.lane.b32.xlu0 %v6136, 32
      %v6144 = vpop.permute.xlu0 %6143
      %v6145 = vunpack.c.l.b16 %v5708
      %v6146 = vunpack.c.l.b16 %v5712
      %v6147 = vunpack.c.l.b16 %v5716
      %v6148 = vunpack.c.l.b16 %v5720
      %v6149 = vunpack.c.l.b16 %v5724
      %v6150 = vunpack.c.l.b16 %v5728
      %v6151 = vunpack.c.l.b16 %v5732
      %v6152 = vunpack.c.l.b16 %v5736
      %v6153 = vpack.c.b16 %v6146, %v6145
      %v6154 = vpack.c.b16 %v6148, %v6147
      %v6155 = vpack.c.b16 %v6150, %v6149
      %v6156 = vpack.c.b16 %v6152, %v6151
      %6157 = vrot.lane.b32.xlu0 %v6153, 64
      %v6158 = vpop.permute.xlu0 %6157
      %6159 = vrot.lane.b32.xlu0 %v6154, 64
      %v6160 = vpop.permute.xlu0 %6159
      %6161 = vrot.lane.b32.xlu0 %v6155, 64
      %v6162 = vpop.permute.xlu0 %6161
      %6163 = vrot.lane.b32.xlu0 %v6156, 64
      %v6164 = vpop.permute.xlu0 %6163
      %v6173 = vunpack.c.l.b16 %v5737
      %v6174 = vunpack.c.l.b16 %v5738
      %v6175 = vunpack.c.l.b16 %v5739
      %v6176 = vunpack.c.l.b16 %v5740
      %v6177 = vunpack.c.l.b16 %v5741
      %v6178 = vunpack.c.l.b16 %v5742
      %v6179 = vunpack.c.l.b16 %v5743
      %v6180 = vunpack.c.l.b16 %v5744
      %v6181 = vpack.c.b16 %v6174, %v6173
      %v6182 = vpack.c.b16 %v6176, %v6175
      %v6183 = vpack.c.b16 %v6178, %v6177
      %v6184 = vpack.c.b16 %v6180, %v6179
      %6185 = vrot.lane.b32.xlu0 %v6181, 96
      %v6186 = vpop.permute.xlu0 %6185
      %6187 = vrot.lane.b32.xlu0 %v6182, 96
      %v6188 = vpop.permute.xlu0 %6187
      %6189 = vrot.lane.b32.xlu0 %v6183, 96
      %v6190 = vpop.permute.xlu0 %6189
      %6191 = vrot.lane.b32.xlu0 %v6184, 96
      %v6192 = vpop.permute.xlu0 %6191
      %v6193 = vunpack.c.l.b16 %v5766
      %v6194 = vunpack.c.l.b16 %v5780
      %v6195 = vunpack.c.l.b16 %v5794
      %v6196 = vunpack.c.l.b16 %v5808
      %v6197 = vunpack.c.l.b16 %v5822
      %v6198 = vunpack.c.l.b16 %v5836
      %v6199 = vunpack.c.l.b16 %v5850
      %v6200 = vunpack.c.l.b16 %v5864
      %v6201 = vpack.c.b16 %v6194, %v6193
      %v6202 = vpack.c.b16 %v6196, %v6195
      %v6203 = vpack.c.b16 %v6198, %v6197
      %v6204 = vpack.c.b16 %v6200, %v6199
      %v6205 = vunpack.c.l.b16 %v5892
      %v6206 = vunpack.c.l.b16 %v5896
      %v6207 = vunpack.c.l.b16 %v5900
      %v6208 = vunpack.c.l.b16 %v5904
      %v6209 = vunpack.c.l.b16 %v5908
      %v6210 = vunpack.c.l.b16 %v5912
      %v6211 = vunpack.c.l.b16 %v5916
      %v6212 = vunpack.c.l.b16 %v5920
      %v6213 = vpack.c.b16 %v6206, %v6205
      %v6214 = vpack.c.b16 %v6208, %v6207
      %v6215 = vpack.c.b16 %v6210, %v6209
      %v6216 = vpack.c.b16 %v6212, %v6211
      %6217 = vrot.lane.b32.xlu0 %v6213, 32
      %v6218 = vpop.permute.xlu0 %6217
      %6219 = vrot.lane.b32.xlu0 %v6214, 32
      %v6220 = vpop.permute.xlu0 %6219
      %6221 = vrot.lane.b32.xlu0 %v6215, 32
      %v6222 = vpop.permute.xlu0 %6221
      %6223 = vrot.lane.b32.xlu0 %v6216, 32
      %v6224 = vpop.permute.xlu0 %6223
      %v6233 = vunpack.c.l.b16 %v5921
      %v6234 = vunpack.c.l.b16 %v5922
      %v6235 = vunpack.c.l.b16 %v5923
      %v6236 = vunpack.c.l.b16 %v5924
      %v6237 = vunpack.c.l.b16 %v5925
      %v6238 = vunpack.c.l.b16 %v5926
      %v6239 = vunpack.c.l.b16 %v5927
      %v6240 = vunpack.c.l.b16 %v5928
      %v6241 = vpack.c.b16 %v6234, %v6233
      %v6242 = vpack.c.b16 %v6236, %v6235
      %v6243 = vpack.c.b16 %v6238, %v6237
      %v6244 = vpack.c.b16 %v6240, %v6239
      %6245 = vrot.lane.b32.xlu0 %v6241, 64
      %v6246 = vpop.permute.xlu0 %6245
      %6247 = vrot.lane.b32.xlu0 %v6242, 64
      %v6248 = vpop.permute.xlu0 %6247
      %6249 = vrot.lane.b32.xlu0 %v6243, 64
      %v6250 = vpop.permute.xlu0 %6249
      %6251 = vrot.lane.b32.xlu0 %v6244, 64
      %v6252 = vpop.permute.xlu0 %6251
      %v6253 = vunpack.c.l.b16 %v5950
      %v6254 = vunpack.c.l.b16 %v5964
      %v6255 = vunpack.c.l.b16 %v5978
      %v6256 = vunpack.c.l.b16 %v5992
      %v6257 = vunpack.c.l.b16 %v6006
      %v6258 = vunpack.c.l.b16 %v6020
      %v6259 = vunpack.c.l.b16 %v6034
      %v6260 = vunpack.c.l.b16 %v6048
      %v6261 = vpack.c.b16 %v6254, %v6253
      %v6262 = vpack.c.b16 %v6256, %v6255
      %v6263 = vpack.c.b16 %v6258, %v6257
      %v6264 = vpack.c.b16 %v6260, %v6259
      %6265 = vrot.lane.b32.xlu0 %v6261, 96
      %v6266 = vpop.permute.xlu0 %6265
      %6267 = vrot.lane.b32.xlu0 %v6262, 96
      %v6268 = vpop.permute.xlu0 %6267
      %6269 = vrot.lane.b32.xlu0 %v6263, 96
      %v6270 = vpop.permute.xlu0 %6269
      %6271 = vrot.lane.b32.xlu0 %v6264, 96
      %v6272 = vpop.permute.xlu0 %6271
      %v6273 = vunpack.c.l.b16 %v6076
      %v6274 = vunpack.c.l.b16 %v6080
      %v6275 = vunpack.c.l.b16 %v6084
      %v6276 = vunpack.c.l.b16 %v6088
      %v6277 = vunpack.c.l.b16 %v6092
      %v6278 = vunpack.c.l.b16 %v6096
      %v6279 = vunpack.c.l.b16 %v6100
      %v6280 = vunpack.c.l.b16 %v6104
      %v6281 = vpack.c.b16 %v6274, %v6273
      %v6282 = vpack.c.b16 %v6276, %v6275
      %v6283 = vpack.c.b16 %v6278, %v6277
      %v6284 = vpack.c.b16 %v6280, %v6279
      %v6287 = vsel %vm1349, %v6121, %v6138
      %v6290 = vsel %vm1349, %v6122, %v6140
      %v6293 = vsel %vm1349, %v6123, %v6142
      %v6296 = vsel %vm1349, %v6124, %v6144
      %v6298 = vsel %vm1362, %v6287, %v6158
      %v6300 = vsel %vm1362, %v6290, %v6160
      %v6302 = vsel %vm1362, %v6293, %v6162
      %v6304 = vsel %vm1362, %v6296, %v6164
      %v6306 = vsel %vm1371, %v6298, %v6186
      %v6309 = vsel %vm1371, %v6300, %v6188
      %v6312 = vsel %vm1371, %v6302, %v6190
      %v6315 = vsel %vm1371, %v6304, %v6192
      %v6319 = vsel %vm1349, %v6201, %v6218
      %v6322 = vsel %vm1349, %v6202, %v6220
      %v6325 = vsel %vm1349, %v6203, %v6222
      %v6328 = vsel %vm1349, %v6204, %v6224
      %v6330 = vsel %vm1362, %v6319, %v6246
      %v6332 = vsel %vm1362, %v6322, %v6248
      %v6334 = vsel %vm1362, %v6325, %v6250
      %v6336 = vsel %vm1362, %v6328, %v6252
      %v6338 = vsel %vm1371, %v6330, %v6266
      %v6341 = vsel %vm1371, %v6332, %v6268
      %v6344 = vsel %vm1371, %v6334, %v6270
      %v6347 = vsel %vm1371, %v6336, %v6272
      %v6350 = vlaneseq
      %v6351 = vshrl.u32 %v6350, 7
      %v6352 = vsub.s32 0, %v6351
      %v6353 = vrot.slane %v5552, %v6352
      %v6391 = vunpack.c.l.b16 %v5515
      %v6392 = vunpack.c.l.b16 %v5516
      %v6393 = vunpack.c.l.b16 %v5517
      %v6394 = vunpack.c.l.b16 %v5518
      %v6395 = vunpack.c.l.b16 %v5519
      %v6396 = vunpack.c.l.b16 %v5520
      %v6397 = vunpack.c.l.b16 %v5521
      %v6398 = vunpack.c.l.b16 %v5522
      %v6399 = vunpack.c.l.b16 %v5523
      %v6400 = vunpack.c.l.b16 %v5524
      %v6401 = vunpack.c.l.b16 %v5525
      %v6402 = vunpack.c.l.b16 %v5526
      %v6403 = vunpack.c.l.b16 %v5527
      %v6404 = vunpack.c.l.b16 %v5528
      %v6405 = vunpack.c.l.b16 %v5529
      %v6406 = vunpack.c.l.b16 %v5530
      %v6407 = vunpack.c.l.b16 %v5531
      %v6408 = vunpack.c.l.b16 %v5532
      %v6409 = vunpack.c.l.b16 %v5533
      %v6410 = vunpack.c.l.b16 %v5534
      %v6411 = vunpack.c.l.b16 %v5535
      %v6412 = vunpack.c.l.b16 %v5536
      %v6413 = vunpack.c.l.b16 %v5537
      %v6414 = vunpack.c.l.b16 %v5538
      %v6415 = vunpack.c.l.b16 %v5539
      %v6416 = vunpack.c.l.b16 %v5540
      %v6417 = vunpack.c.l.b16 %v5541
      %v6418 = vunpack.c.l.b16 %v5542
      %v6419 = vunpack.c.l.b16 %v5543
      %v6420 = vunpack.c.l.b16 %v5544
      %v6421 = vunpack.c.l.b16 %v5545
      %v6422 = vunpack.c.l.b16 %v5546
      %v6423 = vunpack.c.l.b16 %v5547
      %v6424 = vunpack.c.l.b16 %v5548
      %v6425 = vunpack.c.l.b16 %v5549
      %v6426 = vunpack.c.l.b16 %v5550
      %v6427 = vpack.c.b16 %v6392, %v6391
      %v6428 = vpack.c.b16 %v6394, %v6393
      %v6429 = vpack.c.b16 %v6396, %v6395
      %v6430 = vpack.c.b16 %v6398, %v6397
      %v6431 = vpack.c.b16 %v6400, %v6399
      %v6432 = vpack.c.b16 %v6402, %v6401
      %v6433 = vpack.c.b16 %v6404, %v6403
      %v6434 = vpack.c.b16 %v6406, %v6405
      %v6435 = vpack.c.b16 %v6408, %v6407
      %v6436 = vpack.c.b16 %v6410, %v6409
      %v6437 = vpack.c.b16 %v6412, %v6411
      %v6438 = vpack.c.b16 %v6414, %v6413
      %v6439 = vpack.c.b16 %v6416, %v6415
      %v6440 = vpack.c.b16 %v6418, %v6417
      %v6441 = vpack.c.b16 %v6420, %v6419
      %v6442 = vpack.c.b16 %v6422, %v6421
      %v6443 = vpack.c.b16 %v6424, %v6423
      %v6444 = vpack.c.b16 %v6426, %v6425
      %v6464 = vsel %vm1349, %v6281, 0
      %v6467 = vsel %vm1349, %v6282, 0
      %v6470 = vsel %vm1349, %v6283, 0
      %v6473 = vsel %vm1349, %v6284, 0
      %6475 = vmatprep.subr.bf16.mxu0 0
      %6476 = vmatpush1.bf16.msra.mxu0 %v6427
      %6477 = vmatprep.subr.bf16.mxu0 0
      %6478 = vmatpush1.bf16.msra.mxu0 %v6428
      %6479 = vmatprep.subr.bf16.mxu0 0
      %6480 = vmatpush1.bf16.msra.mxu0 %v6429
      %6481 = vmatprep.subr.bf16.mxu0 0
      %6482 = vmatpush1.bf16.msra.mxu0 %v6430
      %6483 = vmatprep.subr.bf16.mxu0 0
      %6484 = vmatpush1.bf16.msra.mxu0 %v6431
      %6485 = vmatprep.subr.bf16.mxu0 0
      %6486 = vmatpush1.bf16.msra.mxu0 %v6432
      %6487 = vmatprep.subr.bf16.mxu0 0
      %6488 = vmatpush1.bf16.msra.mxu0 %v6433
      %6489 = vmatprep.subr.bf16.mxu0 0
      %6490 = vmatpush1.bf16.msra.mxu0 %v6434
      %6491 = vmatprep.subr.bf16.mxu0 0
      %6492 = vmatpush1.bf16.msra.mxu0 %v6435
      %6493 = vmatprep.subr.bf16.mxu0 0
      %6494 = vmatpush1.bf16.msra.mxu0 %v6436
      %6495 = vmatprep.subr.bf16.mxu0 0
      %6496 = vmatpush1.bf16.msra.mxu0 %v6437
      %6497 = vmatprep.subr.bf16.mxu0 0
      %6498 = vmatpush1.bf16.msra.mxu0 %v6438
      %6499 = vmatprep.subr.bf16.mxu0 0
      %6500 = vmatpush1.bf16.msra.mxu0 %v6439
      %6501 = vmatprep.subr.bf16.mxu0 0
      %6502 = vmatpush1.bf16.msra.mxu0 %v6440
      %6503 = vmatprep.subr.bf16.mxu0 0
      %6504 = vmatpush1.bf16.msra.mxu0 %v6441
      %6505 = vmatprep.subr.bf16.mxu0 0
      %6506 = vmatpush1.bf16.msra.mxu0 %v6442
      %6507 = vmatprep.mubr.bf16.mxu0 %v6338
      %6508 = vmatmul.mubr.bf16.gmra.mrb[0].mxu0 %v6306
      %v6509 = vpop.f32.mrb[0].mxu0
      %v6510 = vadd.f32 %v6353, %v6509
      %v6511 = vpop.f32.mrb[0].mxu0
      %v6512 = vpop.f32.mrb[0].mxu0
      %v6513 = vadd.f32 %v6353, %v6512
      %v6514 = vpop.f32.mrb[0].mxu0
      %6515 = vmatprep.mubr.bf16.mxu0 %v6341
      %6516 = vmatmul.mubr.bf16.gmra.mrb[0].mxu0 %v6309
      %v6517 = vpop.f32.mrb[0].mxu0
      %v6518 = vadd.f32 %v6353, %v6517
      %v6519 = vpop.f32.mrb[0].mxu0
      %v6520 = vpop.f32.mrb[0].mxu0
      %v6521 = vadd.f32 %v6353, %v6520
      %v6522 = vpop.f32.mrb[0].mxu0
      %6523 = vmatprep.mubr.bf16.mxu0 %v6344
      %6524 = vmatmul.mubr.bf16.gmra.mrb[0].mxu0 %v6312
      %v6525 = vpop.f32.mrb[0].mxu0
      %v6526 = vadd.f32 %v6353, %v6525
      %v6527 = vpop.f32.mrb[0].mxu0
      %v6528 = vpop.f32.mrb[0].mxu0
      %v6529 = vadd.f32 %v6353, %v6528
      %v6530 = vpop.f32.mrb[0].mxu0
      %6531 = vmatprep.mubr.bf16.mxu0 %v6347
      %6532 = vmatmul.mubr.bf16.gmra.mrb[0].mxu0 %v6315
      %v6533 = vpop.f32.mrb[0].mxu0
      %v6534 = vadd.f32 %v6353, %v6533
      %v6535 = vpop.f32.mrb[0].mxu0
      %v6536 = vpop.f32.mrb[0].mxu0
      %v6537 = vadd.f32 %v6353, %v6536
      %v6538 = vpop.f32.mrb[0].mxu0
      %6539 = vdwg.mxu0
      %6540 = vmatprep.subr.bf16.mxu0 0
      %6541 = vmatpush1.bf16.msra.mxu0 %v6443
      %6542 = vmatprep.subr.bf16.mxu0 0
      %6543 = vmatpush1.bf16.msra.mxu0 %v6444
      %6544 = vmatprep.subr.bf16.mxu0 0
      %6545 = vmatpush1.bf16.msra.mxu0 0
      %6546 = vmatprep.subr.bf16.mxu0 0
      %6547 = vmatpush1.bf16.msra.mxu0 0
      %6548 = vmatprep.subr.bf16.mxu0 0
      %6549 = vmatpush1.bf16.msra.mxu0 0
      %6550 = vmatprep.subr.bf16.mxu0 0
      %6551 = vmatpush1.bf16.msra.mxu0 0
      %6552 = vmatprep.subr.bf16.mxu0 0
      %6553 = vmatpush1.bf16.msra.mxu0 0
      %6554 = vmatprep.subr.bf16.mxu0 0
      %6555 = vmatpush1.bf16.msra.mxu0 0
      %6556 = vmatprep.subr.bf16.mxu0 0
      %6557 = vmatpush1.bf16.msra.mxu0 0
      %6558 = vmatprep.subr.bf16.mxu0 0
      %6559 = vmatpush1.bf16.msra.mxu0 0
      %6560 = vmatprep.subr.bf16.mxu0 0
      %6561 = vmatpush1.bf16.msra.mxu0 0
      %6562 = vmatprep.subr.bf16.mxu0 0
      %6563 = vmatpush1.bf16.msra.mxu0 0
      %6564 = vmatprep.subr.bf16.mxu0 0
      %6565 = vmatpush1.bf16.msra.mxu0 0
      %6566 = vmatprep.subr.bf16.mxu0 0
      %6567 = vmatpush1.bf16.msra.mxu0 0
      %6568 = vmatprep.subr.bf16.mxu0 0
      %6569 = vmatpush1.bf16.msra.mxu0 0
      %6570 = vmatprep.subr.bf16.mxu0 0
      %6571 = vmatpush1.bf16.msra.mxu0 0
      %6572 = vmatprep.mubr.bf16.mxu0 0
      %6573 = vmatmul.mubr.bf16.gmra.mrb[0].mxu0 %v6464
      %v6574 = vpop.f32.mrb[0].mxu0
      %v6575 = vadd.f32 %v6510, %v6574
      %v6576 = vpop.f32.mrb[0].mxu0
      %v6577 = vpop.f32.mrb[0].mxu0
      %v6578 = vadd.f32 %v6513, %v6577
      %v6579 = vpop.f32.mrb[0].mxu0
      %6580 = vmatprep.mubr.bf16.mxu0 0
      %6581 = vmatmul.mubr.bf16.gmra.mrb[0].mxu0 %v6467
      %v6582 = vpop.f32.mrb[0].mxu0
      %v6583 = vadd.f32 %v6518, %v6582
      %v6584 = vpop.f32.mrb[0].mxu0
      %v6585 = vpop.f32.mrb[0].mxu0
      %v6586 = vadd.f32 %v6521, %v6585
      %v6587 = vpop.f32.mrb[0].mxu0
      %6588 = vmatprep.mubr.bf16.mxu0 0
      %6589 = vmatmul.mubr.bf16.gmra.mrb[0].mxu0 %v6470
      %v6590 = vpop.f32.mrb[0].mxu0
      %v6591 = vadd.f32 %v6526, %v6590
      %v6592 = vpop.f32.mrb[0].mxu0
      %v6593 = vpop.f32.mrb[0].mxu0
      %v6594 = vadd.f32 %v6529, %v6593
      %v6595 = vpop.f32.mrb[0].mxu0
      %6596 = vmatprep.mubr.bf16.mxu0 0
      %6597 = vmatmul.mubr.bf16.gmra.mrb[0].mxu0 %v6473
      %v6598 = vpop.f32.mrb[0].mxu0
      %v6599 = vadd.f32 %v6534, %v6598
      %v6600 = vpop.f32.mrb[0].mxu0
      %v6601 = vpop.f32.mrb[0].mxu0
      %v6602 = vadd.f32 %v6537, %v6601
      %v6603 = vpop.f32.mrb[0].mxu0
      %6604 = vdwg.mxu0
      %v6605 = vmax.f32 %v6575, 0.0
      %v6606 = vmax.f32 %v6578, 0.0
      %v6607 = vmax.f32 %v6583, 0.0
      %v6608 = vmax.f32 %v6586, 0.0
      %v6609 = vmax.f32 %v6591, 0.0
      %v6610 = vmax.f32 %v6594, 0.0
      %v6611 = vmax.f32 %v6599, 0.0
      %v6612 = vmax.f32 %v6602, 0.0
      %v6613 = vpack.c.bf16 %v6606, %v6605
      %v6614 = vpack.c.bf16 %v6608, %v6607
      %v6615 = vpack.c.bf16 %v6610, %v6609
      %v6616 = vpack.c.bf16 %v6612, %v6611
      %v6621 = vunpack.c.l.b16 %v6613
      %v6622 = vunpack.c.h.b16 %v6613
      %v6623 = vunpack.c.l.b16 %v6614
      %v6624 = vunpack.c.h.b16 %v6614
      %v6625 = vunpack.c.l.b16 %v6615
      %v6626 = vunpack.c.h.b16 %v6615
      %v6627 = vunpack.c.l.b16 %v6616
      %v6628 = vunpack.c.h.b16 %v6616
      %v6629 = vpack.c.b16 %v6621, %v6621
      %v6630 = vpack.c.b16 %v6622, %v6622
      %v6631 = vpack.c.b16 %v6623, %v6623
      %v6632 = vpack.c.b16 %v6624, %v6624
      %v6633 = vpack.c.b16 %v6625, %v6625
      %v6634 = vpack.c.b16 %v6626, %v6626
      %v6635 = vpack.c.b16 %v6627, %v6627
      %v6636 = vpack.c.b16 %v6628, %v6628
      %v6638 = vshrl.u32 %v6629, 16
      %v6640 = vrot.slane %v6638, 7
      %v6641 = vshll.u32 %v6629, 16
      %v6643 = vor.u32 %v6640, %v6641
      %v6644 = vrot.slane %v6640, 4
      %v6646 = vshrl.u32 %v6630, 16
      %v6648 = vrot.slane %v6646, 7
      %v6649 = vshll.u32 %v6630, 16
      %v6651 = vor.u32 %v6648, %v6649
      %v6652 = vrot.slane %v6648, 4
      %v6654 = vshrl.u32 %v6631, 16
      %v6656 = vrot.slane %v6654, 7
      %v6657 = vshll.u32 %v6631, 16
      %v6659 = vor.u32 %v6656, %v6657
      %v6660 = vrot.slane %v6656, 4
      %v6662 = vshrl.u32 %v6632, 16
      %v6664 = vrot.slane %v6662, 7
      %v6665 = vshll.u32 %v6632, 16
      %v6667 = vor.u32 %v6664, %v6665
      %v6668 = vrot.slane %v6664, 4
      %v6670 = vshrl.u32 %v6633, 16
      %v6672 = vrot.slane %v6670, 7
      %v6673 = vshll.u32 %v6633, 16
      %v6675 = vor.u32 %v6672, %v6673
      %v6676 = vrot.slane %v6672, 4
      %v6678 = vshrl.u32 %v6634, 16
      %v6680 = vrot.slane %v6678, 7
      %v6681 = vshll.u32 %v6634, 16
      %v6683 = vor.u32 %v6680, %v6681
      %v6684 = vrot.slane %v6680, 4
      %v6686 = vshrl.u32 %v6635, 16
      %v6688 = vrot.slane %v6686, 7
      %v6689 = vshll.u32 %v6635, 16
      %v6691 = vor.u32 %v6688, %v6689
      %v6692 = vrot.slane %v6688, 4
      %v6694 = vshrl.u32 %v6636, 16
      %v6696 = vrot.slane %v6694, 7
      %v6697 = vshll.u32 %v6636, 16
      %v6699 = vor.u32 %v6696, %v6697
      %v6700 = vrot.slane %v6696, 4
      %v6717 = vsel %vm521, %v6643, %v5737
      %6718 = vst [vmem:[%s4216] sm:$0xf] %v6717
      %v6719 = vld [vmem:[%s4216 + $0x4] sm:$0x1]
      %v6720 = vsel %vm527, %v6644, %v6719
      %6721 = vst [vmem:[%s4216 + $0x4] sm:$0x1] %v6720
      %v6722 = vld [vmem:[%s4216 + $0x8] sm:$0xf]
      %v6723 = vsel %vm521, %v6651, %v6722
      %6724 = vst [vmem:[%s4216 + $0x8] sm:$0xf] %v6723
      %v6725 = vld [vmem:[%s4216 + $0xc] sm:$0x1]
      %v6726 = vsel %vm527, %v6652, %v6725
      %6727 = vst [vmem:[%s4216 + $0xc] sm:$0x1] %v6726
      %v6728 = vld [vmem:[%s4216 + $0x10] sm:$0xf]
      %v6729 = vsel %vm521, %v6659, %v6728
      %6730 = vst [vmem:[%s4216 + $0x10] sm:$0xf] %v6729
      %v6731 = vld [vmem:[%s4216 + $0x14] sm:$0x1]
      %v6732 = vsel %vm527, %v6660, %v6731
      %6733 = vst [vmem:[%s4216 + $0x14] sm:$0x1] %v6732
      %v6734 = vld [vmem:[%s4216 + $0x18] sm:$0xf]
      %v6735 = vsel %vm521, %v6667, %v6734
      %6736 = vst [vmem:[%s4216 + $0x18] sm:$0xf] %v6735
      %v6737 = vld [vmem:[%s4216 + $0x1c] sm:$0x1]
      %v6738 = vsel %vm527, %v6668, %v6737
      %6739 = vst [vmem:[%s4216 + $0x1c] sm:$0x1] %v6738
      %v6740 = vld [vmem:[%s4216 + $0x20] sm:$0xf]
      %v6741 = vsel %vm521, %v6675, %v6740
      %6742 = vst [vmem:[%s4216 + $0x20] sm:$0xf] %v6741
      %v6743 = vld [vmem:[%s4216 + $0x24] sm:$0x1]
      %v6744 = vsel %vm527, %v6676, %v6743
      %6745 = vst [vmem:[%s4216 + $0x24] sm:$0x1] %v6744
      %v6746 = vld [vmem:[%s4216 + $0x28] sm:$0xf]
      %v6747 = vsel %vm521, %v6683, %v6746
      %6748 = vst [vmem:[%s4216 + $0x28] sm:$0xf] %v6747
      %v6749 = vld [vmem:[%s4216 + $0x2c] sm:$0x1]
      %v6750 = vsel %vm527, %v6684, %v6749
      %6751 = vst [vmem:[%s4216 + $0x2c] sm:$0x1] %v6750
      %v6752 = vld [vmem:[%s4216 + $0x30] sm:$0xf]
      %v6753 = vsel %vm521, %v6691, %v6752
      %6754 = vst [vmem:[%s4216 + $0x30] sm:$0xf] %v6753
      %v6755 = vld [vmem:[%s4216 + $0x34] sm:$0x1]
      %v6756 = vsel %vm527, %v6692, %v6755
      %6757 = vst [vmem:[%s4216 + $0x34] sm:$0x1] %v6756
      %v6758 = vld [vmem:[%s4216 + $0x38] sm:$0xf]
      %v6759 = vsel %vm521, %v6699, %v6758
      %6760 = vst [vmem:[%s4216 + $0x38] sm:$0xf] %v6759
      %v6761 = vld [vmem:[%s4216 + $0x3c] sm:$0x1]
      %v6762 = vsel %vm527, %v6700, %v6761
      %6763 = vst [vmem:[%s4216 + $0x3c] sm:$0x1] %v6762
      %s6764 = scalar_lea.vmem %s5, 288
      %v6765 = vld [vmem:[%s6764] sm:$0xf]
      %v6766 = vld [vmem:[%s6764 + $0x4] sm:$0xf]
      %v6767 = vld [vmem:[%s6764 + $0x8] sm:$0xf]
      %v6768 = vld [vmem:[%s6764 + $0xc] sm:$0xf]
      %v6769 = vld [vmem:[%s6764 + $0x10] sm:$0xf]
      %v6770 = vld [vmem:[%s6764 + $0x14] sm:$0xf]
      %v6771 = vld [vmem:[%s6764 + $0x18] sm:$0xf]
      %v6772 = vld [vmem:[%s6764 + $0x1c] sm:$0xf]
      %v6773 = vld [vmem:[%s6764 + $0x20] sm:$0xf]
      %v6774 = vld [vmem:[%s6764 + $0x24] sm:$0xf]
      %v6775 = vld [vmem:[%s6764 + $0x28] sm:$0xf]
      %v6776 = vld [vmem:[%s6764 + $0x2c] sm:$0xf]
      %v6777 = vld [vmem:[%s6764 + $0x30] sm:$0xf]
      %v6778 = vld [vmem:[%s6764 + $0x34] sm:$0xf]
      %v6779 = vld [vmem:[%s6764 + $0x38] sm:$0xf]
      %v6780 = vld [vmem:[%s6764 + $0x3c] sm:$0xf]
      %v6781 = vld [vmem:[%s6764 + $0x40] sm:$0xf]
      %v6782 = vld [vmem:[%s6764 + $0x44] sm:$0xf]
      %v6783 = vld [vmem:[%s6764 + $0x48] sm:$0xf]
      %v6784 = vld [vmem:[%s6764 + $0x4c] sm:$0xf]
      %v6785 = vld [vmem:[%s6764 + $0x50] sm:$0xf]
      %v6786 = vld [vmem:[%s6764 + $0x54] sm:$0xf]
      %v6787 = vld [vmem:[%s6764 + $0x58] sm:$0xf]
      %v6788 = vld [vmem:[%s6764 + $0x5c] sm:$0xf]
      %v6789 = vld [vmem:[%s6764 + $0x60] sm:$0xf]
      %v6790 = vld [vmem:[%s6764 + $0x64] sm:$0xf]
      %v6791 = vld [vmem:[%s6764 + $0x68] sm:$0xf]
      %v6792 = vld [vmem:[%s6764 + $0x6c] sm:$0xf]
      %v6793 = vld [vmem:[%s6764 + $0x70] sm:$0xf]
      %v6794 = vld [vmem:[%s6764 + $0x74] sm:$0xf]
      %v6795 = vld [vmem:[%s6764 + $0x78] sm:$0xf]
      %v6796 = vld [vmem:[%s6764 + $0x7c] sm:$0xf]
      %v6797 = vld [vmem:[%s6764 + $0x80] sm:$0xf]
      %v6798 = vld [vmem:[%s6764 + $0x84] sm:$0xf]
      %v6799 = vld [vmem:[%s6764 + $0x88] sm:$0xf]
      %v6800 = vld [vmem:[%s6764 + $0x8c] sm:$0xf]
      %s6801 = scalar_lea.vmem %s6, 2
      %v6802 = vld [vmem:[%s6801] sm:$0x1]
      %v6803 = vld [vmem:[#allocation3] sm:$0xf]
      %v6804 = vld [vmem:[#allocation3 + $0x8] sm:$0xf]
      %v6805 = vld [vmem:[#allocation3 + $0x10] sm:$0xf]
      %v6806 = vld [vmem:[#allocation3 + $0x18] sm:$0xf]
      %v6807 = vld [vmem:[#allocation3 + $0x20] sm:$0xf]
      %v6808 = vld [vmem:[#allocation3 + $0x28] sm:$0xf]
      %v6809 = vld [vmem:[#allocation3 + $0x30] sm:$0xf]
      %v6810 = vld [vmem:[#allocation3 + $0x38] sm:$0xf]
      %v6811 = vld [vmem:[#allocation3 + $0x4] sm:$0x1]
      %v6812 = vld [vmem:[#allocation3 + $0xc] sm:$0x1]
      %v6813 = vld [vmem:[#allocation3 + $0x14] sm:$0x1]
      %v6814 = vld [vmem:[#allocation3 + $0x1c] sm:$0x1]
      %v6815 = vld [vmem:[#allocation3 + $0x24] sm:$0x1]
      %v6816 = vld [vmem:[#allocation3 + $0x2c] sm:$0x1]
      %v6817 = vld [vmem:[#allocation3 + $0x34] sm:$0x1]
      %v6818 = vld [vmem:[#allocation3 + $0x3c] sm:$0x1]
      %v6820 = vshrl.u32 %v6803, 16
      %v6822 = vrot.slane %v6820, 4
      %v6823 = vshll.u32 %v6803, 16
      %v6825 = vrot.slane %v6823, 5
      %v6826 = vor.u32 %v6822, %v6825
      %v6827 = vrot.slane %v6826, 4
      %v6829 = vshll.u32 %v6811, 16
      %v6831 = vrot.slane %v6829, 5
      %v6832 = vsel %vm628, %v6827, %v6831
      %v6834 = vshrl.u32 %v6804, 16
      %v6836 = vrot.slane %v6834, 4
      %v6837 = vshll.u32 %v6804, 16
      %v6839 = vrot.slane %v6837, 5
      %v6840 = vor.u32 %v6836, %v6839
      %v6841 = vrot.slane %v6840, 4
      %v6843 = vshll.u32 %v6812, 16
      %v6845 = vrot.slane %v6843, 5
      %v6846 = vsel %vm628, %v6841, %v6845
      %v6848 = vshrl.u32 %v6805, 16
      %v6850 = vrot.slane %v6848, 4
      %v6851 = vshll.u32 %v6805, 16
      %v6853 = vrot.slane %v6851, 5
      %v6854 = vor.u32 %v6850, %v6853
      %v6855 = vrot.slane %v6854, 4
      %v6857 = vshll.u32 %v6813, 16
      %v6859 = vrot.slane %v6857, 5
      %v6860 = vsel %vm628, %v6855, %v6859
      %v6862 = vshrl.u32 %v6806, 16
      %v6864 = vrot.slane %v6862, 4
      %v6865 = vshll.u32 %v6806, 16
      %v6867 = vrot.slane %v6865, 5
      %v6868 = vor.u32 %v6864, %v6867
      %v6869 = vrot.slane %v6868, 4
      %v6871 = vshll.u32 %v6814, 16
      %v6873 = vrot.slane %v6871, 5
      %v6874 = vsel %vm628, %v6869, %v6873
      %v6876 = vshrl.u32 %v6807, 16
      %v6878 = vrot.slane %v6876, 4
      %v6879 = vshll.u32 %v6807, 16
      %v6881 = vrot.slane %v6879, 5
      %v6882 = vor.u32 %v6878, %v6881
      %v6883 = vrot.slane %v6882, 4
      %v6885 = vshll.u32 %v6815, 16
      %v6887 = vrot.slane %v6885, 5
      %v6888 = vsel %vm628, %v6883, %v6887
      %v6890 = vshrl.u32 %v6808, 16
      %v6892 = vrot.slane %v6890, 4
      %v6893 = vshll.u32 %v6808, 16
      %v6895 = vrot.slane %v6893, 5
      %v6896 = vor.u32 %v6892, %v6895
      %v6897 = vrot.slane %v6896, 4
      %v6899 = vshll.u32 %v6816, 16
      %v6901 = vrot.slane %v6899, 5
      %v6902 = vsel %vm628, %v6897, %v6901
      %v6904 = vshrl.u32 %v6809, 16
      %v6906 = vrot.slane %v6904, 4
      %v6907 = vshll.u32 %v6809, 16
      %v6909 = vrot.slane %v6907, 5
      %v6910 = vor.u32 %v6906, %v6909
      %v6911 = vrot.slane %v6910, 4
      %v6913 = vshll.u32 %v6817, 16
      %v6915 = vrot.slane %v6913, 5
      %v6916 = vsel %vm628, %v6911, %v6915
      %v6918 = vshrl.u32 %v6810, 16
      %v6920 = vrot.slane %v6918, 4
      %v6921 = vshll.u32 %v6810, 16
      %v6923 = vrot.slane %v6921, 5
      %v6924 = vor.u32 %v6920, %v6923
      %v6925 = vrot.slane %v6924, 4
      %v6927 = vshll.u32 %v6818, 16
      %v6929 = vrot.slane %v6927, 5
      %v6930 = vsel %vm628, %v6925, %v6929
      %v6931 = vld [vmem:[#allocation3] sm:$0xe]
      %v6932 = vld [vmem:[#allocation3 + $0x8] sm:$0xe]
      %v6933 = vld [vmem:[#allocation3 + $0x10] sm:$0xe]
      %v6934 = vld [vmem:[#allocation3 + $0x18] sm:$0xe]
      %v6935 = vld [vmem:[#allocation3 + $0x20] sm:$0xe]
      %v6936 = vld [vmem:[#allocation3 + $0x28] sm:$0xe]
      %v6937 = vld [vmem:[#allocation3 + $0x30] sm:$0xe]
      %v6938 = vld [vmem:[#allocation3 + $0x38] sm:$0xe]
      %v6955 = vrot.slane %v6931, 5
      %v6956 = vrot.slane %v6955, 4
      %v6957 = vrot.slane %v6811, 5
      %v6958 = vsel %vm767, %v6956, %v6957
      %v6959 = vrot.slane %v6932, 5
      %v6960 = vrot.slane %v6959, 4
      %v6961 = vrot.slane %v6812, 5
      %v6962 = vsel %vm767, %v6960, %v6961
      %v6963 = vrot.slane %v6933, 5
      %v6964 = vrot.slane %v6963, 4
      %v6965 = vrot.slane %v6813, 5
      %v6966 = vsel %vm767, %v6964, %v6965
      %v6967 = vrot.slane %v6934, 5
      %v6968 = vrot.slane %v6967, 4
      %v6969 = vrot.slane %v6814, 5
      %v6970 = vsel %vm767, %v6968, %v6969
      %v6971 = vrot.slane %v6935, 5
      %v6972 = vrot.slane %v6971, 4
      %v6973 = vrot.slane %v6815, 5
      %v6974 = vsel %vm767, %v6972, %v6973
      %v6975 = vrot.slane %v6936, 5
      %v6976 = vrot.slane %v6975, 4
      %v6977 = vrot.slane %v6816, 5
      %v6978 = vsel %vm767, %v6976, %v6977
      %v6979 = vrot.slane %v6937, 5
      %v6980 = vrot.slane %v6979, 4
      %v6981 = vrot.slane %v6817, 5
      %v6982 = vsel %vm767, %v6980, %v6981
      %v6983 = vrot.slane %v6938, 5
      %v6984 = vrot.slane %v6983, 4
      %v6985 = vrot.slane %v6818, 5
      %v6986 = vsel %vm767, %v6984, %v6985
      %v6987 = vld [vmem:[%s4216] sm:$0xf]
      %v6988 = vld [vmem:[%s4216 + $0x8] sm:$0xf]
      %v6989 = vld [vmem:[%s4216 + $0x10] sm:$0xf]
      %v6990 = vld [vmem:[%s4216 + $0x18] sm:$0xf]
      %v6991 = vld [vmem:[%s4216 + $0x20] sm:$0xf]
      %v6992 = vld [vmem:[%s4216 + $0x28] sm:$0xf]
      %v6993 = vld [vmem:[%s4216 + $0x30] sm:$0xf]
      %v6994 = vld [vmem:[%s4216 + $0x38] sm:$0xf]
      %v6995 = vld [vmem:[%s4216 + $0x4] sm:$0x1]
      %v6996 = vld [vmem:[%s4216 + $0xc] sm:$0x1]
      %v6997 = vld [vmem:[%s4216 + $0x14] sm:$0x1]
      %v6998 = vld [vmem:[%s4216 + $0x1c] sm:$0x1]
      %v6999 = vld [vmem:[%s4216 + $0x24] sm:$0x1]
      %v7000 = vld [vmem:[%s4216 + $0x2c] sm:$0x1]
      %v7001 = vld [vmem:[%s4216 + $0x34] sm:$0x1]
      %v7002 = vld [vmem:[%s4216 + $0x3c] sm:$0x1]
      %v7004 = vshrl.u32 %v6987, 16
      %v7006 = vrot.slane %v7004, 4
      %v7007 = vshll.u32 %v6987, 16
      %v7009 = vrot.slane %v7007, 5
      %v7010 = vor.u32 %v7006, %v7009
      %v7011 = vrot.slane %v7010, 4
      %v7013 = vshll.u32 %v6995, 16
      %v7015 = vrot.slane %v7013, 5
      %v7016 = vsel %vm628, %v7011, %v7015
      %v7018 = vshrl.u32 %v6988, 16
      %v7020 = vrot.slane %v7018, 4
      %v7021 = vshll.u32 %v6988, 16
      %v7023 = vrot.slane %v7021, 5
      %v7024 = vor.u32 %v7020, %v7023
      %v7025 = vrot.slane %v7024, 4
      %v7027 = vshll.u32 %v6996, 16
      %v7029 = vrot.slane %v7027, 5
      %v7030 = vsel %vm628, %v7025, %v7029
      %v7032 = vshrl.u32 %v6989, 16
      %v7034 = vrot.slane %v7032, 4
      %v7035 = vshll.u32 %v6989, 16
      %v7037 = vrot.slane %v7035, 5
      %v7038 = vor.u32 %v7034, %v7037
      %v7039 = vrot.slane %v7038, 4
      %v7041 = vshll.u32 %v6997, 16
      %v7043 = vrot.slane %v7041, 5
      %v7044 = vsel %vm628, %v7039, %v7043
      %v7046 = vshrl.u32 %v6990, 16
      %v7048 = vrot.slane %v7046, 4
      %v7049 = vshll.u32 %v6990, 16
      %v7051 = vrot.slane %v7049, 5
      %v7052 = vor.u32 %v7048, %v7051
      %v7053 = vrot.slane %v7052, 4
      %v7055 = vshll.u32 %v6998, 16
      %v7057 = vrot.slane %v7055, 5
      %v7058 = vsel %vm628, %v7053, %v7057
      %v7060 = vshrl.u32 %v6991, 16
      %v7062 = vrot.slane %v7060, 4
      %v7063 = vshll.u32 %v6991, 16
      %v7065 = vrot.slane %v7063, 5
      %v7066 = vor.u32 %v7062, %v7065
      %v7067 = vrot.slane %v7066, 4
      %v7069 = vshll.u32 %v6999, 16
      %v7071 = vrot.slane %v7069, 5
      %v7072 = vsel %vm628, %v7067, %v7071
      %v7074 = vshrl.u32 %v6992, 16
      %v7076 = vrot.slane %v7074, 4
      %v7077 = vshll.u32 %v6992, 16
      %v7079 = vrot.slane %v7077, 5
      %v7080 = vor.u32 %v7076, %v7079
      %v7081 = vrot.slane %v7080, 4
      %v7083 = vshll.u32 %v7000, 16
      %v7085 = vrot.slane %v7083, 5
      %v7086 = vsel %vm628, %v7081, %v7085
      %v7088 = vshrl.u32 %v6993, 16
      %v7090 = vrot.slane %v7088, 4
      %v7091 = vshll.u32 %v6993, 16
      %v7093 = vrot.slane %v7091, 5
      %v7094 = vor.u32 %v7090, %v7093
      %v7095 = vrot.slane %v7094, 4
      %v7097 = vshll.u32 %v7001, 16
      %v7099 = vrot.slane %v7097, 5
      %v7100 = vsel %vm628, %v7095, %v7099
      %v7102 = vshrl.u32 %v6994, 16
      %v7104 = vrot.slane %v7102, 4
      %v7105 = vshll.u32 %v6994, 16
      %v7107 = vrot.slane %v7105, 5
      %v7108 = vor.u32 %v7104, %v7107
      %v7109 = vrot.slane %v7108, 4
      %v7111 = vshll.u32 %v7002, 16
      %v7113 = vrot.slane %v7111, 5
      %v7114 = vsel %vm628, %v7109, %v7113
      %v7115 = vld [vmem:[%s4216] sm:$0xe]
      %v7116 = vld [vmem:[%s4216 + $0x8] sm:$0xe]
      %v7117 = vld [vmem:[%s4216 + $0x10] sm:$0xe]
      %v7118 = vld [vmem:[%s4216 + $0x18] sm:$0xe]
      %v7119 = vld [vmem:[%s4216 + $0x20] sm:$0xe]
      %v7120 = vld [vmem:[%s4216 + $0x28] sm:$0xe]
      %v7121 = vld [vmem:[%s4216 + $0x30] sm:$0xe]
      %v7122 = vld [vmem:[%s4216 + $0x38] sm:$0xe]
      %v7139 = vrot.slane %v7115, 5
      %v7140 = vrot.slane %v7139, 4
      %v7141 = vrot.slane %v6995, 5
      %v7142 = vsel %vm767, %v7140, %v7141
      %v7143 = vrot.slane %v7116, 5
      %v7144 = vrot.slane %v7143, 4
      %v7145 = vrot.slane %v6996, 5
      %v7146 = vsel %vm767, %v7144, %v7145
      %v7147 = vrot.slane %v7117, 5
      %v7148 = vrot.slane %v7147, 4
      %v7149 = vrot.slane %v6997, 5
      %v7150 = vsel %vm767, %v7148, %v7149
      %v7151 = vrot.slane %v7118, 5
      %v7152 = vrot.slane %v7151, 4
      %v7153 = vrot.slane %v6998, 5
      %v7154 = vsel %vm767, %v7152, %v7153
      %v7155 = vrot.slane %v7119, 5
      %v7156 = vrot.slane %v7155, 4
      %v7157 = vrot.slane %v6999, 5
      %v7158 = vsel %vm767, %v7156, %v7157
      %v7159 = vrot.slane %v7120, 5
      %v7160 = vrot.slane %v7159, 4
      %v7161 = vrot.slane %v7000, 5
      %v7162 = vsel %vm767, %v7160, %v7161
      %v7163 = vrot.slane %v7121, 5
      %v7164 = vrot.slane %v7163, 4
      %v7165 = vrot.slane %v7001, 5
      %v7166 = vsel %vm767, %v7164, %v7165
      %v7167 = vrot.slane %v7122, 5
      %v7168 = vrot.slane %v7167, 4
      %v7169 = vrot.slane %v7002, 5
      %v7170 = vsel %vm767, %v7168, %v7169
      %v7171 = vld [vmem:[%s4670] sm:$0xf]
      %v7172 = vld [vmem:[%s4670 + $0x8] sm:$0xf]
      %v7173 = vld [vmem:[%s4670 + $0x10] sm:$0xf]
      %v7174 = vld [vmem:[%s4670 + $0x18] sm:$0xf]
      %v7175 = vld [vmem:[%s4670 + $0x20] sm:$0xf]
      %v7176 = vld [vmem:[%s4670 + $0x28] sm:$0xf]
      %v7177 = vld [vmem:[%s4670 + $0x30] sm:$0xf]
      %v7178 = vld [vmem:[%s4670 + $0x38] sm:$0xf]
      %v7179 = vld [vmem:[%s4670 + $0x4] sm:$0x1]
      %v7180 = vld [vmem:[%s4670 + $0xc] sm:$0x1]
      %v7181 = vld [vmem:[%s4670 + $0x14] sm:$0x1]
      %v7182 = vld [vmem:[%s4670 + $0x1c] sm:$0x1]
      %v7183 = vld [vmem:[%s4670 + $0x24] sm:$0x1]
      %v7184 = vld [vmem:[%s4670 + $0x2c] sm:$0x1]
      %v7185 = vld [vmem:[%s4670 + $0x34] sm:$0x1]
      %v7186 = vld [vmem:[%s4670 + $0x3c] sm:$0x1]
      %v7188 = vshrl.u32 %v7171, 16
      %v7190 = vrot.slane %v7188, 4
      %v7191 = vshll.u32 %v7171, 16
      %v7193 = vrot.slane %v7191, 5
      %v7194 = vor.u32 %v7190, %v7193
      %v7195 = vrot.slane %v7194, 4
      %v7197 = vshll.u32 %v7179, 16
      %v7199 = vrot.slane %v7197, 5
      %v7200 = vsel %vm628, %v7195, %v7199
      %v7202 = vshrl.u32 %v7172, 16
      %v7204 = vrot.slane %v7202, 4
      %v7205 = vshll.u32 %v7172, 16
      %v7207 = vrot.slane %v7205, 5
      %v7208 = vor.u32 %v7204, %v7207
      %v7209 = vrot.slane %v7208, 4
      %v7211 = vshll.u32 %v7180, 16
      %v7213 = vrot.slane %v7211, 5
      %v7214 = vsel %vm628, %v7209, %v7213
      %v7216 = vshrl.u32 %v7173, 16
      %v7218 = vrot.slane %v7216, 4
      %v7219 = vshll.u32 %v7173, 16
      %v7221 = vrot.slane %v7219, 5
      %v7222 = vor.u32 %v7218, %v7221
      %v7223 = vrot.slane %v7222, 4
      %v7225 = vshll.u32 %v7181, 16
      %v7227 = vrot.slane %v7225, 5
      %v7228 = vsel %vm628, %v7223, %v7227
      %v7230 = vshrl.u32 %v7174, 16
      %v7232 = vrot.slane %v7230, 4
      %v7233 = vshll.u32 %v7174, 16
      %v7235 = vrot.slane %v7233, 5
      %v7236 = vor.u32 %v7232, %v7235
      %v7237 = vrot.slane %v7236, 4
      %v7239 = vshll.u32 %v7182, 16
      %v7241 = vrot.slane %v7239, 5
      %v7242 = vsel %vm628, %v7237, %v7241
      %v7244 = vshrl.u32 %v7175, 16
      %v7246 = vrot.slane %v7244, 4
      %v7247 = vshll.u32 %v7175, 16
      %v7249 = vrot.slane %v7247, 5
      %v7250 = vor.u32 %v7246, %v7249
      %v7251 = vrot.slane %v7250, 4
      %v7253 = vshll.u32 %v7183, 16
      %v7255 = vrot.slane %v7253, 5
      %v7256 = vsel %vm628, %v7251, %v7255
      %v7258 = vshrl.u32 %v7176, 16
      %v7260 = vrot.slane %v7258, 4
      %v7261 = vshll.u32 %v7176, 16
      %v7263 = vrot.slane %v7261, 5
      %v7264 = vor.u32 %v7260, %v7263
      %v7265 = vrot.slane %v7264, 4
      %v7267 = vshll.u32 %v7184, 16
      %v7269 = vrot.slane %v7267, 5
      %v7270 = vsel %vm628, %v7265, %v7269
      %v7272 = vshrl.u32 %v7177, 16
      %v7274 = vrot.slane %v7272, 4
      %v7275 = vshll.u32 %v7177, 16
      %v7277 = vrot.slane %v7275, 5
      %v7278 = vor.u32 %v7274, %v7277
      %v7279 = vrot.slane %v7278, 4
      %v7281 = vshll.u32 %v7185, 16
      %v7283 = vrot.slane %v7281, 5
      %v7284 = vsel %vm628, %v7279, %v7283
      %v7286 = vshrl.u32 %v7178, 16
      %v7288 = vrot.slane %v7286, 4
      %v7289 = vshll.u32 %v7178, 16
      %v7291 = vrot.slane %v7289, 5
      %v7292 = vor.u32 %v7288, %v7291
      %v7293 = vrot.slane %v7292, 4
      %v7295 = vshll.u32 %v7186, 16
      %v7297 = vrot.slane %v7295, 5
      %v7298 = vsel %vm628, %v7293, %v7297
      %v7299 = vld [vmem:[%s4670] sm:$0xe]
      %v7300 = vld [vmem:[%s4670 + $0x8] sm:$0xe]
      %v7301 = vld [vmem:[%s4670 + $0x10] sm:$0xe]
      %v7302 = vld [vmem:[%s4670 + $0x18] sm:$0xe]
      %v7303 = vld [vmem:[%s4670 + $0x20] sm:$0xe]
      %v7304 = vld [vmem:[%s4670 + $0x28] sm:$0xe]
      %v7305 = vld [vmem:[%s4670 + $0x30] sm:$0xe]
      %v7306 = vld [vmem:[%s4670 + $0x38] sm:$0xe]
      %v7323 = vrot.slane %v7299, 5
      %v7324 = vrot.slane %v7323, 4
      %v7325 = vrot.slane %v7179, 5
      %v7326 = vsel %vm767, %v7324, %v7325
      %v7327 = vrot.slane %v7300, 5
      %v7328 = vrot.slane %v7327, 4
      %v7329 = vrot.slane %v7180, 5
      %v7330 = vsel %vm767, %v7328, %v7329
      %v7331 = vrot.slane %v7301, 5
      %v7332 = vrot.slane %v7331, 4
      %v7333 = vrot.slane %v7181, 5
      %v7334 = vsel %vm767, %v7332, %v7333
      %v7335 = vrot.slane %v7302, 5
      %v7336 = vrot.slane %v7335, 4
      %v7337 = vrot.slane %v7182, 5
      %v7338 = vsel %vm767, %v7336, %v7337
      %v7339 = vrot.slane %v7303, 5
      %v7340 = vrot.slane %v7339, 4
      %v7341 = vrot.slane %v7183, 5
      %v7342 = vsel %vm767, %v7340, %v7341
      %v7343 = vrot.slane %v7304, 5
      %v7344 = vrot.slane %v7343, 4
      %v7345 = vrot.slane %v7184, 5
      %v7346 = vsel %vm767, %v7344, %v7345
      %v7347 = vrot.slane %v7305, 5
      %v7348 = vrot.slane %v7347, 4
      %v7349 = vrot.slane %v7185, 5
      %v7350 = vsel %vm767, %v7348, %v7349
      %v7351 = vrot.slane %v7306, 5
      %v7352 = vrot.slane %v7351, 4
      %v7353 = vrot.slane %v7186, 5
      %v7354 = vsel %vm767, %v7352, %v7353
      %v7363 = vunpack.c.l.b16 %v6803
      %v7364 = vunpack.c.l.b16 %v6804
      %v7365 = vunpack.c.l.b16 %v6805
      %v7366 = vunpack.c.l.b16 %v6806
      %v7367 = vunpack.c.l.b16 %v6807
      %v7368 = vunpack.c.l.b16 %v6808
      %v7369 = vunpack.c.l.b16 %v6809
      %v7370 = vunpack.c.l.b16 %v6810
      %v7371 = vpack.c.b16 %v7364, %v7363
      %v7372 = vpack.c.b16 %v7366, %v7365
      %v7373 = vpack.c.b16 %v7368, %v7367
      %v7374 = vpack.c.b16 %v7370, %v7369
      %v7375 = vunpack.c.l.b16 %v6832
      %v7376 = vunpack.c.l.b16 %v6846
      %v7377 = vunpack.c.l.b16 %v6860
      %v7378 = vunpack.c.l.b16 %v6874
      %v7379 = vunpack.c.l.b16 %v6888
      %v7380 = vunpack.c.l.b16 %v6902
      %v7381 = vunpack.c.l.b16 %v6916
      %v7382 = vunpack.c.l.b16 %v6930
      %v7383 = vpack.c.b16 %v7376, %v7375
      %v7384 = vpack.c.b16 %v7378, %v7377
      %v7385 = vpack.c.b16 %v7380, %v7379
      %v7386 = vpack.c.b16 %v7382, %v7381
      %7387 = vrot.lane.b32.xlu0 %v7383, 32
      %v7388 = vpop.permute.xlu0 %7387
      %7389 = vrot.lane.b32.xlu0 %v7384, 32
      %v7390 = vpop.permute.xlu0 %7389
      %7391 = vrot.lane.b32.xlu0 %v7385, 32
      %v7392 = vpop.permute.xlu0 %7391
      %7393 = vrot.lane.b32.xlu0 %v7386, 32
      %v7394 = vpop.permute.xlu0 %7393
      %v7395 = vunpack.c.l.b16 %v6958
      %v7396 = vunpack.c.l.b16 %v6962
      %v7397 = vunpack.c.l.b16 %v6966
      %v7398 = vunpack.c.l.b16 %v6970
      %v7399 = vunpack.c.l.b16 %v6974
      %v7400 = vunpack.c.l.b16 %v6978
      %v7401 = vunpack.c.l.b16 %v6982
      %v7402 = vunpack.c.l.b16 %v6986
      %v7403 = vpack.c.b16 %v7396, %v7395
      %v7404 = vpack.c.b16 %v7398, %v7397
      %v7405 = vpack.c.b16 %v7400, %v7399
      %v7406 = vpack.c.b16 %v7402, %v7401
      %7407 = vrot.lane.b32.xlu0 %v7403, 64
      %v7408 = vpop.permute.xlu0 %7407
      %7409 = vrot.lane.b32.xlu0 %v7404, 64
      %v7410 = vpop.permute.xlu0 %7409
      %7411 = vrot.lane.b32.xlu0 %v7405, 64
      %v7412 = vpop.permute.xlu0 %7411
      %7413 = vrot.lane.b32.xlu0 %v7406, 64
      %v7414 = vpop.permute.xlu0 %7413
      %v7423 = vunpack.c.l.b16 %v6987
      %v7424 = vunpack.c.l.b16 %v6988
      %v7425 = vunpack.c.l.b16 %v6989
      %v7426 = vunpack.c.l.b16 %v6990
      %v7427 = vunpack.c.l.b16 %v6991
      %v7428 = vunpack.c.l.b16 %v6992
      %v7429 = vunpack.c.l.b16 %v6993
      %v7430 = vunpack.c.l.b16 %v6994
      %v7431 = vpack.c.b16 %v7424, %v7423
      %v7432 = vpack.c.b16 %v7426, %v7425
      %v7433 = vpack.c.b16 %v7428, %v7427
      %v7434 = vpack.c.b16 %v7430, %v7429
      %7435 = vrot.lane.b32.xlu0 %v7431, 96
      %v7436 = vpop.permute.xlu0 %7435
      %7437 = vrot.lane.b32.xlu0 %v7432, 96
      %v7438 = vpop.permute.xlu0 %7437
      %7439 = vrot.lane.b32.xlu0 %v7433, 96
      %v7440 = vpop.permute.xlu0 %7439
      %7441 = vrot.lane.b32.xlu0 %v7434, 96
      %v7442 = vpop.permute.xlu0 %7441
      %v7443 = vunpack.c.l.b16 %v7016
      %v7444 = vunpack.c.l.b16 %v7030
      %v7445 = vunpack.c.l.b16 %v7044
      %v7446 = vunpack.c.l.b16 %v7058
      %v7447 = vunpack.c.l.b16 %v7072
      %v7448 = vunpack.c.l.b16 %v7086
      %v7449 = vunpack.c.l.b16 %v7100
      %v7450 = vunpack.c.l.b16 %v7114
      %v7451 = vpack.c.b16 %v7444, %v7443
      %v7452 = vpack.c.b16 %v7446, %v7445
      %v7453 = vpack.c.b16 %v7448, %v7447
      %v7454 = vpack.c.b16 %v7450, %v7449
      %v7455 = vunpack.c.l.b16 %v7142
      %v7456 = vunpack.c.l.b16 %v7146
      %v7457 = vunpack.c.l.b16 %v7150
      %v7458 = vunpack.c.l.b16 %v7154
      %v7459 = vunpack.c.l.b16 %v7158
      %v7460 = vunpack.c.l.b16 %v7162
      %v7461 = vunpack.c.l.b16 %v7166
      %v7462 = vunpack.c.l.b16 %v7170
      %v7463 = vpack.c.b16 %v7456, %v7455
      %v7464 = vpack.c.b16 %v7458, %v7457
      %v7465 = vpack.c.b16 %v7460, %v7459
      %v7466 = vpack.c.b16 %v7462, %v7461
      %7467 = vrot.lane.b32.xlu0 %v7463, 32
      %v7468 = vpop.permute.xlu0 %7467
      %7469 = vrot.lane.b32.xlu0 %v7464, 32
      %v7470 = vpop.permute.xlu0 %7469
      %7471 = vrot.lane.b32.xlu0 %v7465, 32
      %v7472 = vpop.permute.xlu0 %7471
      %7473 = vrot.lane.b32.xlu0 %v7466, 32
      %v7474 = vpop.permute.xlu0 %7473
      %v7483 = vunpack.c.l.b16 %v7171
      %v7484 = vunpack.c.l.b16 %v7172
      %v7485 = vunpack.c.l.b16 %v7173
      %v7486 = vunpack.c.l.b16 %v7174
      %v7487 = vunpack.c.l.b16 %v7175
      %v7488 = vunpack.c.l.b16 %v7176
      %v7489 = vunpack.c.l.b16 %v7177
      %v7490 = vunpack.c.l.b16 %v7178
      %v7491 = vpack.c.b16 %v7484, %v7483
      %v7492 = vpack.c.b16 %v7486, %v7485
      %v7493 = vpack.c.b16 %v7488, %v7487
      %v7494 = vpack.c.b16 %v7490, %v7489
      %7495 = vrot.lane.b32.xlu0 %v7491, 64
      %v7496 = vpop.permute.xlu0 %7495
      %7497 = vrot.lane.b32.xlu0 %v7492, 64
      %v7498 = vpop.permute.xlu0 %7497
      %7499 = vrot.lane.b32.xlu0 %v7493, 64
      %v7500 = vpop.permute.xlu0 %7499
      %7501 = vrot.lane.b32.xlu0 %v7494, 64
      %v7502 = vpop.permute.xlu0 %7501
      %v7503 = vunpack.c.l.b16 %v7200
      %v7504 = vunpack.c.l.b16 %v7214
      %v7505 = vunpack.c.l.b16 %v7228
      %v7506 = vunpack.c.l.b16 %v7242
      %v7507 = vunpack.c.l.b16 %v7256
      %v7508 = vunpack.c.l.b16 %v7270
      %v7509 = vunpack.c.l.b16 %v7284
      %v7510 = vunpack.c.l.b16 %v7298
      %v7511 = vpack.c.b16 %v7504, %v7503
      %v7512 = vpack.c.b16 %v7506, %v7505
      %v7513 = vpack.c.b16 %v7508, %v7507
      %v7514 = vpack.c.b16 %v7510, %v7509
      %7515 = vrot.lane.b32.xlu0 %v7511, 96
      %v7516 = vpop.permute.xlu0 %7515
      %7517 = vrot.lane.b32.xlu0 %v7512, 96
      %v7518 = vpop.permute.xlu0 %7517
      %7519 = vrot.lane.b32.xlu0 %v7513, 96
      %v7520 = vpop.permute.xlu0 %7519
      %7521 = vrot.lane.b32.xlu0 %v7514, 96
      %v7522 = vpop.permute.xlu0 %7521
      %v7523 = vunpack.c.l.b16 %v7326
      %v7524 = vunpack.c.l.b16 %v7330
      %v7525 = vunpack.c.l.b16 %v7334
      %v7526 = vunpack.c.l.b16 %v7338
      %v7527 = vunpack.c.l.b16 %v7342
      %v7528 = vunpack.c.l.b16 %v7346
      %v7529 = vunpack.c.l.b16 %v7350
      %v7530 = vunpack.c.l.b16 %v7354
      %v7531 = vpack.c.b16 %v7524, %v7523
      %v7532 = vpack.c.b16 %v7526, %v7525
      %v7533 = vpack.c.b16 %v7528, %v7527
      %v7534 = vpack.c.b16 %v7530, %v7529
      %v7537 = vsel %vm1349, %v7371, %v7388
      %v7540 = vsel %vm1349, %v7372, %v7390
      %v7543 = vsel %vm1349, %v7373, %v7392
      %v7546 = vsel %vm1349, %v7374, %v7394
      %v7548 = vsel %vm1362, %v7537, %v7408
      %v7550 = vsel %vm1362, %v7540, %v7410
      %v7552 = vsel %vm1362, %v7543, %v7412
      %v7554 = vsel %vm1362, %v7546, %v7414
      %v7556 = vsel %vm1371, %v7548, %v7436
      %v7559 = vsel %vm1371, %v7550, %v7438
      %v7562 = vsel %vm1371, %v7552, %v7440
      %v7565 = vsel %vm1371, %v7554, %v7442
      %v7569 = vsel %vm1349, %v7451, %v7468
      %v7572 = vsel %vm1349, %v7452, %v7470
      %v7575 = vsel %vm1349, %v7453, %v7472
      %v7578 = vsel %vm1349, %v7454, %v7474
      %v7580 = vsel %vm1362, %v7569, %v7496
      %v7582 = vsel %vm1362, %v7572, %v7498
      %v7584 = vsel %vm1362, %v7575, %v7500
      %v7586 = vsel %vm1362, %v7578, %v7502
      %v7588 = vsel %vm1371, %v7580, %v7516
      %v7591 = vsel %vm1371, %v7582, %v7518
      %v7594 = vsel %vm1371, %v7584, %v7520
      %v7597 = vsel %vm1371, %v7586, %v7522
      %v7600 = vlaneseq
      %v7601 = vshrl.u32 %v7600, 7
      %v7602 = vsub.s32 0, %v7601
      %v7603 = vrot.slane %v6802, %v7602
      %v7641 = vunpack.c.l.b16 %v6765
      %v7642 = vunpack.c.l.b16 %v6766
      %v7643 = vunpack.c.l.b16 %v6767
      %v7644 = vunpack.c.l.b16 %v6768
      %v7645 = vunpack.c.l.b16 %v6769
      %v7646 = vunpack.c.l.b16 %v6770
      %v7647 = vunpack.c.l.b16 %v6771
      %v7648 = vunpack.c.l.b16 %v6772
      %v7649 = vunpack.c.l.b16 %v6773
      %v7650 = vunpack.c.l.b16 %v6774
      %v7651 = vunpack.c.l.b16 %v6775
      %v7652 = vunpack.c.l.b16 %v6776
      %v7653 = vunpack.c.l.b16 %v6777
      %v7654 = vunpack.c.l.b16 %v6778
      %v7655 = vunpack.c.l.b16 %v6779
      %v7656 = vunpack.c.l.b16 %v6780
      %v7657 = vunpack.c.l.b16 %v6781
      %v7658 = vunpack.c.l.b16 %v6782
      %v7659 = vunpack.c.l.b16 %v6783
      %v7660 = vunpack.c.l.b16 %v6784
      %v7661 = vunpack.c.l.b16 %v6785
      %v7662 = vunpack.c.l.b16 %v6786
      %v7663 = vunpack.c.l.b16 %v6787
      %v7664 = vunpack.c.l.b16 %v6788
      %v7665 = vunpack.c.l.b16 %v6789
      %v7666 = vunpack.c.l.b16 %v6790
      %v7667 = vunpack.c.l.b16 %v6791
      %v7668 = vunpack.c.l.b16 %v6792
      %v7669 = vunpack.c.l.b16 %v6793
      %v7670 = vunpack.c.l.b16 %v6794
      %v7671 = vunpack.c.l.b16 %v6795
      %v7672 = vunpack.c.l.b16 %v6796
      %v7673 = vunpack.c.l.b16 %v6797
      %v7674 = vunpack.c.l.b16 %v6798
      %v7675 = vunpack.c.l.b16 %v6799
      %v7676 = vunpack.c.l.b16 %v6800
      %v7677 = vpack.c.b16 %v7642, %v7641
      %v7678 = vpack.c.b16 %v7644, %v7643
      %v7679 = vpack.c.b16 %v7646, %v7645
      %v7680 = vpack.c.b16 %v7648, %v7647
      %v7681 = vpack.c.b16 %v7650, %v7649
      %v7682 = vpack.c.b16 %v7652, %v7651
      %v7683 = vpack.c.b16 %v7654, %v7653
      %v7684 = vpack.c.b16 %v7656, %v7655
      %v7685 = vpack.c.b16 %v7658, %v7657
      %v7686 = vpack.c.b16 %v7660, %v7659
      %v7687 = vpack.c.b16 %v7662, %v7661
      %v7688 = vpack.c.b16 %v7664, %v7663
      %v7689 = vpack.c.b16 %v7666, %v7665
      %v7690 = vpack.c.b16 %v7668, %v7667
      %v7691 = vpack.c.b16 %v7670, %v7669
      %v7692 = vpack.c.b16 %v7672, %v7671
      %v7693 = vpack.c.b16 %v7674, %v7673
      %v7694 = vpack.c.b16 %v7676, %v7675
      %v7714 = vsel %vm1349, %v7531, 0
      %v7717 = vsel %vm1349, %v7532, 0
      %v7720 = vsel %vm1349, %v7533, 0
      %v7723 = vsel %vm1349, %v7534, 0
      %7725 = vmatprep.subr.bf16.mxu0 0
      %7726 = vmatpush1.bf16.msra.mxu0 %v7677
      %7727 = vmatprep.subr.bf16.mxu0 0
      %7728 = vmatpush1.bf16.msra.mxu0 %v7678
      %7729 = vmatprep.subr.bf16.mxu0 0
      %7730 = vmatpush1.bf16.msra.mxu0 %v7679
      %7731 = vmatprep.subr.bf16.mxu0 0
      %7732 = vmatpush1.bf16.msra.mxu0 %v7680
      %7733 = vmatprep.subr.bf16.mxu0 0
      %7734 = vmatpush1.bf16.msra.mxu0 %v7681
      %7735 = vmatprep.subr.bf16.mxu0 0
      %7736 = vmatpush1.bf16.msra.mxu0 %v7682
      %7737 = vmatprep.subr.bf16.mxu0 0
      %7738 = vmatpush1.bf16.msra.mxu0 %v7683
      %7739 = vmatprep.subr.bf16.mxu0 0
      %7740 = vmatpush1.bf16.msra.mxu0 %v7684
      %7741 = vmatprep.subr.bf16.mxu0 0
      %7742 = vmatpush1.bf16.msra.mxu0 %v7685
      %7743 = vmatprep.subr.bf16.mxu0 0
      %7744 = vmatpush1.bf16.msra.mxu0 %v7686
      %7745 = vmatprep.subr.bf16.mxu0 0
      %7746 = vmatpush1.bf16.msra.mxu0 %v7687
      %7747 = vmatprep.subr.bf16.mxu0 0
      %7748 = vmatpush1.bf16.msra.mxu0 %v7688
      %7749 = vmatprep.subr.bf16.mxu0 0
      %7750 = vmatpush1.bf16.msra.mxu0 %v7689
      %7751 = vmatprep.subr.bf16.mxu0 0
      %7752 = vmatpush1.bf16.msra.mxu0 %v7690
      %7753 = vmatprep.subr.bf16.mxu0 0
      %7754 = vmatpush1.bf16.msra.mxu0 %v7691
      %7755 = vmatprep.subr.bf16.mxu0 0
      %7756 = vmatpush1.bf16.msra.mxu0 %v7692
      %7757 = vmatprep.mubr.bf16.mxu0 %v7588
      %7758 = vmatmul.mubr.bf16.gmra.mrb[0].mxu0 %v7556
      %v7759 = vpop.f32.mrb[0].mxu0
      %v7760 = vadd.f32 %v7603, %v7759
      %v7761 = vpop.f32.mrb[0].mxu0
      %v7762 = vpop.f32.mrb[0].mxu0
      %v7763 = vadd.f32 %v7603, %v7762
      %v7764 = vpop.f32.mrb[0].mxu0
      %7765 = vmatprep.mubr.bf16.mxu0 %v7591
      %7766 = vmatmul.mubr.bf16.gmra.mrb[0].mxu0 %v7559
      %v7767 = vpop.f32.mrb[0].mxu0
      %v7768 = vadd.f32 %v7603, %v7767
      %v7769 = vpop.f32.mrb[0].mxu0
      %v7770 = vpop.f32.mrb[0].mxu0
      %v7771 = vadd.f32 %v7603, %v7770
      %v7772 = vpop.f32.mrb[0].mxu0
      %7773 = vmatprep.mubr.bf16.mxu0 %v7594
      %7774 = vmatmul.mubr.bf16.gmra.mrb[0].mxu0 %v7562
      %v7775 = vpop.f32.mrb[0].mxu0
      %v7776 = vadd.f32 %v7603, %v7775
      %v7777 = vpop.f32.mrb[0].mxu0
      %v7778 = vpop.f32.mrb[0].mxu0
      %v7779 = vadd.f32 %v7603, %v7778
      %v7780 = vpop.f32.mrb[0].mxu0
      %7781 = vmatprep.mubr.bf16.mxu0 %v7597
      %7782 = vmatmul.mubr.bf16.gmra.mrb[0].mxu0 %v7565
      %v7783 = vpop.f32.mrb[0].mxu0
      %v7784 = vadd.f32 %v7603, %v7783
      %v7785 = vpop.f32.mrb[0].mxu0
      %v7786 = vpop.f32.mrb[0].mxu0
      %v7787 = vadd.f32 %v7603, %v7786
      %v7788 = vpop.f32.mrb[0].mxu0
      %7789 = vdwg.mxu0
      %7790 = vmatprep.subr.bf16.mxu0 0
      %7791 = vmatpush1.bf16.msra.mxu0 %v7693
      %7792 = vmatprep.subr.bf16.mxu0 0
      %7793 = vmatpush1.bf16.msra.mxu0 %v7694
      %7794 = vmatprep.subr.bf16.mxu0 0
      %7795 = vmatpush1.bf16.msra.mxu0 0
      %7796 = vmatprep.subr.bf16.mxu0 0
      %7797 = vmatpush1.bf16.msra.mxu0 0
      %7798 = vmatprep.subr.bf16.mxu0 0
      %7799 = vmatpush1.bf16.msra.mxu0 0
      %7800 = vmatprep.subr.bf16.mxu0 0
      %7801 = vmatpush1.bf16.msra.mxu0 0
      %7802 = vmatprep.subr.bf16.mxu0 0
      %7803 = vmatpush1.bf16.msra.mxu0 0
      %7804 = vmatprep.subr.bf16.mxu0 0
      %7805 = vmatpush1.bf16.msra.mxu0 0
      %7806 = vmatprep.subr.bf16.mxu0 0
      %7807 = vmatpush1.bf16.msra.mxu0 0
      %7808 = vmatprep.subr.bf16.mxu0 0
      %7809 = vmatpush1.bf16.msra.mxu0 0
      %7810 = vmatprep.subr.bf16.mxu0 0
      %7811 = vmatpush1.bf16.msra.mxu0 0
      %7812 = vmatprep.subr.bf16.mxu0 0
      %7813 = vmatpush1.bf16.msra.mxu0 0
      %7814 = vmatprep.subr.bf16.mxu0 0
      %7815 = vmatpush1.bf16.msra.mxu0 0
      %7816 = vmatprep.subr.bf16.mxu0 0
      %7817 = vmatpush1.bf16.msra.mxu0 0
      %7818 = vmatprep.subr.bf16.mxu0 0
      %7819 = vmatpush1.bf16.msra.mxu0 0
      %7820 = vmatprep.subr.bf16.mxu0 0
      %7821 = vmatpush1.bf16.msra.mxu0 0
      %7822 = vmatprep.mubr.bf16.mxu0 0
      %7823 = vmatmul.mubr.bf16.gmra.mrb[0].mxu0 %v7714
      %v7824 = vpop.f32.mrb[0].mxu0
      %v7825 = vadd.f32 %v7760, %v7824
      %v7826 = vpop.f32.mrb[0].mxu0
      %v7827 = vpop.f32.mrb[0].mxu0
      %v7828 = vadd.f32 %v7763, %v7827
      %v7829 = vpop.f32.mrb[0].mxu0
      %7830 = vmatprep.mubr.bf16.mxu0 0
      %7831 = vmatmul.mubr.bf16.gmra.mrb[0].mxu0 %v7717
      %v7832 = vpop.f32.mrb[0].mxu0
      %v7833 = vadd.f32 %v7768, %v7832
      %v7834 = vpop.f32.mrb[0].mxu0
      %v7835 = vpop.f32.mrb[0].mxu0
      %v7836 = vadd.f32 %v7771, %v7835
      %v7837 = vpop.f32.mrb[0].mxu0
      %7838 = vmatprep.mubr.bf16.mxu0 0
      %7839 = vmatmul.mubr.bf16.gmra.mrb[0].mxu0 %v7720
      %v7840 = vpop.f32.mrb[0].mxu0
      %v7841 = vadd.f32 %v7776, %v7840
      %v7842 = vpop.f32.mrb[0].mxu0
      %v7843 = vpop.f32.mrb[0].mxu0
      %v7844 = vadd.f32 %v7779, %v7843
      %v7845 = vpop.f32.mrb[0].mxu0
      %7846 = vmatprep.mubr.bf16.mxu0 0
      %7847 = vmatmul.mubr.bf16.gmra.mrb[0].mxu0 %v7723
      %v7848 = vpop.f32.mrb[0].mxu0
      %v7849 = vadd.f32 %v7784, %v7848
      %v7850 = vpop.f32.mrb[0].mxu0
      %v7851 = vpop.f32.mrb[0].mxu0
      %v7852 = vadd.f32 %v7787, %v7851
      %v7853 = vpop.f32.mrb[0].mxu0
      %7854 = vdwg.mxu0
      %v7855 = vmax.f32 %v7825, 0.0
      %v7856 = vmax.f32 %v7828, 0.0
      %v7857 = vmax.f32 %v7833, 0.0
      %v7858 = vmax.f32 %v7836, 0.0
      %v7859 = vmax.f32 %v7841, 0.0
      %v7860 = vmax.f32 %v7844, 0.0
      %v7861 = vmax.f32 %v7849, 0.0
      %v7862 = vmax.f32 %v7852, 0.0
      %v7863 = vpack.c.bf16 %v7856, %v7855
      %v7864 = vpack.c.bf16 %v7858, %v7857
      %v7865 = vpack.c.bf16 %v7860, %v7859
      %v7866 = vpack.c.bf16 %v7862, %v7861
      %v7871 = vunpack.c.l.b16 %v7863
      %v7872 = vunpack.c.h.b16 %v7863
      %v7873 = vunpack.c.l.b16 %v7864
      %v7874 = vunpack.c.h.b16 %v7864
      %v7875 = vunpack.c.l.b16 %v7865
      %v7876 = vunpack.c.h.b16 %v7865
      %v7877 = vunpack.c.l.b16 %v7866
      %v7878 = vunpack.c.h.b16 %v7866
      %v7879 = vpack.c.b16 %v7871, %v7871
      %v7880 = vpack.c.b16 %v7872, %v7872
      %v7881 = vpack.c.b16 %v7873, %v7873
      %v7882 = vpack.c.b16 %v7874, %v7874
      %v7883 = vpack.c.b16 %v7875, %v7875
      %v7884 = vpack.c.b16 %v7876, %v7876
      %v7885 = vpack.c.b16 %v7877, %v7877
      %v7886 = vpack.c.b16 %v7878, %v7878
      %v7888 = vshrl.u32 %v7879, 16
      %v7890 = vrot.slane %v7888, 7
      %v7891 = vshll.u32 %v7879, 16
      %v7893 = vor.u32 %v7890, %v7891
      %v7894 = vrot.slane %v7890, 4
      %v7896 = vshrl.u32 %v7880, 16
      %v7898 = vrot.slane %v7896, 7
      %v7899 = vshll.u32 %v7880, 16
      %v7901 = vor.u32 %v7898, %v7899
      %v7902 = vrot.slane %v7898, 4
      %v7904 = vshrl.u32 %v7881, 16
      %v7906 = vrot.slane %v7904, 7
      %v7907 = vshll.u32 %v7881, 16
      %v7909 = vor.u32 %v7906, %v7907
      %v7910 = vrot.slane %v7906, 4
      %v7912 = vshrl.u32 %v7882, 16
      %v7914 = vrot.slane %v7912, 7
      %v7915 = vshll.u32 %v7882, 16
      %v7917 = vor.u32 %v7914, %v7915
      %v7918 = vrot.slane %v7914, 4
      %v7920 = vshrl.u32 %v7883, 16
      %v7922 = vrot.slane %v7920, 7
      %v7923 = vshll.u32 %v7883, 16
      %v7925 = vor.u32 %v7922, %v7923
      %v7926 = vrot.slane %v7922, 4
      %v7928 = vshrl.u32 %v7884, 16
      %v7930 = vrot.slane %v7928, 7
      %v7931 = vshll.u32 %v7884, 16
      %v7933 = vor.u32 %v7930, %v7931
      %v7934 = vrot.slane %v7930, 4
      %v7936 = vshrl.u32 %v7885, 16
      %v7938 = vrot.slane %v7936, 7
      %v7939 = vshll.u32 %v7885, 16
      %v7941 = vor.u32 %v7938, %v7939
      %v7942 = vrot.slane %v7938, 4
      %v7944 = vshrl.u32 %v7886, 16
      %v7946 = vrot.slane %v7944, 7
      %v7947 = vshll.u32 %v7886, 16
      %v7949 = vor.u32 %v7946, %v7947
      %v7950 = vrot.slane %v7946, 4
      %v7967 = vsel %vm521, %v7893, %v6987
      %7968 = vst [vmem:[%s4216] sm:$0xf] %v7967
      %v7969 = vld [vmem:[%s4216 + $0x4] sm:$0x1]
      %v7970 = vsel %vm527, %v7894, %v7969
      %7971 = vst [vmem:[%s4216 + $0x4] sm:$0x1] %v7970
      %v7972 = vld [vmem:[%s4216 + $0x8] sm:$0xf]
      %v7973 = vsel %vm521, %v7901, %v7972
      %7974 = vst [vmem:[%s4216 + $0x8] sm:$0xf] %v7973
      %v7975 = vld [vmem:[%s4216 + $0xc] sm:$0x1]
      %v7976 = vsel %vm527, %v7902, %v7975
      %7977 = vst [vmem:[%s4216 + $0xc] sm:$0x1] %v7976
      %v7978 = vld [vmem:[%s4216 + $0x10] sm:$0xf]
      %v7979 = vsel %vm521, %v7909, %v7978
      %7980 = vst [vmem:[%s4216 + $0x10] sm:$0xf] %v7979
      %v7981 = vld [vmem:[%s4216 + $0x14] sm:$0x1]
      %v7982 = vsel %vm527, %v7910, %v7981
      %7983 = vst [vmem:[%s4216 + $0x14] sm:$0x1] %v7982
      %v7984 = vld [vmem:[%s4216 + $0x18] sm:$0xf]
      %v7985 = vsel %vm521, %v7917, %v7984
      %7986 = vst [vmem:[%s4216 + $0x18] sm:$0xf] %v7985
      %v7987 = vld [vmem:[%s4216 + $0x1c] sm:$0x1]
      %v7988 = vsel %vm527, %v7918, %v7987
      %7989 = vst [vmem:[%s4216 + $0x1c] sm:$0x1] %v7988
      %v7990 = vld [vmem:[%s4216 + $0x20] sm:$0xf]
      %v7991 = vsel %vm521, %v7925, %v7990
      %7992 = vst [vmem:[%s4216 + $0x20] sm:$0xf] %v7991
      %v7993 = vld [vmem:[%s4216 + $0x24] sm:$0x1]
      %v7994 = vsel %vm527, %v7926, %v7993
      %7995 = vst [vmem:[%s4216 + $0x24] sm:$0x1] %v7994
      %v7996 = vld [vmem:[%s4216 + $0x28] sm:$0xf]
      %v7997 = vsel %vm521, %v7933, %v7996
      %7998 = vst [vmem:[%s4216 + $0x28] sm:$0xf] %v7997
      %v7999 = vld [vmem:[%s4216 + $0x2c] sm:$0x1]
      %v8000 = vsel %vm527, %v7934, %v7999
      %8001 = vst [vmem:[%s4216 + $0x2c] sm:$0x1] %v8000
      %v8002 = vld [vmem:[%s4216 + $0x30] sm:$0xf]
      %v8003 = vsel %vm521, %v7941, %v8002
      %8004 = vst [vmem:[%s4216 + $0x30] sm:$0xf] %v8003
      %v8005 = vld [vmem:[%s4216 + $0x34] sm:$0x1]
      %v8006 = vsel %vm527, %v7942, %v8005
      %8007 = vst [vmem:[%s4216 + $0x34] sm:$0x1] %v8006
      %v8008 = vld [vmem:[%s4216 + $0x38] sm:$0xf]
      %v8009 = vsel %vm521, %v7949, %v8008
      %8010 = vst [vmem:[%s4216 + $0x38] sm:$0xf] %v8009
      %v8011 = vld [vmem:[%s4216 + $0x3c] sm:$0x1]
      %v8012 = vsel %vm527, %v7950, %v8011
      %8013 = vst [vmem:[%s4216 + $0x3c] sm:$0x1] %v8012
      %v8014 = vld [vmem:[%s9] sm:$0xf]
      %v8015 = vld [vmem:[%s9 + $0x4] sm:$0xf]
      %v8016 = vld [vmem:[%s9 + $0x8] sm:$0xf]
      %v8017 = vld [vmem:[%s9 + $0xc] sm:$0xf]
      %v8018 = vld [vmem:[%s9 + $0x10] sm:$0xf]
      %v8019 = vld [vmem:[%s9 + $0x14] sm:$0xf]
      %v8020 = vld [vmem:[%s9 + $0x18] sm:$0xf]
      %v8021 = vld [vmem:[%s9 + $0x1c] sm:$0xf]
      %v8022 = vld [vmem:[%s9 + $0x20] sm:$0xf]
      %v8023 = vld [vmem:[%s9 + $0x24] sm:$0xf]
      %v8024 = vld [vmem:[%s9 + $0x28] sm:$0xf]
      %v8025 = vld [vmem:[%s9 + $0x2c] sm:$0xf]
      %v8026 = vld [vmem:[%s9 + $0x30] sm:$0xf]
      %v8027 = vld [vmem:[%s9 + $0x34] sm:$0xf]
      %v8028 = vld [vmem:[%s9 + $0x38] sm:$0xf]
      %v8029 = vld [vmem:[%s9 + $0x3c] sm:$0xf]
      %v8030 = vld [vmem:[%s9 + $0x40] sm:$0xf]
      %v8031 = vld [vmem:[%s9 + $0x44] sm:$0xf]
      %v8032 = vld [vmem:[%s9 + $0x48] sm:$0xf]
      %v8033 = vld [vmem:[%s9 + $0x4c] sm:$0xf]
      %v8034 = vld [vmem:[%s9 + $0x50] sm:$0xf]
      %v8035 = vld [vmem:[%s9 + $0x54] sm:$0xf]
      %v8036 = vld [vmem:[%s9 + $0x58] sm:$0xf]
      %v8037 = vld [vmem:[%s9 + $0x5c] sm:$0xf]
      %v8038 = vld [vmem:[%s9 + $0x60] sm:$0xf]
      %v8039 = vld [vmem:[%s9 + $0x64] sm:$0xf]
      %v8040 = vld [vmem:[%s9 + $0x68] sm:$0xf]
      %v8041 = vld [vmem:[%s9 + $0x6c] sm:$0xf]
      %v8042 = vld [vmem:[%s9 + $0x70] sm:$0xf]
      %v8043 = vld [vmem:[%s9 + $0x74] sm:$0xf]
      %v8044 = vld [vmem:[%s9 + $0x78] sm:$0xf]
      %v8045 = vld [vmem:[%s9 + $0x7c] sm:$0xf]
      %v8046 = vld [vmem:[%s9 + $0x80] sm:$0xf]
      %v8047 = vld [vmem:[%s9 + $0x84] sm:$0xf]
      %v8048 = vld [vmem:[%s9 + $0x88] sm:$0xf]
      %v8049 = vld [vmem:[%s9 + $0x8c] sm:$0xf]
      %v8050 = vld [vmem:[%s10] sm:$0x1]
      %v8051 = vld [vmem:[#allocation3] sm:$0xf]
      %v8052 = vld [vmem:[#allocation3 + $0x8] sm:$0xf]
      %v8053 = vld [vmem:[#allocation3 + $0x10] sm:$0xf]
      %v8054 = vld [vmem:[#allocation3 + $0x18] sm:$0xf]
      %v8055 = vld [vmem:[#allocation3 + $0x20] sm:$0xf]
      %v8056 = vld [vmem:[#allocation3 + $0x28] sm:$0xf]
      %v8057 = vld [vmem:[#allocation3 + $0x30] sm:$0xf]
      %v8058 = vld [vmem:[#allocation3 + $0x38] sm:$0xf]
      %v8059 = vld [vmem:[#allocation3 + $0x4] sm:$0x1]
      %v8060 = vld [vmem:[#allocation3 + $0xc] sm:$0x1]
      %v8061 = vld [vmem:[#allocation3 + $0x14] sm:$0x1]
      %v8062 = vld [vmem:[#allocation3 + $0x1c] sm:$0x1]
      %v8063 = vld [vmem:[#allocation3 + $0x24] sm:$0x1]
      %v8064 = vld [vmem:[#allocation3 + $0x2c] sm:$0x1]
      %v8065 = vld [vmem:[#allocation3 + $0x34] sm:$0x1]
      %v8066 = vld [vmem:[#allocation3 + $0x3c] sm:$0x1]
      %v8068 = vshrl.u32 %v8051, 16
      %v8070 = vrot.slane %v8068, 4
      %v8071 = vshll.u32 %v8051, 16
      %v8073 = vrot.slane %v8071, 5
      %v8074 = vor.u32 %v8070, %v8073
      %v8075 = vrot.slane %v8074, 4
      %v8077 = vshll.u32 %v8059, 16
      %v8079 = vrot.slane %v8077, 5
      %v8080 = vsel %vm628, %v8075, %v8079
      %v8082 = vshrl.u32 %v8052, 16
      %v8084 = vrot.slane %v8082, 4
      %v8085 = vshll.u32 %v8052, 16
      %v8087 = vrot.slane %v8085, 5
      %v8088 = vor.u32 %v8084, %v8087
      %v8089 = vrot.slane %v8088, 4
      %v8091 = vshll.u32 %v8060, 16
      %v8093 = vrot.slane %v8091, 5
      %v8094 = vsel %vm628, %v8089, %v8093
      %v8096 = vshrl.u32 %v8053, 16
      %v8098 = vrot.slane %v8096, 4
      %v8099 = vshll.u32 %v8053, 16
      %v8101 = vrot.slane %v8099, 5
      %v8102 = vor.u32 %v8098, %v8101
      %v8103 = vrot.slane %v8102, 4
      %v8105 = vshll.u32 %v8061, 16
      %v8107 = vrot.slane %v8105, 5
      %v8108 = vsel %vm628, %v8103, %v8107
      %v8110 = vshrl.u32 %v8054, 16
      %v8112 = vrot.slane %v8110, 4
      %v8113 = vshll.u32 %v8054, 16
      %v8115 = vrot.slane %v8113, 5
      %v8116 = vor.u32 %v8112, %v8115
      %v8117 = vrot.slane %v8116, 4
      %v8119 = vshll.u32 %v8062, 16
      %v8121 = vrot.slane %v8119, 5
      %v8122 = vsel %vm628, %v8117, %v8121
      %v8124 = vshrl.u32 %v8055, 16
      %v8126 = vrot.slane %v8124, 4
      %v8127 = vshll.u32 %v8055, 16
      %v8129 = vrot.slane %v8127, 5
      %v8130 = vor.u32 %v8126, %v8129
      %v8131 = vrot.slane %v8130, 4
      %v8133 = vshll.u32 %v8063, 16
      %v8135 = vrot.slane %v8133, 5
      %v8136 = vsel %vm628, %v8131, %v8135
      %v8138 = vshrl.u32 %v8056, 16
      %v8140 = vrot.slane %v8138, 4
      %v8141 = vshll.u32 %v8056, 16
      %v8143 = vrot.slane %v8141, 5
      %v8144 = vor.u32 %v8140, %v8143
      %v8145 = vrot.slane %v8144, 4
      %v8147 = vshll.u32 %v8064, 16
      %v8149 = vrot.slane %v8147, 5
      %v8150 = vsel %vm628, %v8145, %v8149
      %v8152 = vshrl.u32 %v8057, 16
      %v8154 = vrot.slane %v8152, 4
      %v8155 = vshll.u32 %v8057, 16
      %v8157 = vrot.slane %v8155, 5
      %v8158 = vor.u32 %v8154, %v8157
      %v8159 = vrot.slane %v8158, 4
      %v8161 = vshll.u32 %v8065, 16
      %v8163 = vrot.slane %v8161, 5
      %v8164 = vsel %vm628, %v8159, %v8163
      %v8166 = vshrl.u32 %v8058, 16
      %v8168 = vrot.slane %v8166, 4
      %v8169 = vshll.u32 %v8058, 16
      %v8171 = vrot.slane %v8169, 5
      %v8172 = vor.u32 %v8168, %v8171
      %v8173 = vrot.slane %v8172, 4
      %v8175 = vshll.u32 %v8066, 16
      %v8177 = vrot.slane %v8175, 5
      %v8178 = vsel %vm628, %v8173, %v8177
      %v8179 = vld [vmem:[#allocation3] sm:$0xe]
      %v8180 = vld [vmem:[#allocation3 + $0x8] sm:$0xe]
      %v8181 = vld [vmem:[#allocation3 + $0x10] sm:$0xe]
      %v8182 = vld [vmem:[#allocation3 + $0x18] sm:$0xe]
      %v8183 = vld [vmem:[#allocation3 + $0x20] sm:$0xe]
      %v8184 = vld [vmem:[#allocation3 + $0x28] sm:$0xe]
      %v8185 = vld [vmem:[#allocation3 + $0x30] sm:$0xe]
      %v8186 = vld [vmem:[#allocation3 + $0x38] sm:$0xe]
      %v8203 = vrot.slane %v8179, 5
      %v8204 = vrot.slane %v8203, 4
      %v8205 = vrot.slane %v8059, 5
      %v8206 = vsel %vm767, %v8204, %v8205
      %v8207 = vrot.slane %v8180, 5
      %v8208 = vrot.slane %v8207, 4
      %v8209 = vrot.slane %v8060, 5
      %v8210 = vsel %vm767, %v8208, %v8209
      %v8211 = vrot.slane %v8181, 5
      %v8212 = vrot.slane %v8211, 4
      %v8213 = vrot.slane %v8061, 5
      %v8214 = vsel %vm767, %v8212, %v8213
      %v8215 = vrot.slane %v8182, 5
      %v8216 = vrot.slane %v8215, 4
      %v8217 = vrot.slane %v8062, 5
      %v8218 = vsel %vm767, %v8216, %v8217
      %v8219 = vrot.slane %v8183, 5
      %v8220 = vrot.slane %v8219, 4
      %v8221 = vrot.slane %v8063, 5
      %v8222 = vsel %vm767, %v8220, %v8221
      %v8223 = vrot.slane %v8184, 5
      %v8224 = vrot.slane %v8223, 4
      %v8225 = vrot.slane %v8064, 5
      %v8226 = vsel %vm767, %v8224, %v8225
      %v8227 = vrot.slane %v8185, 5
      %v8228 = vrot.slane %v8227, 4
      %v8229 = vrot.slane %v8065, 5
      %v8230 = vsel %vm767, %v8228, %v8229
      %v8231 = vrot.slane %v8186, 5
      %v8232 = vrot.slane %v8231, 4
      %v8233 = vrot.slane %v8066, 5
      %v8234 = vsel %vm767, %v8232, %v8233
      %v8235 = vld [vmem:[%s4216] sm:$0xf]
      %v8236 = vld [vmem:[%s4216 + $0x8] sm:$0xf]
      %v8237 = vld [vmem:[%s4216 + $0x10] sm:$0xf]
      %v8238 = vld [vmem:[%s4216 + $0x18] sm:$0xf]
      %v8239 = vld [vmem:[%s4216 + $0x20] sm:$0xf]
      %v8240 = vld [vmem:[%s4216 + $0x28] sm:$0xf]
      %v8241 = vld [vmem:[%s4216 + $0x30] sm:$0xf]
      %v8242 = vld [vmem:[%s4216 + $0x38] sm:$0xf]
      %v8243 = vld [vmem:[%s4216 + $0x4] sm:$0x1]
      %v8244 = vld [vmem:[%s4216 + $0xc] sm:$0x1]
      %v8245 = vld [vmem:[%s4216 + $0x14] sm:$0x1]
      %v8246 = vld [vmem:[%s4216 + $0x1c] sm:$0x1]
      %v8247 = vld [vmem:[%s4216 + $0x24] sm:$0x1]
      %v8248 = vld [vmem:[%s4216 + $0x2c] sm:$0x1]
      %v8249 = vld [vmem:[%s4216 + $0x34] sm:$0x1]
      %v8250 = vld [vmem:[%s4216 + $0x3c] sm:$0x1]
      %v8252 = vshrl.u32 %v8235, 16
      %v8254 = vrot.slane %v8252, 4
      %v8255 = vshll.u32 %v8235, 16
      %v8257 = vrot.slane %v8255, 5
      %v8258 = vor.u32 %v8254, %v8257
      %v8259 = vrot.slane %v8258, 4
      %v8261 = vshll.u32 %v8243, 16
      %v8263 = vrot.slane %v8261, 5
      %v8264 = vsel %vm628, %v8259, %v8263
      %v8266 = vshrl.u32 %v8236, 16
      %v8268 = vrot.slane %v8266, 4
      %v8269 = vshll.u32 %v8236, 16
      %v8271 = vrot.slane %v8269, 5
      %v8272 = vor.u32 %v8268, %v8271
      %v8273 = vrot.slane %v8272, 4
      %v8275 = vshll.u32 %v8244, 16
      %v8277 = vrot.slane %v8275, 5
      %v8278 = vsel %vm628, %v8273, %v8277
      %v8280 = vshrl.u32 %v8237, 16
      %v8282 = vrot.slane %v8280, 4
      %v8283 = vshll.u32 %v8237, 16
      %v8285 = vrot.slane %v8283, 5
      %v8286 = vor.u32 %v8282, %v8285
      %v8287 = vrot.slane %v8286, 4
      %v8289 = vshll.u32 %v8245, 16
      %v8291 = vrot.slane %v8289, 5
      %v8292 = vsel %vm628, %v8287, %v8291
      %v8294 = vshrl.u32 %v8238, 16
      %v8296 = vrot.slane %v8294, 4
      %v8297 = vshll.u32 %v8238, 16
      %v8299 = vrot.slane %v8297, 5
      %v8300 = vor.u32 %v8296, %v8299
      %v8301 = vrot.slane %v8300, 4
      %v8303 = vshll.u32 %v8246, 16
      %v8305 = vrot.slane %v8303, 5
      %v8306 = vsel %vm628, %v8301, %v8305
      %v8308 = vshrl.u32 %v8239, 16
      %v8310 = vrot.slane %v8308, 4
      %v8311 = vshll.u32 %v8239, 16
      %v8313 = vrot.slane %v8311, 5
      %v8314 = vor.u32 %v8310, %v8313
      %v8315 = vrot.slane %v8314, 4
      %v8317 = vshll.u32 %v8247, 16
      %v8319 = vrot.slane %v8317, 5
      %v8320 = vsel %vm628, %v8315, %v8319
      %v8322 = vshrl.u32 %v8240, 16
      %v8324 = vrot.slane %v8322, 4
      %v8325 = vshll.u32 %v8240, 16
      %v8327 = vrot.slane %v8325, 5
      %v8328 = vor.u32 %v8324, %v8327
      %v8329 = vrot.slane %v8328, 4
      %v8331 = vshll.u32 %v8248, 16
      %v8333 = vrot.slane %v8331, 5
      %v8334 = vsel %vm628, %v8329, %v8333
      %v8336 = vshrl.u32 %v8241, 16
      %v8338 = vrot.slane %v8336, 4
      %v8339 = vshll.u32 %v8241, 16
      %v8341 = vrot.slane %v8339, 5
      %v8342 = vor.u32 %v8338, %v8341
      %v8343 = vrot.slane %v8342, 4
      %v8345 = vshll.u32 %v8249, 16
      %v8347 = vrot.slane %v8345, 5
      %v8348 = vsel %vm628, %v8343, %v8347
      %v8350 = vshrl.u32 %v8242, 16
      %v8352 = vrot.slane %v8350, 4
      %v8353 = vshll.u32 %v8242, 16
      %v8355 = vrot.slane %v8353, 5
      %v8356 = vor.u32 %v8352, %v8355
      %v8357 = vrot.slane %v8356, 4
      %v8359 = vshll.u32 %v8250, 16
      %v8361 = vrot.slane %v8359, 5
      %v8362 = vsel %vm628, %v8357, %v8361
      %v8363 = vld [vmem:[%s4216] sm:$0xe]
      %v8364 = vld [vmem:[%s4216 + $0x8] sm:$0xe]
      %v8365 = vld [vmem:[%s4216 + $0x10] sm:$0xe]
      %v8366 = vld [vmem:[%s4216 + $0x18] sm:$0xe]
      %v8367 = vld [vmem:[%s4216 + $0x20] sm:$0xe]
      %v8368 = vld [vmem:[%s4216 + $0x28] sm:$0xe]
      %v8369 = vld [vmem:[%s4216 + $0x30] sm:$0xe]
      %v8370 = vld [vmem:[%s4216 + $0x38] sm:$0xe]
      %v8387 = vrot.slane %v8363, 5
      %v8388 = vrot.slane %v8387, 4
      %v8389 = vrot.slane %v8243, 5
      %v8390 = vsel %vm767, %v8388, %v8389
      %v8391 = vrot.slane %v8364, 5
      %v8392 = vrot.slane %v8391, 4
      %v8393 = vrot.slane %v8244, 5
      %v8394 = vsel %vm767, %v8392, %v8393
      %v8395 = vrot.slane %v8365, 5
      %v8396 = vrot.slane %v8395, 4
      %v8397 = vrot.slane %v8245, 5
      %v8398 = vsel %vm767, %v8396, %v8397
      %v8399 = vrot.slane %v8366, 5
      %v8400 = vrot.slane %v8399, 4
      %v8401 = vrot.slane %v8246, 5
      %v8402 = vsel %vm767, %v8400, %v8401
      %v8403 = vrot.slane %v8367, 5
      %v8404 = vrot.slane %v8403, 4
      %v8405 = vrot.slane %v8247, 5
      %v8406 = vsel %vm767, %v8404, %v8405
      %v8407 = vrot.slane %v8368, 5
      %v8408 = vrot.slane %v8407, 4
      %v8409 = vrot.slane %v8248, 5
      %v8410 = vsel %vm767, %v8408, %v8409
      %v8411 = vrot.slane %v8369, 5
      %v8412 = vrot.slane %v8411, 4
      %v8413 = vrot.slane %v8249, 5
      %v8414 = vsel %vm767, %v8412, %v8413
      %v8415 = vrot.slane %v8370, 5
      %v8416 = vrot.slane %v8415, 4
      %v8417 = vrot.slane %v8250, 5
      %v8418 = vsel %vm767, %v8416, %v8417
      %v8419 = vld [vmem:[%s4670] sm:$0xf]
      %v8420 = vld [vmem:[%s4670 + $0x8] sm:$0xf]
      %v8421 = vld [vmem:[%s4670 + $0x10] sm:$0xf]
      %v8422 = vld [vmem:[%s4670 + $0x18] sm:$0xf]
      %v8423 = vld [vmem:[%s4670 + $0x20] sm:$0xf]
      %v8424 = vld [vmem:[%s4670 + $0x28] sm:$0xf]
      %v8425 = vld [vmem:[%s4670 + $0x30] sm:$0xf]
      %v8426 = vld [vmem:[%s4670 + $0x38] sm:$0xf]
      %v8427 = vld [vmem:[%s4670 + $0x4] sm:$0x1]
      %v8428 = vld [vmem:[%s4670 + $0xc] sm:$0x1]
      %v8429 = vld [vmem:[%s4670 + $0x14] sm:$0x1]
      %v8430 = vld [vmem:[%s4670 + $0x1c] sm:$0x1]
      %v8431 = vld [vmem:[%s4670 + $0x24] sm:$0x1]
      %v8432 = vld [vmem:[%s4670 + $0x2c] sm:$0x1]
      %v8433 = vld [vmem:[%s4670 + $0x34] sm:$0x1]
      %v8434 = vld [vmem:[%s4670 + $0x3c] sm:$0x1]
      %v8436 = vshrl.u32 %v8419, 16
      %v8438 = vrot.slane %v8436, 4
      %v8439 = vshll.u32 %v8419, 16
      %v8441 = vrot.slane %v8439, 5
      %v8442 = vor.u32 %v8438, %v8441
      %v8443 = vrot.slane %v8442, 4
      %v8445 = vshll.u32 %v8427, 16
      %v8447 = vrot.slane %v8445, 5
      %v8448 = vsel %vm628, %v8443, %v8447
      %v8450 = vshrl.u32 %v8420, 16
      %v8452 = vrot.slane %v8450, 4
      %v8453 = vshll.u32 %v8420, 16
      %v8455 = vrot.slane %v8453, 5
      %v8456 = vor.u32 %v8452, %v8455
      %v8457 = vrot.slane %v8456, 4
      %v8459 = vshll.u32 %v8428, 16
      %v8461 = vrot.slane %v8459, 5
      %v8462 = vsel %vm628, %v8457, %v8461
      %v8464 = vshrl.u32 %v8421, 16
      %v8466 = vrot.slane %v8464, 4
      %v8467 = vshll.u32 %v8421, 16
      %v8469 = vrot.slane %v8467, 5
      %v8470 = vor.u32 %v8466, %v8469
      %v8471 = vrot.slane %v8470, 4
      %v8473 = vshll.u32 %v8429, 16
      %v8475 = vrot.slane %v8473, 5
      %v8476 = vsel %vm628, %v8471, %v8475
      %v8478 = vshrl.u32 %v8422, 16
      %v8480 = vrot.slane %v8478, 4
      %v8481 = vshll.u32 %v8422, 16
      %v8483 = vrot.slane %v8481, 5
      %v8484 = vor.u32 %v8480, %v8483
      %v8485 = vrot.slane %v8484, 4
      %v8487 = vshll.u32 %v8430, 16
      %v8489 = vrot.slane %v8487, 5
      %v8490 = vsel %vm628, %v8485, %v8489
      %v8492 = vshrl.u32 %v8423, 16
      %v8494 = vrot.slane %v8492, 4
      %v8495 = vshll.u32 %v8423, 16
      %v8497 = vrot.slane %v8495, 5
      %v8498 = vor.u32 %v8494, %v8497
      %v8499 = vrot.slane %v8498, 4
      %v8501 = vshll.u32 %v8431, 16
      %v8503 = vrot.slane %v8501, 5
      %v8504 = vsel %vm628, %v8499, %v8503
      %v8506 = vshrl.u32 %v8424, 16
      %v8508 = vrot.slane %v8506, 4
      %v8509 = vshll.u32 %v8424, 16
      %v8511 = vrot.slane %v8509, 5
      %v8512 = vor.u32 %v8508, %v8511
      %v8513 = vrot.slane %v8512, 4
      %v8515 = vshll.u32 %v8432, 16
      %v8517 = vrot.slane %v8515, 5
      %v8518 = vsel %vm628, %v8513, %v8517
      %v8520 = vshrl.u32 %v8425, 16
      %v8522 = vrot.slane %v8520, 4
      %v8523 = vshll.u32 %v8425, 16
      %v8525 = vrot.slane %v8523, 5
      %v8526 = vor.u32 %v8522, %v8525
      %v8527 = vrot.slane %v8526, 4
      %v8529 = vshll.u32 %v8433, 16
      %v8531 = vrot.slane %v8529, 5
      %v8532 = vsel %vm628, %v8527, %v8531
      %v8534 = vshrl.u32 %v8426, 16
      %v8536 = vrot.slane %v8534, 4
      %v8537 = vshll.u32 %v8426, 16
      %v8539 = vrot.slane %v8537, 5
      %v8540 = vor.u32 %v8536, %v8539
      %v8541 = vrot.slane %v8540, 4
      %v8543 = vshll.u32 %v8434, 16
      %v8545 = vrot.slane %v8543, 5
      %v8546 = vsel %vm628, %v8541, %v8545
      %v8547 = vld [vmem:[%s4670] sm:$0xe]
      %v8548 = vld [vmem:[%s4670 + $0x8] sm:$0xe]
      %v8549 = vld [vmem:[%s4670 + $0x10] sm:$0xe]
      %v8550 = vld [vmem:[%s4670 + $0x18] sm:$0xe]
      %v8551 = vld [vmem:[%s4670 + $0x20] sm:$0xe]
      %v8552 = vld [vmem:[%s4670 + $0x28] sm:$0xe]
      %v8553 = vld [vmem:[%s4670 + $0x30] sm:$0xe]
      %v8554 = vld [vmem:[%s4670 + $0x38] sm:$0xe]
      %v8571 = vrot.slane %v8547, 5
      %v8572 = vrot.slane %v8571, 4
      %v8573 = vrot.slane %v8427, 5
      %v8574 = vsel %vm767, %v8572, %v8573
      %v8575 = vrot.slane %v8548, 5
      %v8576 = vrot.slane %v8575, 4
      %v8577 = vrot.slane %v8428, 5
      %v8578 = vsel %vm767, %v8576, %v8577
      %v8579 = vrot.slane %v8549, 5
      %v8580 = vrot.slane %v8579, 4
      %v8581 = vrot.slane %v8429, 5
      %v8582 = vsel %vm767, %v8580, %v8581
      %v8583 = vrot.slane %v8550, 5
      %v8584 = vrot.slane %v8583, 4
      %v8585 = vrot.slane %v8430, 5
      %v8586 = vsel %vm767, %v8584, %v8585
      %v8587 = vrot.slane %v8551, 5
      %v8588 = vrot.slane %v8587, 4
      %v8589 = vrot.slane %v8431, 5
      %v8590 = vsel %vm767, %v8588, %v8589
      %v8591 = vrot.slane %v8552, 5
      %v8592 = vrot.slane %v8591, 4
      %v8593 = vrot.slane %v8432, 5
      %v8594 = vsel %vm767, %v8592, %v8593
      %v8595 = vrot.slane %v8553, 5
      %v8596 = vrot.slane %v8595, 4
      %v8597 = vrot.slane %v8433, 5
      %v8598 = vsel %vm767, %v8596, %v8597
      %v8599 = vrot.slane %v8554, 5
      %v8600 = vrot.slane %v8599, 4
      %v8601 = vrot.slane %v8434, 5
      %v8602 = vsel %vm767, %v8600, %v8601
      %v8611 = vunpack.c.l.b16 %v8051
      %v8612 = vunpack.c.l.b16 %v8052
      %v8613 = vunpack.c.l.b16 %v8053
      %v8614 = vunpack.c.l.b16 %v8054
      %v8615 = vunpack.c.l.b16 %v8055
      %v8616 = vunpack.c.l.b16 %v8056
      %v8617 = vunpack.c.l.b16 %v8057
      %v8618 = vunpack.c.l.b16 %v8058
      %v8619 = vpack.c.b16 %v8612, %v8611
      %v8620 = vpack.c.b16 %v8614, %v8613
      %v8621 = vpack.c.b16 %v8616, %v8615
      %v8622 = vpack.c.b16 %v8618, %v8617
      %v8623 = vunpack.c.l.b16 %v8080
      %v8624 = vunpack.c.l.b16 %v8094
      %v8625 = vunpack.c.l.b16 %v8108
      %v8626 = vunpack.c.l.b16 %v8122
      %v8627 = vunpack.c.l.b16 %v8136
      %v8628 = vunpack.c.l.b16 %v8150
      %v8629 = vunpack.c.l.b16 %v8164
      %v8630 = vunpack.c.l.b16 %v8178
      %v8631 = vpack.c.b16 %v8624, %v8623
      %v8632 = vpack.c.b16 %v8626, %v8625
      %v8633 = vpack.c.b16 %v8628, %v8627
      %v8634 = vpack.c.b16 %v8630, %v8629
      %8635 = vrot.lane.b32.xlu0 %v8631, 32
      %v8636 = vpop.permute.xlu0 %8635
      %8637 = vrot.lane.b32.xlu0 %v8632, 32
      %v8638 = vpop.permute.xlu0 %8637
      %8639 = vrot.lane.b32.xlu0 %v8633, 32
      %v8640 = vpop.permute.xlu0 %8639
      %8641 = vrot.lane.b32.xlu0 %v8634, 32
      %v8642 = vpop.permute.xlu0 %8641
      %v8643 = vunpack.c.l.b16 %v8206
      %v8644 = vunpack.c.l.b16 %v8210
      %v8645 = vunpack.c.l.b16 %v8214
      %v8646 = vunpack.c.l.b16 %v8218
      %v8647 = vunpack.c.l.b16 %v8222
      %v8648 = vunpack.c.l.b16 %v8226
      %v8649 = vunpack.c.l.b16 %v8230
      %v8650 = vunpack.c.l.b16 %v8234
      %v8651 = vpack.c.b16 %v8644, %v8643
      %v8652 = vpack.c.b16 %v8646, %v8645
      %v8653 = vpack.c.b16 %v8648, %v8647
      %v8654 = vpack.c.b16 %v8650, %v8649
      %8655 = vrot.lane.b32.xlu0 %v8651, 64
      %v8656 = vpop.permute.xlu0 %8655
      %8657 = vrot.lane.b32.xlu0 %v8652, 64
      %v8658 = vpop.permute.xlu0 %8657
      %8659 = vrot.lane.b32.xlu0 %v8653, 64
      %v8660 = vpop.permute.xlu0 %8659
      %8661 = vrot.lane.b32.xlu0 %v8654, 64
      %v8662 = vpop.permute.xlu0 %8661
      %v8671 = vunpack.c.l.b16 %v8235
      %v8672 = vunpack.c.l.b16 %v8236
      %v8673 = vunpack.c.l.b16 %v8237
      %v8674 = vunpack.c.l.b16 %v8238
      %v8675 = vunpack.c.l.b16 %v8239
      %v8676 = vunpack.c.l.b16 %v8240
      %v8677 = vunpack.c.l.b16 %v8241
      %v8678 = vunpack.c.l.b16 %v8242
      %v8679 = vpack.c.b16 %v8672, %v8671
      %v8680 = vpack.c.b16 %v8674, %v8673
      %v8681 = vpack.c.b16 %v8676, %v8675
      %v8682 = vpack.c.b16 %v8678, %v8677
      %8683 = vrot.lane.b32.xlu0 %v8679, 96
      %v8684 = vpop.permute.xlu0 %8683
      %8685 = vrot.lane.b32.xlu0 %v8680, 96
      %v8686 = vpop.permute.xlu0 %8685
      %8687 = vrot.lane.b32.xlu0 %v8681, 96
      %v8688 = vpop.permute.xlu0 %8687
      %8689 = vrot.lane.b32.xlu0 %v8682, 96
      %v8690 = vpop.permute.xlu0 %8689
      %v8691 = vunpack.c.l.b16 %v8264
      %v8692 = vunpack.c.l.b16 %v8278
      %v8693 = vunpack.c.l.b16 %v8292
      %v8694 = vunpack.c.l.b16 %v8306
      %v8695 = vunpack.c.l.b16 %v8320
      %v8696 = vunpack.c.l.b16 %v8334
      %v8697 = vunpack.c.l.b16 %v8348
      %v8698 = vunpack.c.l.b16 %v8362
      %v8699 = vpack.c.b16 %v8692, %v8691
      %v8700 = vpack.c.b16 %v8694, %v8693
      %v8701 = vpack.c.b16 %v8696, %v8695
      %v8702 = vpack.c.b16 %v8698, %v8697
      %v8703 = vunpack.c.l.b16 %v8390
      %v8704 = vunpack.c.l.b16 %v8394
      %v8705 = vunpack.c.l.b16 %v8398
      %v8706 = vunpack.c.l.b16 %v8402
      %v8707 = vunpack.c.l.b16 %v8406
      %v8708 = vunpack.c.l.b16 %v8410
      %v8709 = vunpack.c.l.b16 %v8414
      %v8710 = vunpack.c.l.b16 %v8418
      %v8711 = vpack.c.b16 %v8704, %v8703
      %v8712 = vpack.c.b16 %v8706, %v8705
      %v8713 = vpack.c.b16 %v8708, %v8707
      %v8714 = vpack.c.b16 %v8710, %v8709
      %8715 = vrot.lane.b32.xlu0 %v8711, 32
      %v8716 = vpop.permute.xlu0 %8715
      %8717 = vrot.lane.b32.xlu0 %v8712, 32
      %v8718 = vpop.permute.xlu0 %8717
      %8719 = vrot.lane.b32.xlu0 %v8713, 32
      %v8720 = vpop.permute.xlu0 %8719
      %8721 = vrot.lane.b32.xlu0 %v8714, 32
      %v8722 = vpop.permute.xlu0 %8721
      %v8731 = vunpack.c.l.b16 %v8419
      %v8732 = vunpack.c.l.b16 %v8420
      %v8733 = vunpack.c.l.b16 %v8421
      %v8734 = vunpack.c.l.b16 %v8422
      %v8735 = vunpack.c.l.b16 %v8423
      %v8736 = vunpack.c.l.b16 %v8424
      %v8737 = vunpack.c.l.b16 %v8425
      %v8738 = vunpack.c.l.b16 %v8426
      %v8739 = vpack.c.b16 %v8732, %v8731
      %v8740 = vpack.c.b16 %v8734, %v8733
      %v8741 = vpack.c.b16 %v8736, %v8735
      %v8742 = vpack.c.b16 %v8738, %v8737
      %8743 = vrot.lane.b32.xlu0 %v8739, 64
      %v8744 = vpop.permute.xlu0 %8743
      %8745 = vrot.lane.b32.xlu0 %v8740, 64
      %v8746 = vpop.permute.xlu0 %8745
      %8747 = vrot.lane.b32.xlu0 %v8741, 64
      %v8748 = vpop.permute.xlu0 %8747
      %8749 = vrot.lane.b32.xlu0 %v8742, 64
      %v8750 = vpop.permute.xlu0 %8749
      %v8751 = vunpack.c.l.b16 %v8448
      %v8752 = vunpack.c.l.b16 %v8462
      %v8753 = vunpack.c.l.b16 %v8476
      %v8754 = vunpack.c.l.b16 %v8490
      %v8755 = vunpack.c.l.b16 %v8504
      %v8756 = vunpack.c.l.b16 %v8518
      %v8757 = vunpack.c.l.b16 %v8532
      %v8758 = vunpack.c.l.b16 %v8546
      %v8759 = vpack.c.b16 %v8752, %v8751
      %v8760 = vpack.c.b16 %v8754, %v8753
      %v8761 = vpack.c.b16 %v8756, %v8755
      %v8762 = vpack.c.b16 %v8758, %v8757
      %8763 = vrot.lane.b32.xlu0 %v8759, 96
      %v8764 = vpop.permute.xlu0 %8763
      %8765 = vrot.lane.b32.xlu0 %v8760, 96
      %v8766 = vpop.permute.xlu0 %8765
      %8767 = vrot.lane.b32.xlu0 %v8761, 96
      %v8768 = vpop.permute.xlu0 %8767
      %8769 = vrot.lane.b32.xlu0 %v8762, 96
      %v8770 = vpop.permute.xlu0 %8769
      %v8771 = vunpack.c.l.b16 %v8574
      %v8772 = vunpack.c.l.b16 %v8578
      %v8773 = vunpack.c.l.b16 %v8582
      %v8774 = vunpack.c.l.b16 %v8586
      %v8775 = vunpack.c.l.b16 %v8590
      %v8776 = vunpack.c.l.b16 %v8594
      %v8777 = vunpack.c.l.b16 %v8598
      %v8778 = vunpack.c.l.b16 %v8602
      %v8779 = vpack.c.b16 %v8772, %v8771
      %v8780 = vpack.c.b16 %v8774, %v8773
      %v8781 = vpack.c.b16 %v8776, %v8775
      %v8782 = vpack.c.b16 %v8778, %v8777
      %v8785 = vsel %vm1349, %v8619, %v8636
      %v8788 = vsel %vm1349, %v8620, %v8638
      %v8791 = vsel %vm1349, %v8621, %v8640
      %v8794 = vsel %vm1349, %v8622, %v8642
      %v8796 = vsel %vm1362, %v8785, %v8656
      %v8798 = vsel %vm1362, %v8788, %v8658
      %v8800 = vsel %vm1362, %v8791, %v8660
      %v8802 = vsel %vm1362, %v8794, %v8662
      %v8804 = vsel %vm1371, %v8796, %v8684
      %v8807 = vsel %vm1371, %v8798, %v8686
      %v8810 = vsel %vm1371, %v8800, %v8688
      %v8813 = vsel %vm1371, %v8802, %v8690
      %v8817 = vsel %vm1349, %v8699, %v8716
      %v8820 = vsel %vm1349, %v8700, %v8718
      %v8823 = vsel %vm1349, %v8701, %v8720
      %v8826 = vsel %vm1349, %v8702, %v8722
      %v8828 = vsel %vm1362, %v8817, %v8744
      %v8830 = vsel %vm1362, %v8820, %v8746
      %v8832 = vsel %vm1362, %v8823, %v8748
      %v8834 = vsel %vm1362, %v8826, %v8750
      %v8836 = vsel %vm1371, %v8828, %v8764
      %v8839 = vsel %vm1371, %v8830, %v8766
      %v8842 = vsel %vm1371, %v8832, %v8768
      %v8845 = vsel %vm1371, %v8834, %v8770
      %v8848 = vlaneseq
      %v8849 = vshrl.u32 %v8848, 7
      %v8850 = vsub.s32 0, %v8849
      %v8851 = vrot.slane %v8050, %v8850
      %v8889 = vunpack.c.l.b16 %v8014
      %v8890 = vunpack.c.l.b16 %v8015
      %v8891 = vunpack.c.l.b16 %v8016
      %v8892 = vunpack.c.l.b16 %v8017
      %v8893 = vunpack.c.l.b16 %v8018
      %v8894 = vunpack.c.l.b16 %v8019
      %v8895 = vunpack.c.l.b16 %v8020
      %v8896 = vunpack.c.l.b16 %v8021
      %v8897 = vunpack.c.l.b16 %v8022
      %v8898 = vunpack.c.l.b16 %v8023
      %v8899 = vunpack.c.l.b16 %v8024
      %v8900 = vunpack.c.l.b16 %v8025
      %v8901 = vunpack.c.l.b16 %v8026
      %v8902 = vunpack.c.l.b16 %v8027
      %v8903 = vunpack.c.l.b16 %v8028
      %v8904 = vunpack.c.l.b16 %v8029
      %v8905 = vunpack.c.l.b16 %v8030
      %v8906 = vunpack.c.l.b16 %v8031
      %v8907 = vunpack.c.l.b16 %v8032
      %v8908 = vunpack.c.l.b16 %v8033
      %v8909 = vunpack.c.l.b16 %v8034
      %v8910 = vunpack.c.l.b16 %v8035
      %v8911 = vunpack.c.l.b16 %v8036
      %v8912 = vunpack.c.l.b16 %v8037
      %v8913 = vunpack.c.l.b16 %v8038
      %v8914 = vunpack.c.l.b16 %v8039
      %v8915 = vunpack.c.l.b16 %v8040
      %v8916 = vunpack.c.l.b16 %v8041
      %v8917 = vunpack.c.l.b16 %v8042
      %v8918 = vunpack.c.l.b16 %v8043
      %v8919 = vunpack.c.l.b16 %v8044
      %v8920 = vunpack.c.l.b16 %v8045
      %v8921 = vunpack.c.l.b16 %v8046
      %v8922 = vunpack.c.l.b16 %v8047
      %v8923 = vunpack.c.l.b16 %v8048
      %v8924 = vunpack.c.l.b16 %v8049
      %v8925 = vpack.c.b16 %v8890, %v8889
      %v8926 = vpack.c.b16 %v8892, %v8891
      %v8927 = vpack.c.b16 %v8894, %v8893
      %v8928 = vpack.c.b16 %v8896, %v8895
      %v8929 = vpack.c.b16 %v8898, %v8897
      %v8930 = vpack.c.b16 %v8900, %v8899
      %v8931 = vpack.c.b16 %v8902, %v8901
      %v8932 = vpack.c.b16 %v8904, %v8903
      %v8933 = vpack.c.b16 %v8906, %v8905
      %v8934 = vpack.c.b16 %v8908, %v8907
      %v8935 = vpack.c.b16 %v8910, %v8909
      %v8936 = vpack.c.b16 %v8912, %v8911
      %v8937 = vpack.c.b16 %v8914, %v8913
      %v8938 = vpack.c.b16 %v8916, %v8915
      %v8939 = vpack.c.b16 %v8918, %v8917
      %v8940 = vpack.c.b16 %v8920, %v8919
      %v8941 = vpack.c.b16 %v8922, %v8921
      %v8942 = vpack.c.b16 %v8924, %v8923
      %v8962 = vsel %vm1349, %v8779, 0
      %v8965 = vsel %vm1349, %v8780, 0
      %v8968 = vsel %vm1349, %v8781, 0
      %v8971 = vsel %vm1349, %v8782, 0
      %8973 = vmatprep.subr.bf16.mxu0 0
      %8974 = vmatpush1.bf16.msra.mxu0 %v8925
      %8975 = vmatprep.subr.bf16.mxu0 0
      %8976 = vmatpush1.bf16.msra.mxu0 %v8926
      %8977 = vmatprep.subr.bf16.mxu0 0
      %8978 = vmatpush1.bf16.msra.mxu0 %v8927
      %8979 = vmatprep.subr.bf16.mxu0 0
      %8980 = vmatpush1.bf16.msra.mxu0 %v8928
      %8981 = vmatprep.subr.bf16.mxu0 0
      %8982 = vmatpush1.bf16.msra.mxu0 %v8929
      %8983 = vmatprep.subr.bf16.mxu0 0
      %8984 = vmatpush1.bf16.msra.mxu0 %v8930
      %8985 = vmatprep.subr.bf16.mxu0 0
      %8986 = vmatpush1.bf16.msra.mxu0 %v8931
      %8987 = vmatprep.subr.bf16.mxu0 0
      %8988 = vmatpush1.bf16.msra.mxu0 %v8932
      %8989 = vmatprep.subr.bf16.mxu0 0
      %8990 = vmatpush1.bf16.msra.mxu0 %v8933
      %8991 = vmatprep.subr.bf16.mxu0 0
      %8992 = vmatpush1.bf16.msra.mxu0 %v8934
      %8993 = vmatprep.subr.bf16.mxu0 0
      %8994 = vmatpush1.bf16.msra.mxu0 %v8935
      %8995 = vmatprep.subr.bf16.mxu0 0
      %8996 = vmatpush1.bf16.msra.mxu0 %v8936
      %8997 = vmatprep.subr.bf16.mxu0 0
      %8998 = vmatpush1.bf16.msra.mxu0 %v8937
      %8999 = vmatprep.subr.bf16.mxu0 0
      %9000 = vmatpush1.bf16.msra.mxu0 %v8938
      %9001 = vmatprep.subr.bf16.mxu0 0
      %9002 = vmatpush1.bf16.msra.mxu0 %v8939
      %9003 = vmatprep.subr.bf16.mxu0 0
      %9004 = vmatpush1.bf16.msra.mxu0 %v8940
      %9005 = vmatprep.mubr.bf16.mxu0 %v8836
      %9006 = vmatmul.mubr.bf16.gmra.mrb[0].mxu0 %v8804
      %v9007 = vpop.f32.mrb[0].mxu0
      %v9008 = vadd.f32 %v8851, %v9007
      %v9009 = vpop.f32.mrb[0].mxu0
      %v9010 = vpop.f32.mrb[0].mxu0
      %v9011 = vadd.f32 %v8851, %v9010
      %v9012 = vpop.f32.mrb[0].mxu0
      %9013 = vmatprep.mubr.bf16.mxu0 %v8839
      %9014 = vmatmul.mubr.bf16.gmra.mrb[0].mxu0 %v8807
      %v9015 = vpop.f32.mrb[0].mxu0
      %v9016 = vadd.f32 %v8851, %v9015
      %v9017 = vpop.f32.mrb[0].mxu0
      %v9018 = vpop.f32.mrb[0].mxu0
      %v9019 = vadd.f32 %v8851, %v9018
      %v9020 = vpop.f32.mrb[0].mxu0
      %9021 = vmatprep.mubr.bf16.mxu0 %v8842
      %9022 = vmatmul.mubr.bf16.gmra.mrb[0].mxu0 %v8810
      %v9023 = vpop.f32.mrb[0].mxu0
      %v9024 = vadd.f32 %v8851, %v9023
      %v9025 = vpop.f32.mrb[0].mxu0
      %v9026 = vpop.f32.mrb[0].mxu0
      %v9027 = vadd.f32 %v8851, %v9026
      %v9028 = vpop.f32.mrb[0].mxu0
      %9029 = vmatprep.mubr.bf16.mxu0 %v8845
      %9030 = vmatmul.mubr.bf16.gmra.mrb[0].mxu0 %v8813
      %v9031 = vpop.f32.mrb[0].mxu0
      %v9032 = vadd.f32 %v8851, %v9031
      %v9033 = vpop.f32.mrb[0].mxu0
      %v9034 = vpop.f32.mrb[0].mxu0
      %v9035 = vadd.f32 %v8851, %v9034
      %v9036 = vpop.f32.mrb[0].mxu0
      %9037 = vdwg.mxu0
      %9038 = vmatprep.subr.bf16.mxu0 0
      %9039 = vmatpush1.bf16.msra.mxu0 %v8941
      %9040 = vmatprep.subr.bf16.mxu0 0
      %9041 = vmatpush1.bf16.msra.mxu0 %v8942
      %9042 = vmatprep.subr.bf16.mxu0 0
      %9043 = vmatpush1.bf16.msra.mxu0 0
      %9044 = vmatprep.subr.bf16.mxu0 0
      %9045 = vmatpush1.bf16.msra.mxu0 0
      %9046 = vmatprep.subr.bf16.mxu0 0
      %9047 = vmatpush1.bf16.msra.mxu0 0
      %9048 = vmatprep.subr.bf16.mxu0 0
      %9049 = vmatpush1.bf16.msra.mxu0 0
      %9050 = vmatprep.subr.bf16.mxu0 0
      %9051 = vmatpush1.bf16.msra.mxu0 0
      %9052 = vmatprep.subr.bf16.mxu0 0
      %9053 = vmatpush1.bf16.msra.mxu0 0
      %9054 = vmatprep.subr.bf16.mxu0 0
      %9055 = vmatpush1.bf16.msra.mxu0 0
      %9056 = vmatprep.subr.bf16.mxu0 0
      %9057 = vmatpush1.bf16.msra.mxu0 0
      %9058 = vmatprep.subr.bf16.mxu0 0
      %9059 = vmatpush1.bf16.msra.mxu0 0
      %9060 = vmatprep.subr.bf16.mxu0 0
      %9061 = vmatpush1.bf16.msra.mxu0 0
      %9062 = vmatprep.subr.bf16.mxu0 0
      %9063 = vmatpush1.bf16.msra.mxu0 0
      %9064 = vmatprep.subr.bf16.mxu0 0
      %9065 = vmatpush1.bf16.msra.mxu0 0
      %9066 = vmatprep.subr.bf16.mxu0 0
      %9067 = vmatpush1.bf16.msra.mxu0 0
      %9068 = vmatprep.subr.bf16.mxu0 0
      %9069 = vmatpush1.bf16.msra.mxu0 0
      %9070 = vmatprep.mubr.bf16.mxu0 0
      %9071 = vmatmul.mubr.bf16.gmra.mrb[0].mxu0 %v8962
      %v9072 = vpop.f32.mrb[0].mxu0
      %v9073 = vadd.f32 %v9008, %v9072
      %v9074 = vpop.f32.mrb[0].mxu0
      %v9075 = vpop.f32.mrb[0].mxu0
      %v9076 = vadd.f32 %v9011, %v9075
      %v9077 = vpop.f32.mrb[0].mxu0
      %9078 = vmatprep.mubr.bf16.mxu0 0
      %9079 = vmatmul.mubr.bf16.gmra.mrb[0].mxu0 %v8965
      %v9080 = vpop.f32.mrb[0].mxu0
      %v9081 = vadd.f32 %v9016, %v9080
      %v9082 = vpop.f32.mrb[0].mxu0
      %v9083 = vpop.f32.mrb[0].mxu0
      %v9084 = vadd.f32 %v9019, %v9083
      %v9085 = vpop.f32.mrb[0].mxu0
      %9086 = vmatprep.mubr.bf16.mxu0 0
      %9087 = vmatmul.mubr.bf16.gmra.mrb[0].mxu0 %v8968
      %v9088 = vpop.f32.mrb[0].mxu0
      %v9089 = vadd.f32 %v9024, %v9088
      %v9090 = vpop.f32.mrb[0].mxu0
      %v9091 = vpop.f32.mrb[0].mxu0
      %v9092 = vadd.f32 %v9027, %v9091
      %v9093 = vpop.f32.mrb[0].mxu0
      %9094 = vmatprep.mubr.bf16.mxu0 0
      %9095 = vmatmul.mubr.bf16.gmra.mrb[0].mxu0 %v8971
      %v9096 = vpop.f32.mrb[0].mxu0
      %v9097 = vadd.f32 %v9032, %v9096
      %v9098 = vpop.f32.mrb[0].mxu0
      %v9099 = vpop.f32.mrb[0].mxu0
      %v9100 = vadd.f32 %v9035, %v9099
      %v9101 = vpop.f32.mrb[0].mxu0
      %9102 = vdwg.mxu0
      %v9103 = vmul.f32 %v4138, 1.442695
      %v9104 = vpow.pop %v9103
      %v9105 = vmul.f32 %v4141, 1.442695
      %v9106 = vpow.pop %v9105
      %v9107 = vmul.f32 %v4146, 1.442695
      %v9108 = vpow.pop %v9107
      %v9109 = vmul.f32 %v4149, 1.442695
      %v9110 = vpow.pop %v9109
      %v9111 = vmul.f32 %v4154, 1.442695
      %v9112 = vpow.pop %v9111
      %v9113 = vmul.f32 %v4157, 1.442695
      %v9114 = vpow.pop %v9113
      %v9115 = vmul.f32 %v4162, 1.442695
      %v9116 = vpow.pop %v9115
      %v9117 = vmul.f32 %v4165, 1.442695
      %v9118 = vpow.pop %v9117
      %v9119 = vmin.f32 %v9104, 1e+08
      %v9120 = vmin.f32 %v9106, 1e+08
      %v9121 = vmin.f32 %v9108, 1e+08
      %v9122 = vmin.f32 %v9110, 1e+08
      %v9123 = vmin.f32 %v9112, 1e+08
      %v9124 = vmin.f32 %v9114, 1e+08
      %v9125 = vmin.f32 %v9116, 1e+08
      %v9126 = vmin.f32 %v9118, 1e+08
      %v9127 = vmul.f32 %v9073, 1.442695
      %v9128 = vpow.pop %v9127
      %v9129 = vmul.f32 %v9076, 1.442695
      %v9130 = vpow.pop %v9129
      %v9131 = vmul.f32 %v9081, 1.442695
      %v9132 = vpow.pop %v9131
      %v9133 = vmul.f32 %v9084, 1.442695
      %v9134 = vpow.pop %v9133
      %v9135 = vmul.f32 %v9089, 1.442695
      %v9136 = vpow.pop %v9135
      %v9137 = vmul.f32 %v9092, 1.442695
      %v9138 = vpow.pop %v9137
      %v9139 = vmul.f32 %v9097, 1.442695
      %v9140 = vpow.pop %v9139
      %v9141 = vmul.f32 %v9100, 1.442695
      %v9142 = vpow.pop %v9141
      %v9143 = vmin.f32 %v9128, 1e+08
      %v9144 = vmin.f32 %v9130, 1e+08
      %v9145 = vmin.f32 %v9132, 1e+08
      %v9146 = vmin.f32 %v9134, 1e+08
      %v9147 = vmin.f32 %v9136, 1e+08
      %v9148 = vmin.f32 %v9138, 1e+08
      %v9149 = vmin.f32 %v9140, 1e+08
      %v9150 = vmin.f32 %v9142, 1e+08
      %9152 = vset.pattern.permute.xlu0 0
      %9153 = vperm.xlu0 %9152, %v9073
      %v9154 = vpop.permute.xlu0 %9153
      %9157 = vset.pattern.permute.xlu0 0
      %9158 = vperm.xlu0 %9157, %v9076
      %v9159 = vpop.permute.xlu0 %9158
      %9162 = vset.pattern.permute.xlu0 0
      %9163 = vperm.xlu0 %9162, %v9081
      %v9164 = vpop.permute.xlu0 %9163
      %9167 = vset.pattern.permute.xlu0 0
      %9168 = vperm.xlu0 %9167, %v9084
      %v9169 = vpop.permute.xlu0 %9168
      %9172 = vset.pattern.permute.xlu0 0
      %9173 = vperm.xlu0 %9172, %v9089
      %v9174 = vpop.permute.xlu0 %9173
      %9177 = vset.pattern.permute.xlu0 0
      %9178 = vperm.xlu0 %9177, %v9092
      %v9179 = vpop.permute.xlu0 %9178
      %9182 = vset.pattern.permute.xlu0 0
      %9183 = vperm.xlu0 %9182, %v9097
      %v9184 = vpop.permute.xlu0 %9183
      %9187 = vset.pattern.permute.xlu0 0
      %9188 = vperm.xlu0 %9187, %v9100
      %v9189 = vpop.permute.xlu0 %9188
      %v9191 = vadd.f32 %v4138, %v9154
      %v9192 = vadd.f32 %v4141, %v9159
      %v9193 = vadd.f32 %v4146, %v9164
      %v9194 = vadd.f32 %v4149, %v9169
      %v9195 = vadd.f32 %v4154, %v9174
      %v9196 = vadd.f32 %v4157, %v9179
      %v9197 = vadd.f32 %v4162, %v9184
      %v9198 = vadd.f32 %v4165, %v9189
      %v9199 = vadd.f32 %v9119, 1.0
      %v9200 = vadd.f32 %v9120, 1.0
      %v9201 = vadd.f32 %v9121, 1.0
      %v9202 = vadd.f32 %v9122, 1.0
      %v9203 = vadd.f32 %v9123, 1.0
      %v9204 = vadd.f32 %v9124, 1.0
      %v9205 = vadd.f32 %v9125, 1.0
      %v9206 = vadd.f32 %v9126, 1.0
      %9208 = vset.pattern.permute.xlu0 0
      %9209 = vperm.xlu0 %9208, %v9143
      %v9210 = vpop.permute.xlu0 %9209
      %9213 = vset.pattern.permute.xlu0 0
      %9214 = vperm.xlu0 %9213, %v9144
      %v9215 = vpop.permute.xlu0 %9214
      %9218 = vset.pattern.permute.xlu0 0
      %9219 = vperm.xlu0 %9218, %v9145
      %v9220 = vpop.permute.xlu0 %9219
      %9223 = vset.pattern.permute.xlu0 0
      %9224 = vperm.xlu0 %9223, %v9146
      %v9225 = vpop.permute.xlu0 %9224
      %9228 = vset.pattern.permute.xlu0 0
      %9229 = vperm.xlu0 %9228, %v9147
      %v9230 = vpop.permute.xlu0 %9229
      %9233 = vset.pattern.permute.xlu0 0
      %9234 = vperm.xlu0 %9233, %v9148
      %v9235 = vpop.permute.xlu0 %9234
      %9238 = vset.pattern.permute.xlu0 0
      %9239 = vperm.xlu0 %9238, %v9149
      %v9240 = vpop.permute.xlu0 %9239
      %9243 = vset.pattern.permute.xlu0 0
      %9244 = vperm.xlu0 %9243, %v9150
      %v9245 = vpop.permute.xlu0 %9244
      %v9247 = vadd.f32 %v9199, %v9210
      %v9248 = vadd.f32 %v9200, %v9215
      %v9249 = vadd.f32 %v9201, %v9220
      %v9250 = vadd.f32 %v9202, %v9225
      %v9251 = vadd.f32 %v9203, %v9230
      %v9252 = vadd.f32 %v9204, %v9235
      %v9253 = vadd.f32 %v9205, %v9240
      %v9254 = vadd.f32 %v9206, %v9245
      %v9255 = vlog2.pop %v9247
      %v9256 = vmul.f32 %v9255, 0.6931472
      %v9257 = vlog2.pop %v9248
      %v9258 = vmul.f32 %v9257, 0.6931472
      %v9259 = vlog2.pop %v9249
      %v9260 = vmul.f32 %v9259, 0.6931472
      %v9261 = vlog2.pop %v9250
      %v9262 = vmul.f32 %v9261, 0.6931472
      %v9263 = vlog2.pop %v9251
      %v9264 = vmul.f32 %v9263, 0.6931472
      %v9265 = vlog2.pop %v9252
      %v9266 = vmul.f32 %v9265, 0.6931472
      %v9267 = vlog2.pop %v9253
      %v9268 = vmul.f32 %v9267, 0.6931472
      %v9269 = vlog2.pop %v9254
      %v9270 = vmul.f32 %v9269, 0.6931472
      %v9271 = vsub.f32 %v9191, %v9256
      %v9272 = vsub.f32 %v9192, %v9258
      %v9273 = vsub.f32 %v9193, %v9260
      %v9274 = vsub.f32 %v9194, %v9262
      %v9275 = vsub.f32 %v9195, %v9264
      %v9276 = vsub.f32 %v9196, %v9266
      %v9277 = vsub.f32 %v9197, %v9268
      %v9278 = vsub.f32 %v9198, %v9270
      %9279 = vrot.lane.b32.xlu0 %v9073, 7
      %v9280 = vpop.permute.xlu0 %9279
      %9281 = vrot.lane.b32.xlu0 %v9076, 7
      %v9282 = vpop.permute.xlu0 %9281
      %9283 = vrot.lane.b32.xlu0 %v9081, 7
      %v9284 = vpop.permute.xlu0 %9283
      %9285 = vrot.lane.b32.xlu0 %v9084, 7
      %v9286 = vpop.permute.xlu0 %9285
      %9287 = vrot.lane.b32.xlu0 %v9089, 7
      %v9288 = vpop.permute.xlu0 %9287
      %9289 = vrot.lane.b32.xlu0 %v9092, 7
      %v9290 = vpop.permute.xlu0 %9289
      %9291 = vrot.lane.b32.xlu0 %v9097, 7
      %v9292 = vpop.permute.xlu0 %9291
      %9293 = vrot.lane.b32.xlu0 %v9100, 7
      %v9294 = vpop.permute.xlu0 %9293
      %vm9303 = vcmask 64512
      %v9304 = vsel %vm9303, %v9271, %v9280
      %v9305 = vsel %vm9303, %v9272, %v9282
      %v9306 = vsel %vm9303, %v9273, %v9284
      %v9307 = vsel %vm9303, %v9274, %v9286
      %v9308 = vsel %vm9303, %v9275, %v9288
      %v9309 = vsel %vm9303, %v9276, %v9290
      %v9310 = vsel %vm9303, %v9277, %v9292
      %v9311 = vsel %vm9303, %v9278, %v9294
      %vm9312 = vcmask 97280
      %9313 = vst.msk [vmem:[%s386] sm:$0xff] %vm9312, %v9304
      %9314 = vst.msk [vmem:[%s386 + $0x8] sm:$0xff] %vm9312, %v9305
      %9315 = vst.msk [vmem:[%s386 + $0x10] sm:$0xff] %vm9312, %v9306
      %9316 = vst.msk [vmem:[%s386 + $0x18] sm:$0xff] %vm9312, %v9307
      %9317 = vst.msk [vmem:[%s386 + $0x20] sm:$0xff] %vm9312, %v9308
      %9318 = vst.msk [vmem:[%s386 + $0x28] sm:$0xff] %vm9312, %v9309
      %9319 = vst.msk [vmem:[%s386 + $0x30] sm:$0xff] %vm9312, %v9310
      %9320 = vst.msk [vmem:[%s386 + $0x38] sm:$0xff] %vm9312, %v9311
      %p9321 = scmp.lt.s32.totalorder %s22, 1
      %s9322 = scalar_select %p9321, %s22, 1
      %s9323 = smul.addr %s9322, 8
      %s9324 = smul.addr %s9323, 8
      %s9325 = scalar_lea.vmem %s11, %s9324
      // Predicated region
      $region65: #{decoupled_head_forward.1} parent=63 // pred_check
        %p9326 = pneg %p276
      $region66: #{decoupled_head_forward.1} parent=63 // pred_check_branch
        %9328 = sbr.rel (%p9326) target = $region68
      $region67: #{decoupled_head_forward.1} parent=63 // pred_region
        _
      $region68: #{decoupled_head_forward.1} parent=63 // pred_fallthru
        _
    $region64: #{decoupled_head_forward.1} parent=5 // pred_fallthru
      _
    %p9329 = scmp.le.s32.totalorder 2, %s17
    // Predicated region
    $region69: #{decoupled_head_forward.1} parent=5 // pred_check
      %p9330 = pneg %p9329
    $region70: #{decoupled_head_forward.1} parent=5 // pred_check_branch
      %9332 = sbr.rel (%p9330) target = $region72
    $region71: #{decoupled_head_forward.1} parent=5 // pred_region
      %s9333 = ssub.s32 %s17, 2
      // Predicated region
      $region73: #{decoupled_head_forward.1} parent=71 // pred_check
        %p9334 = pneg %p282
      $region74: #{decoupled_head_forward.1} parent=71 // pred_check_branch
        %9336 = sbr.rel (%p9334) target = $region76
      $region75: #{decoupled_head_forward.1} parent=71 // pred_region
        %p9337 = scmp.lt.s32.totalorder %s23, 1
        %s9338 = scalar_select %p9337, %s23, 1
        %s9339 = smul.addr %s9338, 8
        %s9340 = smul.addr %s9339, 8
        %s9341 = scalar_lea.vmem %s11, %s9340
      $region76: #{decoupled_head_forward.1} parent=71 // pred_fallthru
        _
    $region72: #{decoupled_head_forward.1} parent=5 // pred_fallthru
      _
  $region6: #{decoupled_head_forward.1} parent=0 // loop_footer
    %s21 = sadd.s32 1, %s17
  $region7: #{decoupled_head_forward.1} parent=0 // loop_footer_branch
    %16 = sbr.rel target = $region3
  $region8: #{decoupled_head_forward.1} parent=0 // loop_exit
    _

</llo_original>
